<compile_context>
chip_gen: v7x
topology: tpu7x:2x2x1
jax: 0.10.0
libtpu: 0.0.40
codegen_flags: <defaults>
</compile_context>

<pallas_src>
import jax
import jax.numpy as jnp
from jax import lax
from jax.experimental import pallas as pl
from jax.experimental.pallas import tpu as pltpu


# ----------------------------------------------------------------------------
# Constant-matrix builders (run in the wrapper, constant-folded under jit)
# ----------------------------------------------------------------------------
def _shift_matrix(h, w, dy, dx, stride=1, dtype=jnp.float32):
    """(h*w, (h//s)*(w//s)) 0/1 matrix: out[:, q] = in[:, stride*q + (dy,dx)]."""
    ho, wo = h // stride, w // stride
    yo = jnp.arange(ho)
    xo = jnp.arange(wo)
    ys = stride * yo + dy
    xs = stride * xo + dx
    valid = ((ys >= 0) & (ys < h))[:, None] & ((xs >= 0) & (xs < w))[None, :]
    src = jnp.clip(ys, 0, h - 1)[:, None] * w + jnp.clip(xs, 0, w - 1)[None, :]
    src = src.reshape(-1)
    valid = valid.reshape(-1)
    mat = (jnp.arange(h * w)[:, None] == src[None, :]) & valid[None, :]
    return mat.astype(dtype)


def _tap_matrices(h, w, stride=1, dtype=jnp.float32):
    """Stack of the 9 shift(+stride) matrices, tap order t = kh*3 + kw."""
    return jnp.stack([_shift_matrix(h, w, kh - 1, kw - 1, stride, dtype)
                      for kh in range(3) for kw in range(3)], axis=0)


def _interleave_matrices(h, w, dtype=jnp.float32):
    """(4, h*w, 4*h*w) scatter matrices: phase p=oy*2+ox -> (2h, 2w) positions."""
    q = jnp.arange(h * w)
    m, n = q // w, q % w
    mats = []
    for oy in range(2):
        for ox in range(2):
            big = (2 * m + oy) * (2 * w) + (2 * n + ox)
            mats.append((big[:, None] == jnp.arange(4 * h * w)[None, :]).astype(dtype))
    return jnp.stack(mats, axis=0)


def _im2col_3x3(x):
    """(N, C, H, W) -> (N, 9*C, H*W) patch rows, tap-major (t = kh*3 + kw)."""
    N, C, H, W = x.shape
    xp = jnp.pad(x, ((0, 0), (0, 0), (1, 1), (1, 1)))
    cols = [xp[:, :, kh:kh + H, kw:kw + W] for kh in range(3) for kw in range(3)]
    return jnp.stack(cols, axis=1).reshape(N, 9 * C, H * W)


def _dw_dense(w_dw):
    """Depthwise Conv2d weight (C,1,3,3) -> dense (C, 9*C) matrix for im2col rows."""
    C = w_dw.shape[0]
    w = w_dw[:, 0].reshape(C, 9)
    out = jnp.zeros((C, 9 * C), w_dw.dtype)
    for t in range(9):
        out = out.at[:, t * C:(t + 1) * C].set(jnp.diag(w[:, t]))
    return out


def _dw_taps(w_dw):
    """Depthwise Conv2d weight (C,1,3,3) -> per-tap per-channel (9, C, 1)."""
    C = w_dw.shape[0]
    return jnp.transpose(w_dw[:, 0].reshape(C, 9), (1, 0)).reshape(9, C, 1)


def _deconv_weight(w_pt):
    """PyTorch ConvTranspose2d weight (Cin, Cout, 4, 4) -> (4*Cout, 9*Cin).

    Row p*Cout+o, col t*Cin+i (t = r*3+c) is the weight applied to
    x[i, m+r-1, n+c-1] when producing out[o, 2m+oy, 2n+ox], phase p = oy*2+ox
    (4-phase subpixel decomposition of ConvTranspose2d(k=4, s=2, p=1)).
    """
    Cin, Cout = w_pt.shape[0], w_pt.shape[1]
    wt = jnp.zeros((3, 3, Cin, 4 * Cout), w_pt.dtype)
    for r in range(3):
        for c in range(3):
            for oy in range(2):
                for ox in range(2):
                    if oy <= r <= oy + 1 and ox <= c <= ox + 1:
                        kh, kw = 3 + oy - 2 * r, 3 + ox - 2 * c
                        p = oy * 2 + ox
                        wt = wt.at[r, c, :, p * Cout:(p + 1) * Cout].set(
                            w_pt[:, :, kh, kw])
    w2 = wt.reshape(9, Cin, 4 * Cout)
    return jnp.transpose(w2, (2, 0, 1)).reshape(4 * Cout, 9 * Cin)


# ----------------------------------------------------------------------------
# Fully-fused forward pass (NCHW in / NCHW out, like the PyTorch module)
# ----------------------------------------------------------------------------
def lightweight_semantic_branch(x_nchw, params):
    f32, bf16 = jnp.float32, jnp.bfloat16
    N, Cin0, H, W = x_nchw.shape
    if H % 4 or W % 4:
        # TODO(synk): F.interpolate fallback for non-divisible spatial sizes.
        raise ValueError("H and W must be divisible by 4")
    mid = params["ds1"]["pw_w"].shape[0]
    out_c = params["ds3"]["pw_w"].shape[0]
    h2, w2, h4, w4 = H // 2, W // 2, H // 4, W // 4
    HW = H * W

    cv = lambda v: v.reshape(-1, 1).astype(f32)           # BN params -> (C, 1)

    # ---- constants / folded weights --------------------------------------
    xcol = _im2col_3x3(x_nchw).astype(f32)                 # (N, 9*Cin0, HW)
    wdw1 = _dw_dense(params["ds1"]["dw_w"]).astype(f32)    # (Cin0, 9*Cin0)
    pw1 = params["ds1"]["pw_w"][:, :, 0, 0].astype(bf16)   # (mid, Cin0)
    dw2 = _dw_taps(params["ds2"]["dw_w"]).astype(f32)      # (9, mid, 1)
    S2 = _tap_matrices(H, W, stride=2)                     # (9, HW, HW/4)
    pw2 = params["ds2"]["pw_w"][:, :, 0, 0].astype(bf16)   # (mid, mid)
    dw3 = _dw_taps(params["ds3"]["dw_w"]).astype(f32)      # (9, mid, 1)
    S3 = _tap_matrices(h2, w2, stride=2)                   # (9, HW/4, HW/16)
    pw3 = params["ds3"]["pw_w"][:, :, 0, 0].astype(bf16)   # (out_c, mid)
    Sd1 = _tap_matrices(h4, w4, stride=1)                  # (9, HW/16, HW/16)
    wd1 = _deconv_weight(params["ct1_w"]).astype(bf16)     # (4*mid, 9*out_c)
    Pd1 = _interleave_matrices(h4, w4)                     # (4, HW/16, HW/4)
    Sd2 = _tap_matrices(h2, w2, stride=1)                  # (9, HW/4, HW/4)
    wd2 = _deconv_weight(params["ct2_w"]).astype(bf16)     # (4*out_c, 9*mid)
    Pd2 = _interleave_matrices(h2, w2)                     # (4, HW/4, HW)

    p1, p2, p3 = params["ds1"], params["ds2"], params["ds3"]
    weight_args = [
        wdw1, cv(p1["bn1_scale"]), cv(p1["bn1_bias"]),
        pw1, cv(p1["bn2_scale"]), cv(p1["bn2_bias"]),
        dw2, S2, cv(p2["bn1_scale"]), cv(p2["bn1_bias"]),
        pw2, cv(p2["bn2_scale"]), cv(p2["bn2_bias"]),
        dw3, S3, cv(p3["bn1_scale"]), cv(p3["bn1_bias"]),
        pw3, cv(p3["bn2_scale"]), cv(p3["bn2_bias"]),
        Sd1, wd1, Pd1, cv(params["ct1_scale"]), cv(params["ct1_bias"]),
        Sd2, wd2, Pd2, cv(params["ct2_scale"]), cv(params["ct2_bias"]),
    ]

    def kernel(xcol_ref,
               wdw1_ref, s1a, b1a, pw1_ref, s1b, b1b,
               dw2_ref, S2_ref, s2a, b2a, pw2_ref, s2b, b2b,
               dw3_ref, S3_ref, s3a, b3a, pw3_ref, s3b, b3b,
               Sd1_ref, wd1_ref, Pd1_ref, s4, b4,
               Sd2_ref, wd2_ref, Pd2_ref, s5, b5,
               o_ref):

        def bn_relu(v, s, b):                               # folded BN + ReLU
            return jnp.maximum(v * s[...] + b[...], 0.0)

        def pointwise(w_ref, act):                          # 1x1 conv on the MXU
            return jnp.dot(w_ref[...], act.astype(bf16),
                           preferred_element_type=f32)

        def depthwise(act, S_ref, w_ref):                   # 3x3 DW (+stride-2)
            acc = None
            for t in range(9):                              # static, unrolled
                term = w_ref[t] * jnp.dot(act, S_ref[t],
                                          preferred_element_type=f32)
                acc = term if acc is None else acc + term
            return acc

        def deconv(act, S_ref, w_ref, P_ref, cout):         # ConvT(4,2,1)
            cols = [jnp.dot(act, S_ref[t], preferred_element_type=f32)
                    for t in range(9)]                       # tap gather (exact)
            col = jnp.concatenate(cols, axis=0).astype(bf16)  # (9*Cin, hw)
            phases = jnp.dot(w_ref[...], col,
                             preferred_element_type=f32)      # (4*Cout, hw)
            full = None
            for p in range(4):                               # subpixel interleave
                term = jnp.dot(phases[p * cout:(p + 1) * cout, :], P_ref[p],
                               preferred_element_type=f32)
                full = term if full is None else full + term
            return full                                      # (Cout, 4*hw)

        # ---- encoder: 3 x (depthwise + BN + ReLU + pointwise + BN + ReLU) ----
        a = jnp.dot(wdw1_ref[...], xcol_ref[0], preferred_element_type=f32)
        a = bn_relu(a, s1a, b1a)
        a = bn_relu(pointwise(pw1_ref, a), s1b, b1b)          # (mid,   HW)

        a = bn_relu(depthwise(a, S2_ref, dw2_ref), s2a, b2a)
        a = bn_relu(pointwise(pw2_ref, a), s2b, b2b)          # (mid,   HW/4)

        a = bn_relu(depthwise(a, S3_ref, dw3_ref), s3a, b3a)
        a = bn_relu(pointwise(pw3_ref, a), s3b, b3b)          # (out_c, HW/16)

        # ---- decoder: 2 x (ConvTranspose2d(4,2,1) + BN + ReLU) ----
        a = bn_relu(deconv(a, Sd1_ref, wd1_ref, Pd1_ref, mid), s4, b4)     # HW/4
        a = bn_relu(deconv(a, Sd2_ref, wd2_ref, Pd2_ref, out_c), s5, b5)   # HW

        o_ref[0] = a.astype(o_ref.dtype)                      # lane-dense store

    in_specs = [pl.BlockSpec((1, 9 * Cin0, HW), lambda n: (n, 0, 0))]
    in_specs += [pl.BlockSpec(a.shape, lambda n, _k=a.ndim: (0,) * _k)
                 for a in weight_args]

    out = pl.pallas_call(
        kernel,
        out_shape=jax.ShapeDtypeStruct((N, out_c, HW), x_nchw.dtype),
        grid=(N,),
        in_specs=in_specs,
        out_specs=pl.BlockSpec((1, out_c, HW), lambda n: (n, 0, 0)),
        compiler_params=pltpu.CompilerParams(
            dimension_semantics=("parallel",),
            vmem_limit_bytes=32 * 1024 * 1024),
    )(xcol, *weight_args)

    return out.reshape(N, out_c, H, W)                        # already NCHW


# ----------------------------------------------------------------------------
# Pure-XLA reference (for the built-in numerical check only)
# ----------------------------------------------------------------------------
def reference_forward(x_nchw, params):
    def conv(x, w, stride=1, padding=0, groups=1, lhs_dilation=1):
        return lax.conv_general_dilated(
            x, w, window_strides=(stride, stride),
            padding=((padding, padding), (padding, padding)),
            lhs_dilation=(lhs_dilation, lhs_dilation),
            dimension_numbers=("NCHW", "OIHW", "NCHW"),
            feature_group_count=groups)

    def bn_relu(x, scale, bias):
        return jnp.maximum(
            x * scale.reshape(1, -1, 1, 1) + bias.reshape(1, -1, 1, 1), 0.0)

    def ds(x, p, stride):
        cin = x.shape[1]
        x = bn_relu(conv(x, p["dw_w"], stride=stride, padding=1, groups=cin),
                    p["bn1_scale"], p["bn1_bias"])
        return bn_relu(conv(x, p["pw_w"]), p["bn2_scale"], p["bn2_bias"])

    def deconv(x, w_pt, scale, bias):
        w = jnp.transpose(jnp.flip(w_pt, axis=(2, 3)), (1, 0, 2, 3))
        return bn_relu(conv(x, w, padding=2, lhs_dilation=2), scale, bias)

    h = ds(x_nchw, params["ds1"], 1)
    h = ds(h, params["ds2"], 2)
    h = ds(h, params["ds3"], 2)
    h = deconv(h, params["ct1_w"], params["ct1_scale"], params["ct1_bias"])
    h = deconv(h, params["ct2_w"], params["ct2_scale"], params["ct2_bias"])
    return h


# ----------------------------------------------------------------------------
# Deterministic synthetic parameters (PyTorch shapes, BN folded to scale/bias)
# ----------------------------------------------------------------------------
def init_params(key, semantic_channels=16):
    out_c = semantic_channels
    mid_c = out_c // 2
    keys = iter(jax.random.split(key, 64))

    def nrm(shape, s=0.1):
        return (s * jax.random.normal(next(keys), shape)).astype(jnp.float32)

    def bn(C):
        gamma = 1.0 + 0.1 * jax.random.normal(next(keys), (C,))
        beta = 0.05 * jax.random.normal(next(keys), (C,))
        rmean = 0.05 * jax.random.normal(next(keys), (C,))
        rvar = 1.0 + 0.2 * jax.random.uniform(next(keys), (C,))
        scale = gamma / jnp.sqrt(rvar + 1e-5)
        bias = beta - rmean * scale
        return scale.astype(jnp.float32), bias.astype(jnp.float32)

    def ds(cin, cout):
        s1, b1 = bn(cin)
        s2, b2 = bn(cout)
        return {
            "dw_w": nrm((cin, 1, 3, 3)),        # depthwise Conv2d weight
            "bn1_scale": s1, "bn1_bias": b1,
            "pw_w": nrm((cout, cin, 1, 1)),     # pointwise Conv2d weight
            "bn2_scale": s2, "bn2_bias": b2,
        }

    p = {
        "ds1": ds(3, mid_c),
        "ds2": ds(mid_c, mid_c),
        "ds3": ds(mid_c, out_c),
        "ct1_w": nrm((out_c, mid_c, 4, 4)),     # ConvTranspose2d weight
        "ct2_w": nrm((mid_c, out_c, 4, 4)),
    }
    p["ct1_scale"], p["ct1_bias"] = bn(mid_c)
    p["ct2_scale"], p["ct2_bias"] = bn(out_c)
    return p


# ----------------------------------------------------------------------------
if __name__ == "__main__":
    SEMANTIC_CHANNELS = 16
    key = jax.random.PRNGKey(0)
    pkey, xkey = jax.random.split(key)

    params = init_params(pkey, semantic_channels=SEMANTIC_CHANNELS)
    x = jax.random.normal(xkey, (2, 3, 16, 16), dtype=jnp.float32)   # NCHW

    fwd = jax.jit(lambda xin: lightweight_semantic_branch(xin, params))
    out = jax.block_until_ready(fwd(x))

    assert out.shape == (2, SEMANTIC_CHANNELS, 16, 16), out.shape
    assert bool(jnp.all(jnp.isfinite(out)))
    assert bool(jnp.all(out >= 0.0))            # final ReLU

    # Numerical cross-check against a pure-XLA reference (bf16 MXU tolerance).
    ref = jax.jit(lambda xin: reference_forward(xin, params))(x)
    max_err = float(jnp.max(jnp.abs(out - ref)))
    assert max_err < 2e-2, f"max abs error vs reference: {max_err}"

    print("KERNEL_OK")
</pallas_src>

<mosaic_0001>
module attributes {stable_mosaic.version = 11 : i64} {
  func.func @kernel(%arg0: i32, %arg1: memref<1x27x256xf32, #tpu.memory_space<vmem>>, %arg2: memref<3x27xf32, #tpu.memory_space<vmem>>, %arg3: memref<3x1xf32, #tpu.memory_space<vmem>>, %arg4: memref<3x1xf32, #tpu.memory_space<vmem>>, %arg5: memref<8x3xbf16, #tpu.memory_space<vmem>>, %arg6: memref<8x1xf32, #tpu.memory_space<vmem>>, %arg7: memref<8x1xf32, #tpu.memory_space<vmem>>, %arg8: memref<9x8x1xf32, #tpu.memory_space<vmem>>, %arg9: memref<9x256x64xf32, #tpu.memory_space<vmem>>, %arg10: memref<8x1xf32, #tpu.memory_space<vmem>>, %arg11: memref<8x1xf32, #tpu.memory_space<vmem>>, %arg12: memref<8x8xbf16, #tpu.memory_space<vmem>>, %arg13: memref<8x1xf32, #tpu.memory_space<vmem>>, %arg14: memref<8x1xf32, #tpu.memory_space<vmem>>, %arg15: memref<9x8x1xf32, #tpu.memory_space<vmem>>, %arg16: memref<9x64x16xf32, #tpu.memory_space<vmem>>, %arg17: memref<8x1xf32, #tpu.memory_space<vmem>>, %arg18: memref<8x1xf32, #tpu.memory_space<vmem>>, %arg19: memref<16x8xbf16, #tpu.memory_space<vmem>>, %arg20: memref<16x1xf32, #tpu.memory_space<vmem>>, %arg21: memref<16x1xf32, #tpu.memory_space<vmem>>, %arg22: memref<9x16x16xf32, #tpu.memory_space<vmem>>, %arg23: memref<32x144xbf16, #tpu.memory_space<vmem>>, %arg24: memref<4x16x64xf32, #tpu.memory_space<vmem>>, %arg25: memref<8x1xf32, #tpu.memory_space<vmem>>, %arg26: memref<8x1xf32, #tpu.memory_space<vmem>>, %arg27: memref<9x64x64xf32, #tpu.memory_space<vmem>>, %arg28: memref<64x72xbf16, #tpu.memory_space<vmem>>, %arg29: memref<4x64x256xf32, #tpu.memory_space<vmem>>, %arg30: memref<16x1xf32, #tpu.memory_space<vmem>>, %arg31: memref<16x1xf32, #tpu.memory_space<vmem>>, %arg32: memref<1x16x256xf32, #tpu.memory_space<vmem>>) attributes {dimension_semantics = [#tpu.dimension_semantics<parallel>], iteration_bounds = array<i64: 2>, scalar_prefetch = 0 : i64, scratch_operands = 0 : i64, tpu.core_type = #tpu.core_type<tc>, window_params = [{transform_indices = @transform_0, window_bounds = array<i64: 1, 27, 256>}, {pipeline_mode = #tpu.pipeline_mode<synchronous>, transform_indices = @transform_1, window_bounds = array<i64: 3, 27>}, {pipeline_mode = #tpu.pipeline_mode<synchronous>, transform_indices = @transform_2, window_bounds = array<i64: 3, 1>}, {pipeline_mode = #tpu.pipeline_mode<synchronous>, transform_indices = @transform_3, window_bounds = array<i64: 3, 1>}, {pipeline_mode = #tpu.pipeline_mode<synchronous>, transform_indices = @transform_4, window_bounds = array<i64: 8, 3>}, {pipeline_mode = #tpu.pipeline_mode<synchronous>, transform_indices = @transform_5, window_bounds = array<i64: 8, 1>}, {pipeline_mode = #tpu.pipeline_mode<synchronous>, transform_indices = @transform_6, window_bounds = array<i64: 8, 1>}, {pipeline_mode = #tpu.pipeline_mode<synchronous>, transform_indices = @transform_7, window_bounds = array<i64: 9, 8, 1>}, {pipeline_mode = #tpu.pipeline_mode<synchronous>, transform_indices = @transform_8, window_bounds = array<i64: 9, 256, 64>}, {pipeline_mode = #tpu.pipeline_mode<synchronous>, transform_indices = @transform_9, window_bounds = array<i64: 8, 1>}, {pipeline_mode = #tpu.pipeline_mode<synchronous>, transform_indices = @transform_10, window_bounds = array<i64: 8, 1>}, {pipeline_mode = #tpu.pipeline_mode<synchronous>, transform_indices = @transform_11, window_bounds = array<i64: 8, 8>}, {pipeline_mode = #tpu.pipeline_mode<synchronous>, transform_indices = @transform_12, window_bounds = array<i64: 8, 1>}, {pipeline_mode = #tpu.pipeline_mode<synchronous>, transform_indices = @transform_13, window_bounds = array<i64: 8, 1>}, {pipeline_mode = #tpu.pipeline_mode<synchronous>, transform_indices = @transform_14, window_bounds = array<i64: 9, 8, 1>}, {pipeline_mode = #tpu.pipeline_mode<synchronous>, transform_indices = @transform_15, window_bounds = array<i64: 9, 64, 16>}, {pipeline_mode = #tpu.pipeline_mode<synchronous>, transform_indices = @transform_16, window_bounds = array<i64: 8, 1>}, {pipeline_mode = #tpu.pipeline_mode<synchronous>, transform_indices = @transform_17, window_bounds = array<i64: 8, 1>}, {pipeline_mode = #tpu.pipeline_mode<synchronous>, transform_indices = @transform_18, window_bounds = array<i64: 16, 8>}, {pipeline_mode = #tpu.pipeline_mode<synchronous>, transform_indices = @transform_19, window_bounds = array<i64: 16, 1>}, {pipeline_mode = #tpu.pipeline_mode<synchronous>, transform_indices = @transform_20, window_bounds = array<i64: 16, 1>}, {pipeline_mode = #tpu.pipeline_mode<synchronous>, transform_indices = @transform_21, window_bounds = array<i64: 9, 16, 16>}, {pipeline_mode = #tpu.pipeline_mode<synchronous>, transform_indices = @transform_22, window_bounds = array<i64: 32, 144>}, {pipeline_mode = #tpu.pipeline_mode<synchronous>, transform_indices = @transform_23, window_bounds = array<i64: 4, 16, 64>}, {pipeline_mode = #tpu.pipeline_mode<synchronous>, transform_indices = @transform_24, window_bounds = array<i64: 8, 1>}, {pipeline_mode = #tpu.pipeline_mode<synchronous>, transform_indices = @transform_25, window_bounds = array<i64: 8, 1>}, {pipeline_mode = #tpu.pipeline_mode<synchronous>, transform_indices = @transform_26, window_bounds = array<i64: 9, 64, 64>}, {pipeline_mode = #tpu.pipeline_mode<synchronous>, transform_indices = @transform_27, window_bounds = array<i64: 64, 72>}, {pipeline_mode = #tpu.pipeline_mode<synchronous>, transform_indices = @transform_28, window_bounds = array<i64: 4, 64, 256>}, {pipeline_mode = #tpu.pipeline_mode<synchronous>, transform_indices = @transform_29, window_bounds = array<i64: 16, 1>}, {pipeline_mode = #tpu.pipeline_mode<synchronous>, transform_indices = @transform_30, window_bounds = array<i64: 16, 1>}, {transform_indices = @transform_31, window_bounds = array<i64: 1, 16, 256>}]} {
    %c0 = arith.constant 0 : index
    %c0_0 = arith.constant 0 : index
    %0 = vector.load %arg2[%c0, %c0_0] : memref<3x27xf32, #tpu.memory_space<vmem>>, vector<3x27xf32>
    %c0_1 = arith.constant 0 : index
    %c0_2 = arith.constant 0 : index
    %c0_3 = arith.constant 0 : index
    %1 = vector.load %arg1[%c0_1, %c0_2, %c0_3] : memref<1x27x256xf32, #tpu.memory_space<vmem>>, vector<1x27x256xf32>
    %2 = vector.shape_cast %1 : vector<1x27x256xf32> to vector<27x256xf32>
    %cst = arith.constant dense<0.000000e+00> : vector<3x256xf32>
    %3 = tpu.matmul %0, %2, %cst {dimension_numbers = #tpu.dot_dimension_numbers<[1], [0], [0], [1], [0, 0, 1, 1], [], []>} : vector<3x27xf32>, vector<27x256xf32>, vector<3x256xf32> -> vector<3x256xf32>
    %c0_4 = arith.constant 0 : index
    %c0_5 = arith.constant 0 : index
    %4 = vector.load %arg3[%c0_4, %c0_5] : memref<3x1xf32, #tpu.memory_space<vmem>>, vector<3x1xf32>
    %5 = vector.broadcast %4 : vector<3x1xf32> to vector<3x256xf32>
    %6 = arith.mulf %3, %5 : vector<3x256xf32>
    %c0_6 = arith.constant 0 : index
    %c0_7 = arith.constant 0 : index
    %7 = vector.load %arg4[%c0_6, %c0_7] : memref<3x1xf32, #tpu.memory_space<vmem>>, vector<3x1xf32>
    %8 = vector.broadcast %7 : vector<3x1xf32> to vector<3x256xf32>
    %9 = arith.addf %6, %8 : vector<3x256xf32>
    %cst_8 = arith.constant 0.000000e+00 : f32
    %10 = vector.broadcast %cst_8 : f32 to vector<3x256xf32>
    %11 = arith.maximumf %9, %10 : vector<3x256xf32>
    %c0_9 = arith.constant 0 : index
    %c0_10 = arith.constant 0 : index
    %12 = vector.load %arg5[%c0_9, %c0_10] : memref<8x3xbf16, #tpu.memory_space<vmem>>, vector<8x3xbf16>
    %13 = arith.truncf %11 : vector<3x256xf32> to vector<3x256xbf16>
    %cst_11 = arith.constant dense<0.000000e+00> : vector<8x256xf32>
    %14 = tpu.matmul %12, %13, %cst_11 {dimension_numbers = #tpu.dot_dimension_numbers<[1], [0], [0], [1], [0, 0, 1, 1], [], []>} : vector<8x3xbf16>, vector<3x256xbf16>, vector<8x256xf32> -> vector<8x256xf32>
    %c0_12 = arith.constant 0 : index
    %c0_13 = arith.constant 0 : index
    %15 = vector.load %arg6[%c0_12, %c0_13] : memref<8x1xf32, #tpu.memory_space<vmem>>, vector<8x1xf32>
    %16 = vector.broadcast %15 : vector<8x1xf32> to vector<8x256xf32>
    %17 = arith.mulf %14, %16 : vector<8x256xf32>
    %c0_14 = arith.constant 0 : index
    %c0_15 = arith.constant 0 : index
    %18 = vector.load %arg7[%c0_14, %c0_15] : memref<8x1xf32, #tpu.memory_space<vmem>>, vector<8x1xf32>
    %19 = vector.broadcast %18 : vector<8x1xf32> to vector<8x256xf32>
    %20 = arith.addf %17, %19 : vector<8x256xf32>
    %cst_16 = arith.constant 0.000000e+00 : f32
    %21 = vector.broadcast %cst_16 : f32 to vector<8x256xf32>
    %22 = arith.maximumf %20, %21 : vector<8x256xf32>
    %c0_17 = arith.constant 0 : index
    %c0_18 = arith.constant 0 : index
    %c0_19 = arith.constant 0 : index
    %23 = vector.load %arg8[%c0_17, %c0_18, %c0_19] : memref<9x8x1xf32, #tpu.memory_space<vmem>>, vector<1x8x1xf32>
    %24 = vector.shape_cast %23 : vector<1x8x1xf32> to vector<8x1xf32>
    %c0_20 = arith.constant 0 : index
    %c0_21 = arith.constant 0 : index
    %c0_22 = arith.constant 0 : index
    %25 = vector.load %arg9[%c0_20, %c0_21, %c0_22] : memref<9x256x64xf32, #tpu.memory_space<vmem>>, vector<1x256x64xf32>
    %26 = vector.shape_cast %25 : vector<1x256x64xf32> to vector<256x64xf32>
    %cst_23 = arith.constant dense<0.000000e+00> : vector<8x64xf32>
    %27 = tpu.matmul %22, %26, %cst_23 {dimension_numbers = #tpu.dot_dimension_numbers<[1], [0], [0], [1], [0, 0, 1, 1], [], []>} : vector<8x256xf32>, vector<256x64xf32>, vector<8x64xf32> -> vector<8x64xf32>
    %28 = vector.broadcast %24 : vector<8x1xf32> to vector<8x64xf32>
    %29 = arith.mulf %28, %27 : vector<8x64xf32>
    %c1 = arith.constant 1 : index
    %c0_24 = arith.constant 0 : index
    %c0_25 = arith.constant 0 : index
    %30 = vector.load %arg8[%c1, %c0_24, %c0_25] : memref<9x8x1xf32, #tpu.memory_space<vmem>>, vector<1x8x1xf32>
    %31 = vector.shape_cast %30 : vector<1x8x1xf32> to vector<8x1xf32>
    %c1_26 = arith.constant 1 : index
    %c0_27 = arith.constant 0 : index
    %c0_28 = arith.constant 0 : index
    %32 = vector.load %arg9[%c1_26, %c0_27, %c0_28] : memref<9x256x64xf32, #tpu.memory_space<vmem>>, vector<1x256x64xf32>
    %33 = vector.shape_cast %32 : vector<1x256x64xf32> to vector<256x64xf32>
    %cst_29 = arith.constant dense<0.000000e+00> : vector<8x64xf32>
    %34 = tpu.matmul %22, %33, %cst_29 {dimension_numbers = #tpu.dot_dimension_numbers<[1], [0], [0], [1], [0, 0, 1, 1], [], []>} : vector<8x256xf32>, vector<256x64xf32>, vector<8x64xf32> -> vector<8x64xf32>
    %35 = vector.broadcast %31 : vector<8x1xf32> to vector<8x64xf32>
    %36 = arith.mulf %35, %34 : vector<8x64xf32>
    %37 = arith.addf %29, %36 : vector<8x64xf32>
    %c2 = arith.constant 2 : index
    %c0_30 = arith.constant 0 : index
    %c0_31 = arith.constant 0 : index
    %38 = vector.load %arg8[%c2, %c0_30, %c0_31] : memref<9x8x1xf32, #tpu.memory_space<vmem>>, vector<1x8x1xf32>
    %39 = vector.shape_cast %38 : vector<1x8x1xf32> to vector<8x1xf32>
    %c2_32 = arith.constant 2 : index
    %c0_33 = arith.constant 0 : index
    %c0_34 = arith.constant 0 : index
    %40 = vector.load %arg9[%c2_32, %c0_33, %c0_34] : memref<9x256x64xf32, #tpu.memory_space<vmem>>, vector<1x256x64xf32>
    %41 = vector.shape_cast %40 : vector<1x256x64xf32> to vector<256x64xf32>
    %cst_35 = arith.constant dense<0.000000e+00> : vector<8x64xf32>
    %42 = tpu.matmul %22, %41, %cst_35 {dimension_numbers = #tpu.dot_dimension_numbers<[1], [0], [0], [1], [0, 0, 1, 1], [], []>} : vector<8x256xf32>, vector<256x64xf32>, vector<8x64xf32> -> vector<8x64xf32>
    %43 = vector.broadcast %39 : vector<8x1xf32> to vector<8x64xf32>
    %44 = arith.mulf %43, %42 : vector<8x64xf32>
    %45 = arith.addf %37, %44 : vector<8x64xf32>
    %c3 = arith.constant 3 : index
    %c0_36 = arith.constant 0 : index
    %c0_37 = arith.constant 0 : index
    %46 = vector.load %arg8[%c3, %c0_36, %c0_37] : memref<9x8x1xf32, #tpu.memory_space<vmem>>, vector<1x8x1xf32>
    %47 = vector.shape_cast %46 : vector<1x8x1xf32> to vector<8x1xf32>
    %c3_38 = arith.constant 3 : index
    %c0_39 = arith.constant 0 : index
    %c0_40 = arith.constant 0 : index
    %48 = vector.load %arg9[%c3_38, %c0_39, %c0_40] : memref<9x256x64xf32, #tpu.memory_space<vmem>>, vector<1x256x64xf32>
    %49 = vector.shape_cast %48 : vector<1x256x64xf32> to vector<256x64xf32>
    %cst_41 = arith.constant dense<0.000000e+00> : vector<8x64xf32>
    %50 = tpu.matmul %22, %49, %cst_41 {dimension_numbers = #tpu.dot_dimension_numbers<[1], [0], [0], [1], [0, 0, 1, 1], [], []>} : vector<8x256xf32>, vector<256x64xf32>, vector<8x64xf32> -> vector<8x64xf32>
    %51 = vector.broadcast %47 : vector<8x1xf32> to vector<8x64xf32>
    %52 = arith.mulf %51, %50 : vector<8x64xf32>
    %53 = arith.addf %45, %52 : vector<8x64xf32>
    %c4 = arith.constant 4 : index
    %c0_42 = arith.constant 0 : index
    %c0_43 = arith.constant 0 : index
    %54 = vector.load %arg8[%c4, %c0_42, %c0_43] : memref<9x8x1xf32, #tpu.memory_space<vmem>>, vector<1x8x1xf32>
    %55 = vector.shape_cast %54 : vector<1x8x1xf32> to vector<8x1xf32>
    %c4_44 = arith.constant 4 : index
    %c0_45 = arith.constant 0 : index
    %c0_46 = arith.constant 0 : index
    %56 = vector.load %arg9[%c4_44, %c0_45, %c0_46] : memref<9x256x64xf32, #tpu.memory_space<vmem>>, vector<1x256x64xf32>
    %57 = vector.shape_cast %56 : vector<1x256x64xf32> to vector<256x64xf32>
    %cst_47 = arith.constant dense<0.000000e+00> : vector<8x64xf32>
    %58 = tpu.matmul %22, %57, %cst_47 {dimension_numbers = #tpu.dot_dimension_numbers<[1], [0], [0], [1], [0, 0, 1, 1], [], []>} : vector<8x256xf32>, vector<256x64xf32>, vector<8x64xf32> -> vector<8x64xf32>
    %59 = vector.broadcast %55 : vector<8x1xf32> to vector<8x64xf32>
    %60 = arith.mulf %59, %58 : vector<8x64xf32>
    %61 = arith.addf %53, %60 : vector<8x64xf32>
    %c5 = arith.constant 5 : index
    %c0_48 = arith.constant 0 : index
    %c0_49 = arith.constant 0 : index
    %62 = vector.load %arg8[%c5, %c0_48, %c0_49] : memref<9x8x1xf32, #tpu.memory_space<vmem>>, vector<1x8x1xf32>
    %63 = vector.shape_cast %62 : vector<1x8x1xf32> to vector<8x1xf32>
    %c5_50 = arith.constant 5 : index
    %c0_51 = arith.constant 0 : index
    %c0_52 = arith.constant 0 : index
    %64 = vector.load %arg9[%c5_50, %c0_51, %c0_52] : memref<9x256x64xf32, #tpu.memory_space<vmem>>, vector<1x256x64xf32>
    %65 = vector.shape_cast %64 : vector<1x256x64xf32> to vector<256x64xf32>
    %cst_53 = arith.constant dense<0.000000e+00> : vector<8x64xf32>
    %66 = tpu.matmul %22, %65, %cst_53 {dimension_numbers = #tpu.dot_dimension_numbers<[1], [0], [0], [1], [0, 0, 1, 1], [], []>} : vector<8x256xf32>, vector<256x64xf32>, vector<8x64xf32> -> vector<8x64xf32>
    %67 = vector.broadcast %63 : vector<8x1xf32> to vector<8x64xf32>
    %68 = arith.mulf %67, %66 : vector<8x64xf32>
    %69 = arith.addf %61, %68 : vector<8x64xf32>
    %c6 = arith.constant 6 : index
    %c0_54 = arith.constant 0 : index
    %c0_55 = arith.constant 0 : index
    %70 = vector.load %arg8[%c6, %c0_54, %c0_55] : memref<9x8x1xf32, #tpu.memory_space<vmem>>, vector<1x8x1xf32>
    %71 = vector.shape_cast %70 : vector<1x8x1xf32> to vector<8x1xf32>
    %c6_56 = arith.constant 6 : index
    %c0_57 = arith.constant 0 : index
    %c0_58 = arith.constant 0 : index
    %72 = vector.load %arg9[%c6_56, %c0_57, %c0_58] : memref<9x256x64xf32, #tpu.memory_space<vmem>>, vector<1x256x64xf32>
    %73 = vector.shape_cast %72 : vector<1x256x64xf32> to vector<256x64xf32>
    %cst_59 = arith.constant dense<0.000000e+00> : vector<8x64xf32>
    %74 = tpu.matmul %22, %73, %cst_59 {dimension_numbers = #tpu.dot_dimension_numbers<[1], [0], [0], [1], [0, 0, 1, 1], [], []>} : vector<8x256xf32>, vector<256x64xf32>, vector<8x64xf32> -> vector<8x64xf32>
    %75 = vector.broadcast %71 : vector<8x1xf32> to vector<8x64xf32>
    %76 = arith.mulf %75, %74 : vector<8x64xf32>
    %77 = arith.addf %69, %76 : vector<8x64xf32>
    %c7 = arith.constant 7 : index
    %c0_60 = arith.constant 0 : index
    %c0_61 = arith.constant 0 : index
    %78 = vector.load %arg8[%c7, %c0_60, %c0_61] : memref<9x8x1xf32, #tpu.memory_space<vmem>>, vector<1x8x1xf32>
    %79 = vector.shape_cast %78 : vector<1x8x1xf32> to vector<8x1xf32>
    %c7_62 = arith.constant 7 : index
    %c0_63 = arith.constant 0 : index
    %c0_64 = arith.constant 0 : index
    %80 = vector.load %arg9[%c7_62, %c0_63, %c0_64] : memref<9x256x64xf32, #tpu.memory_space<vmem>>, vector<1x256x64xf32>
    %81 = vector.shape_cast %80 : vector<1x256x64xf32> to vector<256x64xf32>
    %cst_65 = arith.constant dense<0.000000e+00> : vector<8x64xf32>
    %82 = tpu.matmul %22, %81, %cst_65 {dimension_numbers = #tpu.dot_dimension_numbers<[1], [0], [0], [1], [0, 0, 1, 1], [], []>} : vector<8x256xf32>, vector<256x64xf32>, vector<8x64xf32> -> vector<8x64xf32>
    %83 = vector.broadcast %79 : vector<8x1xf32> to vector<8x64xf32>
    %84 = arith.mulf %83, %82 : vector<8x64xf32>
    %85 = arith.addf %77, %84 : vector<8x64xf32>
    %c8 = arith.constant 8 : index
    %c0_66 = arith.constant 0 : index
    %c0_67 = arith.constant 0 : index
    %86 = vector.load %arg8[%c8, %c0_66, %c0_67] : memref<9x8x1xf32, #tpu.memory_space<vmem>>, vector<1x8x1xf32>
    %87 = vector.shape_cast %86 : vector<1x8x1xf32> to vector<8x1xf32>
    %c8_68 = arith.constant 8 : index
    %c0_69 = arith.constant 0 : index
    %c0_70 = arith.constant 0 : index
    %88 = vector.load %arg9[%c8_68, %c0_69, %c0_70] : memref<9x256x64xf32, #tpu.memory_space<vmem>>, vector<1x256x64xf32>
    %89 = vector.shape_cast %88 : vector<1x256x64xf32> to vector<256x64xf32>
    %cst_71 = arith.constant dense<0.000000e+00> : vector<8x64xf32>
    %90 = tpu.matmul %22, %89, %cst_71 {dimension_numbers = #tpu.dot_dimension_numbers<[1], [0], [0], [1], [0, 0, 1, 1], [], []>} : vector<8x256xf32>, vector<256x64xf32>, vector<8x64xf32> -> vector<8x64xf32>
    %91 = vector.broadcast %87 : vector<8x1xf32> to vector<8x64xf32>
    %92 = arith.mulf %91, %90 : vector<8x64xf32>
    %93 = arith.addf %85, %92 : vector<8x64xf32>
    %c0_72 = arith.constant 0 : index
    %c0_73 = arith.constant 0 : index
    %94 = vector.load %arg10[%c0_72, %c0_73] : memref<8x1xf32, #tpu.memory_space<vmem>>, vector<8x1xf32>
    %95 = vector.broadcast %94 : vector<8x1xf32> to vector<8x64xf32>
    %96 = arith.mulf %93, %95 : vector<8x64xf32>
    %c0_74 = arith.constant 0 : index
    %c0_75 = arith.constant 0 : index
    %97 = vector.load %arg11[%c0_74, %c0_75] : memref<8x1xf32, #tpu.memory_space<vmem>>, vector<8x1xf32>
    %98 = vector.broadcast %97 : vector<8x1xf32> to vector<8x64xf32>
    %99 = arith.addf %96, %98 : vector<8x64xf32>
    %cst_76 = arith.constant 0.000000e+00 : f32
    %100 = vector.broadcast %cst_76 : f32 to vector<8x64xf32>
    %101 = arith.maximumf %99, %100 : vector<8x64xf32>
    %c0_77 = arith.constant 0 : index
    %c0_78 = arith.constant 0 : index
    %102 = vector.load %arg12[%c0_77, %c0_78] : memref<8x8xbf16, #tpu.memory_space<vmem>>, vector<8x8xbf16>
    %103 = arith.truncf %101 : vector<8x64xf32> to vector<8x64xbf16>
    %cst_79 = arith.constant dense<0.000000e+00> : vector<8x64xf32>
    %104 = tpu.matmul %102, %103, %cst_79 {dimension_numbers = #tpu.dot_dimension_numbers<[1], [0], [0], [1], [0, 0, 1, 1], [], []>} : vector<8x8xbf16>, vector<8x64xbf16>, vector<8x64xf32> -> vector<8x64xf32>
    %c0_80 = arith.constant 0 : index
    %c0_81 = arith.constant 0 : index
    %105 = vector.load %arg13[%c0_80, %c0_81] : memref<8x1xf32, #tpu.memory_space<vmem>>, vector<8x1xf32>
    %106 = vector.broadcast %105 : vector<8x1xf32> to vector<8x64xf32>
    %107 = arith.mulf %104, %106 : vector<8x64xf32>
    %c0_82 = arith.constant 0 : index
    %c0_83 = arith.constant 0 : index
    %108 = vector.load %arg14[%c0_82, %c0_83] : memref<8x1xf32, #tpu.memory_space<vmem>>, vector<8x1xf32>
    %109 = vector.broadcast %108 : vector<8x1xf32> to vector<8x64xf32>
    %110 = arith.addf %107, %109 : vector<8x64xf32>
    %cst_84 = arith.constant 0.000000e+00 : f32
    %111 = vector.broadcast %cst_84 : f32 to vector<8x64xf32>
    %112 = arith.maximumf %110, %111 : vector<8x64xf32>
    %c0_85 = arith.constant 0 : index
    %c0_86 = arith.constant 0 : index
    %c0_87 = arith.constant 0 : index
    %113 = vector.load %arg15[%c0_85, %c0_86, %c0_87] : memref<9x8x1xf32, #tpu.memory_space<vmem>>, vector<1x8x1xf32>
    %114 = vector.shape_cast %113 : vector<1x8x1xf32> to vector<8x1xf32>
    %c0_88 = arith.constant 0 : index
    %c0_89 = arith.constant 0 : index
    %c0_90 = arith.constant 0 : index
    %115 = vector.load %arg16[%c0_88, %c0_89, %c0_90] : memref<9x64x16xf32, #tpu.memory_space<vmem>>, vector<1x64x16xf32>
    %116 = vector.shape_cast %115 : vector<1x64x16xf32> to vector<64x16xf32>
    %cst_91 = arith.constant dense<0.000000e+00> : vector<8x16xf32>
    %117 = tpu.matmul %112, %116, %cst_91 {dimension_numbers = #tpu.dot_dimension_numbers<[1], [0], [0], [1], [0, 0, 1, 1], [], []>} : vector<8x64xf32>, vector<64x16xf32>, vector<8x16xf32> -> vector<8x16xf32>
    %118 = vector.broadcast %114 : vector<8x1xf32> to vector<8x16xf32>
    %119 = arith.mulf %118, %117 : vector<8x16xf32>
    %c1_92 = arith.constant 1 : index
    %c0_93 = arith.constant 0 : index
    %c0_94 = arith.constant 0 : index
    %120 = vector.load %arg15[%c1_92, %c0_93, %c0_94] : memref<9x8x1xf32, #tpu.memory_space<vmem>>, vector<1x8x1xf32>
    %121 = vector.shape_cast %120 : vector<1x8x1xf32> to vector<8x1xf32>
    %c1_95 = arith.constant 1 : index
    %c0_96 = arith.constant 0 : index
    %c0_97 = arith.constant 0 : index
    %122 = vector.load %arg16[%c1_95, %c0_96, %c0_97] : memref<9x64x16xf32, #tpu.memory_space<vmem>>, vector<1x64x16xf32>
    %123 = vector.shape_cast %122 : vector<1x64x16xf32> to vector<64x16xf32>
    %cst_98 = arith.constant dense<0.000000e+00> : vector<8x16xf32>
    %124 = tpu.matmul %112, %123, %cst_98 {dimension_numbers = #tpu.dot_dimension_numbers<[1], [0], [0], [1], [0, 0, 1, 1], [], []>} : vector<8x64xf32>, vector<64x16xf32>, vector<8x16xf32> -> vector<8x16xf32>
    %125 = vector.broadcast %121 : vector<8x1xf32> to vector<8x16xf32>
    %126 = arith.mulf %125, %124 : vector<8x16xf32>
    %127 = arith.addf %119, %126 : vector<8x16xf32>
    %c2_99 = arith.constant 2 : index
    %c0_100 = arith.constant 0 : index
    %c0_101 = arith.constant 0 : index
    %128 = vector.load %arg15[%c2_99, %c0_100, %c0_101] : memref<9x8x1xf32, #tpu.memory_space<vmem>>, vector<1x8x1xf32>
    %129 = vector.shape_cast %128 : vector<1x8x1xf32> to vector<8x1xf32>
    %c2_102 = arith.constant 2 : index
    %c0_103 = arith.constant 0 : index
    %c0_104 = arith.constant 0 : index
    %130 = vector.load %arg16[%c2_102, %c0_103, %c0_104] : memref<9x64x16xf32, #tpu.memory_space<vmem>>, vector<1x64x16xf32>
    %131 = vector.shape_cast %130 : vector<1x64x16xf32> to vector<64x16xf32>
    %cst_105 = arith.constant dense<0.000000e+00> : vector<8x16xf32>
    %132 = tpu.matmul %112, %131, %cst_105 {dimension_numbers = #tpu.dot_dimension_numbers<[1], [0], [0], [1], [0, 0, 1, 1], [], []>} : vector<8x64xf32>, vector<64x16xf32>, vector<8x16xf32> -> vector<8x16xf32>
    %133 = vector.broadcast %129 : vector<8x1xf32> to vector<8x16xf32>
    %134 = arith.mulf %133, %132 : vector<8x16xf32>
    %135 = arith.addf %127, %134 : vector<8x16xf32>
    %c3_106 = arith.constant 3 : index
    %c0_107 = arith.constant 0 : index
    %c0_108 = arith.constant 0 : index
    %136 = vector.load %arg15[%c3_106, %c0_107, %c0_108] : memref<9x8x1xf32, #tpu.memory_space<vmem>>, vector<1x8x1xf32>
    %137 = vector.shape_cast %136 : vector<1x8x1xf32> to vector<8x1xf32>
    %c3_109 = arith.constant 3 : index
    %c0_110 = arith.constant 0 : index
    %c0_111 = arith.constant 0 : index
    %138 = vector.load %arg16[%c3_109, %c0_110, %c0_111] : memref<9x64x16xf32, #tpu.memory_space<vmem>>, vector<1x64x16xf32>
    %139 = vector.shape_cast %138 : vector<1x64x16xf32> to vector<64x16xf32>
    %cst_112 = arith.constant dense<0.000000e+00> : vector<8x16xf32>
    %140 = tpu.matmul %112, %139, %cst_112 {dimension_numbers = #tpu.dot_dimension_numbers<[1], [0], [0], [1], [0, 0, 1, 1], [], []>} : vector<8x64xf32>, vector<64x16xf32>, vector<8x16xf32> -> vector<8x16xf32>
    %141 = vector.broadcast %137 : vector<8x1xf32> to vector<8x16xf32>
    %142 = arith.mulf %141, %140 : vector<8x16xf32>
    %143 = arith.addf %135, %142 : vector<8x16xf32>
    %c4_113 = arith.constant 4 : index
    %c0_114 = arith.constant 0 : index
    %c0_115 = arith.constant 0 : index
    %144 = vector.load %arg15[%c4_113, %c0_114, %c0_115] : memref<9x8x1xf32, #tpu.memory_space<vmem>>, vector<1x8x1xf32>
    %145 = vector.shape_cast %144 : vector<1x8x1xf32> to vector<8x1xf32>
    %c4_116 = arith.constant 4 : index
    %c0_117 = arith.constant 0 : index
    %c0_118 = arith.constant 0 : index
    %146 = vector.load %arg16[%c4_116, %c0_117, %c0_118] : memref<9x64x16xf32, #tpu.memory_space<vmem>>, vector<1x64x16xf32>
    %147 = vector.shape_cast %146 : vector<1x64x16xf32> to vector<64x16xf32>
    %cst_119 = arith.constant dense<0.000000e+00> : vector<8x16xf32>
    %148 = tpu.matmul %112, %147, %cst_119 {dimension_numbers = #tpu.dot_dimension_numbers<[1], [0], [0], [1], [0, 0, 1, 1], [], []>} : vector<8x64xf32>, vector<64x16xf32>, vector<8x16xf32> -> vector<8x16xf32>
    %149 = vector.broadcast %145 : vector<8x1xf32> to vector<8x16xf32>
    %150 = arith.mulf %149, %148 : vector<8x16xf32>
    %151 = arith.addf %143, %150 : vector<8x16xf32>
    %c5_120 = arith.constant 5 : index
    %c0_121 = arith.constant 0 : index
    %c0_122 = arith.constant 0 : index
    %152 = vector.load %arg15[%c5_120, %c0_121, %c0_122] : memref<9x8x1xf32, #tpu.memory_space<vmem>>, vector<1x8x1xf32>
    %153 = vector.shape_cast %152 : vector<1x8x1xf32> to vector<8x1xf32>
    %c5_123 = arith.constant 5 : index
    %c0_124 = arith.constant 0 : index
    %c0_125 = arith.constant 0 : index
    %154 = vector.load %arg16[%c5_123, %c0_124, %c0_125] : memref<9x64x16xf32, #tpu.memory_space<vmem>>, vector<1x64x16xf32>
    %155 = vector.shape_cast %154 : vector<1x64x16xf32> to vector<64x16xf32>
    %cst_126 = arith.constant dense<0.000000e+00> : vector<8x16xf32>
    %156 = tpu.matmul %112, %155, %cst_126 {dimension_numbers = #tpu.dot_dimension_numbers<[1], [0], [0], [1], [0, 0, 1, 1], [], []>} : vector<8x64xf32>, vector<64x16xf32>, vector<8x16xf32> -> vector<8x16xf32>
    %157 = vector.broadcast %153 : vector<8x1xf32> to vector<8x16xf32>
    %158 = arith.mulf %157, %156 : vector<8x16xf32>
    %159 = arith.addf %151, %158 : vector<8x16xf32>
    %c6_127 = arith.constant 6 : index
    %c0_128 = arith.constant 0 : index
    %c0_129 = arith.constant 0 : index
    %160 = vector.load %arg15[%c6_127, %c0_128, %c0_129] : memref<9x8x1xf32, #tpu.memory_space<vmem>>, vector<1x8x1xf32>
    %161 = vector.shape_cast %160 : vector<1x8x1xf32> to vector<8x1xf32>
    %c6_130 = arith.constant 6 : index
    %c0_131 = arith.constant 0 : index
    %c0_132 = arith.constant 0 : index
    %162 = vector.load %arg16[%c6_130, %c0_131, %c0_132] : memref<9x64x16xf32, #tpu.memory_space<vmem>>, vector<1x64x16xf32>
    %163 = vector.shape_cast %162 : vector<1x64x16xf32> to vector<64x16xf32>
    %cst_133 = arith.constant dense<0.000000e+00> : vector<8x16xf32>
    %164 = tpu.matmul %112, %163, %cst_133 {dimension_numbers = #tpu.dot_dimension_numbers<[1], [0], [0], [1], [0, 0, 1, 1], [], []>} : vector<8x64xf32>, vector<64x16xf32>, vector<8x16xf32> -> vector<8x16xf32>
    %165 = vector.broadcast %161 : vector<8x1xf32> to vector<8x16xf32>
    %166 = arith.mulf %165, %164 : vector<8x16xf32>
    %167 = arith.addf %159, %166 : vector<8x16xf32>
    %c7_134 = arith.constant 7 : index
    %c0_135 = arith.constant 0 : index
    %c0_136 = arith.constant 0 : index
    %168 = vector.load %arg15[%c7_134, %c0_135, %c0_136] : memref<9x8x1xf32, #tpu.memory_space<vmem>>, vector<1x8x1xf32>
    %169 = vector.shape_cast %168 : vector<1x8x1xf32> to vector<8x1xf32>
    %c7_137 = arith.constant 7 : index
    %c0_138 = arith.constant 0 : index
    %c0_139 = arith.constant 0 : index
    %170 = vector.load %arg16[%c7_137, %c0_138, %c0_139] : memref<9x64x16xf32, #tpu.memory_space<vmem>>, vector<1x64x16xf32>
    %171 = vector.shape_cast %170 : vector<1x64x16xf32> to vector<64x16xf32>
    %cst_140 = arith.constant dense<0.000000e+00> : vector<8x16xf32>
    %172 = tpu.matmul %112, %171, %cst_140 {dimension_numbers = #tpu.dot_dimension_numbers<[1], [0], [0], [1], [0, 0, 1, 1], [], []>} : vector<8x64xf32>, vector<64x16xf32>, vector<8x16xf32> -> vector<8x16xf32>
    %173 = vector.broadcast %169 : vector<8x1xf32> to vector<8x16xf32>
    %174 = arith.mulf %173, %172 : vector<8x16xf32>
    %175 = arith.addf %167, %174 : vector<8x16xf32>
    %c8_141 = arith.constant 8 : index
    %c0_142 = arith.constant 0 : index
    %c0_143 = arith.constant 0 : index
    %176 = vector.load %arg15[%c8_141, %c0_142, %c0_143] : memref<9x8x1xf32, #tpu.memory_space<vmem>>, vector<1x8x1xf32>
    %177 = vector.shape_cast %176 : vector<1x8x1xf32> to vector<8x1xf32>
    %c8_144 = arith.constant 8 : index
    %c0_145 = arith.constant 0 : index
    %c0_146 = arith.constant 0 : index
    %178 = vector.load %arg16[%c8_144, %c0_145, %c0_146] : memref<9x64x16xf32, #tpu.memory_space<vmem>>, vector<1x64x16xf32>
    %179 = vector.shape_cast %178 : vector<1x64x16xf32> to vector<64x16xf32>
    %cst_147 = arith.constant dense<0.000000e+00> : vector<8x16xf32>
    %180 = tpu.matmul %112, %179, %cst_147 {dimension_numbers = #tpu.dot_dimension_numbers<[1], [0], [0], [1], [0, 0, 1, 1], [], []>} : vector<8x64xf32>, vector<64x16xf32>, vector<8x16xf32> -> vector<8x16xf32>
    %181 = vector.broadcast %177 : vector<8x1xf32> to vector<8x16xf32>
    %182 = arith.mulf %181, %180 : vector<8x16xf32>
    %183 = arith.addf %175, %182 : vector<8x16xf32>
    %c0_148 = arith.constant 0 : index
    %c0_149 = arith.constant 0 : index
    %184 = vector.load %arg17[%c0_148, %c0_149] : memref<8x1xf32, #tpu.memory_space<vmem>>, vector<8x1xf32>
    %185 = vector.broadcast %184 : vector<8x1xf32> to vector<8x16xf32>
    %186 = arith.mulf %183, %185 : vector<8x16xf32>
    %c0_150 = arith.constant 0 : index
    %c0_151 = arith.constant 0 : index
    %187 = vector.load %arg18[%c0_150, %c0_151] : memref<8x1xf32, #tpu.memory_space<vmem>>, vector<8x1xf32>
    %188 = vector.broadcast %187 : vector<8x1xf32> to vector<8x16xf32>
    %189 = arith.addf %186, %188 : vector<8x16xf32>
    %cst_152 = arith.constant 0.000000e+00 : f32
    %190 = vector.broadcast %cst_152 : f32 to vector<8x16xf32>
    %191 = arith.maximumf %189, %190 : vector<8x16xf32>
    %c0_153 = arith.constant 0 : index
    %c0_154 = arith.constant 0 : index
    %192 = vector.load %arg19[%c0_153, %c0_154] : memref<16x8xbf16, #tpu.memory_space<vmem>>, vector<16x8xbf16>
    %193 = arith.truncf %191 : vector<8x16xf32> to vector<8x16xbf16>
    %cst_155 = arith.constant dense<0.000000e+00> : vector<16x16xf32>
    %194 = tpu.matmul %192, %193, %cst_155 {dimension_numbers = #tpu.dot_dimension_numbers<[1], [0], [0], [1], [0, 0, 1, 1], [], []>} : vector<16x8xbf16>, vector<8x16xbf16>, vector<16x16xf32> -> vector<16x16xf32>
    %c0_156 = arith.constant 0 : index
    %c0_157 = arith.constant 0 : index
    %195 = vector.load %arg20[%c0_156, %c0_157] : memref<16x1xf32, #tpu.memory_space<vmem>>, vector<16x1xf32>
    %196 = vector.broadcast %195 : vector<16x1xf32> to vector<16x16xf32>
    %197 = arith.mulf %194, %196 : vector<16x16xf32>
    %c0_158 = arith.constant 0 : index
    %c0_159 = arith.constant 0 : index
    %198 = vector.load %arg21[%c0_158, %c0_159] : memref<16x1xf32, #tpu.memory_space<vmem>>, vector<16x1xf32>
    %199 = vector.broadcast %198 : vector<16x1xf32> to vector<16x16xf32>
    %200 = arith.addf %197, %199 : vector<16x16xf32>
    %cst_160 = arith.constant 0.000000e+00 : f32
    %201 = vector.broadcast %cst_160 : f32 to vector<16x16xf32>
    %202 = arith.maximumf %200, %201 : vector<16x16xf32>
    %c0_161 = arith.constant 0 : index
    %c0_162 = arith.constant 0 : index
    %c0_163 = arith.constant 0 : index
    %203 = vector.load %arg22[%c0_161, %c0_162, %c0_163] : memref<9x16x16xf32, #tpu.memory_space<vmem>>, vector<1x16x16xf32>
    %204 = vector.shape_cast %203 : vector<1x16x16xf32> to vector<16x16xf32>
    %cst_164 = arith.constant dense<0.000000e+00> : vector<16x16xf32>
    %205 = tpu.matmul %202, %204, %cst_164 {dimension_numbers = #tpu.dot_dimension_numbers<[1], [0], [0], [1], [0, 0, 1, 1], [], []>} : vector<16x16xf32>, vector<16x16xf32>, vector<16x16xf32> -> vector<16x16xf32>
    %c1_165 = arith.constant 1 : index
    %c0_166 = arith.constant 0 : index
    %c0_167 = arith.constant 0 : index
    %206 = vector.load %arg22[%c1_165, %c0_166, %c0_167] : memref<9x16x16xf32, #tpu.memory_space<vmem>>, vector<1x16x16xf32>
    %207 = vector.shape_cast %206 : vector<1x16x16xf32> to vector<16x16xf32>
    %cst_168 = arith.constant dense<0.000000e+00> : vector<16x16xf32>
    %208 = tpu.matmul %202, %207, %cst_168 {dimension_numbers = #tpu.dot_dimension_numbers<[1], [0], [0], [1], [0, 0, 1, 1], [], []>} : vector<16x16xf32>, vector<16x16xf32>, vector<16x16xf32> -> vector<16x16xf32>
    %c2_169 = arith.constant 2 : index
    %c0_170 = arith.constant 0 : index
    %c0_171 = arith.constant 0 : index
    %209 = vector.load %arg22[%c2_169, %c0_170, %c0_171] : memref<9x16x16xf32, #tpu.memory_space<vmem>>, vector<1x16x16xf32>
    %210 = vector.shape_cast %209 : vector<1x16x16xf32> to vector<16x16xf32>
    %cst_172 = arith.constant dense<0.000000e+00> : vector<16x16xf32>
    %211 = tpu.matmul %202, %210, %cst_172 {dimension_numbers = #tpu.dot_dimension_numbers<[1], [0], [0], [1], [0, 0, 1, 1], [], []>} : vector<16x16xf32>, vector<16x16xf32>, vector<16x16xf32> -> vector<16x16xf32>
    %c3_173 = arith.constant 3 : index
    %c0_174 = arith.constant 0 : index
    %c0_175 = arith.constant 0 : index
    %212 = vector.load %arg22[%c3_173, %c0_174, %c0_175] : memref<9x16x16xf32, #tpu.memory_space<vmem>>, vector<1x16x16xf32>
    %213 = vector.shape_cast %212 : vector<1x16x16xf32> to vector<16x16xf32>
    %cst_176 = arith.constant dense<0.000000e+00> : vector<16x16xf32>
    %214 = tpu.matmul %202, %213, %cst_176 {dimension_numbers = #tpu.dot_dimension_numbers<[1], [0], [0], [1], [0, 0, 1, 1], [], []>} : vector<16x16xf32>, vector<16x16xf32>, vector<16x16xf32> -> vector<16x16xf32>
    %c4_177 = arith.constant 4 : index
    %c0_178 = arith.constant 0 : index
    %c0_179 = arith.constant 0 : index
    %215 = vector.load %arg22[%c4_177, %c0_178, %c0_179] : memref<9x16x16xf32, #tpu.memory_space<vmem>>, vector<1x16x16xf32>
    %216 = vector.shape_cast %215 : vector<1x16x16xf32> to vector<16x16xf32>
    %cst_180 = arith.constant dense<0.000000e+00> : vector<16x16xf32>
    %217 = tpu.matmul %202, %216, %cst_180 {dimension_numbers = #tpu.dot_dimension_numbers<[1], [0], [0], [1], [0, 0, 1, 1], [], []>} : vector<16x16xf32>, vector<16x16xf32>, vector<16x16xf32> -> vector<16x16xf32>
    %c5_181 = arith.constant 5 : index
    %c0_182 = arith.constant 0 : index
    %c0_183 = arith.constant 0 : index
    %218 = vector.load %arg22[%c5_181, %c0_182, %c0_183] : memref<9x16x16xf32, #tpu.memory_space<vmem>>, vector<1x16x16xf32>
    %219 = vector.shape_cast %218 : vector<1x16x16xf32> to vector<16x16xf32>
    %cst_184 = arith.constant dense<0.000000e+00> : vector<16x16xf32>
    %220 = tpu.matmul %202, %219, %cst_184 {dimension_numbers = #tpu.dot_dimension_numbers<[1], [0], [0], [1], [0, 0, 1, 1], [], []>} : vector<16x16xf32>, vector<16x16xf32>, vector<16x16xf32> -> vector<16x16xf32>
    %c6_185 = arith.constant 6 : index
    %c0_186 = arith.constant 0 : index
    %c0_187 = arith.constant 0 : index
    %221 = vector.load %arg22[%c6_185, %c0_186, %c0_187] : memref<9x16x16xf32, #tpu.memory_space<vmem>>, vector<1x16x16xf32>
    %222 = vector.shape_cast %221 : vector<1x16x16xf32> to vector<16x16xf32>
    %cst_188 = arith.constant dense<0.000000e+00> : vector<16x16xf32>
    %223 = tpu.matmul %202, %222, %cst_188 {dimension_numbers = #tpu.dot_dimension_numbers<[1], [0], [0], [1], [0, 0, 1, 1], [], []>} : vector<16x16xf32>, vector<16x16xf32>, vector<16x16xf32> -> vector<16x16xf32>
    %c7_189 = arith.constant 7 : index
    %c0_190 = arith.constant 0 : index
    %c0_191 = arith.constant 0 : index
    %224 = vector.load %arg22[%c7_189, %c0_190, %c0_191] : memref<9x16x16xf32, #tpu.memory_space<vmem>>, vector<1x16x16xf32>
    %225 = vector.shape_cast %224 : vector<1x16x16xf32> to vector<16x16xf32>
    %cst_192 = arith.constant dense<0.000000e+00> : vector<16x16xf32>
    %226 = tpu.matmul %202, %225, %cst_192 {dimension_numbers = #tpu.dot_dimension_numbers<[1], [0], [0], [1], [0, 0, 1, 1], [], []>} : vector<16x16xf32>, vector<16x16xf32>, vector<16x16xf32> -> vector<16x16xf32>
    %c8_193 = arith.constant 8 : index
    %c0_194 = arith.constant 0 : index
    %c0_195 = arith.constant 0 : index
    %227 = vector.load %arg22[%c8_193, %c0_194, %c0_195] : memref<9x16x16xf32, #tpu.memory_space<vmem>>, vector<1x16x16xf32>
    %228 = vector.shape_cast %227 : vector<1x16x16xf32> to vector<16x16xf32>
    %cst_196 = arith.constant dense<0.000000e+00> : vector<16x16xf32>
    %229 = tpu.matmul %202, %228, %cst_196 {dimension_numbers = #tpu.dot_dimension_numbers<[1], [0], [0], [1], [0, 0, 1, 1], [], []>} : vector<16x16xf32>, vector<16x16xf32>, vector<16x16xf32> -> vector<16x16xf32>
    %230 = tpu.concatenate %205, %208, %211, %214, %217, %220, %223, %226, %229 in 0 : vector<16x16xf32>, vector<16x16xf32>, vector<16x16xf32>, vector<16x16xf32>, vector<16x16xf32>, vector<16x16xf32>, vector<16x16xf32>, vector<16x16xf32>, vector<16x16xf32> -> vector<144x16xf32>
    %231 = arith.truncf %230 : vector<144x16xf32> to vector<144x16xbf16>
    %c0_197 = arith.constant 0 : index
    %c0_198 = arith.constant 0 : index
    %232 = vector.load %arg23[%c0_197, %c0_198] : memref<32x144xbf16, #tpu.memory_space<vmem>>, vector<32x144xbf16>
    %cst_199 = arith.constant dense<0.000000e+00> : vector<32x16xf32>
    %233 = tpu.matmul %232, %231, %cst_199 {dimension_numbers = #tpu.dot_dimension_numbers<[1], [0], [0], [1], [0, 0, 1, 1], [], []>} : vector<32x144xbf16>, vector<144x16xbf16>, vector<32x16xf32> -> vector<32x16xf32>
    %234 = vector.extract_strided_slice %233 {offsets = [0, 0], sizes = [8, 16], strides = [1, 1]} : vector<32x16xf32> to vector<8x16xf32>
    %c0_200 = arith.constant 0 : index
    %c0_201 = arith.constant 0 : index
    %c0_202 = arith.constant 0 : index
    %235 = vector.load %arg24[%c0_200, %c0_201, %c0_202] : memref<4x16x64xf32, #tpu.memory_space<vmem>>, vector<1x16x64xf32>
    %236 = vector.shape_cast %235 : vector<1x16x64xf32> to vector<16x64xf32>
    %cst_203 = arith.constant dense<0.000000e+00> : vector<8x64xf32>
    %237 = tpu.matmul %234, %236, %cst_203 {dimension_numbers = #tpu.dot_dimension_numbers<[1], [0], [0], [1], [0, 0, 1, 1], [], []>} : vector<8x16xf32>, vector<16x64xf32>, vector<8x64xf32> -> vector<8x64xf32>
    %238 = vector.extract_strided_slice %233 {offsets = [8, 0], sizes = [8, 16], strides = [1, 1]} : vector<32x16xf32> to vector<8x16xf32>
    %c1_204 = arith.constant 1 : index
    %c0_205 = arith.constant 0 : index
    %c0_206 = arith.constant 0 : index
    %239 = vector.load %arg24[%c1_204, %c0_205, %c0_206] : memref<4x16x64xf32, #tpu.memory_space<vmem>>, vector<1x16x64xf32>
    %240 = vector.shape_cast %239 : vector<1x16x64xf32> to vector<16x64xf32>
    %cst_207 = arith.constant dense<0.000000e+00> : vector<8x64xf32>
    %241 = tpu.matmul %238, %240, %cst_207 {dimension_numbers = #tpu.dot_dimension_numbers<[1], [0], [0], [1], [0, 0, 1, 1], [], []>} : vector<8x16xf32>, vector<16x64xf32>, vector<8x64xf32> -> vector<8x64xf32>
    %242 = arith.addf %237, %241 : vector<8x64xf32>
    %243 = vector.extract_strided_slice %233 {offsets = [16, 0], sizes = [8, 16], strides = [1, 1]} : vector<32x16xf32> to vector<8x16xf32>
    %c2_208 = arith.constant 2 : index
    %c0_209 = arith.constant 0 : index
    %c0_210 = arith.constant 0 : index
    %244 = vector.load %arg24[%c2_208, %c0_209, %c0_210] : memref<4x16x64xf32, #tpu.memory_space<vmem>>, vector<1x16x64xf32>
    %245 = vector.shape_cast %244 : vector<1x16x64xf32> to vector<16x64xf32>
    %cst_211 = arith.constant dense<0.000000e+00> : vector<8x64xf32>
    %246 = tpu.matmul %243, %245, %cst_211 {dimension_numbers = #tpu.dot_dimension_numbers<[1], [0], [0], [1], [0, 0, 1, 1], [], []>} : vector<8x16xf32>, vector<16x64xf32>, vector<8x64xf32> -> vector<8x64xf32>
    %247 = arith.addf %242, %246 : vector<8x64xf32>
    %248 = vector.extract_strided_slice %233 {offsets = [24, 0], sizes = [8, 16], strides = [1, 1]} : vector<32x16xf32> to vector<8x16xf32>
    %c3_212 = arith.constant 3 : index
    %c0_213 = arith.constant 0 : index
    %c0_214 = arith.constant 0 : index
    %249 = vector.load %arg24[%c3_212, %c0_213, %c0_214] : memref<4x16x64xf32, #tpu.memory_space<vmem>>, vector<1x16x64xf32>
    %250 = vector.shape_cast %249 : vector<1x16x64xf32> to vector<16x64xf32>
    %cst_215 = arith.constant dense<0.000000e+00> : vector<8x64xf32>
    %251 = tpu.matmul %248, %250, %cst_215 {dimension_numbers = #tpu.dot_dimension_numbers<[1], [0], [0], [1], [0, 0, 1, 1], [], []>} : vector<8x16xf32>, vector<16x64xf32>, vector<8x64xf32> -> vector<8x64xf32>
    %252 = arith.addf %247, %251 : vector<8x64xf32>
    %c0_216 = arith.constant 0 : index
    %c0_217 = arith.constant 0 : index
    %253 = vector.load %arg25[%c0_216, %c0_217] : memref<8x1xf32, #tpu.memory_space<vmem>>, vector<8x1xf32>
    %254 = vector.broadcast %253 : vector<8x1xf32> to vector<8x64xf32>
    %255 = arith.mulf %252, %254 : vector<8x64xf32>
    %c0_218 = arith.constant 0 : index
    %c0_219 = arith.constant 0 : index
    %256 = vector.load %arg26[%c0_218, %c0_219] : memref<8x1xf32, #tpu.memory_space<vmem>>, vector<8x1xf32>
    %257 = vector.broadcast %256 : vector<8x1xf32> to vector<8x64xf32>
    %258 = arith.addf %255, %257 : vector<8x64xf32>
    %cst_220 = arith.constant 0.000000e+00 : f32
    %259 = vector.broadcast %cst_220 : f32 to vector<8x64xf32>
    %260 = arith.maximumf %258, %259 : vector<8x64xf32>
    %c0_221 = arith.constant 0 : index
    %c0_222 = arith.constant 0 : index
    %c0_223 = arith.constant 0 : index
    %261 = vector.load %arg27[%c0_221, %c0_222, %c0_223] : memref<9x64x64xf32, #tpu.memory_space<vmem>>, vector<1x64x64xf32>
    %262 = vector.shape_cast %261 : vector<1x64x64xf32> to vector<64x64xf32>
    %cst_224 = arith.constant dense<0.000000e+00> : vector<8x64xf32>
    %263 = tpu.matmul %260, %262, %cst_224 {dimension_numbers = #tpu.dot_dimension_numbers<[1], [0], [0], [1], [0, 0, 1, 1], [], []>} : vector<8x64xf32>, vector<64x64xf32>, vector<8x64xf32> -> vector<8x64xf32>
    %c1_225 = arith.constant 1 : index
    %c0_226 = arith.constant 0 : index
    %c0_227 = arith.constant 0 : index
    %264 = vector.load %arg27[%c1_225, %c0_226, %c0_227] : memref<9x64x64xf32, #tpu.memory_space<vmem>>, vector<1x64x64xf32>
    %265 = vector.shape_cast %264 : vector<1x64x64xf32> to vector<64x64xf32>
    %cst_228 = arith.constant dense<0.000000e+00> : vector<8x64xf32>
    %266 = tpu.matmul %260, %265, %cst_228 {dimension_numbers = #tpu.dot_dimension_numbers<[1], [0], [0], [1], [0, 0, 1, 1], [], []>} : vector<8x64xf32>, vector<64x64xf32>, vector<8x64xf32> -> vector<8x64xf32>
    %c2_229 = arith.constant 2 : index
    %c0_230 = arith.constant 0 : index
    %c0_231 = arith.constant 0 : index
    %267 = vector.load %arg27[%c2_229, %c0_230, %c0_231] : memref<9x64x64xf32, #tpu.memory_space<vmem>>, vector<1x64x64xf32>
    %268 = vector.shape_cast %267 : vector<1x64x64xf32> to vector<64x64xf32>
    %cst_232 = arith.constant dense<0.000000e+00> : vector<8x64xf32>
    %269 = tpu.matmul %260, %268, %cst_232 {dimension_numbers = #tpu.dot_dimension_numbers<[1], [0], [0], [1], [0, 0, 1, 1], [], []>} : vector<8x64xf32>, vector<64x64xf32>, vector<8x64xf32> -> vector<8x64xf32>
    %c3_233 = arith.constant 3 : index
    %c0_234 = arith.constant 0 : index
    %c0_235 = arith.constant 0 : index
    %270 = vector.load %arg27[%c3_233, %c0_234, %c0_235] : memref<9x64x64xf32, #tpu.memory_space<vmem>>, vector<1x64x64xf32>
    %271 = vector.shape_cast %270 : vector<1x64x64xf32> to vector<64x64xf32>
    %cst_236 = arith.constant dense<0.000000e+00> : vector<8x64xf32>
    %272 = tpu.matmul %260, %271, %cst_236 {dimension_numbers = #tpu.dot_dimension_numbers<[1], [0], [0], [1], [0, 0, 1, 1], [], []>} : vector<8x64xf32>, vector<64x64xf32>, vector<8x64xf32> -> vector<8x64xf32>
    %c4_237 = arith.constant 4 : index
    %c0_238 = arith.constant 0 : index
    %c0_239 = arith.constant 0 : index
    %273 = vector.load %arg27[%c4_237, %c0_238, %c0_239] : memref<9x64x64xf32, #tpu.memory_space<vmem>>, vector<1x64x64xf32>
    %274 = vector.shape_cast %273 : vector<1x64x64xf32> to vector<64x64xf32>
    %cst_240 = arith.constant dense<0.000000e+00> : vector<8x64xf32>
    %275 = tpu.matmul %260, %274, %cst_240 {dimension_numbers = #tpu.dot_dimension_numbers<[1], [0], [0], [1], [0, 0, 1, 1], [], []>} : vector<8x64xf32>, vector<64x64xf32>, vector<8x64xf32> -> vector<8x64xf32>
    %c5_241 = arith.constant 5 : index
    %c0_242 = arith.constant 0 : index
    %c0_243 = arith.constant 0 : index
    %276 = vector.load %arg27[%c5_241, %c0_242, %c0_243] : memref<9x64x64xf32, #tpu.memory_space<vmem>>, vector<1x64x64xf32>
    %277 = vector.shape_cast %276 : vector<1x64x64xf32> to vector<64x64xf32>
    %cst_244 = arith.constant dense<0.000000e+00> : vector<8x64xf32>
    %278 = tpu.matmul %260, %277, %cst_244 {dimension_numbers = #tpu.dot_dimension_numbers<[1], [0], [0], [1], [0, 0, 1, 1], [], []>} : vector<8x64xf32>, vector<64x64xf32>, vector<8x64xf32> -> vector<8x64xf32>
    %c6_245 = arith.constant 6 : index
    %c0_246 = arith.constant 0 : index
    %c0_247 = arith.constant 0 : index
    %279 = vector.load %arg27[%c6_245, %c0_246, %c0_247] : memref<9x64x64xf32, #tpu.memory_space<vmem>>, vector<1x64x64xf32>
    %280 = vector.shape_cast %279 : vector<1x64x64xf32> to vector<64x64xf32>
    %cst_248 = arith.constant dense<0.000000e+00> : vector<8x64xf32>
    %281 = tpu.matmul %260, %280, %cst_248 {dimension_numbers = #tpu.dot_dimension_numbers<[1], [0], [0], [1], [0, 0, 1, 1], [], []>} : vector<8x64xf32>, vector<64x64xf32>, vector<8x64xf32> -> vector<8x64xf32>
    %c7_249 = arith.constant 7 : index
    %c0_250 = arith.constant 0 : index
    %c0_251 = arith.constant 0 : index
    %282 = vector.load %arg27[%c7_249, %c0_250, %c0_251] : memref<9x64x64xf32, #tpu.memory_space<vmem>>, vector<1x64x64xf32>
    %283 = vector.shape_cast %282 : vector<1x64x64xf32> to vector<64x64xf32>
    %cst_252 = arith.constant dense<0.000000e+00> : vector<8x64xf32>
    %284 = tpu.matmul %260, %283, %cst_252 {dimension_numbers = #tpu.dot_dimension_numbers<[1], [0], [0], [1], [0, 0, 1, 1], [], []>} : vector<8x64xf32>, vector<64x64xf32>, vector<8x64xf32> -> vector<8x64xf32>
    %c8_253 = arith.constant 8 : index
    %c0_254 = arith.constant 0 : index
    %c0_255 = arith.constant 0 : index
    %285 = vector.load %arg27[%c8_253, %c0_254, %c0_255] : memref<9x64x64xf32, #tpu.memory_space<vmem>>, vector<1x64x64xf32>
    %286 = vector.shape_cast %285 : vector<1x64x64xf32> to vector<64x64xf32>
    %cst_256 = arith.constant dense<0.000000e+00> : vector<8x64xf32>
    %287 = tpu.matmul %260, %286, %cst_256 {dimension_numbers = #tpu.dot_dimension_numbers<[1], [0], [0], [1], [0, 0, 1, 1], [], []>} : vector<8x64xf32>, vector<64x64xf32>, vector<8x64xf32> -> vector<8x64xf32>
    %288 = tpu.concatenate %263, %266, %269, %272, %275, %278, %281, %284, %287 in 0 : vector<8x64xf32>, vector<8x64xf32>, vector<8x64xf32>, vector<8x64xf32>, vector<8x64xf32>, vector<8x64xf32>, vector<8x64xf32>, vector<8x64xf32>, vector<8x64xf32> -> vector<72x64xf32>
    %289 = arith.truncf %288 : vector<72x64xf32> to vector<72x64xbf16>
    %c0_257 = arith.constant 0 : index
    %c0_258 = arith.constant 0 : index
    %290 = vector.load %arg28[%c0_257, %c0_258] : memref<64x72xbf16, #tpu.memory_space<vmem>>, vector<64x72xbf16>
    %cst_259 = arith.constant dense<0.000000e+00> : vector<64x64xf32>
    %291 = tpu.matmul %290, %289, %cst_259 {dimension_numbers = #tpu.dot_dimension_numbers<[1], [0], [0], [1], [0, 0, 1, 1], [], []>} : vector<64x72xbf16>, vector<72x64xbf16>, vector<64x64xf32> -> vector<64x64xf32>
    %292 = vector.extract_strided_slice %291 {offsets = [0, 0], sizes = [16, 64], strides = [1, 1]} : vector<64x64xf32> to vector<16x64xf32>
    %c0_260 = arith.constant 0 : index
    %c0_261 = arith.constant 0 : index
    %c0_262 = arith.constant 0 : index
    %293 = vector.load %arg29[%c0_260, %c0_261, %c0_262] : memref<4x64x256xf32, #tpu.memory_space<vmem>>, vector<1x64x256xf32>
    %294 = vector.shape_cast %293 : vector<1x64x256xf32> to vector<64x256xf32>
    %cst_263 = arith.constant dense<0.000000e+00> : vector<16x256xf32>
    %295 = tpu.matmul %292, %294, %cst_263 {dimension_numbers = #tpu.dot_dimension_numbers<[1], [0], [0], [1], [0, 0, 1, 1], [], []>} : vector<16x64xf32>, vector<64x256xf32>, vector<16x256xf32> -> vector<16x256xf32>
    %296 = vector.extract_strided_slice %291 {offsets = [16, 0], sizes = [16, 64], strides = [1, 1]} : vector<64x64xf32> to vector<16x64xf32>
    %c1_264 = arith.constant 1 : index
    %c0_265 = arith.constant 0 : index
    %c0_266 = arith.constant 0 : index
    %297 = vector.load %arg29[%c1_264, %c0_265, %c0_266] : memref<4x64x256xf32, #tpu.memory_space<vmem>>, vector<1x64x256xf32>
    %298 = vector.shape_cast %297 : vector<1x64x256xf32> to vector<64x256xf32>
    %cst_267 = arith.constant dense<0.000000e+00> : vector<16x256xf32>
    %299 = tpu.matmul %296, %298, %cst_267 {dimension_numbers = #tpu.dot_dimension_numbers<[1], [0], [0], [1], [0, 0, 1, 1], [], []>} : vector<16x64xf32>, vector<64x256xf32>, vector<16x256xf32> -> vector<16x256xf32>
    %300 = arith.addf %295, %299 : vector<16x256xf32>
    %301 = vector.extract_strided_slice %291 {offsets = [32, 0], sizes = [16, 64], strides = [1, 1]} : vector<64x64xf32> to vector<16x64xf32>
    %c2_268 = arith.constant 2 : index
    %c0_269 = arith.constant 0 : index
    %c0_270 = arith.constant 0 : index
    %302 = vector.load %arg29[%c2_268, %c0_269, %c0_270] : memref<4x64x256xf32, #tpu.memory_space<vmem>>, vector<1x64x256xf32>
    %303 = vector.shape_cast %302 : vector<1x64x256xf32> to vector<64x256xf32>
    %cst_271 = arith.constant dense<0.000000e+00> : vector<16x256xf32>
    %304 = tpu.matmul %301, %303, %cst_271 {dimension_numbers = #tpu.dot_dimension_numbers<[1], [0], [0], [1], [0, 0, 1, 1], [], []>} : vector<16x64xf32>, vector<64x256xf32>, vector<16x256xf32> -> vector<16x256xf32>
    %305 = arith.addf %300, %304 : vector<16x256xf32>
    %306 = vector.extract_strided_slice %291 {offsets = [48, 0], sizes = [16, 64], strides = [1, 1]} : vector<64x64xf32> to vector<16x64xf32>
    %c3_272 = arith.constant 3 : index
    %c0_273 = arith.constant 0 : index
    %c0_274 = arith.constant 0 : index
    %307 = vector.load %arg29[%c3_272, %c0_273, %c0_274] : memref<4x64x256xf32, #tpu.memory_space<vmem>>, vector<1x64x256xf32>
    %308 = vector.shape_cast %307 : vector<1x64x256xf32> to vector<64x256xf32>
    %cst_275 = arith.constant dense<0.000000e+00> : vector<16x256xf32>
    %309 = tpu.matmul %306, %308, %cst_275 {dimension_numbers = #tpu.dot_dimension_numbers<[1], [0], [0], [1], [0, 0, 1, 1], [], []>} : vector<16x64xf32>, vector<64x256xf32>, vector<16x256xf32> -> vector<16x256xf32>
    %310 = arith.addf %305, %309 : vector<16x256xf32>
    %c0_276 = arith.constant 0 : index
    %c0_277 = arith.constant 0 : index
    %311 = vector.load %arg30[%c0_276, %c0_277] : memref<16x1xf32, #tpu.memory_space<vmem>>, vector<16x1xf32>
    %312 = vector.broadcast %311 : vector<16x1xf32> to vector<16x256xf32>
    %313 = arith.mulf %310, %312 : vector<16x256xf32>
    %c0_278 = arith.constant 0 : index
    %c0_279 = arith.constant 0 : index
    %314 = vector.load %arg31[%c0_278, %c0_279] : memref<16x1xf32, #tpu.memory_space<vmem>>, vector<16x1xf32>
    %315 = vector.broadcast %314 : vector<16x1xf32> to vector<16x256xf32>
    %316 = arith.addf %313, %315 : vector<16x256xf32>
    %cst_280 = arith.constant 0.000000e+00 : f32
    %317 = vector.broadcast %cst_280 : f32 to vector<16x256xf32>
    %318 = arith.maximumf %316, %317 : vector<16x256xf32>
    %c0_281 = arith.constant 0 : index
    %c0_282 = arith.constant 0 : index
    %c0_283 = arith.constant 0 : index
    %319 = vector.load %arg32[%c0_281, %c0_282, %c0_283] : memref<1x16x256xf32, #tpu.memory_space<vmem>>, vector<1x16x256xf32>
    %320 = vector.shape_cast %319 : vector<1x16x256xf32> to vector<16x256xf32>
    %321 = vector.shape_cast %318 : vector<16x256xf32> to vector<1x16x256xf32>
    tpu.vector_store %arg32[%c0_281, %c0_282, %c0_283], %321 {strides = array<i32>} : memref<1x16x256xf32, #tpu.memory_space<vmem>>, vector<1x16x256xf32>,
    return
  }
  func.func @transform_0(%arg0: i32) -> (i32, i32, i32) {
    %c0_i32 = arith.constant 0 : i32
    %c0_i32_0 = arith.constant 0 : i32
    %c0_i32_1 = arith.constant 0 : i32
    return %arg0, %c0_i32, %c0_i32_0 : i32, i32, i32
  }
  func.func @transform_1(%arg0: i32) -> (i32, i32) {
    %c0_i32 = arith.constant 0 : i32
    %c0_i32_0 = arith.constant 0 : i32
    %c0_i32_1 = arith.constant 0 : i32
    return %c0_i32, %c0_i32_0 : i32, i32
  }
  func.func @transform_2(%arg0: i32) -> (i32, i32) {
    %c0_i32 = arith.constant 0 : i32
    %c0_i32_0 = arith.constant 0 : i32
    %c0_i32_1 = arith.constant 0 : i32
    return %c0_i32, %c0_i32_0 : i32, i32
  }
  func.func @transform_3(%arg0: i32) -> (i32, i32) {
    %c0_i32 = arith.constant 0 : i32
    %c0_i32_0 = arith.constant 0 : i32
    %c0_i32_1 = arith.constant 0 : i32
    return %c0_i32, %c0_i32_0 : i32, i32
  }
  func.func @transform_4(%arg0: i32) -> (i32, i32) {
    %c0_i32 = arith.constant 0 : i32
    %c0_i32_0 = arith.constant 0 : i32
    %c0_i32_1 = arith.constant 0 : i32
    return %c0_i32, %c0_i32_0 : i32, i32
  }
  func.func @transform_5(%arg0: i32) -> (i32, i32) {
    %c0_i32 = arith.constant 0 : i32
    %c0_i32_0 = arith.constant 0 : i32
    %c0_i32_1 = arith.constant 0 : i32
    return %c0_i32, %c0_i32_0 : i32, i32
  }
  func.func @transform_6(%arg0: i32) -> (i32, i32) {
    %c0_i32 = arith.constant 0 : i32
    %c0_i32_0 = arith.constant 0 : i32
    %c0_i32_1 = arith.constant 0 : i32
    return %c0_i32, %c0_i32_0 : i32, i32
  }
  func.func @transform_7(%arg0: i32) -> (i32, i32, i32) {
    %c0_i32 = arith.constant 0 : i32
    %c0_i32_0 = arith.constant 0 : i32
    %c0_i32_1 = arith.constant 0 : i32
    %c0_i32_2 = arith.constant 0 : i32
    return %c0_i32, %c0_i32_0, %c0_i32_1 : i32, i32, i32
  }
  func.func @transform_8(%arg0: i32) -> (i32, i32, i32) {
    %c0_i32 = arith.constant 0 : i32
    %c0_i32_0 = arith.constant 0 : i32
    %c0_i32_1 = arith.constant 0 : i32
    %c0_i32_2 = arith.constant 0 : i32
    return %c0_i32, %c0_i32_0, %c0_i32_1 : i32, i32, i32
  }
  func.func @transform_9(%arg0: i32) -> (i32, i32) {
    %c0_i32 = arith.constant 0 : i32
    %c0_i32_0 = arith.constant 0 : i32
    %c0_i32_1 = arith.constant 0 : i32
    return %c0_i32, %c0_i32_0 : i32, i32
  }
  func.func @transform_10(%arg0: i32) -> (i32, i32) {
    %c0_i32 = arith.constant 0 : i32
    %c0_i32_0 = arith.constant 0 : i32
    %c0_i32_1 = arith.constant 0 : i32
    return %c0_i32, %c0_i32_0 : i32, i32
  }
  func.func @transform_11(%arg0: i32) -> (i32, i32) {
    %c0_i32 = arith.constant 0 : i32
    %c0_i32_0 = arith.constant 0 : i32
    %c0_i32_1 = arith.constant 0 : i32
    return %c0_i32, %c0_i32_0 : i32, i32
  }
  func.func @transform_12(%arg0: i32) -> (i32, i32) {
    %c0_i32 = arith.constant 0 : i32
    %c0_i32_0 = arith.constant 0 : i32
    %c0_i32_1 = arith.constant 0 : i32
    return %c0_i32, %c0_i32_0 : i32, i32
  }
  func.func @transform_13(%arg0: i32) -> (i32, i32) {
    %c0_i32 = arith.constant 0 : i32
    %c0_i32_0 = arith.constant 0 : i32
    %c0_i32_1 = arith.constant 0 : i32
    return %c0_i32, %c0_i32_0 : i32, i32
  }
  func.func @transform_14(%arg0: i32) -> (i32, i32, i32) {
    %c0_i32 = arith.constant 0 : i32
    %c0_i32_0 = arith.constant 0 : i32
    %c0_i32_1 = arith.constant 0 : i32
    %c0_i32_2 = arith.constant 0 : i32
    return %c0_i32, %c0_i32_0, %c0_i32_1 : i32, i32, i32
  }
  func.func @transform_15(%arg0: i32) -> (i32, i32, i32) {
    %c0_i32 = arith.constant 0 : i32
    %c0_i32_0 = arith.constant 0 : i32
    %c0_i32_1 = arith.constant 0 : i32
    %c0_i32_2 = arith.constant 0 : i32
    return %c0_i32, %c0_i32_0, %c0_i32_1 : i32, i32, i32
  }
  func.func @transform_16(%arg0: i32) -> (i32, i32) {
    %c0_i32 = arith.constant 0 : i32
    %c0_i32_0 = arith.constant 0 : i32
    %c0_i32_1 = arith.constant 0 : i32
    return %c0_i32, %c0_i32_0 : i32, i32
  }
  func.func @transform_17(%arg0: i32) -> (i32, i32) {
    %c0_i32 = arith.constant 0 : i32
    %c0_i32_0 = arith.constant 0 : i32
    %c0_i32_1 = arith.constant 0 : i32
    return %c0_i32, %c0_i32_0 : i32, i32
  }
  func.func @transform_18(%arg0: i32) -> (i32, i32) {
    %c0_i32 = arith.constant 0 : i32
    %c0_i32_0 = arith.constant 0 : i32
    %c0_i32_1 = arith.constant 0 : i32
    return %c0_i32, %c0_i32_0 : i32, i32
  }
  func.func @transform_19(%arg0: i32) -> (i32, i32) {
    %c0_i32 = arith.constant 0 : i32
    %c0_i32_0 = arith.constant 0 : i32
    %c0_i32_1 = arith.constant 0 : i32
    return %c0_i32, %c0_i32_0 : i32, i32
  }
  func.func @transform_20(%arg0: i32) -> (i32, i32) {
    %c0_i32 = arith.constant 0 : i32
    %c0_i32_0 = arith.constant 0 : i32
    %c0_i32_1 = arith.constant 0 : i32
    return %c0_i32, %c0_i32_0 : i32, i32
  }
  func.func @transform_21(%arg0: i32) -> (i32, i32, i32) {
    %c0_i32 = arith.constant 0 : i32
    %c0_i32_0 = arith.constant 0 : i32
    %c0_i32_1 = arith.constant 0 : i32
    %c0_i32_2 = arith.constant 0 : i32
    return %c0_i32, %c0_i32_0, %c0_i32_1 : i32, i32, i32
  }
  func.func @transform_22(%arg0: i32) -> (i32, i32) {
    %c0_i32 = arith.constant 0 : i32
    %c0_i32_0 = arith.constant 0 : i32
    %c0_i32_1 = arith.constant 0 : i32
    return %c0_i32, %c0_i32_0 : i32, i32
  }
  func.func @transform_23(%arg0: i32) -> (i32, i32, i32) {
    %c0_i32 = arith.constant 0 : i32
    %c0_i32_0 = arith.constant 0 : i32
    %c0_i32_1 = arith.constant 0 : i32
    %c0_i32_2 = arith.constant 0 : i32
    return %c0_i32, %c0_i32_0, %c0_i32_1 : i32, i32, i32
  }
  func.func @transform_24(%arg0: i32) -> (i32, i32) {
    %c0_i32 = arith.constant 0 : i32
    %c0_i32_0 = arith.constant 0 : i32
    %c0_i32_1 = arith.constant 0 : i32
    return %c0_i32, %c0_i32_0 : i32, i32
  }
  func.func @transform_25(%arg0: i32) -> (i32, i32) {
    %c0_i32 = arith.constant 0 : i32
    %c0_i32_0 = arith.constant 0 : i32
    %c0_i32_1 = arith.constant 0 : i32
    return %c0_i32, %c0_i32_0 : i32, i32
  }
  func.func @transform_26(%arg0: i32) -> (i32, i32, i32) {
    %c0_i32 = arith.constant 0 : i32
    %c0_i32_0 = arith.constant 0 : i32
    %c0_i32_1 = arith.constant 0 : i32
    %c0_i32_2 = arith.constant 0 : i32
    return %c0_i32, %c0_i32_0, %c0_i32_1 : i32, i32, i32
  }
  func.func @transform_27(%arg0: i32) -> (i32, i32) {
    %c0_i32 = arith.constant 0 : i32
    %c0_i32_0 = arith.constant 0 : i32
    %c0_i32_1 = arith.constant 0 : i32
    return %c0_i32, %c0_i32_0 : i32, i32
  }
  func.func @transform_28(%arg0: i32) -> (i32, i32, i32) {
    %c0_i32 = arith.constant 0 : i32
    %c0_i32_0 = arith.constant 0 : i32
    %c0_i32_1 = arith.constant 0 : i32
    %c0_i32_2 = arith.constant 0 : i32
    return %c0_i32, %c0_i32_0, %c0_i32_1 : i32, i32, i32
  }
  func.func @transform_29(%arg0: i32) -> (i32, i32) {
    %c0_i32 = arith.constant 0 : i32
    %c0_i32_0 = arith.constant 0 : i32
    %c0_i32_1 = arith.constant 0 : i32
    return %c0_i32, %c0_i32_0 : i32, i32
  }
  func.func @transform_30(%arg0: i32) -> (i32, i32) {
    %c0_i32 = arith.constant 0 : i32
    %c0_i32_0 = arith.constant 0 : i32
    %c0_i32_1 = arith.constant 0 : i32
    return %c0_i32, %c0_i32_0 : i32, i32
  }
  func.func @transform_31(%arg0: i32) -> (i32, i32, i32) {
    %c0_i32 = arith.constant 0 : i32
    %c0_i32_0 = arith.constant 0 : i32
    %c0_i32_1 = arith.constant 0 : i32
    return %arg0, %c0_i32, %c0_i32_0 : i32, i32, i32
  }
}

</mosaic_0001>

<llo_original>
// kernel: _lambda_.1
$region0: #{_lambda_.1}
  #allocation0 [shape = 'u32[]', space=smem, size = 0x4, offset = 0x4, fixed_abs, tag = 'smem constant byte address 0x4 - core index']
  #allocation1 [shape = 'u32[144,128]{1,0:T(1,128)}', space=vmem, size = 0x12000, scoped, tag = 'internal scratch']
  %s0 = inlined_call_operand.smem [shape: u32[32], index: -1, kind: input, shape index: {}]
  %s1 = sld [smem:[%s0]]
  %s2 = scalar_lea.smem %s0, 1
  %s3 = sld [smem:[%s2]]
  %s4 = scalar_lea.smem %s0, 2
  %s5 = sld [smem:[%s4]]
  %s6 = scalar_lea.smem %s0, 3
  %s7 = sld [smem:[%s6]]
  %s8 = scalar_lea.smem %s0, 4
  %s9 = sld [smem:[%s8]]
  %s10 = scalar_lea.smem %s0, 5
  %s11 = sld [smem:[%s10]]
  %s12 = scalar_lea.smem %s0, 6
  %s13 = sld [smem:[%s12]]
  %s14 = scalar_lea.smem %s0, 7
  %s15 = sld [smem:[%s14]]
  %s16 = scalar_lea.smem %s0, 8
  %s17 = sld [smem:[%s16]]
  %s18 = scalar_lea.smem %s0, 9
  %s19 = sld [smem:[%s18]]
  %s20 = scalar_lea.smem %s0, 10
  %s21 = sld [smem:[%s20]]
  %s22 = scalar_lea.smem %s0, 11
  %s23 = sld [smem:[%s22]]
  %s24 = scalar_lea.smem %s0, 12
  %s25 = sld [smem:[%s24]]
  %s26 = scalar_lea.smem %s0, 13
  %s27 = sld [smem:[%s26]]
  %s28 = scalar_lea.smem %s0, 14
  %s29 = sld [smem:[%s28]]
  %s30 = scalar_lea.smem %s0, 15
  %s31 = sld [smem:[%s30]]
  %s32 = scalar_lea.smem %s0, 16
  %s33 = sld [smem:[%s32]]
  %s34 = scalar_lea.smem %s0, 17
  %s35 = sld [smem:[%s34]]
  %s36 = scalar_lea.smem %s0, 18
  %s37 = sld [smem:[%s36]]
  %s38 = scalar_lea.smem %s0, 19
  %s39 = sld [smem:[%s38]]
  %s40 = scalar_lea.smem %s0, 20
  %s41 = sld [smem:[%s40]]
  %s42 = scalar_lea.smem %s0, 21
  %s43 = sld [smem:[%s42]]
  %s44 = scalar_lea.smem %s0, 22
  %s45 = sld [smem:[%s44]]
  %s46 = scalar_lea.smem %s0, 23
  %s47 = sld [smem:[%s46]]
  %s48 = scalar_lea.smem %s0, 24
  %s49 = sld [smem:[%s48]]
  %s50 = scalar_lea.smem %s0, 25
  %s51 = sld [smem:[%s50]]
  %s52 = scalar_lea.smem %s0, 26
  %s53 = sld [smem:[%s52]]
  %s54 = scalar_lea.smem %s0, 27
  %s55 = sld [smem:[%s54]]
  %s56 = scalar_lea.smem %s0, 28
  %s57 = sld [smem:[%s56]]
  %s58 = scalar_lea.smem %s0, 29
  %s59 = sld [smem:[%s58]]
  %s60 = scalar_lea.smem %s0, 30
  %s61 = sld [smem:[%s60]]
  %s62 = scalar_lea.smem %s0, 31
  %s63 = sld [smem:[%s62]]
  %s64 = sld [smem:[#allocation0]]
  $region157: #{_lambda_.1} parent=0
    _
  %s66 = ssub.s32 1, %s64
  %s67 = scalar_select 0, %s66, %s64
  loop: start=0, step=1, limit=4
  $region2: #{_lambda_.1} parent=0 // loop_pre_header
    _
  $region3: #{_lambda_.1} parent=0 // loop_header
    %s69 = sphi 0, %s73
    %p70 = scmp.ge.s32.totalorder %s69, 4
    %s79 = sphi 0, %s81
    %s82 = sphi 0, %s79
    %s83 = sphi 0, %s82
    %s99 = sphi 0, %s83
    %s103 = sphi 0, %s103
    %s105 = sphi 0, %s103
    %s106 = sphi 0, %s105
    %s120 = sphi 0, %s106
    %s124 = sphi 0, %s124
    %s126 = sphi 0, %s124
    %s127 = sphi 0, %s126
    %s141 = sphi 0, %s127
    %s145 = sphi 0, %s145
    %s147 = sphi 0, %s145
    %s148 = sphi 0, %s147
    %s162 = sphi 0, %s148
    %s166 = sphi 0, %s166
    %s168 = sphi 0, %s166
    %s169 = sphi 0, %s168
    %s183 = sphi 0, %s169
    %s187 = sphi 0, %s187
    %s189 = sphi 0, %s187
    %s190 = sphi 0, %s189
    %s204 = sphi 0, %s190
    %s208 = sphi 0, %s208
    %s210 = sphi 0, %s208
    %s211 = sphi 0, %s210
    %s225 = sphi 0, %s211
    %s229 = sphi 0, %s229
    %s231 = sphi 0, %s229
    %s232 = sphi 0, %s231
    %s246 = sphi 0, %s232
    %s250 = sphi 0, %s250
    %s252 = sphi 0, %s250
    %s253 = sphi 0, %s252
    %s267 = sphi 0, %s253
    %s271 = sphi 0, %s271
    %s273 = sphi 0, %s271
    %s274 = sphi 0, %s273
    %s288 = sphi 0, %s274
    %s292 = sphi 0, %s292
    %s294 = sphi 0, %s292
    %s295 = sphi 0, %s294
    %s309 = sphi 0, %s295
    %s313 = sphi 0, %s313
    %s315 = sphi 0, %s313
    %s316 = sphi 0, %s315
    %s330 = sphi 0, %s316
    %s334 = sphi 0, %s334
    %s336 = sphi 0, %s334
    %s337 = sphi 0, %s336
    %s351 = sphi 0, %s337
    %s355 = sphi 0, %s355
    %s357 = sphi 0, %s355
    %s358 = sphi 0, %s357
    %s372 = sphi 0, %s358
    %s376 = sphi 0, %s376
    %s378 = sphi 0, %s376
    %s379 = sphi 0, %s378
    %s393 = sphi 0, %s379
    %s397 = sphi 0, %s397
    %s399 = sphi 0, %s397
    %s400 = sphi 0, %s399
    %s414 = sphi 0, %s400
    %s418 = sphi 0, %s418
    %s420 = sphi 0, %s418
    %s421 = sphi 0, %s420
    %s435 = sphi 0, %s421
    %s439 = sphi 0, %s439
    %s441 = sphi 0, %s439
    %s442 = sphi 0, %s441
    %s456 = sphi 0, %s442
    %s460 = sphi 0, %s460
    %s462 = sphi 0, %s460
    %s463 = sphi 0, %s462
    %s477 = sphi 0, %s463
    %s481 = sphi 0, %s481
    %s483 = sphi 0, %s481
    %s484 = sphi 0, %s483
    %s498 = sphi 0, %s484
    %s502 = sphi 0, %s502
    %s504 = sphi 0, %s502
    %s505 = sphi 0, %s504
    %s519 = sphi 0, %s505
    %s523 = sphi 0, %s523
    %s525 = sphi 0, %s523
    %s526 = sphi 0, %s525
    %s540 = sphi 0, %s526
    %s544 = sphi 0, %s544
    %s546 = sphi 0, %s544
    %s547 = sphi 0, %s546
    %s561 = sphi 0, %s547
    %s565 = sphi 0, %s565
    %s567 = sphi 0, %s565
    %s568 = sphi 0, %s567
    %s582 = sphi 0, %s568
    %s586 = sphi 0, %s586
    %s588 = sphi 0, %s586
    %s589 = sphi 0, %s588
    %s603 = sphi 0, %s589
    %s607 = sphi 0, %s607
    %s609 = sphi 0, %s607
    %s610 = sphi 0, %s609
    %s624 = sphi 0, %s610
    %s628 = sphi 0, %s628
    %s630 = sphi 0, %s628
    %s631 = sphi 0, %s630
    %s645 = sphi 0, %s631
    %s649 = sphi 0, %s649
    %s651 = sphi 0, %s649
    %s652 = sphi 0, %s651
    %s666 = sphi 0, %s652
    %s670 = sphi 0, %s670
    %s672 = sphi 0, %s670
    %s673 = sphi 0, %s672
    %s687 = sphi 0, %s673
    %s691 = sphi 0, %s691
    %s693 = sphi 0, %s691
    %s694 = sphi 0, %s693
    %s708 = sphi 0, %s694
    %s712 = sphi 0, %s712
    %s714 = sphi 0, %s712
    %s715 = sphi 0, %s714
    %s729 = sphi 0, %s715
    %s735 = sphi 0, %s737
    %s738 = sphi 0, %s735
    %s739 = sphi 0, %s738
    %s755 = sphi 0, %s739
  $region4: #{_lambda_.1} parent=0 // loop_header_branch
    %72 = sbr.rel (%p70) target = $region8
  $region5: #{_lambda_.1} parent=0 // loop_body
    %s74 = ssub.s32 %s69, 1
    %s75 = ssub.s32 %s69, 2
    %s76 = sadd.s32 %s69, 1
    %s77 = ssub.s32 %s69, %s76
    %p78 = scmp.eq.s32.totalorder %s77, 0
    %s80 = sadd.s32 %s79, 1
    %s81 = scalar_select %p78, %s79, %s80
    %p84 = pneg %p78
    %p85 = scmp.eq.s32.totalorder %s69, 1
    %p86 = por %p84, %p85
    %p87 = scmp.ne.s32.totalorder %s79, %s82
    %p88 = scmp.eq.s32.totalorder %s69, 0
    %p89 = por %p87, %p88
    %p90 = scmp.ne.s32.totalorder %s79, %s82
    %p91 = scmp.eq.s32.totalorder %s74, 1
    %p92 = por %p90, %p91
    %p93 = scmp.ne.s32.totalorder %s82, %s83
    %p94 = scmp.eq.s32.totalorder %s74, 0
    %p95 = por %p93, %p94
    %p96 = scmp.ne.s32.totalorder %s82, %s83
    %p97 = scmp.eq.s32.totalorder %s75, 1
    %p98 = por %p96, %p97
    %p100 = scmp.ne.s32.totalorder %s83, %s99
    %p101 = scmp.eq.s32.totalorder %s75, 0
    %p102 = por %p100, %p101
    %s104 = sadd.s32 %s103, 1
    %p107 = scmp.eq.s32.totalorder %s69, 1
    %p108 = scmp.ne.s32.totalorder %s103, %s105
    %p109 = scmp.eq.s32.totalorder %s69, 0
    %p110 = por %p108, %p109
    %p111 = scmp.ne.s32.totalorder %s103, %s105
    %p112 = scmp.eq.s32.totalorder %s74, 1
    %p113 = por %p111, %p112
    %p114 = scmp.ne.s32.totalorder %s105, %s106
    %p115 = scmp.eq.s32.totalorder %s74, 0
    %p116 = por %p114, %p115
    %p117 = scmp.ne.s32.totalorder %s105, %s106
    %p118 = scmp.eq.s32.totalorder %s75, 1
    %p119 = por %p117, %p118
    %p121 = scmp.ne.s32.totalorder %s106, %s120
    %p122 = scmp.eq.s32.totalorder %s75, 0
    %p123 = por %p121, %p122
    %s125 = sadd.s32 %s124, 1
    %p128 = scmp.eq.s32.totalorder %s69, 1
    %p129 = scmp.ne.s32.totalorder %s124, %s126
    %p130 = scmp.eq.s32.totalorder %s69, 0
    %p131 = por %p129, %p130
    %p132 = scmp.ne.s32.totalorder %s124, %s126
    %p133 = scmp.eq.s32.totalorder %s74, 1
    %p134 = por %p132, %p133
    %p135 = scmp.ne.s32.totalorder %s126, %s127
    %p136 = scmp.eq.s32.totalorder %s74, 0
    %p137 = por %p135, %p136
    %p138 = scmp.ne.s32.totalorder %s126, %s127
    %p139 = scmp.eq.s32.totalorder %s75, 1
    %p140 = por %p138, %p139
    %p142 = scmp.ne.s32.totalorder %s127, %s141
    %p143 = scmp.eq.s32.totalorder %s75, 0
    %p144 = por %p142, %p143
    %s146 = sadd.s32 %s145, 1
    %p149 = scmp.eq.s32.totalorder %s69, 1
    %p150 = scmp.ne.s32.totalorder %s145, %s147
    %p151 = scmp.eq.s32.totalorder %s69, 0
    %p152 = por %p150, %p151
    %p153 = scmp.ne.s32.totalorder %s145, %s147
    %p154 = scmp.eq.s32.totalorder %s74, 1
    %p155 = por %p153, %p154
    %p156 = scmp.ne.s32.totalorder %s147, %s148
    %p157 = scmp.eq.s32.totalorder %s74, 0
    %p158 = por %p156, %p157
    %p159 = scmp.ne.s32.totalorder %s147, %s148
    %p160 = scmp.eq.s32.totalorder %s75, 1
    %p161 = por %p159, %p160
    %p163 = scmp.ne.s32.totalorder %s148, %s162
    %p164 = scmp.eq.s32.totalorder %s75, 0
    %p165 = por %p163, %p164
    %s167 = sadd.s32 %s166, 1
    %p170 = scmp.eq.s32.totalorder %s69, 1
    %p171 = scmp.ne.s32.totalorder %s166, %s168
    %p172 = scmp.eq.s32.totalorder %s69, 0
    %p173 = por %p171, %p172
    %p174 = scmp.ne.s32.totalorder %s166, %s168
    %p175 = scmp.eq.s32.totalorder %s74, 1
    %p176 = por %p174, %p175
    %p177 = scmp.ne.s32.totalorder %s168, %s169
    %p178 = scmp.eq.s32.totalorder %s74, 0
    %p179 = por %p177, %p178
    %p180 = scmp.ne.s32.totalorder %s168, %s169
    %p181 = scmp.eq.s32.totalorder %s75, 1
    %p182 = por %p180, %p181
    %p184 = scmp.ne.s32.totalorder %s169, %s183
    %p185 = scmp.eq.s32.totalorder %s75, 0
    %p186 = por %p184, %p185
    %s188 = sadd.s32 %s187, 1
    %p191 = scmp.eq.s32.totalorder %s69, 1
    %p192 = scmp.ne.s32.totalorder %s187, %s189
    %p193 = scmp.eq.s32.totalorder %s69, 0
    %p194 = por %p192, %p193
    %p195 = scmp.ne.s32.totalorder %s187, %s189
    %p196 = scmp.eq.s32.totalorder %s74, 1
    %p197 = por %p195, %p196
    %p198 = scmp.ne.s32.totalorder %s189, %s190
    %p199 = scmp.eq.s32.totalorder %s74, 0
    %p200 = por %p198, %p199
    %p201 = scmp.ne.s32.totalorder %s189, %s190
    %p202 = scmp.eq.s32.totalorder %s75, 1
    %p203 = por %p201, %p202
    %p205 = scmp.ne.s32.totalorder %s190, %s204
    %p206 = scmp.eq.s32.totalorder %s75, 0
    %p207 = por %p205, %p206
    %s209 = sadd.s32 %s208, 1
    %p212 = scmp.eq.s32.totalorder %s69, 1
    %p213 = scmp.ne.s32.totalorder %s208, %s210
    %p214 = scmp.eq.s32.totalorder %s69, 0
    %p215 = por %p213, %p214
    %p216 = scmp.ne.s32.totalorder %s208, %s210
    %p217 = scmp.eq.s32.totalorder %s74, 1
    %p218 = por %p216, %p217
    %p219 = scmp.ne.s32.totalorder %s210, %s211
    %p220 = scmp.eq.s32.totalorder %s74, 0
    %p221 = por %p219, %p220
    %p222 = scmp.ne.s32.totalorder %s210, %s211
    %p223 = scmp.eq.s32.totalorder %s75, 1
    %p224 = por %p222, %p223
    %p226 = scmp.ne.s32.totalorder %s211, %s225
    %p227 = scmp.eq.s32.totalorder %s75, 0
    %p228 = por %p226, %p227
    %s230 = sadd.s32 %s229, 1
    %p233 = scmp.eq.s32.totalorder %s69, 1
    %p234 = scmp.ne.s32.totalorder %s229, %s231
    %p235 = scmp.eq.s32.totalorder %s69, 0
    %p236 = por %p234, %p235
    %p237 = scmp.ne.s32.totalorder %s229, %s231
    %p238 = scmp.eq.s32.totalorder %s74, 1
    %p239 = por %p237, %p238
    %p240 = scmp.ne.s32.totalorder %s231, %s232
    %p241 = scmp.eq.s32.totalorder %s74, 0
    %p242 = por %p240, %p241
    %p243 = scmp.ne.s32.totalorder %s231, %s232
    %p244 = scmp.eq.s32.totalorder %s75, 1
    %p245 = por %p243, %p244
    %p247 = scmp.ne.s32.totalorder %s232, %s246
    %p248 = scmp.eq.s32.totalorder %s75, 0
    %p249 = por %p247, %p248
    %s251 = sadd.s32 %s250, 1
    %p254 = scmp.eq.s32.totalorder %s69, 1
    %p255 = scmp.ne.s32.totalorder %s250, %s252
    %p256 = scmp.eq.s32.totalorder %s69, 0
    %p257 = por %p255, %p256
    %p258 = scmp.ne.s32.totalorder %s250, %s252
    %p259 = scmp.eq.s32.totalorder %s74, 1
    %p260 = por %p258, %p259
    %p261 = scmp.ne.s32.totalorder %s252, %s253
    %p262 = scmp.eq.s32.totalorder %s74, 0
    %p263 = por %p261, %p262
    %p264 = scmp.ne.s32.totalorder %s252, %s253
    %p265 = scmp.eq.s32.totalorder %s75, 1
    %p266 = por %p264, %p265
    %p268 = scmp.ne.s32.totalorder %s253, %s267
    %p269 = scmp.eq.s32.totalorder %s75, 0
    %p270 = por %p268, %p269
    %s272 = sadd.s32 %s271, 1
    %p275 = scmp.eq.s32.totalorder %s69, 1
    %p276 = scmp.ne.s32.totalorder %s271, %s273
    %p277 = scmp.eq.s32.totalorder %s69, 0
    %p278 = por %p276, %p277
    %p279 = scmp.ne.s32.totalorder %s271, %s273
    %p280 = scmp.eq.s32.totalorder %s74, 1
    %p281 = por %p279, %p280
    %p282 = scmp.ne.s32.totalorder %s273, %s274
    %p283 = scmp.eq.s32.totalorder %s74, 0
    %p284 = por %p282, %p283
    %p285 = scmp.ne.s32.totalorder %s273, %s274
    %p286 = scmp.eq.s32.totalorder %s75, 1
    %p287 = por %p285, %p286
    %p289 = scmp.ne.s32.totalorder %s274, %s288
    %p290 = scmp.eq.s32.totalorder %s75, 0
    %p291 = por %p289, %p290
    %s293 = sadd.s32 %s292, 1
    %p296 = scmp.eq.s32.totalorder %s69, 1
    %p297 = scmp.ne.s32.totalorder %s292, %s294
    %p298 = scmp.eq.s32.totalorder %s69, 0
    %p299 = por %p297, %p298
    %p300 = scmp.ne.s32.totalorder %s292, %s294
    %p301 = scmp.eq.s32.totalorder %s74, 1
    %p302 = por %p300, %p301
    %p303 = scmp.ne.s32.totalorder %s294, %s295
    %p304 = scmp.eq.s32.totalorder %s74, 0
    %p305 = por %p303, %p304
    %p306 = scmp.ne.s32.totalorder %s294, %s295
    %p307 = scmp.eq.s32.totalorder %s75, 1
    %p308 = por %p306, %p307
    %p310 = scmp.ne.s32.totalorder %s295, %s309
    %p311 = scmp.eq.s32.totalorder %s75, 0
    %p312 = por %p310, %p311
    %s314 = sadd.s32 %s313, 1
    %p317 = scmp.eq.s32.totalorder %s69, 1
    %p318 = scmp.ne.s32.totalorder %s313, %s315
    %p319 = scmp.eq.s32.totalorder %s69, 0
    %p320 = por %p318, %p319
    %p321 = scmp.ne.s32.totalorder %s313, %s315
    %p322 = scmp.eq.s32.totalorder %s74, 1
    %p323 = por %p321, %p322
    %p324 = scmp.ne.s32.totalorder %s315, %s316
    %p325 = scmp.eq.s32.totalorder %s74, 0
    %p326 = por %p324, %p325
    %p327 = scmp.ne.s32.totalorder %s315, %s316
    %p328 = scmp.eq.s32.totalorder %s75, 1
    %p329 = por %p327, %p328
    %p331 = scmp.ne.s32.totalorder %s316, %s330
    %p332 = scmp.eq.s32.totalorder %s75, 0
    %p333 = por %p331, %p332
    %s335 = sadd.s32 %s334, 1
    %p338 = scmp.eq.s32.totalorder %s69, 1
    %p339 = scmp.ne.s32.totalorder %s334, %s336
    %p340 = scmp.eq.s32.totalorder %s69, 0
    %p341 = por %p339, %p340
    %p342 = scmp.ne.s32.totalorder %s334, %s336
    %p343 = scmp.eq.s32.totalorder %s74, 1
    %p344 = por %p342, %p343
    %p345 = scmp.ne.s32.totalorder %s336, %s337
    %p346 = scmp.eq.s32.totalorder %s74, 0
    %p347 = por %p345, %p346
    %p348 = scmp.ne.s32.totalorder %s336, %s337
    %p349 = scmp.eq.s32.totalorder %s75, 1
    %p350 = por %p348, %p349
    %p352 = scmp.ne.s32.totalorder %s337, %s351
    %p353 = scmp.eq.s32.totalorder %s75, 0
    %p354 = por %p352, %p353
    %s356 = sadd.s32 %s355, 1
    %p359 = scmp.eq.s32.totalorder %s69, 1
    %p360 = scmp.ne.s32.totalorder %s355, %s357
    %p361 = scmp.eq.s32.totalorder %s69, 0
    %p362 = por %p360, %p361
    %p363 = scmp.ne.s32.totalorder %s355, %s357
    %p364 = scmp.eq.s32.totalorder %s74, 1
    %p365 = por %p363, %p364
    %p366 = scmp.ne.s32.totalorder %s357, %s358
    %p367 = scmp.eq.s32.totalorder %s74, 0
    %p368 = por %p366, %p367
    %p369 = scmp.ne.s32.totalorder %s357, %s358
    %p370 = scmp.eq.s32.totalorder %s75, 1
    %p371 = por %p369, %p370
    %p373 = scmp.ne.s32.totalorder %s358, %s372
    %p374 = scmp.eq.s32.totalorder %s75, 0
    %p375 = por %p373, %p374
    %s377 = sadd.s32 %s376, 1
    %p380 = scmp.eq.s32.totalorder %s69, 1
    %p381 = scmp.ne.s32.totalorder %s376, %s378
    %p382 = scmp.eq.s32.totalorder %s69, 0
    %p383 = por %p381, %p382
    %p384 = scmp.ne.s32.totalorder %s376, %s378
    %p385 = scmp.eq.s32.totalorder %s74, 1
    %p386 = por %p384, %p385
    %p387 = scmp.ne.s32.totalorder %s378, %s379
    %p388 = scmp.eq.s32.totalorder %s74, 0
    %p389 = por %p387, %p388
    %p390 = scmp.ne.s32.totalorder %s378, %s379
    %p391 = scmp.eq.s32.totalorder %s75, 1
    %p392 = por %p390, %p391
    %p394 = scmp.ne.s32.totalorder %s379, %s393
    %p395 = scmp.eq.s32.totalorder %s75, 0
    %p396 = por %p394, %p395
    %s398 = sadd.s32 %s397, 1
    %p401 = scmp.eq.s32.totalorder %s69, 1
    %p402 = scmp.ne.s32.totalorder %s397, %s399
    %p403 = scmp.eq.s32.totalorder %s69, 0
    %p404 = por %p402, %p403
    %p405 = scmp.ne.s32.totalorder %s397, %s399
    %p406 = scmp.eq.s32.totalorder %s74, 1
    %p407 = por %p405, %p406
    %p408 = scmp.ne.s32.totalorder %s399, %s400
    %p409 = scmp.eq.s32.totalorder %s74, 0
    %p410 = por %p408, %p409
    %p411 = scmp.ne.s32.totalorder %s399, %s400
    %p412 = scmp.eq.s32.totalorder %s75, 1
    %p413 = por %p411, %p412
    %p415 = scmp.ne.s32.totalorder %s400, %s414
    %p416 = scmp.eq.s32.totalorder %s75, 0
    %p417 = por %p415, %p416
    %s419 = sadd.s32 %s418, 1
    %p422 = scmp.eq.s32.totalorder %s69, 1
    %p423 = scmp.ne.s32.totalorder %s418, %s420
    %p424 = scmp.eq.s32.totalorder %s69, 0
    %p425 = por %p423, %p424
    %p426 = scmp.ne.s32.totalorder %s418, %s420
    %p427 = scmp.eq.s32.totalorder %s74, 1
    %p428 = por %p426, %p427
    %p429 = scmp.ne.s32.totalorder %s420, %s421
    %p430 = scmp.eq.s32.totalorder %s74, 0
    %p431 = por %p429, %p430
    %p432 = scmp.ne.s32.totalorder %s420, %s421
    %p433 = scmp.eq.s32.totalorder %s75, 1
    %p434 = por %p432, %p433
    %p436 = scmp.ne.s32.totalorder %s421, %s435
    %p437 = scmp.eq.s32.totalorder %s75, 0
    %p438 = por %p436, %p437
    %s440 = sadd.s32 %s439, 1
    %p443 = scmp.eq.s32.totalorder %s69, 1
    %p444 = scmp.ne.s32.totalorder %s439, %s441
    %p445 = scmp.eq.s32.totalorder %s69, 0
    %p446 = por %p444, %p445
    %p447 = scmp.ne.s32.totalorder %s439, %s441
    %p448 = scmp.eq.s32.totalorder %s74, 1
    %p449 = por %p447, %p448
    %p450 = scmp.ne.s32.totalorder %s441, %s442
    %p451 = scmp.eq.s32.totalorder %s74, 0
    %p452 = por %p450, %p451
    %p453 = scmp.ne.s32.totalorder %s441, %s442
    %p454 = scmp.eq.s32.totalorder %s75, 1
    %p455 = por %p453, %p454
    %p457 = scmp.ne.s32.totalorder %s442, %s456
    %p458 = scmp.eq.s32.totalorder %s75, 0
    %p459 = por %p457, %p458
    %s461 = sadd.s32 %s460, 1
    %p464 = scmp.eq.s32.totalorder %s69, 1
    %p465 = scmp.ne.s32.totalorder %s460, %s462
    %p466 = scmp.eq.s32.totalorder %s69, 0
    %p467 = por %p465, %p466
    %p468 = scmp.ne.s32.totalorder %s460, %s462
    %p469 = scmp.eq.s32.totalorder %s74, 1
    %p470 = por %p468, %p469
    %p471 = scmp.ne.s32.totalorder %s462, %s463
    %p472 = scmp.eq.s32.totalorder %s74, 0
    %p473 = por %p471, %p472
    %p474 = scmp.ne.s32.totalorder %s462, %s463
    %p475 = scmp.eq.s32.totalorder %s75, 1
    %p476 = por %p474, %p475
    %p478 = scmp.ne.s32.totalorder %s463, %s477
    %p479 = scmp.eq.s32.totalorder %s75, 0
    %p480 = por %p478, %p479
    %s482 = sadd.s32 %s481, 1
    %p485 = scmp.eq.s32.totalorder %s69, 1
    %p486 = scmp.ne.s32.totalorder %s481, %s483
    %p487 = scmp.eq.s32.totalorder %s69, 0
    %p488 = por %p486, %p487
    %p489 = scmp.ne.s32.totalorder %s481, %s483
    %p490 = scmp.eq.s32.totalorder %s74, 1
    %p491 = por %p489, %p490
    %p492 = scmp.ne.s32.totalorder %s483, %s484
    %p493 = scmp.eq.s32.totalorder %s74, 0
    %p494 = por %p492, %p493
    %p495 = scmp.ne.s32.totalorder %s483, %s484
    %p496 = scmp.eq.s32.totalorder %s75, 1
    %p497 = por %p495, %p496
    %p499 = scmp.ne.s32.totalorder %s484, %s498
    %p500 = scmp.eq.s32.totalorder %s75, 0
    %p501 = por %p499, %p500
    %s503 = sadd.s32 %s502, 1
    %p506 = scmp.eq.s32.totalorder %s69, 1
    %p507 = scmp.ne.s32.totalorder %s502, %s504
    %p508 = scmp.eq.s32.totalorder %s69, 0
    %p509 = por %p507, %p508
    %p510 = scmp.ne.s32.totalorder %s502, %s504
    %p511 = scmp.eq.s32.totalorder %s74, 1
    %p512 = por %p510, %p511
    %p513 = scmp.ne.s32.totalorder %s504, %s505
    %p514 = scmp.eq.s32.totalorder %s74, 0
    %p515 = por %p513, %p514
    %p516 = scmp.ne.s32.totalorder %s504, %s505
    %p517 = scmp.eq.s32.totalorder %s75, 1
    %p518 = por %p516, %p517
    %p520 = scmp.ne.s32.totalorder %s505, %s519
    %p521 = scmp.eq.s32.totalorder %s75, 0
    %p522 = por %p520, %p521
    %s524 = sadd.s32 %s523, 1
    %p527 = scmp.eq.s32.totalorder %s69, 1
    %p528 = scmp.ne.s32.totalorder %s523, %s525
    %p529 = scmp.eq.s32.totalorder %s69, 0
    %p530 = por %p528, %p529
    %p531 = scmp.ne.s32.totalorder %s523, %s525
    %p532 = scmp.eq.s32.totalorder %s74, 1
    %p533 = por %p531, %p532
    %p534 = scmp.ne.s32.totalorder %s525, %s526
    %p535 = scmp.eq.s32.totalorder %s74, 0
    %p536 = por %p534, %p535
    %p537 = scmp.ne.s32.totalorder %s525, %s526
    %p538 = scmp.eq.s32.totalorder %s75, 1
    %p539 = por %p537, %p538
    %p541 = scmp.ne.s32.totalorder %s526, %s540
    %p542 = scmp.eq.s32.totalorder %s75, 0
    %p543 = por %p541, %p542
    %s545 = sadd.s32 %s544, 1
    %p548 = scmp.eq.s32.totalorder %s69, 1
    %p549 = scmp.ne.s32.totalorder %s544, %s546
    %p550 = scmp.eq.s32.totalorder %s69, 0
    %p551 = por %p549, %p550
    %p552 = scmp.ne.s32.totalorder %s544, %s546
    %p553 = scmp.eq.s32.totalorder %s74, 1
    %p554 = por %p552, %p553
    %p555 = scmp.ne.s32.totalorder %s546, %s547
    %p556 = scmp.eq.s32.totalorder %s74, 0
    %p557 = por %p555, %p556
    %p558 = scmp.ne.s32.totalorder %s546, %s547
    %p559 = scmp.eq.s32.totalorder %s75, 1
    %p560 = por %p558, %p559
    %p562 = scmp.ne.s32.totalorder %s547, %s561
    %p563 = scmp.eq.s32.totalorder %s75, 0
    %p564 = por %p562, %p563
    %s566 = sadd.s32 %s565, 1
    %p569 = scmp.eq.s32.totalorder %s69, 1
    %p570 = scmp.ne.s32.totalorder %s565, %s567
    %p571 = scmp.eq.s32.totalorder %s69, 0
    %p572 = por %p570, %p571
    %p573 = scmp.ne.s32.totalorder %s565, %s567
    %p574 = scmp.eq.s32.totalorder %s74, 1
    %p575 = por %p573, %p574
    %p576 = scmp.ne.s32.totalorder %s567, %s568
    %p577 = scmp.eq.s32.totalorder %s74, 0
    %p578 = por %p576, %p577
    %p579 = scmp.ne.s32.totalorder %s567, %s568
    %p580 = scmp.eq.s32.totalorder %s75, 1
    %p581 = por %p579, %p580
    %p583 = scmp.ne.s32.totalorder %s568, %s582
    %p584 = scmp.eq.s32.totalorder %s75, 0
    %p585 = por %p583, %p584
    %s587 = sadd.s32 %s586, 1
    %p590 = scmp.eq.s32.totalorder %s69, 1
    %p591 = scmp.ne.s32.totalorder %s586, %s588
    %p592 = scmp.eq.s32.totalorder %s69, 0
    %p593 = por %p591, %p592
    %p594 = scmp.ne.s32.totalorder %s586, %s588
    %p595 = scmp.eq.s32.totalorder %s74, 1
    %p596 = por %p594, %p595
    %p597 = scmp.ne.s32.totalorder %s588, %s589
    %p598 = scmp.eq.s32.totalorder %s74, 0
    %p599 = por %p597, %p598
    %p600 = scmp.ne.s32.totalorder %s588, %s589
    %p601 = scmp.eq.s32.totalorder %s75, 1
    %p602 = por %p600, %p601
    %p604 = scmp.ne.s32.totalorder %s589, %s603
    %p605 = scmp.eq.s32.totalorder %s75, 0
    %p606 = por %p604, %p605
    %s608 = sadd.s32 %s607, 1
    %p611 = scmp.eq.s32.totalorder %s69, 1
    %p612 = scmp.ne.s32.totalorder %s607, %s609
    %p613 = scmp.eq.s32.totalorder %s69, 0
    %p614 = por %p612, %p613
    %p615 = scmp.ne.s32.totalorder %s607, %s609
    %p616 = scmp.eq.s32.totalorder %s74, 1
    %p617 = por %p615, %p616
    %p618 = scmp.ne.s32.totalorder %s609, %s610
    %p619 = scmp.eq.s32.totalorder %s74, 0
    %p620 = por %p618, %p619
    %p621 = scmp.ne.s32.totalorder %s609, %s610
    %p622 = scmp.eq.s32.totalorder %s75, 1
    %p623 = por %p621, %p622
    %p625 = scmp.ne.s32.totalorder %s610, %s624
    %p626 = scmp.eq.s32.totalorder %s75, 0
    %p627 = por %p625, %p626
    %s629 = sadd.s32 %s628, 1
    %p632 = scmp.eq.s32.totalorder %s69, 1
    %p633 = scmp.ne.s32.totalorder %s628, %s630
    %p634 = scmp.eq.s32.totalorder %s69, 0
    %p635 = por %p633, %p634
    %p636 = scmp.ne.s32.totalorder %s628, %s630
    %p637 = scmp.eq.s32.totalorder %s74, 1
    %p638 = por %p636, %p637
    %p639 = scmp.ne.s32.totalorder %s630, %s631
    %p640 = scmp.eq.s32.totalorder %s74, 0
    %p641 = por %p639, %p640
    %p642 = scmp.ne.s32.totalorder %s630, %s631
    %p643 = scmp.eq.s32.totalorder %s75, 1
    %p644 = por %p642, %p643
    %p646 = scmp.ne.s32.totalorder %s631, %s645
    %p647 = scmp.eq.s32.totalorder %s75, 0
    %p648 = por %p646, %p647
    %s650 = sadd.s32 %s649, 1
    %p653 = scmp.eq.s32.totalorder %s69, 1
    %p654 = scmp.ne.s32.totalorder %s649, %s651
    %p655 = scmp.eq.s32.totalorder %s69, 0
    %p656 = por %p654, %p655
    %p657 = scmp.ne.s32.totalorder %s649, %s651
    %p658 = scmp.eq.s32.totalorder %s74, 1
    %p659 = por %p657, %p658
    %p660 = scmp.ne.s32.totalorder %s651, %s652
    %p661 = scmp.eq.s32.totalorder %s74, 0
    %p662 = por %p660, %p661
    %p663 = scmp.ne.s32.totalorder %s651, %s652
    %p664 = scmp.eq.s32.totalorder %s75, 1
    %p665 = por %p663, %p664
    %p667 = scmp.ne.s32.totalorder %s652, %s666
    %p668 = scmp.eq.s32.totalorder %s75, 0
    %p669 = por %p667, %p668
    %s671 = sadd.s32 %s670, 1
    %p674 = scmp.eq.s32.totalorder %s69, 1
    %p675 = scmp.ne.s32.totalorder %s670, %s672
    %p676 = scmp.eq.s32.totalorder %s69, 0
    %p677 = por %p675, %p676
    %p678 = scmp.ne.s32.totalorder %s670, %s672
    %p679 = scmp.eq.s32.totalorder %s74, 1
    %p680 = por %p678, %p679
    %p681 = scmp.ne.s32.totalorder %s672, %s673
    %p682 = scmp.eq.s32.totalorder %s74, 0
    %p683 = por %p681, %p682
    %p684 = scmp.ne.s32.totalorder %s672, %s673
    %p685 = scmp.eq.s32.totalorder %s75, 1
    %p686 = por %p684, %p685
    %p688 = scmp.ne.s32.totalorder %s673, %s687
    %p689 = scmp.eq.s32.totalorder %s75, 0
    %p690 = por %p688, %p689
    %s692 = sadd.s32 %s691, 1
    %p695 = scmp.eq.s32.totalorder %s69, 1
    %p696 = scmp.ne.s32.totalorder %s691, %s693
    %p697 = scmp.eq.s32.totalorder %s69, 0
    %p698 = por %p696, %p697
    %p699 = scmp.ne.s32.totalorder %s691, %s693
    %p700 = scmp.eq.s32.totalorder %s74, 1
    %p701 = por %p699, %p700
    %p702 = scmp.ne.s32.totalorder %s693, %s694
    %p703 = scmp.eq.s32.totalorder %s74, 0
    %p704 = por %p702, %p703
    %p705 = scmp.ne.s32.totalorder %s693, %s694
    %p706 = scmp.eq.s32.totalorder %s75, 1
    %p707 = por %p705, %p706
    %p709 = scmp.ne.s32.totalorder %s694, %s708
    %p710 = scmp.eq.s32.totalorder %s75, 0
    %p711 = por %p709, %p710
    %s713 = sadd.s32 %s712, 1
    %p716 = scmp.eq.s32.totalorder %s69, 1
    %p717 = scmp.ne.s32.totalorder %s712, %s714
    %p718 = scmp.eq.s32.totalorder %s69, 0
    %p719 = por %p717, %p718
    %p720 = scmp.ne.s32.totalorder %s712, %s714
    %p721 = scmp.eq.s32.totalorder %s74, 1
    %p722 = por %p720, %p721
    %p723 = scmp.ne.s32.totalorder %s714, %s715
    %p724 = scmp.eq.s32.totalorder %s74, 0
    %p725 = por %p723, %p724
    %p726 = scmp.ne.s32.totalorder %s714, %s715
    %p727 = scmp.eq.s32.totalorder %s75, 1
    %p728 = por %p726, %p727
    %p730 = scmp.ne.s32.totalorder %s715, %s729
    %p731 = scmp.eq.s32.totalorder %s75, 0
    %p732 = por %p730, %p731
    %s733 = ssub.s32 %s69, %s76
    %p734 = scmp.eq.s32.totalorder %s733, 0
    %s736 = sadd.s32 %s735, 1
    %s737 = scalar_select %p734, %s735, %s736
    %p740 = pneg %p734
    %p741 = scmp.eq.s32.totalorder %s69, 1
    %p742 = por %p740, %p741
    %p743 = scmp.ne.s32.totalorder %s735, %s738
    %p744 = scmp.eq.s32.totalorder %s69, 0
    %p745 = por %p743, %p744
    %p746 = scmp.ne.s32.totalorder %s735, %s738
    %p747 = scmp.eq.s32.totalorder %s74, 1
    %p748 = por %p746, %p747
    %p749 = scmp.ne.s32.totalorder %s738, %s739
    %p750 = scmp.eq.s32.totalorder %s74, 0
    %p751 = por %p749, %p750
    %p752 = scmp.ne.s32.totalorder %s738, %s739
    %p753 = scmp.eq.s32.totalorder %s75, 1
    %p754 = por %p752, %p753
    %p756 = scmp.ne.s32.totalorder %s739, %s755
    %p757 = scmp.eq.s32.totalorder %s75, 0
    %p758 = por %p756, %p757
    %p759 = scmp.le.s32.totalorder 1, %s69
    %p760 = scmp.lt.s32.totalorder %s69, 3
    %p761 = pnand %p759, %p760
    %p762 = pneg %p761
    // Predicated region
    $region9: #{_lambda_.1} parent=5 // pred_check
      _
    $region10: #{_lambda_.1} parent=5 // pred_check_branch
      %764 = sbr.rel (%p761) target = $region12
    $region11: #{_lambda_.1} parent=5 // pred_region
      %s765 = ssub.s32 %s69, 1
      // Predicated region
      $region13: #{_lambda_.1} parent=11 // pred_check
        %p766 = pneg %p116
      $region14: #{_lambda_.1} parent=11 // pred_check_branch
        %768 = sbr.rel (%p766) target = $region16
      $region15: #{_lambda_.1} parent=11 // pred_region
        _
      $region16: #{_lambda_.1} parent=11 // pred_fallthru
        _
      // Predicated region
      $region17: #{_lambda_.1} parent=11 // pred_check
        %p769 = pneg %p137
      $region18: #{_lambda_.1} parent=11 // pred_check_branch
        %771 = sbr.rel (%p769) target = $region20
      $region19: #{_lambda_.1} parent=11 // pred_region
        _
      $region20: #{_lambda_.1} parent=11 // pred_fallthru
        _
      // Predicated region
      $region21: #{_lambda_.1} parent=11 // pred_check
        %p772 = pneg %p158
      $region22: #{_lambda_.1} parent=11 // pred_check_branch
        %774 = sbr.rel (%p772) target = $region24
      $region23: #{_lambda_.1} parent=11 // pred_region
        _
      $region24: #{_lambda_.1} parent=11 // pred_fallthru
        _
      // Predicated region
      $region25: #{_lambda_.1} parent=11 // pred_check
        %p775 = pneg %p179
      $region26: #{_lambda_.1} parent=11 // pred_check_branch
        %777 = sbr.rel (%p775) target = $region28
      $region27: #{_lambda_.1} parent=11 // pred_region
        _
      $region28: #{_lambda_.1} parent=11 // pred_fallthru
        _
      // Predicated region
      $region29: #{_lambda_.1} parent=11 // pred_check
        %p778 = pneg %p200
      $region30: #{_lambda_.1} parent=11 // pred_check_branch
        %780 = sbr.rel (%p778) target = $region32
      $region31: #{_lambda_.1} parent=11 // pred_region
        _
      $region32: #{_lambda_.1} parent=11 // pred_fallthru
        _
      // Predicated region
      $region33: #{_lambda_.1} parent=11 // pred_check
        %p781 = pneg %p221
      $region34: #{_lambda_.1} parent=11 // pred_check_branch
        %783 = sbr.rel (%p781) target = $region36
      $region35: #{_lambda_.1} parent=11 // pred_region
        _
      $region36: #{_lambda_.1} parent=11 // pred_fallthru
        _
      // Predicated region
      $region37: #{_lambda_.1} parent=11 // pred_check
        %p784 = pneg %p242
      $region38: #{_lambda_.1} parent=11 // pred_check_branch
        %786 = sbr.rel (%p784) target = $region40
      $region39: #{_lambda_.1} parent=11 // pred_region
        _
      $region40: #{_lambda_.1} parent=11 // pred_fallthru
        _
      // Predicated region
      $region41: #{_lambda_.1} parent=11 // pred_check
        %p787 = pneg %p263
      $region42: #{_lambda_.1} parent=11 // pred_check_branch
        %789 = sbr.rel (%p787) target = $region44
      $region43: #{_lambda_.1} parent=11 // pred_region
        _
      $region44: #{_lambda_.1} parent=11 // pred_fallthru
        _
      // Predicated region
      $region45: #{_lambda_.1} parent=11 // pred_check
        %p790 = pneg %p284
      $region46: #{_lambda_.1} parent=11 // pred_check_branch
        %792 = sbr.rel (%p790) target = $region48
      $region47: #{_lambda_.1} parent=11 // pred_region
        _
      $region48: #{_lambda_.1} parent=11 // pred_fallthru
        _
      // Predicated region
      $region49: #{_lambda_.1} parent=11 // pred_check
        %p793 = pneg %p305
      $region50: #{_lambda_.1} parent=11 // pred_check_branch
        %795 = sbr.rel (%p793) target = $region52
      $region51: #{_lambda_.1} parent=11 // pred_region
        _
      $region52: #{_lambda_.1} parent=11 // pred_fallthru
        _
      // Predicated region
      $region53: #{_lambda_.1} parent=11 // pred_check
        %p796 = pneg %p326
      $region54: #{_lambda_.1} parent=11 // pred_check_branch
        %798 = sbr.rel (%p796) target = $region56
      $region55: #{_lambda_.1} parent=11 // pred_region
        _
      $region56: #{_lambda_.1} parent=11 // pred_fallthru
        _
      // Predicated region
      $region57: #{_lambda_.1} parent=11 // pred_check
        %p799 = pneg %p347
      $region58: #{_lambda_.1} parent=11 // pred_check_branch
        %801 = sbr.rel (%p799) target = $region60
      $region59: #{_lambda_.1} parent=11 // pred_region
        _
      $region60: #{_lambda_.1} parent=11 // pred_fallthru
        _
      // Predicated region
      $region61: #{_lambda_.1} parent=11 // pred_check
        %p802 = pneg %p368
      $region62: #{_lambda_.1} parent=11 // pred_check_branch
        %804 = sbr.rel (%p802) target = $region64
      $region63: #{_lambda_.1} parent=11 // pred_region
        _
      $region64: #{_lambda_.1} parent=11 // pred_fallthru
        _
      // Predicated region
      $region65: #{_lambda_.1} parent=11 // pred_check
        %p805 = pneg %p389
      $region66: #{_lambda_.1} parent=11 // pred_check_branch
        %807 = sbr.rel (%p805) target = $region68
      $region67: #{_lambda_.1} parent=11 // pred_region
        _
      $region68: #{_lambda_.1} parent=11 // pred_fallthru
        _
      // Predicated region
      $region69: #{_lambda_.1} parent=11 // pred_check
        %p808 = pneg %p410
      $region70: #{_lambda_.1} parent=11 // pred_check_branch
        %810 = sbr.rel (%p808) target = $region72
      $region71: #{_lambda_.1} parent=11 // pred_region
        _
      $region72: #{_lambda_.1} parent=11 // pred_fallthru
        _
      // Predicated region
      $region73: #{_lambda_.1} parent=11 // pred_check
        %p811 = pneg %p431
      $region74: #{_lambda_.1} parent=11 // pred_check_branch
        %813 = sbr.rel (%p811) target = $region76
      $region75: #{_lambda_.1} parent=11 // pred_region
        _
      $region76: #{_lambda_.1} parent=11 // pred_fallthru
        _
      // Predicated region
      $region77: #{_lambda_.1} parent=11 // pred_check
        %p814 = pneg %p452
      $region78: #{_lambda_.1} parent=11 // pred_check_branch
        %816 = sbr.rel (%p814) target = $region80
      $region79: #{_lambda_.1} parent=11 // pred_region
        _
      $region80: #{_lambda_.1} parent=11 // pred_fallthru
        _
      // Predicated region
      $region81: #{_lambda_.1} parent=11 // pred_check
        %p817 = pneg %p473
      $region82: #{_lambda_.1} parent=11 // pred_check_branch
        %819 = sbr.rel (%p817) target = $region84
      $region83: #{_lambda_.1} parent=11 // pred_region
        _
      $region84: #{_lambda_.1} parent=11 // pred_fallthru
        _
      // Predicated region
      $region85: #{_lambda_.1} parent=11 // pred_check
        %p820 = pneg %p494
      $region86: #{_lambda_.1} parent=11 // pred_check_branch
        %822 = sbr.rel (%p820) target = $region88
      $region87: #{_lambda_.1} parent=11 // pred_region
        _
      $region88: #{_lambda_.1} parent=11 // pred_fallthru
        _
      // Predicated region
      $region89: #{_lambda_.1} parent=11 // pred_check
        %p823 = pneg %p515
      $region90: #{_lambda_.1} parent=11 // pred_check_branch
        %825 = sbr.rel (%p823) target = $region92
      $region91: #{_lambda_.1} parent=11 // pred_region
        _
      $region92: #{_lambda_.1} parent=11 // pred_fallthru
        _
      // Predicated region
      $region93: #{_lambda_.1} parent=11 // pred_check
        %p826 = pneg %p536
      $region94: #{_lambda_.1} parent=11 // pred_check_branch
        %828 = sbr.rel (%p826) target = $region96
      $region95: #{_lambda_.1} parent=11 // pred_region
        _
      $region96: #{_lambda_.1} parent=11 // pred_fallthru
        _
      // Predicated region
      $region97: #{_lambda_.1} parent=11 // pred_check
        %p829 = pneg %p557
      $region98: #{_lambda_.1} parent=11 // pred_check_branch
        %831 = sbr.rel (%p829) target = $region100
      $region99: #{_lambda_.1} parent=11 // pred_region
        _
      $region100: #{_lambda_.1} parent=11 // pred_fallthru
        _
      // Predicated region
      $region101: #{_lambda_.1} parent=11 // pred_check
        %p832 = pneg %p578
      $region102: #{_lambda_.1} parent=11 // pred_check_branch
        %834 = sbr.rel (%p832) target = $region104
      $region103: #{_lambda_.1} parent=11 // pred_region
        _
      $region104: #{_lambda_.1} parent=11 // pred_fallthru
        _
      // Predicated region
      $region105: #{_lambda_.1} parent=11 // pred_check
        %p835 = pneg %p599
      $region106: #{_lambda_.1} parent=11 // pred_check_branch
        %837 = sbr.rel (%p835) target = $region108
      $region107: #{_lambda_.1} parent=11 // pred_region
        _
      $region108: #{_lambda_.1} parent=11 // pred_fallthru
        _
      // Predicated region
      $region109: #{_lambda_.1} parent=11 // pred_check
        %p838 = pneg %p620
      $region110: #{_lambda_.1} parent=11 // pred_check_branch
        %840 = sbr.rel (%p838) target = $region112
      $region111: #{_lambda_.1} parent=11 // pred_region
        _
      $region112: #{_lambda_.1} parent=11 // pred_fallthru
        _
      // Predicated region
      $region113: #{_lambda_.1} parent=11 // pred_check
        %p841 = pneg %p641
      $region114: #{_lambda_.1} parent=11 // pred_check_branch
        %843 = sbr.rel (%p841) target = $region116
      $region115: #{_lambda_.1} parent=11 // pred_region
        _
      $region116: #{_lambda_.1} parent=11 // pred_fallthru
        _
      // Predicated region
      $region117: #{_lambda_.1} parent=11 // pred_check
        %p844 = pneg %p662
      $region118: #{_lambda_.1} parent=11 // pred_check_branch
        %846 = sbr.rel (%p844) target = $region120
      $region119: #{_lambda_.1} parent=11 // pred_region
        _
      $region120: #{_lambda_.1} parent=11 // pred_fallthru
        _
      // Predicated region
      $region121: #{_lambda_.1} parent=11 // pred_check
        %p847 = pneg %p683
      $region122: #{_lambda_.1} parent=11 // pred_check_branch
        %849 = sbr.rel (%p847) target = $region124
      $region123: #{_lambda_.1} parent=11 // pred_region
        _
      $region124: #{_lambda_.1} parent=11 // pred_fallthru
        _
      // Predicated region
      $region125: #{_lambda_.1} parent=11 // pred_check
        %p850 = pneg %p704
      $region126: #{_lambda_.1} parent=11 // pred_check_branch
        %852 = sbr.rel (%p850) target = $region128
      $region127: #{_lambda_.1} parent=11 // pred_region
        _
      $region128: #{_lambda_.1} parent=11 // pred_fallthru
        _
      // Predicated region
      $region129: #{_lambda_.1} parent=11 // pred_check
        %p853 = pneg %p725
      $region130: #{_lambda_.1} parent=11 // pred_check_branch
        %855 = sbr.rel (%p853) target = $region132
      $region131: #{_lambda_.1} parent=11 // pred_region
        _
      $region132: #{_lambda_.1} parent=11 // pred_fallthru
        _
    $region12: #{_lambda_.1} parent=5 // pred_fallthru
      _
    %p856 = scmp.lt.s32.totalorder %s69, 2
    // Predicated region
    $region133: #{_lambda_.1} parent=5 // pred_check
      %p857 = pneg %p856
    $region134: #{_lambda_.1} parent=5 // pred_check_branch
      %859 = sbr.rel (%p857) target = $region136
    $region135: #{_lambda_.1} parent=5 // pred_region
      // Predicated region
      $region137: #{_lambda_.1} parent=135 // pred_check
        %p860 = pneg %p89
      $region138: #{_lambda_.1} parent=135 // pred_check_branch
        %862 = sbr.rel (%p860) target = $region140
      $region139: #{_lambda_.1} parent=135 // pred_region
        %p863 = scmp.lt.s32.totalorder %s69, 1
        %s864 = scalar_select %p863, %s69, 1
        %s865 = smul.addr %s864, 8
        %s866 = smul.addr %s865, 8
        %s867 = scalar_lea.vmem %s1, %s866
      $region140: #{_lambda_.1} parent=135 // pred_fallthru
        _
    $region136: #{_lambda_.1} parent=5 // pred_fallthru
      _
    %p868 = scmp.le.s32.totalorder 1, %s69
    %p869 = scmp.lt.s32.totalorder %s69, 3
    %p870 = pnand %p868, %p869
    %p871 = pneg %p870
    // Predicated region
    $region141: #{_lambda_.1} parent=5 // pred_check
      _
    $region142: #{_lambda_.1} parent=5 // pred_check_branch
      %873 = sbr.rel (%p870) target = $region144
    $region143: #{_lambda_.1} parent=5 // pred_region
      %s874 = ssub.s32 %s69, 1
      %p875 = scmp.lt.s32.totalorder %s74, 1
      %s876 = scalar_select %p875, %s74, 1
      %s877 = smul.addr %s876, 8
      %s878 = smul.addr %s877, 8
      %s879 = scalar_lea.vmem %s1, %s878
      %p880 = pneg %p95
      %p881 = pneg %p92
      %p882 = pneg %p116
      %p883 = pneg %p113
      %p884 = pneg %p137
      %p885 = pneg %p134
      %p886 = pneg %p158
      %p887 = pneg %p155
      %p888 = pneg %p179
      %p889 = pneg %p176
      %p890 = pneg %p200
      %p891 = pneg %p197
      %p892 = pneg %p221
      %p893 = pneg %p218
      %p894 = pneg %p242
      %p895 = pneg %p239
      %p896 = pneg %p263
      %p897 = pneg %p260
      %p898 = pneg %p284
      %p899 = pneg %p281
      %p900 = pneg %p305
      %p901 = pneg %p302
      %p902 = pneg %p326
      %p903 = pneg %p323
      %p904 = pneg %p347
      %p905 = pneg %p344
      %p906 = pneg %p368
      %p907 = pneg %p365
      %p908 = pneg %p389
      %p909 = pneg %p386
      %p910 = pneg %p410
      %p911 = pneg %p407
      %p912 = pneg %p431
      %p913 = pneg %p428
      %p914 = pneg %p452
      %p915 = pneg %p449
      %p916 = pneg %p473
      %p917 = pneg %p470
      %p918 = pneg %p494
      %p919 = pneg %p491
      %p920 = pneg %p515
      %p921 = pneg %p512
      %p922 = pneg %p536
      %p923 = pneg %p533
      %p924 = pneg %p557
      %p925 = pneg %p554
      %p926 = pneg %p578
      %p927 = pneg %p575
      %p928 = pneg %p599
      %p929 = pneg %p596
      %p930 = pneg %p620
      %p931 = pneg %p617
      %p932 = pneg %p641
      %p933 = pneg %p638
      %p934 = pneg %p662
      %p935 = pneg %p659
      %p936 = pneg %p683
      %p937 = pneg %p680
      %p938 = pneg %p704
      %p939 = pneg %p701
      %p940 = pneg %p725
      %p941 = pneg %p722
      %p942 = pneg %p751
      %p943 = pneg %p748
      %p944 = scmp.lt.s32.totalorder %s74, 1
      %s945 = scalar_select %p944, %s74, 1
      %s946 = smul.addr %s945, 4
      %s947 = smul.addr %s946, 8
      %s948 = scalar_lea.vmem %s63, %s947
      %p949 = scmp.lt.s32.totalorder %s74, 1
      %s950 = scalar_select %p949, %s74, 1
      %s951 = smul.addr %s950, 8
      %s952 = smul.addr %s951, 8
      %s953 = scalar_lea.vmem %s1, %s952
      %p954 = scmp.lt.s32.totalorder %s74, 1
      %s955 = scalar_select %p954, %s74, 1
      %s956 = smul.addr %s955, 4
      %s957 = smul.addr %s956, 8
      %s958 = scalar_lea.vmem %s63, %s957
      %v960 = vld [vmem:[%s3] sm:$0x7]
      %v961 = vld [vmem:[%s953] sm:$0xff]
      %v962 = vld [vmem:[%s953 + $0x8] sm:$0xff]
      %v963 = vld [vmem:[%s953 + $0x10] sm:$0xff]
      %v964 = vld [vmem:[%s953 + $0x18] sm:$0xff]
      %v965 = vld [vmem:[%s953 + $0x20] sm:$0xff]
      %v966 = vld [vmem:[%s953 + $0x28] sm:$0xff]
      %v967 = vld [vmem:[%s953 + $0x30] sm:$0x7]
      %v968 = vld [vmem:[%s953 + $0x38] sm:$0x7]
      %vm969 = vcmask 220160
      %v971 = vsel %vm969, %v960, 0
      %vm973 = vcmask 1042432
      %v975 = vsel %vm973, %v967, 0
      %v978 = vsel %vm973, %v968, 0
      %980 = vmatprep.subr.mxu0 %v962
      %981 = vmatpush1.msra.mxu0 %v961
      %982 = vmatprep.subr.mxu0 %v964
      %983 = vmatpush1.msra.mxu0 %v963
      %984 = vmatprep.subr.mxu0 %v966
      %985 = vmatpush1.msra.mxu0 %v965
      %986 = vmatprep.subr.mxu0 %v978
      %987 = vmatpush1.msra.mxu0 %v975
      %988 = vmatprep.subr.mxu0 0.0
      %989 = vmatpush1.msra.mxu0 0.0
      %990 = vmatprep.subr.mxu0 0.0
      %991 = vmatpush1.msra.mxu0 0.0
      %992 = vmatprep.subr.mxu0 0.0
      %993 = vmatpush1.msra.mxu0 0.0
      %994 = vmatprep.subr.mxu0 0.0
      %995 = vmatpush1.msra.mxu0 0.0
      %996 = vmatprep.subr.mxu0 0.0
      %997 = vmatpush1.msra.mxu0 0.0
      %998 = vmatprep.subr.mxu0 0.0
      %999 = vmatpush1.msra.mxu0 0.0
      %1000 = vmatprep.subr.mxu0 0.0
      %1001 = vmatpush1.msra.mxu0 0.0
      %1002 = vmatprep.subr.mxu0 0.0
      %1003 = vmatpush1.msra.mxu0 0.0
      %1004 = vmatprep.subr.mxu0 0.0
      %1005 = vmatpush1.msra.mxu0 0.0
      %1006 = vmatprep.subr.mxu0 0.0
      %1007 = vmatpush1.msra.mxu0 0.0
      %1008 = vmatprep.subr.mxu0 0.0
      %1009 = vmatpush1.msra.mxu0 0.0
      %1010 = vmatprep.subr.mxu0 0.0
      %1011 = vmatpush1.msra.mxu0 0.0
      %1012 = vmatprep.subr.mxu0 0.0
      %1013 = vmatpush1.msra.mxu0 0.0
      %1014 = vmatprep.subr.mxu0 0.0
      %1015 = vmatpush1.msra.mxu0 0.0
      %1016 = vmatprep.subr.mxu0 0.0
      %1017 = vmatpush1.msra.mxu0 0.0
      %1018 = vmatprep.subr.mxu0 0.0
      %1019 = vmatpush1.msra.mxu0 0.0
      %1020 = vmatprep.subr.mxu0 0.0
      %1021 = vmatpush1.msra.mxu0 0.0
      %1022 = vmatprep.subr.mxu0 0.0
      %1023 = vmatpush1.msra.mxu0 0.0
      %1024 = vmatprep.subr.mxu0 0.0
      %1025 = vmatpush1.msra.mxu0 0.0
      %1026 = vmatprep.subr.mxu0 0.0
      %1027 = vmatpush1.msra.mxu0 0.0
      %1028 = vmatprep.subr.mxu0 0.0
      %1029 = vmatpush1.msra.mxu0 0.0
      %1030 = vmatprep.subr.mxu0 0.0
      %1031 = vmatpush1.msra.mxu0 0.0
      %1032 = vmatprep.subr.mxu0 0.0
      %1033 = vmatpush1.msra.mxu0 0.0
      %1034 = vmatprep.subr.mxu0 0.0
      %1035 = vmatpush1.msra.mxu0 0.0
      %1036 = vmatprep.subr.mxu0 0.0
      %1037 = vmatpush1.msra.mxu0 0.0
      %1038 = vmatprep.subr.mxu0 0.0
      %1039 = vmatpush1.msra.mxu0 0.0
      %1040 = vmatprep.subr.mxu0 0.0
      %1041 = vmatpush1.msra.mxu0 0.0
      %1042 = vmatprep.subr.mxu0 0.0
      %1043 = vmatpush1.msra.mxu0 0.0
      %1044 = vmatprep.mubr.f32.mxu0 0.0
      %1045 = vmatmul.mubr.f32.gmra.mrb[0].mxu0 %v971
      %v1046 = vpop.f32.mrb[0].mxu0
      %v1047 = vadd.f32 0.0, %v1046
      %v1048 = vpop.f32.mrb[0].mxu0
      %v1049 = vadd.f32 0.0, %v1048
      %1050 = vdwg.mxu0
      %v1051 = vld [vmem:[%s5] sm:$0x7]
      %1053 = vset.pattern.permute.xlu0 0
      %1054 = vperm.xlu0 %1053, %v1051
      %v1055 = vpop.permute.xlu0 %1054
      %v1057 = vmul.f32 %v1047, %v1055
      %v1058 = vmul.f32 %v1049, %v1055
      %v1059 = vld [vmem:[%s7] sm:$0x7]
      %1061 = vset.pattern.permute.xlu0 0
      %1062 = vperm.xlu0 %1061, %v1059
      %v1063 = vpop.permute.xlu0 %1062
      %v1065 = vadd.f32 %v1057, %v1063
      %v1066 = vadd.f32 %v1058, %v1063
      %v1067 = vmax.f32 %v1065, 0.0
      %v1068 = vmax.f32 %v1066, 0.0
      %v1069 = vld [vmem:[%s9] sm:$0xf]
      %v1070 = vpack.c.bf16 %v1067, %v1067
      %v1071 = vpack.c.bf16 %v1068, %v1068
      %vm1072 = vcmask 23552
      %v1074 = vsel %vm1072, %v1069, 0
      %vm1076 = vcmask 1040384
      %vm1077 = vcmask 1041408
      %v1078 = vsel %vm1076, 4294967295, 65535
      %v1079 = vsel %vm1077, %v1078, 0
      %v1081 = vand.u32 %v1070, %v1079
      %v1084 = vand.u32 %v1071, %v1079
      %1086 = vmatprep.subr.bf16.mxu0 %v1084
      %1087 = vmatpush1.bf16.msra.mxu0 %v1081
      %1088 = vmatprep.subr.bf16.mxu0 0
      %1089 = vmatpush1.bf16.msra.mxu0 0
      %1090 = vmatprep.subr.bf16.mxu0 0
      %1091 = vmatpush1.bf16.msra.mxu0 0
      %1092 = vmatprep.subr.bf16.mxu0 0
      %1093 = vmatpush1.bf16.msra.mxu0 0
      %1094 = vmatprep.subr.bf16.mxu0 0
      %1095 = vmatpush1.bf16.msra.mxu0 0
      %1096 = vmatprep.subr.bf16.mxu0 0
      %1097 = vmatpush1.bf16.msra.mxu0 0
      %1098 = vmatprep.subr.bf16.mxu0 0
      %1099 = vmatpush1.bf16.msra.mxu0 0
      %1100 = vmatprep.subr.bf16.mxu0 0
      %1101 = vmatpush1.bf16.msra.mxu0 0
      %1102 = vmatprep.subr.bf16.mxu0 0
      %1103 = vmatpush1.bf16.msra.mxu0 0
      %1104 = vmatprep.subr.bf16.mxu0 0
      %1105 = vmatpush1.bf16.msra.mxu0 0
      %1106 = vmatprep.subr.bf16.mxu0 0
      %1107 = vmatpush1.bf16.msra.mxu0 0
      %1108 = vmatprep.subr.bf16.mxu0 0
      %1109 = vmatpush1.bf16.msra.mxu0 0
      %1110 = vmatprep.subr.bf16.mxu0 0
      %1111 = vmatpush1.bf16.msra.mxu0 0
      %1112 = vmatprep.subr.bf16.mxu0 0
      %1113 = vmatpush1.bf16.msra.mxu0 0
      %1114 = vmatprep.subr.bf16.mxu0 0
      %1115 = vmatpush1.bf16.msra.mxu0 0
      %1116 = vmatprep.subr.bf16.mxu0 0
      %1117 = vmatpush1.bf16.msra.mxu0 0
      %1118 = vmatprep.mubr.bf16.mxu0 0
      %1119 = vmatmul.mubr.bf16.gmra.mrb[0].mxu0 %v1074
      %v1120 = vpop.f32.mrb[0].mxu0
      %v1121 = vadd.f32 0.0, %v1120
      %v1122 = vpop.f32.mrb[0].mxu0
      %v1123 = vadd.f32 0.0, %v1122
      %v1124 = vpop.f32.mrb[0].mxu0
      %v1125 = vpop.f32.mrb[0].mxu0
      %1126 = vdwg.mxu0
      %v1127 = vld [vmem:[%s11] sm:$0xff]
      %1129 = vset.pattern.permute.xlu0 0
      %1130 = vperm.xlu0 %1129, %v1127
      %v1131 = vpop.permute.xlu0 %1130
      %v1133 = vmul.f32 %v1121, %v1131
      %v1134 = vmul.f32 %v1123, %v1131
      %v1135 = vld [vmem:[%s13] sm:$0xff]
      %1137 = vset.pattern.permute.xlu0 0
      %1138 = vperm.xlu0 %1137, %v1135
      %v1139 = vpop.permute.xlu0 %1138
      %v1141 = vadd.f32 %v1133, %v1139
      %v1142 = vadd.f32 %v1134, %v1139
      %v1143 = vmax.f32 %v1141, 0.0
      %v1144 = vmax.f32 %v1142, 0.0
      %v1145 = vld [vmem:[%s15] sm:$0xff]
      %v1146 = vld [vmem:[%s17] sm:$0xff]
      %v1147 = vld [vmem:[%s17 + $0x8] sm:$0xff]
      %v1148 = vld [vmem:[%s17 + $0x10] sm:$0xff]
      %v1149 = vld [vmem:[%s17 + $0x18] sm:$0xff]
      %v1150 = vld [vmem:[%s17 + $0x20] sm:$0xff]
      %v1151 = vld [vmem:[%s17 + $0x28] sm:$0xff]
      %v1152 = vld [vmem:[%s17 + $0x30] sm:$0xff]
      %v1153 = vld [vmem:[%s17 + $0x38] sm:$0xff]
      %v1154 = vld [vmem:[%s17 + $0x40] sm:$0xff]
      %v1155 = vld [vmem:[%s17 + $0x48] sm:$0xff]
      %v1156 = vld [vmem:[%s17 + $0x50] sm:$0xff]
      %v1157 = vld [vmem:[%s17 + $0x58] sm:$0xff]
      %v1158 = vld [vmem:[%s17 + $0x60] sm:$0xff]
      %v1159 = vld [vmem:[%s17 + $0x68] sm:$0xff]
      %v1160 = vld [vmem:[%s17 + $0x70] sm:$0xff]
      %v1161 = vld [vmem:[%s17 + $0x78] sm:$0xff]
      %v1162 = vld [vmem:[%s17 + $0x80] sm:$0xff]
      %v1163 = vld [vmem:[%s17 + $0x88] sm:$0xff]
      %v1164 = vld [vmem:[%s17 + $0x90] sm:$0xff]
      %v1165 = vld [vmem:[%s17 + $0x98] sm:$0xff]
      %v1166 = vld [vmem:[%s17 + $0xa0] sm:$0xff]
      %v1167 = vld [vmem:[%s17 + $0xa8] sm:$0xff]
      %v1168 = vld [vmem:[%s17 + $0xb0] sm:$0xff]
      %v1169 = vld [vmem:[%s17 + $0xb8] sm:$0xff]
      %v1170 = vld [vmem:[%s17 + $0xc0] sm:$0xff]
      %v1171 = vld [vmem:[%s17 + $0xc8] sm:$0xff]
      %v1172 = vld [vmem:[%s17 + $0xd0] sm:$0xff]
      %v1173 = vld [vmem:[%s17 + $0xd8] sm:$0xff]
      %v1174 = vld [vmem:[%s17 + $0xe0] sm:$0xff]
      %v1175 = vld [vmem:[%s17 + $0xe8] sm:$0xff]
      %v1176 = vld [vmem:[%s17 + $0xf0] sm:$0xff]
      %v1177 = vld [vmem:[%s17 + $0xf8] sm:$0xff]
      %1178 = vmatprep.subr.mxu0 0.0
      %1179 = vmatpush1.msra.mxu0 %v1146
      %1180 = vmatprep.subr.mxu0 0.0
      %1181 = vmatpush1.msra.mxu0 %v1147
      %1182 = vmatprep.subr.mxu0 0.0
      %1183 = vmatpush1.msra.mxu0 %v1148
      %1184 = vmatprep.subr.mxu0 0.0
      %1185 = vmatpush1.msra.mxu0 %v1149
      %1186 = vmatprep.subr.mxu0 0.0
      %1187 = vmatpush1.msra.mxu0 %v1150
      %1188 = vmatprep.subr.mxu0 0.0
      %1189 = vmatpush1.msra.mxu0 %v1151
      %1190 = vmatprep.subr.mxu0 0.0
      %1191 = vmatpush1.msra.mxu0 %v1152
      %1192 = vmatprep.subr.mxu0 0.0
      %1193 = vmatpush1.msra.mxu0 %v1153
      %1194 = vmatprep.subr.mxu0 0.0
      %1195 = vmatpush1.msra.mxu0 %v1154
      %1196 = vmatprep.subr.mxu0 0.0
      %1197 = vmatpush1.msra.mxu0 %v1155
      %1198 = vmatprep.subr.mxu0 0.0
      %1199 = vmatpush1.msra.mxu0 %v1156
      %1200 = vmatprep.subr.mxu0 0.0
      %1201 = vmatpush1.msra.mxu0 %v1157
      %1202 = vmatprep.subr.mxu0 0.0
      %1203 = vmatpush1.msra.mxu0 %v1158
      %1204 = vmatprep.subr.mxu0 0.0
      %1205 = vmatpush1.msra.mxu0 %v1159
      %1206 = vmatprep.subr.mxu0 0.0
      %1207 = vmatpush1.msra.mxu0 %v1160
      %1208 = vmatprep.subr.mxu0 0.0
      %1209 = vmatpush1.msra.mxu0 %v1161
      %1210 = vmatprep.subr.mxu0 0.0
      %1211 = vmatpush1.msra.mxu0 %v1162
      %1212 = vmatprep.subr.mxu0 0.0
      %1213 = vmatpush1.msra.mxu0 %v1163
      %1214 = vmatprep.subr.mxu0 0.0
      %1215 = vmatpush1.msra.mxu0 %v1164
      %1216 = vmatprep.subr.mxu0 0.0
      %1217 = vmatpush1.msra.mxu0 %v1165
      %1218 = vmatprep.subr.mxu0 0.0
      %1219 = vmatpush1.msra.mxu0 %v1166
      %1220 = vmatprep.subr.mxu0 0.0
      %1221 = vmatpush1.msra.mxu0 %v1167
      %1222 = vmatprep.subr.mxu0 0.0
      %1223 = vmatpush1.msra.mxu0 %v1168
      %1224 = vmatprep.subr.mxu0 0.0
      %1225 = vmatpush1.msra.mxu0 %v1169
      %1226 = vmatprep.subr.mxu0 0.0
      %1227 = vmatpush1.msra.mxu0 %v1170
      %1228 = vmatprep.subr.mxu0 0.0
      %1229 = vmatpush1.msra.mxu0 %v1171
      %1230 = vmatprep.subr.mxu0 0.0
      %1231 = vmatpush1.msra.mxu0 %v1172
      %1232 = vmatprep.subr.mxu0 0.0
      %1233 = vmatpush1.msra.mxu0 %v1173
      %1234 = vmatprep.subr.mxu0 0.0
      %1235 = vmatpush1.msra.mxu0 %v1174
      %1236 = vmatprep.subr.mxu0 0.0
      %1237 = vmatpush1.msra.mxu0 %v1175
      %1238 = vmatprep.subr.mxu0 0.0
      %1239 = vmatpush1.msra.mxu0 %v1176
      %1240 = vmatprep.subr.mxu0 0.0
      %1241 = vmatpush1.msra.mxu0 %v1177
      %1242 = vmatprep.mubr.f32.mxu0 %v1144
      %1243 = vmatmul.mubr.f32.gmra.mrb[0].mxu0 %v1143
      %v1244 = vpop.f32.mrb[0].mxu0
      %v1245 = vadd.f32 0.0, %v1244
      %v1246 = vpop.f32.mrb[0].mxu0
      %1247 = vdwg.mxu0
      %1249 = vset.pattern.permute.xlu0 0
      %1250 = vperm.xlu0 %1249, %v1145
      %v1251 = vpop.permute.xlu0 %1250
      %v1253 = vmul.f32 %v1251, %v1245
      %s1254 = scalar_lea.vmem %s15, 8
      %v1255 = vld [vmem:[%s1254] sm:$0xff]
      %s1256 = scalar_lea.vmem %s17, 256
      %v1257 = vld [vmem:[%s1256] sm:$0xff]
      %v1258 = vld [vmem:[%s1256 + $0x8] sm:$0xff]
      %v1259 = vld [vmem:[%s1256 + $0x10] sm:$0xff]
      %v1260 = vld [vmem:[%s1256 + $0x18] sm:$0xff]
      %v1261 = vld [vmem:[%s1256 + $0x20] sm:$0xff]
      %v1262 = vld [vmem:[%s1256 + $0x28] sm:$0xff]
      %v1263 = vld [vmem:[%s1256 + $0x30] sm:$0xff]
      %v1264 = vld [vmem:[%s1256 + $0x38] sm:$0xff]
      %v1265 = vld [vmem:[%s1256 + $0x40] sm:$0xff]
      %v1266 = vld [vmem:[%s1256 + $0x48] sm:$0xff]
      %v1267 = vld [vmem:[%s1256 + $0x50] sm:$0xff]
      %v1268 = vld [vmem:[%s1256 + $0x58] sm:$0xff]
      %v1269 = vld [vmem:[%s1256 + $0x60] sm:$0xff]
      %v1270 = vld [vmem:[%s1256 + $0x68] sm:$0xff]
      %v1271 = vld [vmem:[%s1256 + $0x70] sm:$0xff]
      %v1272 = vld [vmem:[%s1256 + $0x78] sm:$0xff]
      %v1273 = vld [vmem:[%s1256 + $0x80] sm:$0xff]
      %v1274 = vld [vmem:[%s1256 + $0x88] sm:$0xff]
      %v1275 = vld [vmem:[%s1256 + $0x90] sm:$0xff]
      %v1276 = vld [vmem:[%s1256 + $0x98] sm:$0xff]
      %v1277 = vld [vmem:[%s1256 + $0xa0] sm:$0xff]
      %v1278 = vld [vmem:[%s1256 + $0xa8] sm:$0xff]
      %v1279 = vld [vmem:[%s1256 + $0xb0] sm:$0xff]
      %v1280 = vld [vmem:[%s1256 + $0xb8] sm:$0xff]
      %v1281 = vld [vmem:[%s1256 + $0xc0] sm:$0xff]
      %v1282 = vld [vmem:[%s1256 + $0xc8] sm:$0xff]
      %v1283 = vld [vmem:[%s1256 + $0xd0] sm:$0xff]
      %v1284 = vld [vmem:[%s1256 + $0xd8] sm:$0xff]
      %v1285 = vld [vmem:[%s1256 + $0xe0] sm:$0xff]
      %v1286 = vld [vmem:[%s1256 + $0xe8] sm:$0xff]
      %v1287 = vld [vmem:[%s1256 + $0xf0] sm:$0xff]
      %v1288 = vld [vmem:[%s1256 + $0xf8] sm:$0xff]
      %1289 = vmatprep.subr.mxu0 0.0
      %1290 = vmatpush1.msra.mxu0 %v1257
      %1291 = vmatprep.subr.mxu0 0.0
      %1292 = vmatpush1.msra.mxu0 %v1258
      %1293 = vmatprep.subr.mxu0 0.0
      %1294 = vmatpush1.msra.mxu0 %v1259
      %1295 = vmatprep.subr.mxu0 0.0
      %1296 = vmatpush1.msra.mxu0 %v1260
      %1297 = vmatprep.subr.mxu0 0.0
      %1298 = vmatpush1.msra.mxu0 %v1261
      %1299 = vmatprep.subr.mxu0 0.0
      %1300 = vmatpush1.msra.mxu0 %v1262
      %1301 = vmatprep.subr.mxu0 0.0
      %1302 = vmatpush1.msra.mxu0 %v1263
      %1303 = vmatprep.subr.mxu0 0.0
      %1304 = vmatpush1.msra.mxu0 %v1264
      %1305 = vmatprep.subr.mxu0 0.0
      %1306 = vmatpush1.msra.mxu0 %v1265
      %1307 = vmatprep.subr.mxu0 0.0
      %1308 = vmatpush1.msra.mxu0 %v1266
      %1309 = vmatprep.subr.mxu0 0.0
      %1310 = vmatpush1.msra.mxu0 %v1267
      %1311 = vmatprep.subr.mxu0 0.0
      %1312 = vmatpush1.msra.mxu0 %v1268
      %1313 = vmatprep.subr.mxu0 0.0
      %1314 = vmatpush1.msra.mxu0 %v1269
      %1315 = vmatprep.subr.mxu0 0.0
      %1316 = vmatpush1.msra.mxu0 %v1270
      %1317 = vmatprep.subr.mxu0 0.0
      %1318 = vmatpush1.msra.mxu0 %v1271
      %1319 = vmatprep.subr.mxu0 0.0
      %1320 = vmatpush1.msra.mxu0 %v1272
      %1321 = vmatprep.subr.mxu0 0.0
      %1322 = vmatpush1.msra.mxu0 %v1273
      %1323 = vmatprep.subr.mxu0 0.0
      %1324 = vmatpush1.msra.mxu0 %v1274
      %1325 = vmatprep.subr.mxu0 0.0
      %1326 = vmatpush1.msra.mxu0 %v1275
      %1327 = vmatprep.subr.mxu0 0.0
      %1328 = vmatpush1.msra.mxu0 %v1276
      %1329 = vmatprep.subr.mxu0 0.0
      %1330 = vmatpush1.msra.mxu0 %v1277
      %1331 = vmatprep.subr.mxu0 0.0
      %1332 = vmatpush1.msra.mxu0 %v1278
      %1333 = vmatprep.subr.mxu0 0.0
      %1334 = vmatpush1.msra.mxu0 %v1279
      %1335 = vmatprep.subr.mxu0 0.0
      %1336 = vmatpush1.msra.mxu0 %v1280
      %1337 = vmatprep.subr.mxu0 0.0
      %1338 = vmatpush1.msra.mxu0 %v1281
      %1339 = vmatprep.subr.mxu0 0.0
      %1340 = vmatpush1.msra.mxu0 %v1282
      %1341 = vmatprep.subr.mxu0 0.0
      %1342 = vmatpush1.msra.mxu0 %v1283
      %1343 = vmatprep.subr.mxu0 0.0
      %1344 = vmatpush1.msra.mxu0 %v1284
      %1345 = vmatprep.subr.mxu0 0.0
      %1346 = vmatpush1.msra.mxu0 %v1285
      %1347 = vmatprep.subr.mxu0 0.0
      %1348 = vmatpush1.msra.mxu0 %v1286
      %1349 = vmatprep.subr.mxu0 0.0
      %1350 = vmatpush1.msra.mxu0 %v1287
      %1351 = vmatprep.subr.mxu0 0.0
      %1352 = vmatpush1.msra.mxu0 %v1288
      %1353 = vmatprep.mubr.f32.mxu0 %v1144
      %1354 = vmatmul.mubr.f32.gmra.mrb[0].mxu0 %v1143
      %v1355 = vpop.f32.mrb[0].mxu0
      %v1356 = vadd.f32 0.0, %v1355
      %v1357 = vpop.f32.mrb[0].mxu0
      %1358 = vdwg.mxu0
      %1360 = vset.pattern.permute.xlu0 0
      %1361 = vperm.xlu0 %1360, %v1255
      %v1362 = vpop.permute.xlu0 %1361
      %v1364 = vmul.f32 %v1362, %v1356
      %v1365 = vadd.f32 %v1253, %v1364
      %s1366 = scalar_lea.vmem %s15, 16
      %v1367 = vld [vmem:[%s1366] sm:$0xff]
      %s1368 = scalar_lea.vmem %s17, 512
      %v1369 = vld [vmem:[%s1368] sm:$0xff]
      %v1370 = vld [vmem:[%s1368 + $0x8] sm:$0xff]
      %v1371 = vld [vmem:[%s1368 + $0x10] sm:$0xff]
      %v1372 = vld [vmem:[%s1368 + $0x18] sm:$0xff]
      %v1373 = vld [vmem:[%s1368 + $0x20] sm:$0xff]
      %v1374 = vld [vmem:[%s1368 + $0x28] sm:$0xff]
      %v1375 = vld [vmem:[%s1368 + $0x30] sm:$0xff]
      %v1376 = vld [vmem:[%s1368 + $0x38] sm:$0xff]
      %v1377 = vld [vmem:[%s1368 + $0x40] sm:$0xff]
      %v1378 = vld [vmem:[%s1368 + $0x48] sm:$0xff]
      %v1379 = vld [vmem:[%s1368 + $0x50] sm:$0xff]
      %v1380 = vld [vmem:[%s1368 + $0x58] sm:$0xff]
      %v1381 = vld [vmem:[%s1368 + $0x60] sm:$0xff]
      %v1382 = vld [vmem:[%s1368 + $0x68] sm:$0xff]
      %v1383 = vld [vmem:[%s1368 + $0x70] sm:$0xff]
      %v1384 = vld [vmem:[%s1368 + $0x78] sm:$0xff]
      %v1385 = vld [vmem:[%s1368 + $0x80] sm:$0xff]
      %v1386 = vld [vmem:[%s1368 + $0x88] sm:$0xff]
      %v1387 = vld [vmem:[%s1368 + $0x90] sm:$0xff]
      %v1388 = vld [vmem:[%s1368 + $0x98] sm:$0xff]
      %v1389 = vld [vmem:[%s1368 + $0xa0] sm:$0xff]
      %v1390 = vld [vmem:[%s1368 + $0xa8] sm:$0xff]
      %v1391 = vld [vmem:[%s1368 + $0xb0] sm:$0xff]
      %v1392 = vld [vmem:[%s1368 + $0xb8] sm:$0xff]
      %v1393 = vld [vmem:[%s1368 + $0xc0] sm:$0xff]
      %v1394 = vld [vmem:[%s1368 + $0xc8] sm:$0xff]
      %v1395 = vld [vmem:[%s1368 + $0xd0] sm:$0xff]
      %v1396 = vld [vmem:[%s1368 + $0xd8] sm:$0xff]
      %v1397 = vld [vmem:[%s1368 + $0xe0] sm:$0xff]
      %v1398 = vld [vmem:[%s1368 + $0xe8] sm:$0xff]
      %v1399 = vld [vmem:[%s1368 + $0xf0] sm:$0xff]
      %v1400 = vld [vmem:[%s1368 + $0xf8] sm:$0xff]
      %1401 = vmatprep.subr.mxu0 0.0
      %1402 = vmatpush1.msra.mxu0 %v1369
      %1403 = vmatprep.subr.mxu0 0.0
      %1404 = vmatpush1.msra.mxu0 %v1370
      %1405 = vmatprep.subr.mxu0 0.0
      %1406 = vmatpush1.msra.mxu0 %v1371
      %1407 = vmatprep.subr.mxu0 0.0
      %1408 = vmatpush1.msra.mxu0 %v1372
      %1409 = vmatprep.subr.mxu0 0.0
      %1410 = vmatpush1.msra.mxu0 %v1373
      %1411 = vmatprep.subr.mxu0 0.0
      %1412 = vmatpush1.msra.mxu0 %v1374
      %1413 = vmatprep.subr.mxu0 0.0
      %1414 = vmatpush1.msra.mxu0 %v1375
      %1415 = vmatprep.subr.mxu0 0.0
      %1416 = vmatpush1.msra.mxu0 %v1376
      %1417 = vmatprep.subr.mxu0 0.0
      %1418 = vmatpush1.msra.mxu0 %v1377
      %1419 = vmatprep.subr.mxu0 0.0
      %1420 = vmatpush1.msra.mxu0 %v1378
      %1421 = vmatprep.subr.mxu0 0.0
      %1422 = vmatpush1.msra.mxu0 %v1379
      %1423 = vmatprep.subr.mxu0 0.0
      %1424 = vmatpush1.msra.mxu0 %v1380
      %1425 = vmatprep.subr.mxu0 0.0
      %1426 = vmatpush1.msra.mxu0 %v1381
      %1427 = vmatprep.subr.mxu0 0.0
      %1428 = vmatpush1.msra.mxu0 %v1382
      %1429 = vmatprep.subr.mxu0 0.0
      %1430 = vmatpush1.msra.mxu0 %v1383
      %1431 = vmatprep.subr.mxu0 0.0
      %1432 = vmatpush1.msra.mxu0 %v1384
      %1433 = vmatprep.subr.mxu0 0.0
      %1434 = vmatpush1.msra.mxu0 %v1385
      %1435 = vmatprep.subr.mxu0 0.0
      %1436 = vmatpush1.msra.mxu0 %v1386
      %1437 = vmatprep.subr.mxu0 0.0
      %1438 = vmatpush1.msra.mxu0 %v1387
      %1439 = vmatprep.subr.mxu0 0.0
      %1440 = vmatpush1.msra.mxu0 %v1388
      %1441 = vmatprep.subr.mxu0 0.0
      %1442 = vmatpush1.msra.mxu0 %v1389
      %1443 = vmatprep.subr.mxu0 0.0
      %1444 = vmatpush1.msra.mxu0 %v1390
      %1445 = vmatprep.subr.mxu0 0.0
      %1446 = vmatpush1.msra.mxu0 %v1391
      %1447 = vmatprep.subr.mxu0 0.0
      %1448 = vmatpush1.msra.mxu0 %v1392
      %1449 = vmatprep.subr.mxu0 0.0
      %1450 = vmatpush1.msra.mxu0 %v1393
      %1451 = vmatprep.subr.mxu0 0.0
      %1452 = vmatpush1.msra.mxu0 %v1394
      %1453 = vmatprep.subr.mxu0 0.0
      %1454 = vmatpush1.msra.mxu0 %v1395
      %1455 = vmatprep.subr.mxu0 0.0
      %1456 = vmatpush1.msra.mxu0 %v1396
      %1457 = vmatprep.subr.mxu0 0.0
      %1458 = vmatpush1.msra.mxu0 %v1397
      %1459 = vmatprep.subr.mxu0 0.0
      %1460 = vmatpush1.msra.mxu0 %v1398
      %1461 = vmatprep.subr.mxu0 0.0
      %1462 = vmatpush1.msra.mxu0 %v1399
      %1463 = vmatprep.subr.mxu0 0.0
      %1464 = vmatpush1.msra.mxu0 %v1400
      %1465 = vmatprep.mubr.f32.mxu0 %v1144
      %1466 = vmatmul.mubr.f32.gmra.mrb[0].mxu0 %v1143
      %v1467 = vpop.f32.mrb[0].mxu0
      %v1468 = vadd.f32 0.0, %v1467
      %v1469 = vpop.f32.mrb[0].mxu0
      %1470 = vdwg.mxu0
      %1472 = vset.pattern.permute.xlu0 0
      %1473 = vperm.xlu0 %1472, %v1367
      %v1474 = vpop.permute.xlu0 %1473
      %v1476 = vmul.f32 %v1474, %v1468
      %v1477 = vadd.f32 %v1365, %v1476
      %s1478 = scalar_lea.vmem %s15, 24
      %v1479 = vld [vmem:[%s1478] sm:$0xff]
      %s1480 = scalar_lea.vmem %s17, 768
      %v1481 = vld [vmem:[%s1480] sm:$0xff]
      %v1482 = vld [vmem:[%s1480 + $0x8] sm:$0xff]
      %v1483 = vld [vmem:[%s1480 + $0x10] sm:$0xff]
      %v1484 = vld [vmem:[%s1480 + $0x18] sm:$0xff]
      %v1485 = vld [vmem:[%s1480 + $0x20] sm:$0xff]
      %v1486 = vld [vmem:[%s1480 + $0x28] sm:$0xff]
      %v1487 = vld [vmem:[%s1480 + $0x30] sm:$0xff]
      %v1488 = vld [vmem:[%s1480 + $0x38] sm:$0xff]
      %v1489 = vld [vmem:[%s1480 + $0x40] sm:$0xff]
      %v1490 = vld [vmem:[%s1480 + $0x48] sm:$0xff]
      %v1491 = vld [vmem:[%s1480 + $0x50] sm:$0xff]
      %v1492 = vld [vmem:[%s1480 + $0x58] sm:$0xff]
      %v1493 = vld [vmem:[%s1480 + $0x60] sm:$0xff]
      %v1494 = vld [vmem:[%s1480 + $0x68] sm:$0xff]
      %v1495 = vld [vmem:[%s1480 + $0x70] sm:$0xff]
      %v1496 = vld [vmem:[%s1480 + $0x78] sm:$0xff]
      %v1497 = vld [vmem:[%s1480 + $0x80] sm:$0xff]
      %v1498 = vld [vmem:[%s1480 + $0x88] sm:$0xff]
      %v1499 = vld [vmem:[%s1480 + $0x90] sm:$0xff]
      %v1500 = vld [vmem:[%s1480 + $0x98] sm:$0xff]
      %v1501 = vld [vmem:[%s1480 + $0xa0] sm:$0xff]
      %v1502 = vld [vmem:[%s1480 + $0xa8] sm:$0xff]
      %v1503 = vld [vmem:[%s1480 + $0xb0] sm:$0xff]
      %v1504 = vld [vmem:[%s1480 + $0xb8] sm:$0xff]
      %v1505 = vld [vmem:[%s1480 + $0xc0] sm:$0xff]
      %v1506 = vld [vmem:[%s1480 + $0xc8] sm:$0xff]
      %v1507 = vld [vmem:[%s1480 + $0xd0] sm:$0xff]
      %v1508 = vld [vmem:[%s1480 + $0xd8] sm:$0xff]
      %v1509 = vld [vmem:[%s1480 + $0xe0] sm:$0xff]
      %v1510 = vld [vmem:[%s1480 + $0xe8] sm:$0xff]
      %v1511 = vld [vmem:[%s1480 + $0xf0] sm:$0xff]
      %v1512 = vld [vmem:[%s1480 + $0xf8] sm:$0xff]
      %1513 = vmatprep.subr.mxu0 0.0
      %1514 = vmatpush1.msra.mxu0 %v1481
      %1515 = vmatprep.subr.mxu0 0.0
      %1516 = vmatpush1.msra.mxu0 %v1482
      %1517 = vmatprep.subr.mxu0 0.0
      %1518 = vmatpush1.msra.mxu0 %v1483
      %1519 = vmatprep.subr.mxu0 0.0
      %1520 = vmatpush1.msra.mxu0 %v1484
      %1521 = vmatprep.subr.mxu0 0.0
      %1522 = vmatpush1.msra.mxu0 %v1485
      %1523 = vmatprep.subr.mxu0 0.0
      %1524 = vmatpush1.msra.mxu0 %v1486
      %1525 = vmatprep.subr.mxu0 0.0
      %1526 = vmatpush1.msra.mxu0 %v1487
      %1527 = vmatprep.subr.mxu0 0.0
      %1528 = vmatpush1.msra.mxu0 %v1488
      %1529 = vmatprep.subr.mxu0 0.0
      %1530 = vmatpush1.msra.mxu0 %v1489
      %1531 = vmatprep.subr.mxu0 0.0
      %1532 = vmatpush1.msra.mxu0 %v1490
      %1533 = vmatprep.subr.mxu0 0.0
      %1534 = vmatpush1.msra.mxu0 %v1491
      %1535 = vmatprep.subr.mxu0 0.0
      %1536 = vmatpush1.msra.mxu0 %v1492
      %1537 = vmatprep.subr.mxu0 0.0
      %1538 = vmatpush1.msra.mxu0 %v1493
      %1539 = vmatprep.subr.mxu0 0.0
      %1540 = vmatpush1.msra.mxu0 %v1494
      %1541 = vmatprep.subr.mxu0 0.0
      %1542 = vmatpush1.msra.mxu0 %v1495
      %1543 = vmatprep.subr.mxu0 0.0
      %1544 = vmatpush1.msra.mxu0 %v1496
      %1545 = vmatprep.subr.mxu0 0.0
      %1546 = vmatpush1.msra.mxu0 %v1497
      %1547 = vmatprep.subr.mxu0 0.0
      %1548 = vmatpush1.msra.mxu0 %v1498
      %1549 = vmatprep.subr.mxu0 0.0
      %1550 = vmatpush1.msra.mxu0 %v1499
      %1551 = vmatprep.subr.mxu0 0.0
      %1552 = vmatpush1.msra.mxu0 %v1500
      %1553 = vmatprep.subr.mxu0 0.0
      %1554 = vmatpush1.msra.mxu0 %v1501
      %1555 = vmatprep.subr.mxu0 0.0
      %1556 = vmatpush1.msra.mxu0 %v1502
      %1557 = vmatprep.subr.mxu0 0.0
      %1558 = vmatpush1.msra.mxu0 %v1503
      %1559 = vmatprep.subr.mxu0 0.0
      %1560 = vmatpush1.msra.mxu0 %v1504
      %1561 = vmatprep.subr.mxu0 0.0
      %1562 = vmatpush1.msra.mxu0 %v1505
      %1563 = vmatprep.subr.mxu0 0.0
      %1564 = vmatpush1.msra.mxu0 %v1506
      %1565 = vmatprep.subr.mxu0 0.0
      %1566 = vmatpush1.msra.mxu0 %v1507
      %1567 = vmatprep.subr.mxu0 0.0
      %1568 = vmatpush1.msra.mxu0 %v1508
      %1569 = vmatprep.subr.mxu0 0.0
      %1570 = vmatpush1.msra.mxu0 %v1509
      %1571 = vmatprep.subr.mxu0 0.0
      %1572 = vmatpush1.msra.mxu0 %v1510
      %1573 = vmatprep.subr.mxu0 0.0
      %1574 = vmatpush1.msra.mxu0 %v1511
      %1575 = vmatprep.subr.mxu0 0.0
      %1576 = vmatpush1.msra.mxu0 %v1512
      %1577 = vmatprep.mubr.f32.mxu0 %v1144
      %1578 = vmatmul.mubr.f32.gmra.mrb[0].mxu0 %v1143
      %v1579 = vpop.f32.mrb[0].mxu0
      %v1580 = vadd.f32 0.0, %v1579
      %v1581 = vpop.f32.mrb[0].mxu0
      %1582 = vdwg.mxu0
      %1584 = vset.pattern.permute.xlu0 0
      %1585 = vperm.xlu0 %1584, %v1479
      %v1586 = vpop.permute.xlu0 %1585
      %v1588 = vmul.f32 %v1586, %v1580
      %v1589 = vadd.f32 %v1477, %v1588
      %s1590 = scalar_lea.vmem %s15, 32
      %v1591 = vld [vmem:[%s1590] sm:$0xff]
      %s1592 = scalar_lea.vmem %s17, 1024
      %v1593 = vld [vmem:[%s1592] sm:$0xff]
      %v1594 = vld [vmem:[%s1592 + $0x8] sm:$0xff]
      %v1595 = vld [vmem:[%s1592 + $0x10] sm:$0xff]
      %v1596 = vld [vmem:[%s1592 + $0x18] sm:$0xff]
      %v1597 = vld [vmem:[%s1592 + $0x20] sm:$0xff]
      %v1598 = vld [vmem:[%s1592 + $0x28] sm:$0xff]
      %v1599 = vld [vmem:[%s1592 + $0x30] sm:$0xff]
      %v1600 = vld [vmem:[%s1592 + $0x38] sm:$0xff]
      %v1601 = vld [vmem:[%s1592 + $0x40] sm:$0xff]
      %v1602 = vld [vmem:[%s1592 + $0x48] sm:$0xff]
      %v1603 = vld [vmem:[%s1592 + $0x50] sm:$0xff]
      %v1604 = vld [vmem:[%s1592 + $0x58] sm:$0xff]
      %v1605 = vld [vmem:[%s1592 + $0x60] sm:$0xff]
      %v1606 = vld [vmem:[%s1592 + $0x68] sm:$0xff]
      %v1607 = vld [vmem:[%s1592 + $0x70] sm:$0xff]
      %v1608 = vld [vmem:[%s1592 + $0x78] sm:$0xff]
      %v1609 = vld [vmem:[%s1592 + $0x80] sm:$0xff]
      %v1610 = vld [vmem:[%s1592 + $0x88] sm:$0xff]
      %v1611 = vld [vmem:[%s1592 + $0x90] sm:$0xff]
      %v1612 = vld [vmem:[%s1592 + $0x98] sm:$0xff]
      %v1613 = vld [vmem:[%s1592 + $0xa0] sm:$0xff]
      %v1614 = vld [vmem:[%s1592 + $0xa8] sm:$0xff]
      %v1615 = vld [vmem:[%s1592 + $0xb0] sm:$0xff]
      %v1616 = vld [vmem:[%s1592 + $0xb8] sm:$0xff]
      %v1617 = vld [vmem:[%s1592 + $0xc0] sm:$0xff]
      %v1618 = vld [vmem:[%s1592 + $0xc8] sm:$0xff]
      %v1619 = vld [vmem:[%s1592 + $0xd0] sm:$0xff]
      %v1620 = vld [vmem:[%s1592 + $0xd8] sm:$0xff]
      %v1621 = vld [vmem:[%s1592 + $0xe0] sm:$0xff]
      %v1622 = vld [vmem:[%s1592 + $0xe8] sm:$0xff]
      %v1623 = vld [vmem:[%s1592 + $0xf0] sm:$0xff]
      %v1624 = vld [vmem:[%s1592 + $0xf8] sm:$0xff]
      %1625 = vmatprep.subr.mxu0 0.0
      %1626 = vmatpush1.msra.mxu0 %v1593
      %1627 = vmatprep.subr.mxu0 0.0
      %1628 = vmatpush1.msra.mxu0 %v1594
      %1629 = vmatprep.subr.mxu0 0.0
      %1630 = vmatpush1.msra.mxu0 %v1595
      %1631 = vmatprep.subr.mxu0 0.0
      %1632 = vmatpush1.msra.mxu0 %v1596
      %1633 = vmatprep.subr.mxu0 0.0
      %1634 = vmatpush1.msra.mxu0 %v1597
      %1635 = vmatprep.subr.mxu0 0.0
      %1636 = vmatpush1.msra.mxu0 %v1598
      %1637 = vmatprep.subr.mxu0 0.0
      %1638 = vmatpush1.msra.mxu0 %v1599
      %1639 = vmatprep.subr.mxu0 0.0
      %1640 = vmatpush1.msra.mxu0 %v1600
      %1641 = vmatprep.subr.mxu0 0.0
      %1642 = vmatpush1.msra.mxu0 %v1601
      %1643 = vmatprep.subr.mxu0 0.0
      %1644 = vmatpush1.msra.mxu0 %v1602
      %1645 = vmatprep.subr.mxu0 0.0
      %1646 = vmatpush1.msra.mxu0 %v1603
      %1647 = vmatprep.subr.mxu0 0.0
      %1648 = vmatpush1.msra.mxu0 %v1604
      %1649 = vmatprep.subr.mxu0 0.0
      %1650 = vmatpush1.msra.mxu0 %v1605
      %1651 = vmatprep.subr.mxu0 0.0
      %1652 = vmatpush1.msra.mxu0 %v1606
      %1653 = vmatprep.subr.mxu0 0.0
      %1654 = vmatpush1.msra.mxu0 %v1607
      %1655 = vmatprep.subr.mxu0 0.0
      %1656 = vmatpush1.msra.mxu0 %v1608
      %1657 = vmatprep.subr.mxu0 0.0
      %1658 = vmatpush1.msra.mxu0 %v1609
      %1659 = vmatprep.subr.mxu0 0.0
      %1660 = vmatpush1.msra.mxu0 %v1610
      %1661 = vmatprep.subr.mxu0 0.0
      %1662 = vmatpush1.msra.mxu0 %v1611
      %1663 = vmatprep.subr.mxu0 0.0
      %1664 = vmatpush1.msra.mxu0 %v1612
      %1665 = vmatprep.subr.mxu0 0.0
      %1666 = vmatpush1.msra.mxu0 %v1613
      %1667 = vmatprep.subr.mxu0 0.0
      %1668 = vmatpush1.msra.mxu0 %v1614
      %1669 = vmatprep.subr.mxu0 0.0
      %1670 = vmatpush1.msra.mxu0 %v1615
      %1671 = vmatprep.subr.mxu0 0.0
      %1672 = vmatpush1.msra.mxu0 %v1616
      %1673 = vmatprep.subr.mxu0 0.0
      %1674 = vmatpush1.msra.mxu0 %v1617
      %1675 = vmatprep.subr.mxu0 0.0
      %1676 = vmatpush1.msra.mxu0 %v1618
      %1677 = vmatprep.subr.mxu0 0.0
      %1678 = vmatpush1.msra.mxu0 %v1619
      %1679 = vmatprep.subr.mxu0 0.0
      %1680 = vmatpush1.msra.mxu0 %v1620
      %1681 = vmatprep.subr.mxu0 0.0
      %1682 = vmatpush1.msra.mxu0 %v1621
      %1683 = vmatprep.subr.mxu0 0.0
      %1684 = vmatpush1.msra.mxu0 %v1622
      %1685 = vmatprep.subr.mxu0 0.0
      %1686 = vmatpush1.msra.mxu0 %v1623
      %1687 = vmatprep.subr.mxu0 0.0
      %1688 = vmatpush1.msra.mxu0 %v1624
      %1689 = vmatprep.mubr.f32.mxu0 %v1144
      %1690 = vmatmul.mubr.f32.gmra.mrb[0].mxu0 %v1143
      %v1691 = vpop.f32.mrb[0].mxu0
      %v1692 = vadd.f32 0.0, %v1691
      %v1693 = vpop.f32.mrb[0].mxu0
      %1694 = vdwg.mxu0
      %1696 = vset.pattern.permute.xlu0 0
      %1697 = vperm.xlu0 %1696, %v1591
      %v1698 = vpop.permute.xlu0 %1697
      %v1700 = vmul.f32 %v1698, %v1692
      %v1701 = vadd.f32 %v1589, %v1700
      %s1702 = scalar_lea.vmem %s15, 40
      %v1703 = vld [vmem:[%s1702] sm:$0xff]
      %s1704 = scalar_lea.vmem %s17, 1280
      %v1705 = vld [vmem:[%s1704] sm:$0xff]
      %v1706 = vld [vmem:[%s1704 + $0x8] sm:$0xff]
      %v1707 = vld [vmem:[%s1704 + $0x10] sm:$0xff]
      %v1708 = vld [vmem:[%s1704 + $0x18] sm:$0xff]
      %v1709 = vld [vmem:[%s1704 + $0x20] sm:$0xff]
      %v1710 = vld [vmem:[%s1704 + $0x28] sm:$0xff]
      %v1711 = vld [vmem:[%s1704 + $0x30] sm:$0xff]
      %v1712 = vld [vmem:[%s1704 + $0x38] sm:$0xff]
      %v1713 = vld [vmem:[%s1704 + $0x40] sm:$0xff]
      %v1714 = vld [vmem:[%s1704 + $0x48] sm:$0xff]
      %v1715 = vld [vmem:[%s1704 + $0x50] sm:$0xff]
      %v1716 = vld [vmem:[%s1704 + $0x58] sm:$0xff]
      %v1717 = vld [vmem:[%s1704 + $0x60] sm:$0xff]
      %v1718 = vld [vmem:[%s1704 + $0x68] sm:$0xff]
      %v1719 = vld [vmem:[%s1704 + $0x70] sm:$0xff]
      %v1720 = vld [vmem:[%s1704 + $0x78] sm:$0xff]
      %v1721 = vld [vmem:[%s1704 + $0x80] sm:$0xff]
      %v1722 = vld [vmem:[%s1704 + $0x88] sm:$0xff]
      %v1723 = vld [vmem:[%s1704 + $0x90] sm:$0xff]
      %v1724 = vld [vmem:[%s1704 + $0x98] sm:$0xff]
      %v1725 = vld [vmem:[%s1704 + $0xa0] sm:$0xff]
      %v1726 = vld [vmem:[%s1704 + $0xa8] sm:$0xff]
      %v1727 = vld [vmem:[%s1704 + $0xb0] sm:$0xff]
      %v1728 = vld [vmem:[%s1704 + $0xb8] sm:$0xff]
      %v1729 = vld [vmem:[%s1704 + $0xc0] sm:$0xff]
      %v1730 = vld [vmem:[%s1704 + $0xc8] sm:$0xff]
      %v1731 = vld [vmem:[%s1704 + $0xd0] sm:$0xff]
      %v1732 = vld [vmem:[%s1704 + $0xd8] sm:$0xff]
      %v1733 = vld [vmem:[%s1704 + $0xe0] sm:$0xff]
      %v1734 = vld [vmem:[%s1704 + $0xe8] sm:$0xff]
      %v1735 = vld [vmem:[%s1704 + $0xf0] sm:$0xff]
      %v1736 = vld [vmem:[%s1704 + $0xf8] sm:$0xff]
      %1737 = vmatprep.subr.mxu0 0.0
      %1738 = vmatpush1.msra.mxu0 %v1705
      %1739 = vmatprep.subr.mxu0 0.0
      %1740 = vmatpush1.msra.mxu0 %v1706
      %1741 = vmatprep.subr.mxu0 0.0
      %1742 = vmatpush1.msra.mxu0 %v1707
      %1743 = vmatprep.subr.mxu0 0.0
      %1744 = vmatpush1.msra.mxu0 %v1708
      %1745 = vmatprep.subr.mxu0 0.0
      %1746 = vmatpush1.msra.mxu0 %v1709
      %1747 = vmatprep.subr.mxu0 0.0
      %1748 = vmatpush1.msra.mxu0 %v1710
      %1749 = vmatprep.subr.mxu0 0.0
      %1750 = vmatpush1.msra.mxu0 %v1711
      %1751 = vmatprep.subr.mxu0 0.0
      %1752 = vmatpush1.msra.mxu0 %v1712
      %1753 = vmatprep.subr.mxu0 0.0
      %1754 = vmatpush1.msra.mxu0 %v1713
      %1755 = vmatprep.subr.mxu0 0.0
      %1756 = vmatpush1.msra.mxu0 %v1714
      %1757 = vmatprep.subr.mxu0 0.0
      %1758 = vmatpush1.msra.mxu0 %v1715
      %1759 = vmatprep.subr.mxu0 0.0
      %1760 = vmatpush1.msra.mxu0 %v1716
      %1761 = vmatprep.subr.mxu0 0.0
      %1762 = vmatpush1.msra.mxu0 %v1717
      %1763 = vmatprep.subr.mxu0 0.0
      %1764 = vmatpush1.msra.mxu0 %v1718
      %1765 = vmatprep.subr.mxu0 0.0
      %1766 = vmatpush1.msra.mxu0 %v1719
      %1767 = vmatprep.subr.mxu0 0.0
      %1768 = vmatpush1.msra.mxu0 %v1720
      %1769 = vmatprep.subr.mxu0 0.0
      %1770 = vmatpush1.msra.mxu0 %v1721
      %1771 = vmatprep.subr.mxu0 0.0
      %1772 = vmatpush1.msra.mxu0 %v1722
      %1773 = vmatprep.subr.mxu0 0.0
      %1774 = vmatpush1.msra.mxu0 %v1723
      %1775 = vmatprep.subr.mxu0 0.0
      %1776 = vmatpush1.msra.mxu0 %v1724
      %1777 = vmatprep.subr.mxu0 0.0
      %1778 = vmatpush1.msra.mxu0 %v1725
      %1779 = vmatprep.subr.mxu0 0.0
      %1780 = vmatpush1.msra.mxu0 %v1726
      %1781 = vmatprep.subr.mxu0 0.0
      %1782 = vmatpush1.msra.mxu0 %v1727
      %1783 = vmatprep.subr.mxu0 0.0
      %1784 = vmatpush1.msra.mxu0 %v1728
      %1785 = vmatprep.subr.mxu0 0.0
      %1786 = vmatpush1.msra.mxu0 %v1729
      %1787 = vmatprep.subr.mxu0 0.0
      %1788 = vmatpush1.msra.mxu0 %v1730
      %1789 = vmatprep.subr.mxu0 0.0
      %1790 = vmatpush1.msra.mxu0 %v1731
      %1791 = vmatprep.subr.mxu0 0.0
      %1792 = vmatpush1.msra.mxu0 %v1732
      %1793 = vmatprep.subr.mxu0 0.0
      %1794 = vmatpush1.msra.mxu0 %v1733
      %1795 = vmatprep.subr.mxu0 0.0
      %1796 = vmatpush1.msra.mxu0 %v1734
      %1797 = vmatprep.subr.mxu0 0.0
      %1798 = vmatpush1.msra.mxu0 %v1735
      %1799 = vmatprep.subr.mxu0 0.0
      %1800 = vmatpush1.msra.mxu0 %v1736
      %1801 = vmatprep.mubr.f32.mxu0 %v1144
      %1802 = vmatmul.mubr.f32.gmra.mrb[0].mxu0 %v1143
      %v1803 = vpop.f32.mrb[0].mxu0
      %v1804 = vadd.f32 0.0, %v1803
      %v1805 = vpop.f32.mrb[0].mxu0
      %1806 = vdwg.mxu0
      %1808 = vset.pattern.permute.xlu0 0
      %1809 = vperm.xlu0 %1808, %v1703
      %v1810 = vpop.permute.xlu0 %1809
      %v1812 = vmul.f32 %v1810, %v1804
      %v1813 = vadd.f32 %v1701, %v1812
      %s1814 = scalar_lea.vmem %s15, 48
      %v1815 = vld [vmem:[%s1814] sm:$0xff]
      %s1816 = scalar_lea.vmem %s17, 1536
      %v1817 = vld [vmem:[%s1816] sm:$0xff]
      %v1818 = vld [vmem:[%s1816 + $0x8] sm:$0xff]
      %v1819 = vld [vmem:[%s1816 + $0x10] sm:$0xff]
      %v1820 = vld [vmem:[%s1816 + $0x18] sm:$0xff]
      %v1821 = vld [vmem:[%s1816 + $0x20] sm:$0xff]
      %v1822 = vld [vmem:[%s1816 + $0x28] sm:$0xff]
      %v1823 = vld [vmem:[%s1816 + $0x30] sm:$0xff]
      %v1824 = vld [vmem:[%s1816 + $0x38] sm:$0xff]
      %v1825 = vld [vmem:[%s1816 + $0x40] sm:$0xff]
      %v1826 = vld [vmem:[%s1816 + $0x48] sm:$0xff]
      %v1827 = vld [vmem:[%s1816 + $0x50] sm:$0xff]
      %v1828 = vld [vmem:[%s1816 + $0x58] sm:$0xff]
      %v1829 = vld [vmem:[%s1816 + $0x60] sm:$0xff]
      %v1830 = vld [vmem:[%s1816 + $0x68] sm:$0xff]
      %v1831 = vld [vmem:[%s1816 + $0x70] sm:$0xff]
      %v1832 = vld [vmem:[%s1816 + $0x78] sm:$0xff]
      %v1833 = vld [vmem:[%s1816 + $0x80] sm:$0xff]
      %v1834 = vld [vmem:[%s1816 + $0x88] sm:$0xff]
      %v1835 = vld [vmem:[%s1816 + $0x90] sm:$0xff]
      %v1836 = vld [vmem:[%s1816 + $0x98] sm:$0xff]
      %v1837 = vld [vmem:[%s1816 + $0xa0] sm:$0xff]
      %v1838 = vld [vmem:[%s1816 + $0xa8] sm:$0xff]
      %v1839 = vld [vmem:[%s1816 + $0xb0] sm:$0xff]
      %v1840 = vld [vmem:[%s1816 + $0xb8] sm:$0xff]
      %v1841 = vld [vmem:[%s1816 + $0xc0] sm:$0xff]
      %v1842 = vld [vmem:[%s1816 + $0xc8] sm:$0xff]
      %v1843 = vld [vmem:[%s1816 + $0xd0] sm:$0xff]
      %v1844 = vld [vmem:[%s1816 + $0xd8] sm:$0xff]
      %v1845 = vld [vmem:[%s1816 + $0xe0] sm:$0xff]
      %v1846 = vld [vmem:[%s1816 + $0xe8] sm:$0xff]
      %v1847 = vld [vmem:[%s1816 + $0xf0] sm:$0xff]
      %v1848 = vld [vmem:[%s1816 + $0xf8] sm:$0xff]
      %1849 = vmatprep.subr.mxu0 0.0
      %1850 = vmatpush1.msra.mxu0 %v1817
      %1851 = vmatprep.subr.mxu0 0.0
      %1852 = vmatpush1.msra.mxu0 %v1818
      %1853 = vmatprep.subr.mxu0 0.0
      %1854 = vmatpush1.msra.mxu0 %v1819
      %1855 = vmatprep.subr.mxu0 0.0
      %1856 = vmatpush1.msra.mxu0 %v1820
      %1857 = vmatprep.subr.mxu0 0.0
      %1858 = vmatpush1.msra.mxu0 %v1821
      %1859 = vmatprep.subr.mxu0 0.0
      %1860 = vmatpush1.msra.mxu0 %v1822
      %1861 = vmatprep.subr.mxu0 0.0
      %1862 = vmatpush1.msra.mxu0 %v1823
      %1863 = vmatprep.subr.mxu0 0.0
      %1864 = vmatpush1.msra.mxu0 %v1824
      %1865 = vmatprep.subr.mxu0 0.0
      %1866 = vmatpush1.msra.mxu0 %v1825
      %1867 = vmatprep.subr.mxu0 0.0
      %1868 = vmatpush1.msra.mxu0 %v1826
      %1869 = vmatprep.subr.mxu0 0.0
      %1870 = vmatpush1.msra.mxu0 %v1827
      %1871 = vmatprep.subr.mxu0 0.0
      %1872 = vmatpush1.msra.mxu0 %v1828
      %1873 = vmatprep.subr.mxu0 0.0
      %1874 = vmatpush1.msra.mxu0 %v1829
      %1875 = vmatprep.subr.mxu0 0.0
      %1876 = vmatpush1.msra.mxu0 %v1830
      %1877 = vmatprep.subr.mxu0 0.0
      %1878 = vmatpush1.msra.mxu0 %v1831
      %1879 = vmatprep.subr.mxu0 0.0
      %1880 = vmatpush1.msra.mxu0 %v1832
      %1881 = vmatprep.subr.mxu0 0.0
      %1882 = vmatpush1.msra.mxu0 %v1833
      %1883 = vmatprep.subr.mxu0 0.0
      %1884 = vmatpush1.msra.mxu0 %v1834
      %1885 = vmatprep.subr.mxu0 0.0
      %1886 = vmatpush1.msra.mxu0 %v1835
      %1887 = vmatprep.subr.mxu0 0.0
      %1888 = vmatpush1.msra.mxu0 %v1836
      %1889 = vmatprep.subr.mxu0 0.0
      %1890 = vmatpush1.msra.mxu0 %v1837
      %1891 = vmatprep.subr.mxu0 0.0
      %1892 = vmatpush1.msra.mxu0 %v1838
      %1893 = vmatprep.subr.mxu0 0.0
      %1894 = vmatpush1.msra.mxu0 %v1839
      %1895 = vmatprep.subr.mxu0 0.0
      %1896 = vmatpush1.msra.mxu0 %v1840
      %1897 = vmatprep.subr.mxu0 0.0
      %1898 = vmatpush1.msra.mxu0 %v1841
      %1899 = vmatprep.subr.mxu0 0.0
      %1900 = vmatpush1.msra.mxu0 %v1842
      %1901 = vmatprep.subr.mxu0 0.0
      %1902 = vmatpush1.msra.mxu0 %v1843
      %1903 = vmatprep.subr.mxu0 0.0
      %1904 = vmatpush1.msra.mxu0 %v1844
      %1905 = vmatprep.subr.mxu0 0.0
      %1906 = vmatpush1.msra.mxu0 %v1845
      %1907 = vmatprep.subr.mxu0 0.0
      %1908 = vmatpush1.msra.mxu0 %v1846
      %1909 = vmatprep.subr.mxu0 0.0
      %1910 = vmatpush1.msra.mxu0 %v1847
      %1911 = vmatprep.subr.mxu0 0.0
      %1912 = vmatpush1.msra.mxu0 %v1848
      %1913 = vmatprep.mubr.f32.mxu0 %v1144
      %1914 = vmatmul.mubr.f32.gmra.mrb[0].mxu0 %v1143
      %v1915 = vpop.f32.mrb[0].mxu0
      %v1916 = vadd.f32 0.0, %v1915
      %v1917 = vpop.f32.mrb[0].mxu0
      %1918 = vdwg.mxu0
      %1920 = vset.pattern.permute.xlu0 0
      %1921 = vperm.xlu0 %1920, %v1815
      %v1922 = vpop.permute.xlu0 %1921
      %v1924 = vmul.f32 %v1922, %v1916
      %v1925 = vadd.f32 %v1813, %v1924
      %s1926 = scalar_lea.vmem %s15, 56
      %v1927 = vld [vmem:[%s1926] sm:$0xff]
      %s1928 = scalar_lea.vmem %s17, 1792
      %v1929 = vld [vmem:[%s1928] sm:$0xff]
      %v1930 = vld [vmem:[%s1928 + $0x8] sm:$0xff]
      %v1931 = vld [vmem:[%s1928 + $0x10] sm:$0xff]
      %v1932 = vld [vmem:[%s1928 + $0x18] sm:$0xff]
      %v1933 = vld [vmem:[%s1928 + $0x20] sm:$0xff]
      %v1934 = vld [vmem:[%s1928 + $0x28] sm:$0xff]
      %v1935 = vld [vmem:[%s1928 + $0x30] sm:$0xff]
      %v1936 = vld [vmem:[%s1928 + $0x38] sm:$0xff]
      %v1937 = vld [vmem:[%s1928 + $0x40] sm:$0xff]
      %v1938 = vld [vmem:[%s1928 + $0x48] sm:$0xff]
      %v1939 = vld [vmem:[%s1928 + $0x50] sm:$0xff]
      %v1940 = vld [vmem:[%s1928 + $0x58] sm:$0xff]
      %v1941 = vld [vmem:[%s1928 + $0x60] sm:$0xff]
      %v1942 = vld [vmem:[%s1928 + $0x68] sm:$0xff]
      %v1943 = vld [vmem:[%s1928 + $0x70] sm:$0xff]
      %v1944 = vld [vmem:[%s1928 + $0x78] sm:$0xff]
      %v1945 = vld [vmem:[%s1928 + $0x80] sm:$0xff]
      %v1946 = vld [vmem:[%s1928 + $0x88] sm:$0xff]
      %v1947 = vld [vmem:[%s1928 + $0x90] sm:$0xff]
      %v1948 = vld [vmem:[%s1928 + $0x98] sm:$0xff]
      %v1949 = vld [vmem:[%s1928 + $0xa0] sm:$0xff]
      %v1950 = vld [vmem:[%s1928 + $0xa8] sm:$0xff]
      %v1951 = vld [vmem:[%s1928 + $0xb0] sm:$0xff]
      %v1952 = vld [vmem:[%s1928 + $0xb8] sm:$0xff]
      %v1953 = vld [vmem:[%s1928 + $0xc0] sm:$0xff]
      %v1954 = vld [vmem:[%s1928 + $0xc8] sm:$0xff]
      %v1955 = vld [vmem:[%s1928 + $0xd0] sm:$0xff]
      %v1956 = vld [vmem:[%s1928 + $0xd8] sm:$0xff]
      %v1957 = vld [vmem:[%s1928 + $0xe0] sm:$0xff]
      %v1958 = vld [vmem:[%s1928 + $0xe8] sm:$0xff]
      %v1959 = vld [vmem:[%s1928 + $0xf0] sm:$0xff]
      %v1960 = vld [vmem:[%s1928 + $0xf8] sm:$0xff]
      %1961 = vmatprep.subr.mxu0 0.0
      %1962 = vmatpush1.msra.mxu0 %v1929
      %1963 = vmatprep.subr.mxu0 0.0
      %1964 = vmatpush1.msra.mxu0 %v1930
      %1965 = vmatprep.subr.mxu0 0.0
      %1966 = vmatpush1.msra.mxu0 %v1931
      %1967 = vmatprep.subr.mxu0 0.0
      %1968 = vmatpush1.msra.mxu0 %v1932
      %1969 = vmatprep.subr.mxu0 0.0
      %1970 = vmatpush1.msra.mxu0 %v1933
      %1971 = vmatprep.subr.mxu0 0.0
      %1972 = vmatpush1.msra.mxu0 %v1934
      %1973 = vmatprep.subr.mxu0 0.0
      %1974 = vmatpush1.msra.mxu0 %v1935
      %1975 = vmatprep.subr.mxu0 0.0
      %1976 = vmatpush1.msra.mxu0 %v1936
      %1977 = vmatprep.subr.mxu0 0.0
      %1978 = vmatpush1.msra.mxu0 %v1937
      %1979 = vmatprep.subr.mxu0 0.0
      %1980 = vmatpush1.msra.mxu0 %v1938
      %1981 = vmatprep.subr.mxu0 0.0
      %1982 = vmatpush1.msra.mxu0 %v1939
      %1983 = vmatprep.subr.mxu0 0.0
      %1984 = vmatpush1.msra.mxu0 %v1940
      %1985 = vmatprep.subr.mxu0 0.0
      %1986 = vmatpush1.msra.mxu0 %v1941
      %1987 = vmatprep.subr.mxu0 0.0
      %1988 = vmatpush1.msra.mxu0 %v1942
      %1989 = vmatprep.subr.mxu0 0.0
      %1990 = vmatpush1.msra.mxu0 %v1943
      %1991 = vmatprep.subr.mxu0 0.0
      %1992 = vmatpush1.msra.mxu0 %v1944
      %1993 = vmatprep.subr.mxu0 0.0
      %1994 = vmatpush1.msra.mxu0 %v1945
      %1995 = vmatprep.subr.mxu0 0.0
      %1996 = vmatpush1.msra.mxu0 %v1946
      %1997 = vmatprep.subr.mxu0 0.0
      %1998 = vmatpush1.msra.mxu0 %v1947
      %1999 = vmatprep.subr.mxu0 0.0
      %2000 = vmatpush1.msra.mxu0 %v1948
      %2001 = vmatprep.subr.mxu0 0.0
      %2002 = vmatpush1.msra.mxu0 %v1949
      %2003 = vmatprep.subr.mxu0 0.0
      %2004 = vmatpush1.msra.mxu0 %v1950
      %2005 = vmatprep.subr.mxu0 0.0
      %2006 = vmatpush1.msra.mxu0 %v1951
      %2007 = vmatprep.subr.mxu0 0.0
      %2008 = vmatpush1.msra.mxu0 %v1952
      %2009 = vmatprep.subr.mxu0 0.0
      %2010 = vmatpush1.msra.mxu0 %v1953
      %2011 = vmatprep.subr.mxu0 0.0
      %2012 = vmatpush1.msra.mxu0 %v1954
      %2013 = vmatprep.subr.mxu0 0.0
      %2014 = vmatpush1.msra.mxu0 %v1955
      %2015 = vmatprep.subr.mxu0 0.0
      %2016 = vmatpush1.msra.mxu0 %v1956
      %2017 = vmatprep.subr.mxu0 0.0
      %2018 = vmatpush1.msra.mxu0 %v1957
      %2019 = vmatprep.subr.mxu0 0.0
      %2020 = vmatpush1.msra.mxu0 %v1958
      %2021 = vmatprep.subr.mxu0 0.0
      %2022 = vmatpush1.msra.mxu0 %v1959
      %2023 = vmatprep.subr.mxu0 0.0
      %2024 = vmatpush1.msra.mxu0 %v1960
      %2025 = vmatprep.mubr.f32.mxu0 %v1144
      %2026 = vmatmul.mubr.f32.gmra.mrb[0].mxu0 %v1143
      %v2027 = vpop.f32.mrb[0].mxu0
      %v2028 = vadd.f32 0.0, %v2027
      %v2029 = vpop.f32.mrb[0].mxu0
      %2030 = vdwg.mxu0
      %2032 = vset.pattern.permute.xlu0 0
      %2033 = vperm.xlu0 %2032, %v1927
      %v2034 = vpop.permute.xlu0 %2033
      %v2036 = vmul.f32 %v2034, %v2028
      %v2037 = vadd.f32 %v1925, %v2036
      %s2038 = scalar_lea.vmem %s15, 64
      %v2039 = vld [vmem:[%s2038] sm:$0xff]
      %s2040 = scalar_lea.vmem %s17, 2048
      %v2041 = vld [vmem:[%s2040] sm:$0xff]
      %v2042 = vld [vmem:[%s2040 + $0x8] sm:$0xff]
      %v2043 = vld [vmem:[%s2040 + $0x10] sm:$0xff]
      %v2044 = vld [vmem:[%s2040 + $0x18] sm:$0xff]
      %v2045 = vld [vmem:[%s2040 + $0x20] sm:$0xff]
      %v2046 = vld [vmem:[%s2040 + $0x28] sm:$0xff]
      %v2047 = vld [vmem:[%s2040 + $0x30] sm:$0xff]
      %v2048 = vld [vmem:[%s2040 + $0x38] sm:$0xff]
      %v2049 = vld [vmem:[%s2040 + $0x40] sm:$0xff]
      %v2050 = vld [vmem:[%s2040 + $0x48] sm:$0xff]
      %v2051 = vld [vmem:[%s2040 + $0x50] sm:$0xff]
      %v2052 = vld [vmem:[%s2040 + $0x58] sm:$0xff]
      %v2053 = vld [vmem:[%s2040 + $0x60] sm:$0xff]
      %v2054 = vld [vmem:[%s2040 + $0x68] sm:$0xff]
      %v2055 = vld [vmem:[%s2040 + $0x70] sm:$0xff]
      %v2056 = vld [vmem:[%s2040 + $0x78] sm:$0xff]
      %v2057 = vld [vmem:[%s2040 + $0x80] sm:$0xff]
      %v2058 = vld [vmem:[%s2040 + $0x88] sm:$0xff]
      %v2059 = vld [vmem:[%s2040 + $0x90] sm:$0xff]
      %v2060 = vld [vmem:[%s2040 + $0x98] sm:$0xff]
      %v2061 = vld [vmem:[%s2040 + $0xa0] sm:$0xff]
      %v2062 = vld [vmem:[%s2040 + $0xa8] sm:$0xff]
      %v2063 = vld [vmem:[%s2040 + $0xb0] sm:$0xff]
      %v2064 = vld [vmem:[%s2040 + $0xb8] sm:$0xff]
      %v2065 = vld [vmem:[%s2040 + $0xc0] sm:$0xff]
      %v2066 = vld [vmem:[%s2040 + $0xc8] sm:$0xff]
      %v2067 = vld [vmem:[%s2040 + $0xd0] sm:$0xff]
      %v2068 = vld [vmem:[%s2040 + $0xd8] sm:$0xff]
      %v2069 = vld [vmem:[%s2040 + $0xe0] sm:$0xff]
      %v2070 = vld [vmem:[%s2040 + $0xe8] sm:$0xff]
      %v2071 = vld [vmem:[%s2040 + $0xf0] sm:$0xff]
      %v2072 = vld [vmem:[%s2040 + $0xf8] sm:$0xff]
      %2073 = vmatprep.subr.mxu0 0.0
      %2074 = vmatpush1.msra.mxu0 %v2041
      %2075 = vmatprep.subr.mxu0 0.0
      %2076 = vmatpush1.msra.mxu0 %v2042
      %2077 = vmatprep.subr.mxu0 0.0
      %2078 = vmatpush1.msra.mxu0 %v2043
      %2079 = vmatprep.subr.mxu0 0.0
      %2080 = vmatpush1.msra.mxu0 %v2044
      %2081 = vmatprep.subr.mxu0 0.0
      %2082 = vmatpush1.msra.mxu0 %v2045
      %2083 = vmatprep.subr.mxu0 0.0
      %2084 = vmatpush1.msra.mxu0 %v2046
      %2085 = vmatprep.subr.mxu0 0.0
      %2086 = vmatpush1.msra.mxu0 %v2047
      %2087 = vmatprep.subr.mxu0 0.0
      %2088 = vmatpush1.msra.mxu0 %v2048
      %2089 = vmatprep.subr.mxu0 0.0
      %2090 = vmatpush1.msra.mxu0 %v2049
      %2091 = vmatprep.subr.mxu0 0.0
      %2092 = vmatpush1.msra.mxu0 %v2050
      %2093 = vmatprep.subr.mxu0 0.0
      %2094 = vmatpush1.msra.mxu0 %v2051
      %2095 = vmatprep.subr.mxu0 0.0
      %2096 = vmatpush1.msra.mxu0 %v2052
      %2097 = vmatprep.subr.mxu0 0.0
      %2098 = vmatpush1.msra.mxu0 %v2053
      %2099 = vmatprep.subr.mxu0 0.0
      %2100 = vmatpush1.msra.mxu0 %v2054
      %2101 = vmatprep.subr.mxu0 0.0
      %2102 = vmatpush1.msra.mxu0 %v2055
      %2103 = vmatprep.subr.mxu0 0.0
      %2104 = vmatpush1.msra.mxu0 %v2056
      %2105 = vmatprep.subr.mxu0 0.0
      %2106 = vmatpush1.msra.mxu0 %v2057
      %2107 = vmatprep.subr.mxu0 0.0
      %2108 = vmatpush1.msra.mxu0 %v2058
      %2109 = vmatprep.subr.mxu0 0.0
      %2110 = vmatpush1.msra.mxu0 %v2059
      %2111 = vmatprep.subr.mxu0 0.0
      %2112 = vmatpush1.msra.mxu0 %v2060
      %2113 = vmatprep.subr.mxu0 0.0
      %2114 = vmatpush1.msra.mxu0 %v2061
      %2115 = vmatprep.subr.mxu0 0.0
      %2116 = vmatpush1.msra.mxu0 %v2062
      %2117 = vmatprep.subr.mxu0 0.0
      %2118 = vmatpush1.msra.mxu0 %v2063
      %2119 = vmatprep.subr.mxu0 0.0
      %2120 = vmatpush1.msra.mxu0 %v2064
      %2121 = vmatprep.subr.mxu0 0.0
      %2122 = vmatpush1.msra.mxu0 %v2065
      %2123 = vmatprep.subr.mxu0 0.0
      %2124 = vmatpush1.msra.mxu0 %v2066
      %2125 = vmatprep.subr.mxu0 0.0
      %2126 = vmatpush1.msra.mxu0 %v2067
      %2127 = vmatprep.subr.mxu0 0.0
      %2128 = vmatpush1.msra.mxu0 %v2068
      %2129 = vmatprep.subr.mxu0 0.0
      %2130 = vmatpush1.msra.mxu0 %v2069
      %2131 = vmatprep.subr.mxu0 0.0
      %2132 = vmatpush1.msra.mxu0 %v2070
      %2133 = vmatprep.subr.mxu0 0.0
      %2134 = vmatpush1.msra.mxu0 %v2071
      %2135 = vmatprep.subr.mxu0 0.0
      %2136 = vmatpush1.msra.mxu0 %v2072
      %2137 = vmatprep.mubr.f32.mxu0 %v1144
      %2138 = vmatmul.mubr.f32.gmra.mrb[0].mxu0 %v1143
      %v2139 = vpop.f32.mrb[0].mxu0
      %v2140 = vadd.f32 0.0, %v2139
      %v2141 = vpop.f32.mrb[0].mxu0
      %2142 = vdwg.mxu0
      %2144 = vset.pattern.permute.xlu0 0
      %2145 = vperm.xlu0 %2144, %v2039
      %v2146 = vpop.permute.xlu0 %2145
      %v2148 = vmul.f32 %v2146, %v2140
      %v2149 = vadd.f32 %v2037, %v2148
      %v2150 = vld [vmem:[%s19] sm:$0xff]
      %2152 = vset.pattern.permute.xlu0 0
      %2153 = vperm.xlu0 %2152, %v2150
      %v2154 = vpop.permute.xlu0 %2153
      %v2156 = vmul.f32 %v2149, %v2154
      %v2157 = vld [vmem:[%s21] sm:$0xff]
      %2159 = vset.pattern.permute.xlu0 0
      %2160 = vperm.xlu0 %2159, %v2157
      %v2161 = vpop.permute.xlu0 %2160
      %v2163 = vadd.f32 %v2156, %v2161
      %v2164 = vmax.f32 %v2163, 0.0
      %v2165 = vld [vmem:[%s23] sm:$0xf]
      %v2166 = vpack.c.bf16 %v2164, %v2164
      %vm2167 = vcmask 64512
      %v2169 = vsel %vm2167, %v2165, 0
      %vm2171 = vcmask 1043456
      %v2173 = vsel %vm2171, %v2166, 0
      %2175 = vmatprep.subr.bf16.mxu0 0
      %2176 = vmatpush1.bf16.msra.mxu0 %v2173
      %2177 = vmatprep.subr.bf16.mxu0 0
      %2178 = vmatpush1.bf16.msra.mxu0 0
      %2179 = vmatprep.subr.bf16.mxu0 0
      %2180 = vmatpush1.bf16.msra.mxu0 0
      %2181 = vmatprep.subr.bf16.mxu0 0
      %2182 = vmatpush1.bf16.msra.mxu0 0
      %2183 = vmatprep.subr.bf16.mxu0 0
      %2184 = vmatpush1.bf16.msra.mxu0 0
      %2185 = vmatprep.subr.bf16.mxu0 0
      %2186 = vmatpush1.bf16.msra.mxu0 0
      %2187 = vmatprep.subr.bf16.mxu0 0
      %2188 = vmatpush1.bf16.msra.mxu0 0
      %2189 = vmatprep.subr.bf16.mxu0 0
      %2190 = vmatpush1.bf16.msra.mxu0 0
      %2191 = vmatprep.subr.bf16.mxu0 0
      %2192 = vmatpush1.bf16.msra.mxu0 0
      %2193 = vmatprep.subr.bf16.mxu0 0
      %2194 = vmatpush1.bf16.msra.mxu0 0
      %2195 = vmatprep.subr.bf16.mxu0 0
      %2196 = vmatpush1.bf16.msra.mxu0 0
      %2197 = vmatprep.subr.bf16.mxu0 0
      %2198 = vmatpush1.bf16.msra.mxu0 0
      %2199 = vmatprep.subr.bf16.mxu0 0
      %2200 = vmatpush1.bf16.msra.mxu0 0
      %2201 = vmatprep.subr.bf16.mxu0 0
      %2202 = vmatpush1.bf16.msra.mxu0 0
      %2203 = vmatprep.subr.bf16.mxu0 0
      %2204 = vmatpush1.bf16.msra.mxu0 0
      %2205 = vmatprep.subr.bf16.mxu0 0
      %2206 = vmatpush1.bf16.msra.mxu0 0
      %2207 = vmatprep.mubr.bf16.mxu0 0
      %2208 = vmatmul.mubr.bf16.gmra.mrb[0].mxu0 %v2169
      %v2209 = vpop.f32.mrb[0].mxu0
      %v2210 = vadd.f32 0.0, %v2209
      %v2211 = vpop.f32.mrb[0].mxu0
      %v2212 = vpop.f32.mrb[0].mxu0
      %v2213 = vpop.f32.mrb[0].mxu0
      %2214 = vdwg.mxu0
      %v2215 = vld [vmem:[%s25] sm:$0xff]
      %2217 = vset.pattern.permute.xlu0 0
      %2218 = vperm.xlu0 %2217, %v2215
      %v2219 = vpop.permute.xlu0 %2218
      %v2221 = vmul.f32 %v2210, %v2219
      %v2222 = vld [vmem:[%s27] sm:$0xff]
      %2224 = vset.pattern.permute.xlu0 0
      %2225 = vperm.xlu0 %2224, %v2222
      %v2226 = vpop.permute.xlu0 %2225
      %v2228 = vadd.f32 %v2221, %v2226
      %v2229 = vmax.f32 %v2228, 0.0
      %v2230 = vld [vmem:[%s29] sm:$0xff]
      %v2231 = vld [vmem:[%s31] sm:$0xff]
      %v2232 = vld [vmem:[%s31 + $0x8] sm:$0xff]
      %v2233 = vld [vmem:[%s31 + $0x10] sm:$0xff]
      %v2234 = vld [vmem:[%s31 + $0x18] sm:$0xff]
      %v2235 = vld [vmem:[%s31 + $0x20] sm:$0xff]
      %v2236 = vld [vmem:[%s31 + $0x28] sm:$0xff]
      %v2237 = vld [vmem:[%s31 + $0x30] sm:$0xff]
      %v2238 = vld [vmem:[%s31 + $0x38] sm:$0xff]
      %vm2239 = vcmask 523264
      %v2241 = vsel %vm2239, %v2229, 0
      %2243 = vmatprep.subr.mxu0 0.0
      %2244 = vmatpush1.msra.mxu0 %v2231
      %2245 = vmatprep.subr.mxu0 0.0
      %2246 = vmatpush1.msra.mxu0 %v2232
      %2247 = vmatprep.subr.mxu0 0.0
      %2248 = vmatpush1.msra.mxu0 %v2233
      %2249 = vmatprep.subr.mxu0 0.0
      %2250 = vmatpush1.msra.mxu0 %v2234
      %2251 = vmatprep.subr.mxu0 0.0
      %2252 = vmatpush1.msra.mxu0 %v2235
      %2253 = vmatprep.subr.mxu0 0.0
      %2254 = vmatpush1.msra.mxu0 %v2236
      %2255 = vmatprep.subr.mxu0 0.0
      %2256 = vmatpush1.msra.mxu0 %v2237
      %2257 = vmatprep.subr.mxu0 0.0
      %2258 = vmatpush1.msra.mxu0 %v2238
      %2259 = vmatprep.subr.mxu0 0.0
      %2260 = vmatpush1.msra.mxu0 0.0
      %2261 = vmatprep.subr.mxu0 0.0
      %2262 = vmatpush1.msra.mxu0 0.0
      %2263 = vmatprep.subr.mxu0 0.0
      %2264 = vmatpush1.msra.mxu0 0.0
      %2265 = vmatprep.subr.mxu0 0.0
      %2266 = vmatpush1.msra.mxu0 0.0
      %2267 = vmatprep.subr.mxu0 0.0
      %2268 = vmatpush1.msra.mxu0 0.0
      %2269 = vmatprep.subr.mxu0 0.0
      %2270 = vmatpush1.msra.mxu0 0.0
      %2271 = vmatprep.subr.mxu0 0.0
      %2272 = vmatpush1.msra.mxu0 0.0
      %2273 = vmatprep.subr.mxu0 0.0
      %2274 = vmatpush1.msra.mxu0 0.0
      %2275 = vmatprep.subr.mxu0 0.0
      %2276 = vmatpush1.msra.mxu0 0.0
      %2277 = vmatprep.subr.mxu0 0.0
      %2278 = vmatpush1.msra.mxu0 0.0
      %2279 = vmatprep.subr.mxu0 0.0
      %2280 = vmatpush1.msra.mxu0 0.0
      %2281 = vmatprep.subr.mxu0 0.0
      %2282 = vmatpush1.msra.mxu0 0.0
      %2283 = vmatprep.subr.mxu0 0.0
      %2284 = vmatpush1.msra.mxu0 0.0
      %2285 = vmatprep.subr.mxu0 0.0
      %2286 = vmatpush1.msra.mxu0 0.0
      %2287 = vmatprep.subr.mxu0 0.0
      %2288 = vmatpush1.msra.mxu0 0.0
      %2289 = vmatprep.subr.mxu0 0.0
      %2290 = vmatpush1.msra.mxu0 0.0
      %2291 = vmatprep.subr.mxu0 0.0
      %2292 = vmatpush1.msra.mxu0 0.0
      %2293 = vmatprep.subr.mxu0 0.0
      %2294 = vmatpush1.msra.mxu0 0.0
      %2295 = vmatprep.subr.mxu0 0.0
      %2296 = vmatpush1.msra.mxu0 0.0
      %2297 = vmatprep.subr.mxu0 0.0
      %2298 = vmatpush1.msra.mxu0 0.0
      %2299 = vmatprep.subr.mxu0 0.0
      %2300 = vmatpush1.msra.mxu0 0.0
      %2301 = vmatprep.subr.mxu0 0.0
      %2302 = vmatpush1.msra.mxu0 0.0
      %2303 = vmatprep.subr.mxu0 0.0
      %2304 = vmatpush1.msra.mxu0 0.0
      %2305 = vmatprep.subr.mxu0 0.0
      %2306 = vmatpush1.msra.mxu0 0.0
      %2307 = vmatprep.mubr.f32.mxu0 0.0
      %2308 = vmatmul.mubr.f32.gmra.mrb[0].mxu0 %v2241
      %v2309 = vpop.f32.mrb[0].mxu0
      %v2310 = vadd.f32 0.0, %v2309
      %v2311 = vpop.f32.mrb[0].mxu0
      %2312 = vdwg.mxu0
      %2314 = vset.pattern.permute.xlu0 0
      %2315 = vperm.xlu0 %2314, %v2230
      %v2316 = vpop.permute.xlu0 %2315
      %v2318 = vmul.f32 %v2316, %v2310
      %s2319 = scalar_lea.vmem %s29, 8
      %v2320 = vld [vmem:[%s2319] sm:$0xff]
      %s2321 = scalar_lea.vmem %s31, 64
      %v2322 = vld [vmem:[%s2321] sm:$0xff]
      %v2323 = vld [vmem:[%s2321 + $0x8] sm:$0xff]
      %v2324 = vld [vmem:[%s2321 + $0x10] sm:$0xff]
      %v2325 = vld [vmem:[%s2321 + $0x18] sm:$0xff]
      %v2326 = vld [vmem:[%s2321 + $0x20] sm:$0xff]
      %v2327 = vld [vmem:[%s2321 + $0x28] sm:$0xff]
      %v2328 = vld [vmem:[%s2321 + $0x30] sm:$0xff]
      %v2329 = vld [vmem:[%s2321 + $0x38] sm:$0xff]
      %2330 = vmatprep.subr.mxu0 0.0
      %2331 = vmatpush1.msra.mxu0 %v2322
      %2332 = vmatprep.subr.mxu0 0.0
      %2333 = vmatpush1.msra.mxu0 %v2323
      %2334 = vmatprep.subr.mxu0 0.0
      %2335 = vmatpush1.msra.mxu0 %v2324
      %2336 = vmatprep.subr.mxu0 0.0
      %2337 = vmatpush1.msra.mxu0 %v2325
      %2338 = vmatprep.subr.mxu0 0.0
      %2339 = vmatpush1.msra.mxu0 %v2326
      %2340 = vmatprep.subr.mxu0 0.0
      %2341 = vmatpush1.msra.mxu0 %v2327
      %2342 = vmatprep.subr.mxu0 0.0
      %2343 = vmatpush1.msra.mxu0 %v2328
      %2344 = vmatprep.subr.mxu0 0.0
      %2345 = vmatpush1.msra.mxu0 %v2329
      %2346 = vmatprep.subr.mxu0 0.0
      %2347 = vmatpush1.msra.mxu0 0.0
      %2348 = vmatprep.subr.mxu0 0.0
      %2349 = vmatpush1.msra.mxu0 0.0
      %2350 = vmatprep.subr.mxu0 0.0
      %2351 = vmatpush1.msra.mxu0 0.0
      %2352 = vmatprep.subr.mxu0 0.0
      %2353 = vmatpush1.msra.mxu0 0.0
      %2354 = vmatprep.subr.mxu0 0.0
      %2355 = vmatpush1.msra.mxu0 0.0
      %2356 = vmatprep.subr.mxu0 0.0
      %2357 = vmatpush1.msra.mxu0 0.0
      %2358 = vmatprep.subr.mxu0 0.0
      %2359 = vmatpush1.msra.mxu0 0.0
      %2360 = vmatprep.subr.mxu0 0.0
      %2361 = vmatpush1.msra.mxu0 0.0
      %2362 = vmatprep.subr.mxu0 0.0
      %2363 = vmatpush1.msra.mxu0 0.0
      %2364 = vmatprep.subr.mxu0 0.0
      %2365 = vmatpush1.msra.mxu0 0.0
      %2366 = vmatprep.subr.mxu0 0.0
      %2367 = vmatpush1.msra.mxu0 0.0
      %2368 = vmatprep.subr.mxu0 0.0
      %2369 = vmatpush1.msra.mxu0 0.0
      %2370 = vmatprep.subr.mxu0 0.0
      %2371 = vmatpush1.msra.mxu0 0.0
      %2372 = vmatprep.subr.mxu0 0.0
      %2373 = vmatpush1.msra.mxu0 0.0
      %2374 = vmatprep.subr.mxu0 0.0
      %2375 = vmatpush1.msra.mxu0 0.0
      %2376 = vmatprep.subr.mxu0 0.0
      %2377 = vmatpush1.msra.mxu0 0.0
      %2378 = vmatprep.subr.mxu0 0.0
      %2379 = vmatpush1.msra.mxu0 0.0
      %2380 = vmatprep.subr.mxu0 0.0
      %2381 = vmatpush1.msra.mxu0 0.0
      %2382 = vmatprep.subr.mxu0 0.0
      %2383 = vmatpush1.msra.mxu0 0.0
      %2384 = vmatprep.subr.mxu0 0.0
      %2385 = vmatpush1.msra.mxu0 0.0
      %2386 = vmatprep.subr.mxu0 0.0
      %2387 = vmatpush1.msra.mxu0 0.0
      %2388 = vmatprep.subr.mxu0 0.0
      %2389 = vmatpush1.msra.mxu0 0.0
      %2390 = vmatprep.subr.mxu0 0.0
      %2391 = vmatpush1.msra.mxu0 0.0
      %2392 = vmatprep.subr.mxu0 0.0
      %2393 = vmatpush1.msra.mxu0 0.0
      %2394 = vmatprep.mubr.f32.mxu0 0.0
      %2395 = vmatmul.mubr.f32.gmra.mrb[0].mxu0 %v2241
      %v2396 = vpop.f32.mrb[0].mxu0
      %v2397 = vadd.f32 0.0, %v2396
      %v2398 = vpop.f32.mrb[0].mxu0
      %2399 = vdwg.mxu0
      %2401 = vset.pattern.permute.xlu0 0
      %2402 = vperm.xlu0 %2401, %v2320
      %v2403 = vpop.permute.xlu0 %2402
      %v2405 = vmul.f32 %v2403, %v2397
      %v2406 = vadd.f32 %v2318, %v2405
      %s2407 = scalar_lea.vmem %s29, 16
      %v2408 = vld [vmem:[%s2407] sm:$0xff]
      %s2409 = scalar_lea.vmem %s31, 128
      %v2410 = vld [vmem:[%s2409] sm:$0xff]
      %v2411 = vld [vmem:[%s2409 + $0x8] sm:$0xff]
      %v2412 = vld [vmem:[%s2409 + $0x10] sm:$0xff]
      %v2413 = vld [vmem:[%s2409 + $0x18] sm:$0xff]
      %v2414 = vld [vmem:[%s2409 + $0x20] sm:$0xff]
      %v2415 = vld [vmem:[%s2409 + $0x28] sm:$0xff]
      %v2416 = vld [vmem:[%s2409 + $0x30] sm:$0xff]
      %v2417 = vld [vmem:[%s2409 + $0x38] sm:$0xff]
      %2418 = vmatprep.subr.mxu0 0.0
      %2419 = vmatpush1.msra.mxu0 %v2410
      %2420 = vmatprep.subr.mxu0 0.0
      %2421 = vmatpush1.msra.mxu0 %v2411
      %2422 = vmatprep.subr.mxu0 0.0
      %2423 = vmatpush1.msra.mxu0 %v2412
      %2424 = vmatprep.subr.mxu0 0.0
      %2425 = vmatpush1.msra.mxu0 %v2413
      %2426 = vmatprep.subr.mxu0 0.0
      %2427 = vmatpush1.msra.mxu0 %v2414
      %2428 = vmatprep.subr.mxu0 0.0
      %2429 = vmatpush1.msra.mxu0 %v2415
      %2430 = vmatprep.subr.mxu0 0.0
      %2431 = vmatpush1.msra.mxu0 %v2416
      %2432 = vmatprep.subr.mxu0 0.0
      %2433 = vmatpush1.msra.mxu0 %v2417
      %2434 = vmatprep.subr.mxu0 0.0
      %2435 = vmatpush1.msra.mxu0 0.0
      %2436 = vmatprep.subr.mxu0 0.0
      %2437 = vmatpush1.msra.mxu0 0.0
      %2438 = vmatprep.subr.mxu0 0.0
      %2439 = vmatpush1.msra.mxu0 0.0
      %2440 = vmatprep.subr.mxu0 0.0
      %2441 = vmatpush1.msra.mxu0 0.0
      %2442 = vmatprep.subr.mxu0 0.0
      %2443 = vmatpush1.msra.mxu0 0.0
      %2444 = vmatprep.subr.mxu0 0.0
      %2445 = vmatpush1.msra.mxu0 0.0
      %2446 = vmatprep.subr.mxu0 0.0
      %2447 = vmatpush1.msra.mxu0 0.0
      %2448 = vmatprep.subr.mxu0 0.0
      %2449 = vmatpush1.msra.mxu0 0.0
      %2450 = vmatprep.subr.mxu0 0.0
      %2451 = vmatpush1.msra.mxu0 0.0
      %2452 = vmatprep.subr.mxu0 0.0
      %2453 = vmatpush1.msra.mxu0 0.0
      %2454 = vmatprep.subr.mxu0 0.0
      %2455 = vmatpush1.msra.mxu0 0.0
      %2456 = vmatprep.subr.mxu0 0.0
      %2457 = vmatpush1.msra.mxu0 0.0
      %2458 = vmatprep.subr.mxu0 0.0
      %2459 = vmatpush1.msra.mxu0 0.0
      %2460 = vmatprep.subr.mxu0 0.0
      %2461 = vmatpush1.msra.mxu0 0.0
      %2462 = vmatprep.subr.mxu0 0.0
      %2463 = vmatpush1.msra.mxu0 0.0
      %2464 = vmatprep.subr.mxu0 0.0
      %2465 = vmatpush1.msra.mxu0 0.0
      %2466 = vmatprep.subr.mxu0 0.0
      %2467 = vmatpush1.msra.mxu0 0.0
      %2468 = vmatprep.subr.mxu0 0.0
      %2469 = vmatpush1.msra.mxu0 0.0
      %2470 = vmatprep.subr.mxu0 0.0
      %2471 = vmatpush1.msra.mxu0 0.0
      %2472 = vmatprep.subr.mxu0 0.0
      %2473 = vmatpush1.msra.mxu0 0.0
      %2474 = vmatprep.subr.mxu0 0.0
      %2475 = vmatpush1.msra.mxu0 0.0
      %2476 = vmatprep.subr.mxu0 0.0
      %2477 = vmatpush1.msra.mxu0 0.0
      %2478 = vmatprep.subr.mxu0 0.0
      %2479 = vmatpush1.msra.mxu0 0.0
      %2480 = vmatprep.subr.mxu0 0.0
      %2481 = vmatpush1.msra.mxu0 0.0
      %2482 = vmatprep.mubr.f32.mxu0 0.0
      %2483 = vmatmul.mubr.f32.gmra.mrb[0].mxu0 %v2241
      %v2484 = vpop.f32.mrb[0].mxu0
      %v2485 = vadd.f32 0.0, %v2484
      %v2486 = vpop.f32.mrb[0].mxu0
      %2487 = vdwg.mxu0
      %2489 = vset.pattern.permute.xlu0 0
      %2490 = vperm.xlu0 %2489, %v2408
      %v2491 = vpop.permute.xlu0 %2490
      %v2493 = vmul.f32 %v2491, %v2485
      %v2494 = vadd.f32 %v2406, %v2493
      %s2495 = scalar_lea.vmem %s29, 24
      %v2496 = vld [vmem:[%s2495] sm:$0xff]
      %s2497 = scalar_lea.vmem %s31, 192
      %v2498 = vld [vmem:[%s2497] sm:$0xff]
      %v2499 = vld [vmem:[%s2497 + $0x8] sm:$0xff]
      %v2500 = vld [vmem:[%s2497 + $0x10] sm:$0xff]
      %v2501 = vld [vmem:[%s2497 + $0x18] sm:$0xff]
      %v2502 = vld [vmem:[%s2497 + $0x20] sm:$0xff]
      %v2503 = vld [vmem:[%s2497 + $0x28] sm:$0xff]
      %v2504 = vld [vmem:[%s2497 + $0x30] sm:$0xff]
      %v2505 = vld [vmem:[%s2497 + $0x38] sm:$0xff]
      %2506 = vmatprep.subr.mxu0 0.0
      %2507 = vmatpush1.msra.mxu0 %v2498
      %2508 = vmatprep.subr.mxu0 0.0
      %2509 = vmatpush1.msra.mxu0 %v2499
      %2510 = vmatprep.subr.mxu0 0.0
      %2511 = vmatpush1.msra.mxu0 %v2500
      %2512 = vmatprep.subr.mxu0 0.0
      %2513 = vmatpush1.msra.mxu0 %v2501
      %2514 = vmatprep.subr.mxu0 0.0
      %2515 = vmatpush1.msra.mxu0 %v2502
      %2516 = vmatprep.subr.mxu0 0.0
      %2517 = vmatpush1.msra.mxu0 %v2503
      %2518 = vmatprep.subr.mxu0 0.0
      %2519 = vmatpush1.msra.mxu0 %v2504
      %2520 = vmatprep.subr.mxu0 0.0
      %2521 = vmatpush1.msra.mxu0 %v2505
      %2522 = vmatprep.subr.mxu0 0.0
      %2523 = vmatpush1.msra.mxu0 0.0
      %2524 = vmatprep.subr.mxu0 0.0
      %2525 = vmatpush1.msra.mxu0 0.0
      %2526 = vmatprep.subr.mxu0 0.0
      %2527 = vmatpush1.msra.mxu0 0.0
      %2528 = vmatprep.subr.mxu0 0.0
      %2529 = vmatpush1.msra.mxu0 0.0
      %2530 = vmatprep.subr.mxu0 0.0
      %2531 = vmatpush1.msra.mxu0 0.0
      %2532 = vmatprep.subr.mxu0 0.0
      %2533 = vmatpush1.msra.mxu0 0.0
      %2534 = vmatprep.subr.mxu0 0.0
      %2535 = vmatpush1.msra.mxu0 0.0
      %2536 = vmatprep.subr.mxu0 0.0
      %2537 = vmatpush1.msra.mxu0 0.0
      %2538 = vmatprep.subr.mxu0 0.0
      %2539 = vmatpush1.msra.mxu0 0.0
      %2540 = vmatprep.subr.mxu0 0.0
      %2541 = vmatpush1.msra.mxu0 0.0
      %2542 = vmatprep.subr.mxu0 0.0
      %2543 = vmatpush1.msra.mxu0 0.0
      %2544 = vmatprep.subr.mxu0 0.0
      %2545 = vmatpush1.msra.mxu0 0.0
      %2546 = vmatprep.subr.mxu0 0.0
      %2547 = vmatpush1.msra.mxu0 0.0
      %2548 = vmatprep.subr.mxu0 0.0
      %2549 = vmatpush1.msra.mxu0 0.0
      %2550 = vmatprep.subr.mxu0 0.0
      %2551 = vmatpush1.msra.mxu0 0.0
      %2552 = vmatprep.subr.mxu0 0.0
      %2553 = vmatpush1.msra.mxu0 0.0
      %2554 = vmatprep.subr.mxu0 0.0
      %2555 = vmatpush1.msra.mxu0 0.0
      %2556 = vmatprep.subr.mxu0 0.0
      %2557 = vmatpush1.msra.mxu0 0.0
      %2558 = vmatprep.subr.mxu0 0.0
      %2559 = vmatpush1.msra.mxu0 0.0
      %2560 = vmatprep.subr.mxu0 0.0
      %2561 = vmatpush1.msra.mxu0 0.0
      %2562 = vmatprep.subr.mxu0 0.0
      %2563 = vmatpush1.msra.mxu0 0.0
      %2564 = vmatprep.subr.mxu0 0.0
      %2565 = vmatpush1.msra.mxu0 0.0
      %2566 = vmatprep.subr.mxu0 0.0
      %2567 = vmatpush1.msra.mxu0 0.0
      %2568 = vmatprep.subr.mxu0 0.0
      %2569 = vmatpush1.msra.mxu0 0.0
      %2570 = vmatprep.mubr.f32.mxu0 0.0
      %2571 = vmatmul.mubr.f32.gmra.mrb[0].mxu0 %v2241
      %v2572 = vpop.f32.mrb[0].mxu0
      %v2573 = vadd.f32 0.0, %v2572
      %v2574 = vpop.f32.mrb[0].mxu0
      %2575 = vdwg.mxu0
      %2577 = vset.pattern.permute.xlu0 0
      %2578 = vperm.xlu0 %2577, %v2496
      %v2579 = vpop.permute.xlu0 %2578
      %v2581 = vmul.f32 %v2579, %v2573
      %v2582 = vadd.f32 %v2494, %v2581
      %s2583 = scalar_lea.vmem %s29, 32
      %v2584 = vld [vmem:[%s2583] sm:$0xff]
      %s2585 = scalar_lea.vmem %s31, 256
      %v2586 = vld [vmem:[%s2585] sm:$0xff]
      %v2587 = vld [vmem:[%s2585 + $0x8] sm:$0xff]
      %v2588 = vld [vmem:[%s2585 + $0x10] sm:$0xff]
      %v2589 = vld [vmem:[%s2585 + $0x18] sm:$0xff]
      %v2590 = vld [vmem:[%s2585 + $0x20] sm:$0xff]
      %v2591 = vld [vmem:[%s2585 + $0x28] sm:$0xff]
      %v2592 = vld [vmem:[%s2585 + $0x30] sm:$0xff]
      %v2593 = vld [vmem:[%s2585 + $0x38] sm:$0xff]
      %2594 = vmatprep.subr.mxu0 0.0
      %2595 = vmatpush1.msra.mxu0 %v2586
      %2596 = vmatprep.subr.mxu0 0.0
      %2597 = vmatpush1.msra.mxu0 %v2587
      %2598 = vmatprep.subr.mxu0 0.0
      %2599 = vmatpush1.msra.mxu0 %v2588
      %2600 = vmatprep.subr.mxu0 0.0
      %2601 = vmatpush1.msra.mxu0 %v2589
      %2602 = vmatprep.subr.mxu0 0.0
      %2603 = vmatpush1.msra.mxu0 %v2590
      %2604 = vmatprep.subr.mxu0 0.0
      %2605 = vmatpush1.msra.mxu0 %v2591
      %2606 = vmatprep.subr.mxu0 0.0
      %2607 = vmatpush1.msra.mxu0 %v2592
      %2608 = vmatprep.subr.mxu0 0.0
      %2609 = vmatpush1.msra.mxu0 %v2593
      %2610 = vmatprep.subr.mxu0 0.0
      %2611 = vmatpush1.msra.mxu0 0.0
      %2612 = vmatprep.subr.mxu0 0.0
      %2613 = vmatpush1.msra.mxu0 0.0
      %2614 = vmatprep.subr.mxu0 0.0
      %2615 = vmatpush1.msra.mxu0 0.0
      %2616 = vmatprep.subr.mxu0 0.0
      %2617 = vmatpush1.msra.mxu0 0.0
      %2618 = vmatprep.subr.mxu0 0.0
      %2619 = vmatpush1.msra.mxu0 0.0
      %2620 = vmatprep.subr.mxu0 0.0
      %2621 = vmatpush1.msra.mxu0 0.0
      %2622 = vmatprep.subr.mxu0 0.0
      %2623 = vmatpush1.msra.mxu0 0.0
      %2624 = vmatprep.subr.mxu0 0.0
      %2625 = vmatpush1.msra.mxu0 0.0
      %2626 = vmatprep.subr.mxu0 0.0
      %2627 = vmatpush1.msra.mxu0 0.0
      %2628 = vmatprep.subr.mxu0 0.0
      %2629 = vmatpush1.msra.mxu0 0.0
      %2630 = vmatprep.subr.mxu0 0.0
      %2631 = vmatpush1.msra.mxu0 0.0
      %2632 = vmatprep.subr.mxu0 0.0
      %2633 = vmatpush1.msra.mxu0 0.0
      %2634 = vmatprep.subr.mxu0 0.0
      %2635 = vmatpush1.msra.mxu0 0.0
      %2636 = vmatprep.subr.mxu0 0.0
      %2637 = vmatpush1.msra.mxu0 0.0
      %2638 = vmatprep.subr.mxu0 0.0
      %2639 = vmatpush1.msra.mxu0 0.0
      %2640 = vmatprep.subr.mxu0 0.0
      %2641 = vmatpush1.msra.mxu0 0.0
      %2642 = vmatprep.subr.mxu0 0.0
      %2643 = vmatpush1.msra.mxu0 0.0
      %2644 = vmatprep.subr.mxu0 0.0
      %2645 = vmatpush1.msra.mxu0 0.0
      %2646 = vmatprep.subr.mxu0 0.0
      %2647 = vmatpush1.msra.mxu0 0.0
      %2648 = vmatprep.subr.mxu0 0.0
      %2649 = vmatpush1.msra.mxu0 0.0
      %2650 = vmatprep.subr.mxu0 0.0
      %2651 = vmatpush1.msra.mxu0 0.0
      %2652 = vmatprep.subr.mxu0 0.0
      %2653 = vmatpush1.msra.mxu0 0.0
      %2654 = vmatprep.subr.mxu0 0.0
      %2655 = vmatpush1.msra.mxu0 0.0
      %2656 = vmatprep.subr.mxu0 0.0
      %2657 = vmatpush1.msra.mxu0 0.0
      %2658 = vmatprep.mubr.f32.mxu0 0.0
      %2659 = vmatmul.mubr.f32.gmra.mrb[0].mxu0 %v2241
      %v2660 = vpop.f32.mrb[0].mxu0
      %v2661 = vadd.f32 0.0, %v2660
      %v2662 = vpop.f32.mrb[0].mxu0
      %2663 = vdwg.mxu0
      %2665 = vset.pattern.permute.xlu0 0
      %2666 = vperm.xlu0 %2665, %v2584
      %v2667 = vpop.permute.xlu0 %2666
      %v2669 = vmul.f32 %v2667, %v2661
      %v2670 = vadd.f32 %v2582, %v2669
      %s2671 = scalar_lea.vmem %s29, 40
      %v2672 = vld [vmem:[%s2671] sm:$0xff]
      %s2673 = scalar_lea.vmem %s31, 320
      %v2674 = vld [vmem:[%s2673] sm:$0xff]
      %v2675 = vld [vmem:[%s2673 + $0x8] sm:$0xff]
      %v2676 = vld [vmem:[%s2673 + $0x10] sm:$0xff]
      %v2677 = vld [vmem:[%s2673 + $0x18] sm:$0xff]
      %v2678 = vld [vmem:[%s2673 + $0x20] sm:$0xff]
      %v2679 = vld [vmem:[%s2673 + $0x28] sm:$0xff]
      %v2680 = vld [vmem:[%s2673 + $0x30] sm:$0xff]
      %v2681 = vld [vmem:[%s2673 + $0x38] sm:$0xff]
      %2682 = vmatprep.subr.mxu0 0.0
      %2683 = vmatpush1.msra.mxu0 %v2674
      %2684 = vmatprep.subr.mxu0 0.0
      %2685 = vmatpush1.msra.mxu0 %v2675
      %2686 = vmatprep.subr.mxu0 0.0
      %2687 = vmatpush1.msra.mxu0 %v2676
      %2688 = vmatprep.subr.mxu0 0.0
      %2689 = vmatpush1.msra.mxu0 %v2677
      %2690 = vmatprep.subr.mxu0 0.0
      %2691 = vmatpush1.msra.mxu0 %v2678
      %2692 = vmatprep.subr.mxu0 0.0
      %2693 = vmatpush1.msra.mxu0 %v2679
      %2694 = vmatprep.subr.mxu0 0.0
      %2695 = vmatpush1.msra.mxu0 %v2680
      %2696 = vmatprep.subr.mxu0 0.0
      %2697 = vmatpush1.msra.mxu0 %v2681
      %2698 = vmatprep.subr.mxu0 0.0
      %2699 = vmatpush1.msra.mxu0 0.0
      %2700 = vmatprep.subr.mxu0 0.0
      %2701 = vmatpush1.msra.mxu0 0.0
      %2702 = vmatprep.subr.mxu0 0.0
      %2703 = vmatpush1.msra.mxu0 0.0
      %2704 = vmatprep.subr.mxu0 0.0
      %2705 = vmatpush1.msra.mxu0 0.0
      %2706 = vmatprep.subr.mxu0 0.0
      %2707 = vmatpush1.msra.mxu0 0.0
      %2708 = vmatprep.subr.mxu0 0.0
      %2709 = vmatpush1.msra.mxu0 0.0
      %2710 = vmatprep.subr.mxu0 0.0
      %2711 = vmatpush1.msra.mxu0 0.0
      %2712 = vmatprep.subr.mxu0 0.0
      %2713 = vmatpush1.msra.mxu0 0.0
      %2714 = vmatprep.subr.mxu0 0.0
      %2715 = vmatpush1.msra.mxu0 0.0
      %2716 = vmatprep.subr.mxu0 0.0
      %2717 = vmatpush1.msra.mxu0 0.0
      %2718 = vmatprep.subr.mxu0 0.0
      %2719 = vmatpush1.msra.mxu0 0.0
      %2720 = vmatprep.subr.mxu0 0.0
      %2721 = vmatpush1.msra.mxu0 0.0
      %2722 = vmatprep.subr.mxu0 0.0
      %2723 = vmatpush1.msra.mxu0 0.0
      %2724 = vmatprep.subr.mxu0 0.0
      %2725 = vmatpush1.msra.mxu0 0.0
      %2726 = vmatprep.subr.mxu0 0.0
      %2727 = vmatpush1.msra.mxu0 0.0
      %2728 = vmatprep.subr.mxu0 0.0
      %2729 = vmatpush1.msra.mxu0 0.0
      %2730 = vmatprep.subr.mxu0 0.0
      %2731 = vmatpush1.msra.mxu0 0.0
      %2732 = vmatprep.subr.mxu0 0.0
      %2733 = vmatpush1.msra.mxu0 0.0
      %2734 = vmatprep.subr.mxu0 0.0
      %2735 = vmatpush1.msra.mxu0 0.0
      %2736 = vmatprep.subr.mxu0 0.0
      %2737 = vmatpush1.msra.mxu0 0.0
      %2738 = vmatprep.subr.mxu0 0.0
      %2739 = vmatpush1.msra.mxu0 0.0
      %2740 = vmatprep.subr.mxu0 0.0
      %2741 = vmatpush1.msra.mxu0 0.0
      %2742 = vmatprep.subr.mxu0 0.0
      %2743 = vmatpush1.msra.mxu0 0.0
      %2744 = vmatprep.subr.mxu0 0.0
      %2745 = vmatpush1.msra.mxu0 0.0
      %2746 = vmatprep.mubr.f32.mxu0 0.0
      %2747 = vmatmul.mubr.f32.gmra.mrb[0].mxu0 %v2241
      %v2748 = vpop.f32.mrb[0].mxu0
      %v2749 = vadd.f32 0.0, %v2748
      %v2750 = vpop.f32.mrb[0].mxu0
      %2751 = vdwg.mxu0
      %2753 = vset.pattern.permute.xlu0 0
      %2754 = vperm.xlu0 %2753, %v2672
      %v2755 = vpop.permute.xlu0 %2754
      %v2757 = vmul.f32 %v2755, %v2749
      %v2758 = vadd.f32 %v2670, %v2757
      %s2759 = scalar_lea.vmem %s29, 48
      %v2760 = vld [vmem:[%s2759] sm:$0xff]
      %s2761 = scalar_lea.vmem %s31, 384
      %v2762 = vld [vmem:[%s2761] sm:$0xff]
      %v2763 = vld [vmem:[%s2761 + $0x8] sm:$0xff]
      %v2764 = vld [vmem:[%s2761 + $0x10] sm:$0xff]
      %v2765 = vld [vmem:[%s2761 + $0x18] sm:$0xff]
      %v2766 = vld [vmem:[%s2761 + $0x20] sm:$0xff]
      %v2767 = vld [vmem:[%s2761 + $0x28] sm:$0xff]
      %v2768 = vld [vmem:[%s2761 + $0x30] sm:$0xff]
      %v2769 = vld [vmem:[%s2761 + $0x38] sm:$0xff]
      %2770 = vmatprep.subr.mxu0 0.0
      %2771 = vmatpush1.msra.mxu0 %v2762
      %2772 = vmatprep.subr.mxu0 0.0
      %2773 = vmatpush1.msra.mxu0 %v2763
      %2774 = vmatprep.subr.mxu0 0.0
      %2775 = vmatpush1.msra.mxu0 %v2764
      %2776 = vmatprep.subr.mxu0 0.0
      %2777 = vmatpush1.msra.mxu0 %v2765
      %2778 = vmatprep.subr.mxu0 0.0
      %2779 = vmatpush1.msra.mxu0 %v2766
      %2780 = vmatprep.subr.mxu0 0.0
      %2781 = vmatpush1.msra.mxu0 %v2767
      %2782 = vmatprep.subr.mxu0 0.0
      %2783 = vmatpush1.msra.mxu0 %v2768
      %2784 = vmatprep.subr.mxu0 0.0
      %2785 = vmatpush1.msra.mxu0 %v2769
      %2786 = vmatprep.subr.mxu0 0.0
      %2787 = vmatpush1.msra.mxu0 0.0
      %2788 = vmatprep.subr.mxu0 0.0
      %2789 = vmatpush1.msra.mxu0 0.0
      %2790 = vmatprep.subr.mxu0 0.0
      %2791 = vmatpush1.msra.mxu0 0.0
      %2792 = vmatprep.subr.mxu0 0.0
      %2793 = vmatpush1.msra.mxu0 0.0
      %2794 = vmatprep.subr.mxu0 0.0
      %2795 = vmatpush1.msra.mxu0 0.0
      %2796 = vmatprep.subr.mxu0 0.0
      %2797 = vmatpush1.msra.mxu0 0.0
      %2798 = vmatprep.subr.mxu0 0.0
      %2799 = vmatpush1.msra.mxu0 0.0
      %2800 = vmatprep.subr.mxu0 0.0
      %2801 = vmatpush1.msra.mxu0 0.0
      %2802 = vmatprep.subr.mxu0 0.0
      %2803 = vmatpush1.msra.mxu0 0.0
      %2804 = vmatprep.subr.mxu0 0.0
      %2805 = vmatpush1.msra.mxu0 0.0
      %2806 = vmatprep.subr.mxu0 0.0
      %2807 = vmatpush1.msra.mxu0 0.0
      %2808 = vmatprep.subr.mxu0 0.0
      %2809 = vmatpush1.msra.mxu0 0.0
      %2810 = vmatprep.subr.mxu0 0.0
      %2811 = vmatpush1.msra.mxu0 0.0
      %2812 = vmatprep.subr.mxu0 0.0
      %2813 = vmatpush1.msra.mxu0 0.0
      %2814 = vmatprep.subr.mxu0 0.0
      %2815 = vmatpush1.msra.mxu0 0.0
      %2816 = vmatprep.subr.mxu0 0.0
      %2817 = vmatpush1.msra.mxu0 0.0
      %2818 = vmatprep.subr.mxu0 0.0
      %2819 = vmatpush1.msra.mxu0 0.0
      %2820 = vmatprep.subr.mxu0 0.0
      %2821 = vmatpush1.msra.mxu0 0.0
      %2822 = vmatprep.subr.mxu0 0.0
      %2823 = vmatpush1.msra.mxu0 0.0
      %2824 = vmatprep.subr.mxu0 0.0
      %2825 = vmatpush1.msra.mxu0 0.0
      %2826 = vmatprep.subr.mxu0 0.0
      %2827 = vmatpush1.msra.mxu0 0.0
      %2828 = vmatprep.subr.mxu0 0.0
      %2829 = vmatpush1.msra.mxu0 0.0
      %2830 = vmatprep.subr.mxu0 0.0
      %2831 = vmatpush1.msra.mxu0 0.0
      %2832 = vmatprep.subr.mxu0 0.0
      %2833 = vmatpush1.msra.mxu0 0.0
      %2834 = vmatprep.mubr.f32.mxu0 0.0
      %2835 = vmatmul.mubr.f32.gmra.mrb[0].mxu0 %v2241
      %v2836 = vpop.f32.mrb[0].mxu0
      %v2837 = vadd.f32 0.0, %v2836
      %v2838 = vpop.f32.mrb[0].mxu0
      %2839 = vdwg.mxu0
      %2841 = vset.pattern.permute.xlu0 0
      %2842 = vperm.xlu0 %2841, %v2760
      %v2843 = vpop.permute.xlu0 %2842
      %v2845 = vmul.f32 %v2843, %v2837
      %v2846 = vadd.f32 %v2758, %v2845
      %s2847 = scalar_lea.vmem %s29, 56
      %v2848 = vld [vmem:[%s2847] sm:$0xff]
      %s2849 = scalar_lea.vmem %s31, 448
      %v2850 = vld [vmem:[%s2849] sm:$0xff]
      %v2851 = vld [vmem:[%s2849 + $0x8] sm:$0xff]
      %v2852 = vld [vmem:[%s2849 + $0x10] sm:$0xff]
      %v2853 = vld [vmem:[%s2849 + $0x18] sm:$0xff]
      %v2854 = vld [vmem:[%s2849 + $0x20] sm:$0xff]
      %v2855 = vld [vmem:[%s2849 + $0x28] sm:$0xff]
      %v2856 = vld [vmem:[%s2849 + $0x30] sm:$0xff]
      %v2857 = vld [vmem:[%s2849 + $0x38] sm:$0xff]
      %2858 = vmatprep.subr.mxu0 0.0
      %2859 = vmatpush1.msra.mxu0 %v2850
      %2860 = vmatprep.subr.mxu0 0.0
      %2861 = vmatpush1.msra.mxu0 %v2851
      %2862 = vmatprep.subr.mxu0 0.0
      %2863 = vmatpush1.msra.mxu0 %v2852
      %2864 = vmatprep.subr.mxu0 0.0
      %2865 = vmatpush1.msra.mxu0 %v2853
      %2866 = vmatprep.subr.mxu0 0.0
      %2867 = vmatpush1.msra.mxu0 %v2854
      %2868 = vmatprep.subr.mxu0 0.0
      %2869 = vmatpush1.msra.mxu0 %v2855
      %2870 = vmatprep.subr.mxu0 0.0
      %2871 = vmatpush1.msra.mxu0 %v2856
      %2872 = vmatprep.subr.mxu0 0.0
      %2873 = vmatpush1.msra.mxu0 %v2857
      %2874 = vmatprep.subr.mxu0 0.0
      %2875 = vmatpush1.msra.mxu0 0.0
      %2876 = vmatprep.subr.mxu0 0.0
      %2877 = vmatpush1.msra.mxu0 0.0
      %2878 = vmatprep.subr.mxu0 0.0
      %2879 = vmatpush1.msra.mxu0 0.0
      %2880 = vmatprep.subr.mxu0 0.0
      %2881 = vmatpush1.msra.mxu0 0.0
      %2882 = vmatprep.subr.mxu0 0.0
      %2883 = vmatpush1.msra.mxu0 0.0
      %2884 = vmatprep.subr.mxu0 0.0
      %2885 = vmatpush1.msra.mxu0 0.0
      %2886 = vmatprep.subr.mxu0 0.0
      %2887 = vmatpush1.msra.mxu0 0.0
      %2888 = vmatprep.subr.mxu0 0.0
      %2889 = vmatpush1.msra.mxu0 0.0
      %2890 = vmatprep.subr.mxu0 0.0
      %2891 = vmatpush1.msra.mxu0 0.0
      %2892 = vmatprep.subr.mxu0 0.0
      %2893 = vmatpush1.msra.mxu0 0.0
      %2894 = vmatprep.subr.mxu0 0.0
      %2895 = vmatpush1.msra.mxu0 0.0
      %2896 = vmatprep.subr.mxu0 0.0
      %2897 = vmatpush1.msra.mxu0 0.0
      %2898 = vmatprep.subr.mxu0 0.0
      %2899 = vmatpush1.msra.mxu0 0.0
      %2900 = vmatprep.subr.mxu0 0.0
      %2901 = vmatpush1.msra.mxu0 0.0
      %2902 = vmatprep.subr.mxu0 0.0
      %2903 = vmatpush1.msra.mxu0 0.0
      %2904 = vmatprep.subr.mxu0 0.0
      %2905 = vmatpush1.msra.mxu0 0.0
      %2906 = vmatprep.subr.mxu0 0.0
      %2907 = vmatpush1.msra.mxu0 0.0
      %2908 = vmatprep.subr.mxu0 0.0
      %2909 = vmatpush1.msra.mxu0 0.0
      %2910 = vmatprep.subr.mxu0 0.0
      %2911 = vmatpush1.msra.mxu0 0.0
      %2912 = vmatprep.subr.mxu0 0.0
      %2913 = vmatpush1.msra.mxu0 0.0
      %2914 = vmatprep.subr.mxu0 0.0
      %2915 = vmatpush1.msra.mxu0 0.0
      %2916 = vmatprep.subr.mxu0 0.0
      %2917 = vmatpush1.msra.mxu0 0.0
      %2918 = vmatprep.subr.mxu0 0.0
      %2919 = vmatpush1.msra.mxu0 0.0
      %2920 = vmatprep.subr.mxu0 0.0
      %2921 = vmatpush1.msra.mxu0 0.0
      %2922 = vmatprep.mubr.f32.mxu0 0.0
      %2923 = vmatmul.mubr.f32.gmra.mrb[0].mxu0 %v2241
      %v2924 = vpop.f32.mrb[0].mxu0
      %v2925 = vadd.f32 0.0, %v2924
      %v2926 = vpop.f32.mrb[0].mxu0
      %2927 = vdwg.mxu0
      %2929 = vset.pattern.permute.xlu0 0
      %2930 = vperm.xlu0 %2929, %v2848
      %v2931 = vpop.permute.xlu0 %2930
      %v2933 = vmul.f32 %v2931, %v2925
      %v2934 = vadd.f32 %v2846, %v2933
      %s2935 = scalar_lea.vmem %s29, 64
      %v2936 = vld [vmem:[%s2935] sm:$0xff]
      %s2937 = scalar_lea.vmem %s31, 512
      %v2938 = vld [vmem:[%s2937] sm:$0xff]
      %v2939 = vld [vmem:[%s2937 + $0x8] sm:$0xff]
      %v2940 = vld [vmem:[%s2937 + $0x10] sm:$0xff]
      %v2941 = vld [vmem:[%s2937 + $0x18] sm:$0xff]
      %v2942 = vld [vmem:[%s2937 + $0x20] sm:$0xff]
      %v2943 = vld [vmem:[%s2937 + $0x28] sm:$0xff]
      %v2944 = vld [vmem:[%s2937 + $0x30] sm:$0xff]
      %v2945 = vld [vmem:[%s2937 + $0x38] sm:$0xff]
      %2946 = vmatprep.subr.mxu0 0.0
      %2947 = vmatpush1.msra.mxu0 %v2938
      %2948 = vmatprep.subr.mxu0 0.0
      %2949 = vmatpush1.msra.mxu0 %v2939
      %2950 = vmatprep.subr.mxu0 0.0
      %2951 = vmatpush1.msra.mxu0 %v2940
      %2952 = vmatprep.subr.mxu0 0.0
      %2953 = vmatpush1.msra.mxu0 %v2941
      %2954 = vmatprep.subr.mxu0 0.0
      %2955 = vmatpush1.msra.mxu0 %v2942
      %2956 = vmatprep.subr.mxu0 0.0
      %2957 = vmatpush1.msra.mxu0 %v2943
      %2958 = vmatprep.subr.mxu0 0.0
      %2959 = vmatpush1.msra.mxu0 %v2944
      %2960 = vmatprep.subr.mxu0 0.0
      %2961 = vmatpush1.msra.mxu0 %v2945
      %2962 = vmatprep.subr.mxu0 0.0
      %2963 = vmatpush1.msra.mxu0 0.0
      %2964 = vmatprep.subr.mxu0 0.0
      %2965 = vmatpush1.msra.mxu0 0.0
      %2966 = vmatprep.subr.mxu0 0.0
      %2967 = vmatpush1.msra.mxu0 0.0
      %2968 = vmatprep.subr.mxu0 0.0
      %2969 = vmatpush1.msra.mxu0 0.0
      %2970 = vmatprep.subr.mxu0 0.0
      %2971 = vmatpush1.msra.mxu0 0.0
      %2972 = vmatprep.subr.mxu0 0.0
      %2973 = vmatpush1.msra.mxu0 0.0
      %2974 = vmatprep.subr.mxu0 0.0
      %2975 = vmatpush1.msra.mxu0 0.0
      %2976 = vmatprep.subr.mxu0 0.0
      %2977 = vmatpush1.msra.mxu0 0.0
      %2978 = vmatprep.subr.mxu0 0.0
      %2979 = vmatpush1.msra.mxu0 0.0
      %2980 = vmatprep.subr.mxu0 0.0
      %2981 = vmatpush1.msra.mxu0 0.0
      %2982 = vmatprep.subr.mxu0 0.0
      %2983 = vmatpush1.msra.mxu0 0.0
      %2984 = vmatprep.subr.mxu0 0.0
      %2985 = vmatpush1.msra.mxu0 0.0
      %2986 = vmatprep.subr.mxu0 0.0
      %2987 = vmatpush1.msra.mxu0 0.0
      %2988 = vmatprep.subr.mxu0 0.0
      %2989 = vmatpush1.msra.mxu0 0.0
      %2990 = vmatprep.subr.mxu0 0.0
      %2991 = vmatpush1.msra.mxu0 0.0
      %2992 = vmatprep.subr.mxu0 0.0
      %2993 = vmatpush1.msra.mxu0 0.0
      %2994 = vmatprep.subr.mxu0 0.0
      %2995 = vmatpush1.msra.mxu0 0.0
      %2996 = vmatprep.subr.mxu0 0.0
      %2997 = vmatpush1.msra.mxu0 0.0
      %2998 = vmatprep.subr.mxu0 0.0
      %2999 = vmatpush1.msra.mxu0 0.0
      %3000 = vmatprep.subr.mxu0 0.0
      %3001 = vmatpush1.msra.mxu0 0.0
      %3002 = vmatprep.subr.mxu0 0.0
      %3003 = vmatpush1.msra.mxu0 0.0
      %3004 = vmatprep.subr.mxu0 0.0
      %3005 = vmatpush1.msra.mxu0 0.0
      %3006 = vmatprep.subr.mxu0 0.0
      %3007 = vmatpush1.msra.mxu0 0.0
      %3008 = vmatprep.subr.mxu0 0.0
      %3009 = vmatpush1.msra.mxu0 0.0
      %3010 = vmatprep.mubr.f32.mxu0 0.0
      %3011 = vmatmul.mubr.f32.gmra.mrb[0].mxu0 %v2241
      %v3012 = vpop.f32.mrb[0].mxu0
      %v3013 = vadd.f32 0.0, %v3012
      %v3014 = vpop.f32.mrb[0].mxu0
      %3015 = vdwg.mxu0
      %3017 = vset.pattern.permute.xlu0 0
      %3018 = vperm.xlu0 %3017, %v2936
      %v3019 = vpop.permute.xlu0 %3018
      %v3021 = vmul.f32 %v3019, %v3013
      %v3022 = vadd.f32 %v2934, %v3021
      %v3023 = vld [vmem:[%s33] sm:$0xff]
      %3025 = vset.pattern.permute.xlu0 0
      %3026 = vperm.xlu0 %3025, %v3023
      %v3027 = vpop.permute.xlu0 %3026
      %v3029 = vmul.f32 %v3022, %v3027
      %v3030 = vld [vmem:[%s35] sm:$0xff]
      %3032 = vset.pattern.permute.xlu0 0
      %3033 = vperm.xlu0 %3032, %v3030
      %v3034 = vpop.permute.xlu0 %3033
      %v3036 = vadd.f32 %v3029, %v3034
      %v3037 = vmax.f32 %v3036, 0.0
      %v3038 = vld [vmem:[%s37] sm:$0xf]
      %v3039 = vld [vmem:[%s37 + $0x4] sm:$0xf]
      %v3040 = vpack.c.bf16 %v3037, %v3037
      %v3043 = vunpack.c.l.b16 %v3038
      %v3044 = vunpack.c.l.b16 %v3039
      %v3045 = vpack.c.b16 %v3044, %v3043
      %v3047 = vsel %vm2167, %v3045, 0
      %v3050 = vsel %vm2171, %v3040, 0
      %3052 = vmatprep.subr.bf16.mxu0 0
      %3053 = vmatpush1.bf16.msra.mxu0 %v3050
      %3054 = vmatprep.subr.bf16.mxu0 0
      %3055 = vmatpush1.bf16.msra.mxu0 0
      %3056 = vmatprep.subr.bf16.mxu0 0
      %3057 = vmatpush1.bf16.msra.mxu0 0
      %3058 = vmatprep.subr.bf16.mxu0 0
      %3059 = vmatpush1.bf16.msra.mxu0 0
      %3060 = vmatprep.subr.bf16.mxu0 0
      %3061 = vmatpush1.bf16.msra.mxu0 0
      %3062 = vmatprep.subr.bf16.mxu0 0
      %3063 = vmatpush1.bf16.msra.mxu0 0
      %3064 = vmatprep.subr.bf16.mxu0 0
      %3065 = vmatpush1.bf16.msra.mxu0 0
      %3066 = vmatprep.subr.bf16.mxu0 0
      %3067 = vmatpush1.bf16.msra.mxu0 0
      %3068 = vmatprep.subr.bf16.mxu0 0
      %3069 = vmatpush1.bf16.msra.mxu0 0
      %3070 = vmatprep.subr.bf16.mxu0 0
      %3071 = vmatpush1.bf16.msra.mxu0 0
      %3072 = vmatprep.subr.bf16.mxu0 0
      %3073 = vmatpush1.bf16.msra.mxu0 0
      %3074 = vmatprep.subr.bf16.mxu0 0
      %3075 = vmatpush1.bf16.msra.mxu0 0
      %3076 = vmatprep.subr.bf16.mxu0 0
      %3077 = vmatpush1.bf16.msra.mxu0 0
      %3078 = vmatprep.subr.bf16.mxu0 0
      %3079 = vmatpush1.bf16.msra.mxu0 0
      %3080 = vmatprep.subr.bf16.mxu0 0
      %3081 = vmatpush1.bf16.msra.mxu0 0
      %3082 = vmatprep.subr.bf16.mxu0 0
      %3083 = vmatpush1.bf16.msra.mxu0 0
      %3084 = vmatprep.mubr.bf16.mxu0 0
      %3085 = vmatmul.mubr.bf16.gmra.mrb[0].mxu0 %v3047
      %v3086 = vpop.f32.mrb[0].mxu0
      %v3087 = vadd.f32 0.0, %v3086
      %v3088 = vpop.f32.mrb[0].mxu0
      %v3089 = vpop.f32.mrb[0].mxu0
      %v3090 = vadd.f32 0.0, %v3089
      %v3091 = vpop.f32.mrb[0].mxu0
      %3092 = vdwg.mxu0
      %v3093 = vld [vmem:[%s39] sm:$0xff]
      %v3094 = vld [vmem:[%s39 + $0x8] sm:$0xff]
      %3096 = vset.pattern.permute.xlu0 0
      %3097 = vperm.xlu0 %3096, %v3093
      %v3098 = vpop.permute.xlu0 %3097
      %3101 = vset.pattern.permute.xlu0 0
      %3102 = vperm.xlu0 %3101, %v3094
      %v3103 = vpop.permute.xlu0 %3102
      %v3105 = vmul.f32 %v3087, %v3098
      %v3106 = vmul.f32 %v3090, %v3103
      %v3107 = vld [vmem:[%s41] sm:$0xff]
      %v3108 = vld [vmem:[%s41 + $0x8] sm:$0xff]
      %3110 = vset.pattern.permute.xlu0 0
      %3111 = vperm.xlu0 %3110, %v3107
      %v3112 = vpop.permute.xlu0 %3111
      %3115 = vset.pattern.permute.xlu0 0
      %3116 = vperm.xlu0 %3115, %v3108
      %v3117 = vpop.permute.xlu0 %3116
      %v3119 = vadd.f32 %v3105, %v3112
      %v3120 = vadd.f32 %v3106, %v3117
      %v3121 = vmax.f32 %v3119, 0.0
      %v3122 = vmax.f32 %v3120, 0.0
      %v3123 = vld [vmem:[%s43] sm:$0xff]
      %v3124 = vld [vmem:[%s43 + $0x8] sm:$0xff]
      %vm3125 = vcmask 130048
      %v3127 = vsel %vm3125, %v3121, 0
      %v3130 = vsel %vm3125, %v3122, 0
      %3132 = vmatprep.subr.mxu0 0.0
      %3133 = vmatpush1.msra.mxu0 %v3123
      %3134 = vmatprep.subr.mxu0 0.0
      %3135 = vmatpush1.msra.mxu0 %v3124
      %3136 = vmatprep.subr.mxu0 0.0
      %3137 = vmatpush1.msra.mxu0 0.0
      %3138 = vmatprep.subr.mxu0 0.0
      %3139 = vmatpush1.msra.mxu0 0.0
      %3140 = vmatprep.subr.mxu0 0.0
      %3141 = vmatpush1.msra.mxu0 0.0
      %3142 = vmatprep.subr.mxu0 0.0
      %3143 = vmatpush1.msra.mxu0 0.0
      %3144 = vmatprep.subr.mxu0 0.0
      %3145 = vmatpush1.msra.mxu0 0.0
      %3146 = vmatprep.subr.mxu0 0.0
      %3147 = vmatpush1.msra.mxu0 0.0
      %3148 = vmatprep.subr.mxu0 0.0
      %3149 = vmatpush1.msra.mxu0 0.0
      %3150 = vmatprep.subr.mxu0 0.0
      %3151 = vmatpush1.msra.mxu0 0.0
      %3152 = vmatprep.subr.mxu0 0.0
      %3153 = vmatpush1.msra.mxu0 0.0
      %3154 = vmatprep.subr.mxu0 0.0
      %3155 = vmatpush1.msra.mxu0 0.0
      %3156 = vmatprep.subr.mxu0 0.0
      %3157 = vmatpush1.msra.mxu0 0.0
      %3158 = vmatprep.subr.mxu0 0.0
      %3159 = vmatpush1.msra.mxu0 0.0
      %3160 = vmatprep.subr.mxu0 0.0
      %3161 = vmatpush1.msra.mxu0 0.0
      %3162 = vmatprep.subr.mxu0 0.0
      %3163 = vmatpush1.msra.mxu0 0.0
      %3164 = vmatprep.subr.mxu0 0.0
      %3165 = vmatpush1.msra.mxu0 0.0
      %3166 = vmatprep.subr.mxu0 0.0
      %3167 = vmatpush1.msra.mxu0 0.0
      %3168 = vmatprep.subr.mxu0 0.0
      %3169 = vmatpush1.msra.mxu0 0.0
      %3170 = vmatprep.subr.mxu0 0.0
      %3171 = vmatpush1.msra.mxu0 0.0
      %3172 = vmatprep.subr.mxu0 0.0
      %3173 = vmatpush1.msra.mxu0 0.0
      %3174 = vmatprep.subr.mxu0 0.0
      %3175 = vmatpush1.msra.mxu0 0.0
      %3176 = vmatprep.subr.mxu0 0.0
      %3177 = vmatpush1.msra.mxu0 0.0
      %3178 = vmatprep.subr.mxu0 0.0
      %3179 = vmatpush1.msra.mxu0 0.0
      %3180 = vmatprep.subr.mxu0 0.0
      %3181 = vmatpush1.msra.mxu0 0.0
      %3182 = vmatprep.subr.mxu0 0.0
      %3183 = vmatpush1.msra.mxu0 0.0
      %3184 = vmatprep.subr.mxu0 0.0
      %3185 = vmatpush1.msra.mxu0 0.0
      %3186 = vmatprep.subr.mxu0 0.0
      %3187 = vmatpush1.msra.mxu0 0.0
      %3188 = vmatprep.subr.mxu0 0.0
      %3189 = vmatpush1.msra.mxu0 0.0
      %3190 = vmatprep.subr.mxu0 0.0
      %3191 = vmatpush1.msra.mxu0 0.0
      %3192 = vmatprep.subr.mxu0 0.0
      %3193 = vmatpush1.msra.mxu0 0.0
      %3194 = vmatprep.subr.mxu0 0.0
      %3195 = vmatpush1.msra.mxu0 0.0
      %3196 = vmatprep.mubr.f32.mxu0 0.0
      %3197 = vmatmul.mubr.f32.gmra.mrb[0].mxu0 %v3127
      %v3198 = vpop.f32.mrb[0].mxu0
      %v3199 = vadd.f32 0.0, %v3198
      %v3200 = vpop.f32.mrb[0].mxu0
      %3201 = vmatprep.mubr.f32.mxu0 0.0
      %3202 = vmatmul.mubr.f32.gmra.mrb[0].mxu0 %v3130
      %v3203 = vpop.f32.mrb[0].mxu0
      %v3204 = vadd.f32 0.0, %v3203
      %v3205 = vpop.f32.mrb[0].mxu0
      %3206 = vdwg.mxu0
      %s3207 = scalar_lea.vmem %s43, 16
      %v3208 = vld [vmem:[%s3207] sm:$0xff]
      %v3209 = vld [vmem:[%s3207 + $0x8] sm:$0xff]
      %3210 = vmatprep.subr.mxu0 0.0
      %3211 = vmatpush1.msra.mxu0 %v3208
      %3212 = vmatprep.subr.mxu0 0.0
      %3213 = vmatpush1.msra.mxu0 %v3209
      %3214 = vmatprep.subr.mxu0 0.0
      %3215 = vmatpush1.msra.mxu0 0.0
      %3216 = vmatprep.subr.mxu0 0.0
      %3217 = vmatpush1.msra.mxu0 0.0
      %3218 = vmatprep.subr.mxu0 0.0
      %3219 = vmatpush1.msra.mxu0 0.0
      %3220 = vmatprep.subr.mxu0 0.0
      %3221 = vmatpush1.msra.mxu0 0.0
      %3222 = vmatprep.subr.mxu0 0.0
      %3223 = vmatpush1.msra.mxu0 0.0
      %3224 = vmatprep.subr.mxu0 0.0
      %3225 = vmatpush1.msra.mxu0 0.0
      %3226 = vmatprep.subr.mxu0 0.0
      %3227 = vmatpush1.msra.mxu0 0.0
      %3228 = vmatprep.subr.mxu0 0.0
      %3229 = vmatpush1.msra.mxu0 0.0
      %3230 = vmatprep.subr.mxu0 0.0
      %3231 = vmatpush1.msra.mxu0 0.0
      %3232 = vmatprep.subr.mxu0 0.0
      %3233 = vmatpush1.msra.mxu0 0.0
      %3234 = vmatprep.subr.mxu0 0.0
      %3235 = vmatpush1.msra.mxu0 0.0
      %3236 = vmatprep.subr.mxu0 0.0
      %3237 = vmatpush1.msra.mxu0 0.0
      %3238 = vmatprep.subr.mxu0 0.0
      %3239 = vmatpush1.msra.mxu0 0.0
      %3240 = vmatprep.subr.mxu0 0.0
      %3241 = vmatpush1.msra.mxu0 0.0
      %3242 = vmatprep.subr.mxu0 0.0
      %3243 = vmatpush1.msra.mxu0 0.0
      %3244 = vmatprep.subr.mxu0 0.0
      %3245 = vmatpush1.msra.mxu0 0.0
      %3246 = vmatprep.subr.mxu0 0.0
      %3247 = vmatpush1.msra.mxu0 0.0
      %3248 = vmatprep.subr.mxu0 0.0
      %3249 = vmatpush1.msra.mxu0 0.0
      %3250 = vmatprep.subr.mxu0 0.0
      %3251 = vmatpush1.msra.mxu0 0.0
      %3252 = vmatprep.subr.mxu0 0.0
      %3253 = vmatpush1.msra.mxu0 0.0
      %3254 = vmatprep.subr.mxu0 0.0
      %3255 = vmatpush1.msra.mxu0 0.0
      %3256 = vmatprep.subr.mxu0 0.0
      %3257 = vmatpush1.msra.mxu0 0.0
      %3258 = vmatprep.subr.mxu0 0.0
      %3259 = vmatpush1.msra.mxu0 0.0
      %3260 = vmatprep.subr.mxu0 0.0
      %3261 = vmatpush1.msra.mxu0 0.0
      %3262 = vmatprep.subr.mxu0 0.0
      %3263 = vmatpush1.msra.mxu0 0.0
      %3264 = vmatprep.subr.mxu0 0.0
      %3265 = vmatpush1.msra.mxu0 0.0
      %3266 = vmatprep.subr.mxu0 0.0
      %3267 = vmatpush1.msra.mxu0 0.0
      %3268 = vmatprep.subr.mxu0 0.0
      %3269 = vmatpush1.msra.mxu0 0.0
      %3270 = vmatprep.subr.mxu0 0.0
      %3271 = vmatpush1.msra.mxu0 0.0
      %3272 = vmatprep.subr.mxu0 0.0
      %3273 = vmatpush1.msra.mxu0 0.0
      %3274 = vmatprep.mubr.f32.mxu0 0.0
      %3275 = vmatmul.mubr.f32.gmra.mrb[0].mxu0 %v3127
      %v3276 = vpop.f32.mrb[0].mxu0
      %v3277 = vadd.f32 0.0, %v3276
      %v3278 = vpop.f32.mrb[0].mxu0
      %3279 = vmatprep.mubr.f32.mxu0 0.0
      %3280 = vmatmul.mubr.f32.gmra.mrb[0].mxu0 %v3130
      %v3281 = vpop.f32.mrb[0].mxu0
      %v3282 = vadd.f32 0.0, %v3281
      %v3283 = vpop.f32.mrb[0].mxu0
      %3284 = vdwg.mxu0
      %s3285 = scalar_lea.vmem %s43, 32
      %v3286 = vld [vmem:[%s3285] sm:$0xff]
      %v3287 = vld [vmem:[%s3285 + $0x8] sm:$0xff]
      %3288 = vmatprep.subr.mxu0 0.0
      %3289 = vmatpush1.msra.mxu0 %v3286
      %3290 = vmatprep.subr.mxu0 0.0
      %3291 = vmatpush1.msra.mxu0 %v3287
      %3292 = vmatprep.subr.mxu0 0.0
      %3293 = vmatpush1.msra.mxu0 0.0
      %3294 = vmatprep.subr.mxu0 0.0
      %3295 = vmatpush1.msra.mxu0 0.0
      %3296 = vmatprep.subr.mxu0 0.0
      %3297 = vmatpush1.msra.mxu0 0.0
      %3298 = vmatprep.subr.mxu0 0.0
      %3299 = vmatpush1.msra.mxu0 0.0
      %3300 = vmatprep.subr.mxu0 0.0
      %3301 = vmatpush1.msra.mxu0 0.0
      %3302 = vmatprep.subr.mxu0 0.0
      %3303 = vmatpush1.msra.mxu0 0.0
      %3304 = vmatprep.subr.mxu0 0.0
      %3305 = vmatpush1.msra.mxu0 0.0
      %3306 = vmatprep.subr.mxu0 0.0
      %3307 = vmatpush1.msra.mxu0 0.0
      %3308 = vmatprep.subr.mxu0 0.0
      %3309 = vmatpush1.msra.mxu0 0.0
      %3310 = vmatprep.subr.mxu0 0.0
      %3311 = vmatpush1.msra.mxu0 0.0
      %3312 = vmatprep.subr.mxu0 0.0
      %3313 = vmatpush1.msra.mxu0 0.0
      %3314 = vmatprep.subr.mxu0 0.0
      %3315 = vmatpush1.msra.mxu0 0.0
      %3316 = vmatprep.subr.mxu0 0.0
      %3317 = vmatpush1.msra.mxu0 0.0
      %3318 = vmatprep.subr.mxu0 0.0
      %3319 = vmatpush1.msra.mxu0 0.0
      %3320 = vmatprep.subr.mxu0 0.0
      %3321 = vmatpush1.msra.mxu0 0.0
      %3322 = vmatprep.subr.mxu0 0.0
      %3323 = vmatpush1.msra.mxu0 0.0
      %3324 = vmatprep.subr.mxu0 0.0
      %3325 = vmatpush1.msra.mxu0 0.0
      %3326 = vmatprep.subr.mxu0 0.0
      %3327 = vmatpush1.msra.mxu0 0.0
      %3328 = vmatprep.subr.mxu0 0.0
      %3329 = vmatpush1.msra.mxu0 0.0
      %3330 = vmatprep.subr.mxu0 0.0
      %3331 = vmatpush1.msra.mxu0 0.0
      %3332 = vmatprep.subr.mxu0 0.0
      %3333 = vmatpush1.msra.mxu0 0.0
      %3334 = vmatprep.subr.mxu0 0.0
      %3335 = vmatpush1.msra.mxu0 0.0
      %3336 = vmatprep.subr.mxu0 0.0
      %3337 = vmatpush1.msra.mxu0 0.0
      %3338 = vmatprep.subr.mxu0 0.0
      %3339 = vmatpush1.msra.mxu0 0.0
      %3340 = vmatprep.subr.mxu0 0.0
      %3341 = vmatpush1.msra.mxu0 0.0
      %3342 = vmatprep.subr.mxu0 0.0
      %3343 = vmatpush1.msra.mxu0 0.0
      %3344 = vmatprep.subr.mxu0 0.0
      %3345 = vmatpush1.msra.mxu0 0.0
      %3346 = vmatprep.subr.mxu0 0.0
      %3347 = vmatpush1.msra.mxu0 0.0
      %3348 = vmatprep.subr.mxu0 0.0
      %3349 = vmatpush1.msra.mxu0 0.0
      %3350 = vmatprep.subr.mxu0 0.0
      %3351 = vmatpush1.msra.mxu0 0.0
      %3352 = vmatprep.mubr.f32.mxu0 0.0
      %3353 = vmatmul.mubr.f32.gmra.mrb[0].mxu0 %v3127
      %v3354 = vpop.f32.mrb[0].mxu0
      %v3355 = vadd.f32 0.0, %v3354
      %v3356 = vpop.f32.mrb[0].mxu0
      %3357 = vmatprep.mubr.f32.mxu0 0.0
      %3358 = vmatmul.mubr.f32.gmra.mrb[0].mxu0 %v3130
      %v3359 = vpop.f32.mrb[0].mxu0
      %v3360 = vadd.f32 0.0, %v3359
      %v3361 = vpop.f32.mrb[0].mxu0
      %3362 = vdwg.mxu0
      %s3363 = scalar_lea.vmem %s43, 48
      %v3364 = vld [vmem:[%s3363] sm:$0xff]
      %v3365 = vld [vmem:[%s3363 + $0x8] sm:$0xff]
      %3366 = vmatprep.subr.mxu0 0.0
      %3367 = vmatpush1.msra.mxu0 %v3364
      %3368 = vmatprep.subr.mxu0 0.0
      %3369 = vmatpush1.msra.mxu0 %v3365
      %3370 = vmatprep.subr.mxu0 0.0
      %3371 = vmatpush1.msra.mxu0 0.0
      %3372 = vmatprep.subr.mxu0 0.0
      %3373 = vmatpush1.msra.mxu0 0.0
      %3374 = vmatprep.subr.mxu0 0.0
      %3375 = vmatpush1.msra.mxu0 0.0
      %3376 = vmatprep.subr.mxu0 0.0
      %3377 = vmatpush1.msra.mxu0 0.0
      %3378 = vmatprep.subr.mxu0 0.0
      %3379 = vmatpush1.msra.mxu0 0.0
      %3380 = vmatprep.subr.mxu0 0.0
      %3381 = vmatpush1.msra.mxu0 0.0
      %3382 = vmatprep.subr.mxu0 0.0
      %3383 = vmatpush1.msra.mxu0 0.0
      %3384 = vmatprep.subr.mxu0 0.0
      %3385 = vmatpush1.msra.mxu0 0.0
      %3386 = vmatprep.subr.mxu0 0.0
      %3387 = vmatpush1.msra.mxu0 0.0
      %3388 = vmatprep.subr.mxu0 0.0
      %3389 = vmatpush1.msra.mxu0 0.0
      %3390 = vmatprep.subr.mxu0 0.0
      %3391 = vmatpush1.msra.mxu0 0.0
      %3392 = vmatprep.subr.mxu0 0.0
      %3393 = vmatpush1.msra.mxu0 0.0
      %3394 = vmatprep.subr.mxu0 0.0
      %3395 = vmatpush1.msra.mxu0 0.0
      %3396 = vmatprep.subr.mxu0 0.0
      %3397 = vmatpush1.msra.mxu0 0.0
      %3398 = vmatprep.subr.mxu0 0.0
      %3399 = vmatpush1.msra.mxu0 0.0
      %3400 = vmatprep.subr.mxu0 0.0
      %3401 = vmatpush1.msra.mxu0 0.0
      %3402 = vmatprep.subr.mxu0 0.0
      %3403 = vmatpush1.msra.mxu0 0.0
      %3404 = vmatprep.subr.mxu0 0.0
      %3405 = vmatpush1.msra.mxu0 0.0
      %3406 = vmatprep.subr.mxu0 0.0
      %3407 = vmatpush1.msra.mxu0 0.0
      %3408 = vmatprep.subr.mxu0 0.0
      %3409 = vmatpush1.msra.mxu0 0.0
      %3410 = vmatprep.subr.mxu0 0.0
      %3411 = vmatpush1.msra.mxu0 0.0
      %3412 = vmatprep.subr.mxu0 0.0
      %3413 = vmatpush1.msra.mxu0 0.0
      %3414 = vmatprep.subr.mxu0 0.0
      %3415 = vmatpush1.msra.mxu0 0.0
      %3416 = vmatprep.subr.mxu0 0.0
      %3417 = vmatpush1.msra.mxu0 0.0
      %3418 = vmatprep.subr.mxu0 0.0
      %3419 = vmatpush1.msra.mxu0 0.0
      %3420 = vmatprep.subr.mxu0 0.0
      %3421 = vmatpush1.msra.mxu0 0.0
      %3422 = vmatprep.subr.mxu0 0.0
      %3423 = vmatpush1.msra.mxu0 0.0
      %3424 = vmatprep.subr.mxu0 0.0
      %3425 = vmatpush1.msra.mxu0 0.0
      %3426 = vmatprep.subr.mxu0 0.0
      %3427 = vmatpush1.msra.mxu0 0.0
      %3428 = vmatprep.subr.mxu0 0.0
      %3429 = vmatpush1.msra.mxu0 0.0
      %3430 = vmatprep.mubr.f32.mxu0 0.0
      %3431 = vmatmul.mubr.f32.gmra.mrb[0].mxu0 %v3127
      %v3432 = vpop.f32.mrb[0].mxu0
      %v3433 = vadd.f32 0.0, %v3432
      %v3434 = vpop.f32.mrb[0].mxu0
      %3435 = vmatprep.mubr.f32.mxu0 0.0
      %3436 = vmatmul.mubr.f32.gmra.mrb[0].mxu0 %v3130
      %v3437 = vpop.f32.mrb[0].mxu0
      %v3438 = vadd.f32 0.0, %v3437
      %v3439 = vpop.f32.mrb[0].mxu0
      %3440 = vdwg.mxu0
      %s3441 = scalar_lea.vmem %s43, 64
      %v3442 = vld [vmem:[%s3441] sm:$0xff]
      %v3443 = vld [vmem:[%s3441 + $0x8] sm:$0xff]
      %3444 = vmatprep.subr.mxu0 0.0
      %3445 = vmatpush1.msra.mxu0 %v3442
      %3446 = vmatprep.subr.mxu0 0.0
      %3447 = vmatpush1.msra.mxu0 %v3443
      %3448 = vmatprep.subr.mxu0 0.0
      %3449 = vmatpush1.msra.mxu0 0.0
      %3450 = vmatprep.subr.mxu0 0.0
      %3451 = vmatpush1.msra.mxu0 0.0
      %3452 = vmatprep.subr.mxu0 0.0
      %3453 = vmatpush1.msra.mxu0 0.0
      %3454 = vmatprep.subr.mxu0 0.0
      %3455 = vmatpush1.msra.mxu0 0.0
      %3456 = vmatprep.subr.mxu0 0.0
      %3457 = vmatpush1.msra.mxu0 0.0
      %3458 = vmatprep.subr.mxu0 0.0
      %3459 = vmatpush1.msra.mxu0 0.0
      %3460 = vmatprep.subr.mxu0 0.0
      %3461 = vmatpush1.msra.mxu0 0.0
      %3462 = vmatprep.subr.mxu0 0.0
      %3463 = vmatpush1.msra.mxu0 0.0
      %3464 = vmatprep.subr.mxu0 0.0
      %3465 = vmatpush1.msra.mxu0 0.0
      %3466 = vmatprep.subr.mxu0 0.0
      %3467 = vmatpush1.msra.mxu0 0.0
      %3468 = vmatprep.subr.mxu0 0.0
      %3469 = vmatpush1.msra.mxu0 0.0
      %3470 = vmatprep.subr.mxu0 0.0
      %3471 = vmatpush1.msra.mxu0 0.0
      %3472 = vmatprep.subr.mxu0 0.0
      %3473 = vmatpush1.msra.mxu0 0.0
      %3474 = vmatprep.subr.mxu0 0.0
      %3475 = vmatpush1.msra.mxu0 0.0
      %3476 = vmatprep.subr.mxu0 0.0
      %3477 = vmatpush1.msra.mxu0 0.0
      %3478 = vmatprep.subr.mxu0 0.0
      %3479 = vmatpush1.msra.mxu0 0.0
      %3480 = vmatprep.subr.mxu0 0.0
      %3481 = vmatpush1.msra.mxu0 0.0
      %3482 = vmatprep.subr.mxu0 0.0
      %3483 = vmatpush1.msra.mxu0 0.0
      %3484 = vmatprep.subr.mxu0 0.0
      %3485 = vmatpush1.msra.mxu0 0.0
      %3486 = vmatprep.subr.mxu0 0.0
      %3487 = vmatpush1.msra.mxu0 0.0
      %3488 = vmatprep.subr.mxu0 0.0
      %3489 = vmatpush1.msra.mxu0 0.0
      %3490 = vmatprep.subr.mxu0 0.0
      %3491 = vmatpush1.msra.mxu0 0.0
      %3492 = vmatprep.subr.mxu0 0.0
      %3493 = vmatpush1.msra.mxu0 0.0
      %3494 = vmatprep.subr.mxu0 0.0
      %3495 = vmatpush1.msra.mxu0 0.0
      %3496 = vmatprep.subr.mxu0 0.0
      %3497 = vmatpush1.msra.mxu0 0.0
      %3498 = vmatprep.subr.mxu0 0.0
      %3499 = vmatpush1.msra.mxu0 0.0
      %3500 = vmatprep.subr.mxu0 0.0
      %3501 = vmatpush1.msra.mxu0 0.0
      %3502 = vmatprep.subr.mxu0 0.0
      %3503 = vmatpush1.msra.mxu0 0.0
      %3504 = vmatprep.subr.mxu0 0.0
      %3505 = vmatpush1.msra.mxu0 0.0
      %3506 = vmatprep.subr.mxu0 0.0
      %3507 = vmatpush1.msra.mxu0 0.0
      %3508 = vmatprep.mubr.f32.mxu0 0.0
      %3509 = vmatmul.mubr.f32.gmra.mrb[0].mxu0 %v3127
      %v3510 = vpop.f32.mrb[0].mxu0
      %v3511 = vadd.f32 0.0, %v3510
      %v3512 = vpop.f32.mrb[0].mxu0
      %3513 = vmatprep.mubr.f32.mxu0 0.0
      %3514 = vmatmul.mubr.f32.gmra.mrb[0].mxu0 %v3130
      %v3515 = vpop.f32.mrb[0].mxu0
      %v3516 = vadd.f32 0.0, %v3515
      %v3517 = vpop.f32.mrb[0].mxu0
      %3518 = vdwg.mxu0
      %s3519 = scalar_lea.vmem %s43, 80
      %v3520 = vld [vmem:[%s3519] sm:$0xff]
      %v3521 = vld [vmem:[%s3519 + $0x8] sm:$0xff]
      %3522 = vmatprep.subr.mxu0 0.0
      %3523 = vmatpush1.msra.mxu0 %v3520
      %3524 = vmatprep.subr.mxu0 0.0
      %3525 = vmatpush1.msra.mxu0 %v3521
      %3526 = vmatprep.subr.mxu0 0.0
      %3527 = vmatpush1.msra.mxu0 0.0
      %3528 = vmatprep.subr.mxu0 0.0
      %3529 = vmatpush1.msra.mxu0 0.0
      %3530 = vmatprep.subr.mxu0 0.0
      %3531 = vmatpush1.msra.mxu0 0.0
      %3532 = vmatprep.subr.mxu0 0.0
      %3533 = vmatpush1.msra.mxu0 0.0
      %3534 = vmatprep.subr.mxu0 0.0
      %3535 = vmatpush1.msra.mxu0 0.0
      %3536 = vmatprep.subr.mxu0 0.0
      %3537 = vmatpush1.msra.mxu0 0.0
      %3538 = vmatprep.subr.mxu0 0.0
      %3539 = vmatpush1.msra.mxu0 0.0
      %3540 = vmatprep.subr.mxu0 0.0
      %3541 = vmatpush1.msra.mxu0 0.0
      %3542 = vmatprep.subr.mxu0 0.0
      %3543 = vmatpush1.msra.mxu0 0.0
      %3544 = vmatprep.subr.mxu0 0.0
      %3545 = vmatpush1.msra.mxu0 0.0
      %3546 = vmatprep.subr.mxu0 0.0
      %3547 = vmatpush1.msra.mxu0 0.0
      %3548 = vmatprep.subr.mxu0 0.0
      %3549 = vmatpush1.msra.mxu0 0.0
      %3550 = vmatprep.subr.mxu0 0.0
      %3551 = vmatpush1.msra.mxu0 0.0
      %3552 = vmatprep.subr.mxu0 0.0
      %3553 = vmatpush1.msra.mxu0 0.0
      %3554 = vmatprep.subr.mxu0 0.0
      %3555 = vmatpush1.msra.mxu0 0.0
      %3556 = vmatprep.subr.mxu0 0.0
      %3557 = vmatpush1.msra.mxu0 0.0
      %3558 = vmatprep.subr.mxu0 0.0
      %3559 = vmatpush1.msra.mxu0 0.0
      %3560 = vmatprep.subr.mxu0 0.0
      %3561 = vmatpush1.msra.mxu0 0.0
      %3562 = vmatprep.subr.mxu0 0.0
      %3563 = vmatpush1.msra.mxu0 0.0
      %3564 = vmatprep.subr.mxu0 0.0
      %3565 = vmatpush1.msra.mxu0 0.0
      %3566 = vmatprep.subr.mxu0 0.0
      %3567 = vmatpush1.msra.mxu0 0.0
      %3568 = vmatprep.subr.mxu0 0.0
      %3569 = vmatpush1.msra.mxu0 0.0
      %3570 = vmatprep.subr.mxu0 0.0
      %3571 = vmatpush1.msra.mxu0 0.0
      %3572 = vmatprep.subr.mxu0 0.0
      %3573 = vmatpush1.msra.mxu0 0.0
      %3574 = vmatprep.subr.mxu0 0.0
      %3575 = vmatpush1.msra.mxu0 0.0
      %3576 = vmatprep.subr.mxu0 0.0
      %3577 = vmatpush1.msra.mxu0 0.0
      %3578 = vmatprep.subr.mxu0 0.0
      %3579 = vmatpush1.msra.mxu0 0.0
      %3580 = vmatprep.subr.mxu0 0.0
      %3581 = vmatpush1.msra.mxu0 0.0
      %3582 = vmatprep.subr.mxu0 0.0
      %3583 = vmatpush1.msra.mxu0 0.0
      %3584 = vmatprep.subr.mxu0 0.0
      %3585 = vmatpush1.msra.mxu0 0.0
      %3586 = vmatprep.mubr.f32.mxu0 0.0
      %3587 = vmatmul.mubr.f32.gmra.mrb[0].mxu0 %v3127
      %v3588 = vpop.f32.mrb[0].mxu0
      %v3589 = vadd.f32 0.0, %v3588
      %v3590 = vpop.f32.mrb[0].mxu0
      %3591 = vmatprep.mubr.f32.mxu0 0.0
      %3592 = vmatmul.mubr.f32.gmra.mrb[0].mxu0 %v3130
      %v3593 = vpop.f32.mrb[0].mxu0
      %v3594 = vadd.f32 0.0, %v3593
      %v3595 = vpop.f32.mrb[0].mxu0
      %3596 = vdwg.mxu0
      %s3597 = scalar_lea.vmem %s43, 96
      %v3598 = vld [vmem:[%s3597] sm:$0xff]
      %v3599 = vld [vmem:[%s3597 + $0x8] sm:$0xff]
      %3600 = vmatprep.subr.mxu0 0.0
      %3601 = vmatpush1.msra.mxu0 %v3598
      %3602 = vmatprep.subr.mxu0 0.0
      %3603 = vmatpush1.msra.mxu0 %v3599
      %3604 = vmatprep.subr.mxu0 0.0
      %3605 = vmatpush1.msra.mxu0 0.0
      %3606 = vmatprep.subr.mxu0 0.0
      %3607 = vmatpush1.msra.mxu0 0.0
      %3608 = vmatprep.subr.mxu0 0.0
      %3609 = vmatpush1.msra.mxu0 0.0
      %3610 = vmatprep.subr.mxu0 0.0
      %3611 = vmatpush1.msra.mxu0 0.0
      %3612 = vmatprep.subr.mxu0 0.0
      %3613 = vmatpush1.msra.mxu0 0.0
      %3614 = vmatprep.subr.mxu0 0.0
      %3615 = vmatpush1.msra.mxu0 0.0
      %3616 = vmatprep.subr.mxu0 0.0
      %3617 = vmatpush1.msra.mxu0 0.0
      %3618 = vmatprep.subr.mxu0 0.0
      %3619 = vmatpush1.msra.mxu0 0.0
      %3620 = vmatprep.subr.mxu0 0.0
      %3621 = vmatpush1.msra.mxu0 0.0
      %3622 = vmatprep.subr.mxu0 0.0
      %3623 = vmatpush1.msra.mxu0 0.0
      %3624 = vmatprep.subr.mxu0 0.0
      %3625 = vmatpush1.msra.mxu0 0.0
      %3626 = vmatprep.subr.mxu0 0.0
      %3627 = vmatpush1.msra.mxu0 0.0
      %3628 = vmatprep.subr.mxu0 0.0
      %3629 = vmatpush1.msra.mxu0 0.0
      %3630 = vmatprep.subr.mxu0 0.0
      %3631 = vmatpush1.msra.mxu0 0.0
      %3632 = vmatprep.subr.mxu0 0.0
      %3633 = vmatpush1.msra.mxu0 0.0
      %3634 = vmatprep.subr.mxu0 0.0
      %3635 = vmatpush1.msra.mxu0 0.0
      %3636 = vmatprep.subr.mxu0 0.0
      %3637 = vmatpush1.msra.mxu0 0.0
      %3638 = vmatprep.subr.mxu0 0.0
      %3639 = vmatpush1.msra.mxu0 0.0
      %3640 = vmatprep.subr.mxu0 0.0
      %3641 = vmatpush1.msra.mxu0 0.0
      %3642 = vmatprep.subr.mxu0 0.0
      %3643 = vmatpush1.msra.mxu0 0.0
      %3644 = vmatprep.subr.mxu0 0.0
      %3645 = vmatpush1.msra.mxu0 0.0
      %3646 = vmatprep.subr.mxu0 0.0
      %3647 = vmatpush1.msra.mxu0 0.0
      %3648 = vmatprep.subr.mxu0 0.0
      %3649 = vmatpush1.msra.mxu0 0.0
      %3650 = vmatprep.subr.mxu0 0.0
      %3651 = vmatpush1.msra.mxu0 0.0
      %3652 = vmatprep.subr.mxu0 0.0
      %3653 = vmatpush1.msra.mxu0 0.0
      %3654 = vmatprep.subr.mxu0 0.0
      %3655 = vmatpush1.msra.mxu0 0.0
      %3656 = vmatprep.subr.mxu0 0.0
      %3657 = vmatpush1.msra.mxu0 0.0
      %3658 = vmatprep.subr.mxu0 0.0
      %3659 = vmatpush1.msra.mxu0 0.0
      %3660 = vmatprep.subr.mxu0 0.0
      %3661 = vmatpush1.msra.mxu0 0.0
      %3662 = vmatprep.subr.mxu0 0.0
      %3663 = vmatpush1.msra.mxu0 0.0
      %3664 = vmatprep.mubr.f32.mxu0 0.0
      %3665 = vmatmul.mubr.f32.gmra.mrb[0].mxu0 %v3127
      %v3666 = vpop.f32.mrb[0].mxu0
      %v3667 = vadd.f32 0.0, %v3666
      %v3668 = vpop.f32.mrb[0].mxu0
      %3669 = vmatprep.mubr.f32.mxu0 0.0
      %3670 = vmatmul.mubr.f32.gmra.mrb[0].mxu0 %v3130
      %v3671 = vpop.f32.mrb[0].mxu0
      %v3672 = vadd.f32 0.0, %v3671
      %v3673 = vpop.f32.mrb[0].mxu0
      %3674 = vdwg.mxu0
      %s3675 = scalar_lea.vmem %s43, 112
      %v3676 = vld [vmem:[%s3675] sm:$0xff]
      %v3677 = vld [vmem:[%s3675 + $0x8] sm:$0xff]
      %3678 = vmatprep.subr.mxu0 0.0
      %3679 = vmatpush1.msra.mxu0 %v3676
      %3680 = vmatprep.subr.mxu0 0.0
      %3681 = vmatpush1.msra.mxu0 %v3677
      %3682 = vmatprep.subr.mxu0 0.0
      %3683 = vmatpush1.msra.mxu0 0.0
      %3684 = vmatprep.subr.mxu0 0.0
      %3685 = vmatpush1.msra.mxu0 0.0
      %3686 = vmatprep.subr.mxu0 0.0
      %3687 = vmatpush1.msra.mxu0 0.0
      %3688 = vmatprep.subr.mxu0 0.0
      %3689 = vmatpush1.msra.mxu0 0.0
      %3690 = vmatprep.subr.mxu0 0.0
      %3691 = vmatpush1.msra.mxu0 0.0
      %3692 = vmatprep.subr.mxu0 0.0
      %3693 = vmatpush1.msra.mxu0 0.0
      %3694 = vmatprep.subr.mxu0 0.0
      %3695 = vmatpush1.msra.mxu0 0.0
      %3696 = vmatprep.subr.mxu0 0.0
      %3697 = vmatpush1.msra.mxu0 0.0
      %3698 = vmatprep.subr.mxu0 0.0
      %3699 = vmatpush1.msra.mxu0 0.0
      %3700 = vmatprep.subr.mxu0 0.0
      %3701 = vmatpush1.msra.mxu0 0.0
      %3702 = vmatprep.subr.mxu0 0.0
      %3703 = vmatpush1.msra.mxu0 0.0
      %3704 = vmatprep.subr.mxu0 0.0
      %3705 = vmatpush1.msra.mxu0 0.0
      %3706 = vmatprep.subr.mxu0 0.0
      %3707 = vmatpush1.msra.mxu0 0.0
      %3708 = vmatprep.subr.mxu0 0.0
      %3709 = vmatpush1.msra.mxu0 0.0
      %3710 = vmatprep.subr.mxu0 0.0
      %3711 = vmatpush1.msra.mxu0 0.0
      %3712 = vmatprep.subr.mxu0 0.0
      %3713 = vmatpush1.msra.mxu0 0.0
      %3714 = vmatprep.subr.mxu0 0.0
      %3715 = vmatpush1.msra.mxu0 0.0
      %3716 = vmatprep.subr.mxu0 0.0
      %3717 = vmatpush1.msra.mxu0 0.0
      %3718 = vmatprep.subr.mxu0 0.0
      %3719 = vmatpush1.msra.mxu0 0.0
      %3720 = vmatprep.subr.mxu0 0.0
      %3721 = vmatpush1.msra.mxu0 0.0
      %3722 = vmatprep.subr.mxu0 0.0
      %3723 = vmatpush1.msra.mxu0 0.0
      %3724 = vmatprep.subr.mxu0 0.0
      %3725 = vmatpush1.msra.mxu0 0.0
      %3726 = vmatprep.subr.mxu0 0.0
      %3727 = vmatpush1.msra.mxu0 0.0
      %3728 = vmatprep.subr.mxu0 0.0
      %3729 = vmatpush1.msra.mxu0 0.0
      %3730 = vmatprep.subr.mxu0 0.0
      %3731 = vmatpush1.msra.mxu0 0.0
      %3732 = vmatprep.subr.mxu0 0.0
      %3733 = vmatpush1.msra.mxu0 0.0
      %3734 = vmatprep.subr.mxu0 0.0
      %3735 = vmatpush1.msra.mxu0 0.0
      %3736 = vmatprep.subr.mxu0 0.0
      %3737 = vmatpush1.msra.mxu0 0.0
      %3738 = vmatprep.subr.mxu0 0.0
      %3739 = vmatpush1.msra.mxu0 0.0
      %3740 = vmatprep.subr.mxu0 0.0
      %3741 = vmatpush1.msra.mxu0 0.0
      %3742 = vmatprep.mubr.f32.mxu0 0.0
      %3743 = vmatmul.mubr.f32.gmra.mrb[0].mxu0 %v3127
      %v3744 = vpop.f32.mrb[0].mxu0
      %v3745 = vadd.f32 0.0, %v3744
      %v3746 = vpop.f32.mrb[0].mxu0
      %3747 = vmatprep.mubr.f32.mxu0 0.0
      %3748 = vmatmul.mubr.f32.gmra.mrb[0].mxu0 %v3130
      %v3749 = vpop.f32.mrb[0].mxu0
      %v3750 = vadd.f32 0.0, %v3749
      %v3751 = vpop.f32.mrb[0].mxu0
      %3752 = vdwg.mxu0
      %s3753 = scalar_lea.vmem %s43, 128
      %v3754 = vld [vmem:[%s3753] sm:$0xff]
      %v3755 = vld [vmem:[%s3753 + $0x8] sm:$0xff]
      %3756 = vmatprep.subr.mxu0 0.0
      %3757 = vmatpush1.msra.mxu0 %v3754
      %3758 = vmatprep.subr.mxu0 0.0
      %3759 = vmatpush1.msra.mxu0 %v3755
      %3760 = vmatprep.subr.mxu0 0.0
      %3761 = vmatpush1.msra.mxu0 0.0
      %3762 = vmatprep.subr.mxu0 0.0
      %3763 = vmatpush1.msra.mxu0 0.0
      %3764 = vmatprep.subr.mxu0 0.0
      %3765 = vmatpush1.msra.mxu0 0.0
      %3766 = vmatprep.subr.mxu0 0.0
      %3767 = vmatpush1.msra.mxu0 0.0
      %3768 = vmatprep.subr.mxu0 0.0
      %3769 = vmatpush1.msra.mxu0 0.0
      %3770 = vmatprep.subr.mxu0 0.0
      %3771 = vmatpush1.msra.mxu0 0.0
      %3772 = vmatprep.subr.mxu0 0.0
      %3773 = vmatpush1.msra.mxu0 0.0
      %3774 = vmatprep.subr.mxu0 0.0
      %3775 = vmatpush1.msra.mxu0 0.0
      %3776 = vmatprep.subr.mxu0 0.0
      %3777 = vmatpush1.msra.mxu0 0.0
      %3778 = vmatprep.subr.mxu0 0.0
      %3779 = vmatpush1.msra.mxu0 0.0
      %3780 = vmatprep.subr.mxu0 0.0
      %3781 = vmatpush1.msra.mxu0 0.0
      %3782 = vmatprep.subr.mxu0 0.0
      %3783 = vmatpush1.msra.mxu0 0.0
      %3784 = vmatprep.subr.mxu0 0.0
      %3785 = vmatpush1.msra.mxu0 0.0
      %3786 = vmatprep.subr.mxu0 0.0
      %3787 = vmatpush1.msra.mxu0 0.0
      %3788 = vmatprep.subr.mxu0 0.0
      %3789 = vmatpush1.msra.mxu0 0.0
      %3790 = vmatprep.subr.mxu0 0.0
      %3791 = vmatpush1.msra.mxu0 0.0
      %3792 = vmatprep.subr.mxu0 0.0
      %3793 = vmatpush1.msra.mxu0 0.0
      %3794 = vmatprep.subr.mxu0 0.0
      %3795 = vmatpush1.msra.mxu0 0.0
      %3796 = vmatprep.subr.mxu0 0.0
      %3797 = vmatpush1.msra.mxu0 0.0
      %3798 = vmatprep.subr.mxu0 0.0
      %3799 = vmatpush1.msra.mxu0 0.0
      %3800 = vmatprep.subr.mxu0 0.0
      %3801 = vmatpush1.msra.mxu0 0.0
      %3802 = vmatprep.subr.mxu0 0.0
      %3803 = vmatpush1.msra.mxu0 0.0
      %3804 = vmatprep.subr.mxu0 0.0
      %3805 = vmatpush1.msra.mxu0 0.0
      %3806 = vmatprep.subr.mxu0 0.0
      %3807 = vmatpush1.msra.mxu0 0.0
      %3808 = vmatprep.subr.mxu0 0.0
      %3809 = vmatpush1.msra.mxu0 0.0
      %3810 = vmatprep.subr.mxu0 0.0
      %3811 = vmatpush1.msra.mxu0 0.0
      %3812 = vmatprep.subr.mxu0 0.0
      %3813 = vmatpush1.msra.mxu0 0.0
      %3814 = vmatprep.subr.mxu0 0.0
      %3815 = vmatpush1.msra.mxu0 0.0
      %3816 = vmatprep.subr.mxu0 0.0
      %3817 = vmatpush1.msra.mxu0 0.0
      %3818 = vmatprep.subr.mxu0 0.0
      %3819 = vmatpush1.msra.mxu0 0.0
      %3820 = vmatprep.mubr.f32.mxu0 0.0
      %3821 = vmatmul.mubr.f32.gmra.mrb[0].mxu0 %v3127
      %v3822 = vpop.f32.mrb[0].mxu0
      %v3823 = vadd.f32 0.0, %v3822
      %v3824 = vpop.f32.mrb[0].mxu0
      %3825 = vmatprep.mubr.f32.mxu0 0.0
      %3826 = vmatmul.mubr.f32.gmra.mrb[0].mxu0 %v3130
      %v3827 = vpop.f32.mrb[0].mxu0
      %v3828 = vadd.f32 0.0, %v3827
      %v3829 = vpop.f32.mrb[0].mxu0
      %3830 = vdwg.mxu0
      %v3831 = vpack.c.bf16 %v3204, %v3199
      %v3832 = vpack.c.bf16 %v3282, %v3277
      %v3833 = vpack.c.bf16 %v3360, %v3355
      %v3834 = vpack.c.bf16 %v3438, %v3433
      %v3835 = vpack.c.bf16 %v3516, %v3511
      %v3836 = vpack.c.bf16 %v3594, %v3589
      %v3837 = vpack.c.bf16 %v3672, %v3667
      %v3838 = vpack.c.bf16 %v3750, %v3745
      %v3839 = vpack.c.bf16 %v3828, %v3823
      %v3840 = vld [vmem:[%s45] sm:$0xff]
      %v3841 = vld [vmem:[%s45 + $0x8] sm:$0xff]
      %v3842 = vld [vmem:[%s45 + $0x10] sm:$0xff]
      %v3843 = vld [vmem:[%s45 + $0x18] sm:$0xff]
      %v3848 = vunpack.c.l.b16 %v3840
      %v3849 = vunpack.c.h.b16 %v3840
      %v3850 = vunpack.c.l.b16 %v3841
      %v3851 = vunpack.c.h.b16 %v3841
      %v3852 = vunpack.c.l.b16 %v3842
      %v3853 = vunpack.c.h.b16 %v3842
      %v3854 = vunpack.c.l.b16 %v3843
      %v3855 = vunpack.c.h.b16 %v3843
      %v3856 = vpack.c.b16 %v3850, %v3848
      %v3857 = vpack.c.b16 %v3851, %v3849
      %v3858 = vpack.c.b16 %v3854, %v3852
      %v3859 = vpack.c.b16 %v3855, %v3853
      %v3863 = vsel %vm3125, %v3857, 0
      %v3866 = vsel %vm3125, %v3859, 0
      %3868 = vmatprep.subr.bf16.mxu0 0
      %3869 = vmatpush1.bf16.msra.mxu0 %v3831
      %3870 = vmatprep.subr.bf16.mxu0 0
      %3871 = vmatpush1.bf16.msra.mxu0 %v3832
      %3872 = vmatprep.subr.bf16.mxu0 0
      %3873 = vmatpush1.bf16.msra.mxu0 %v3833
      %3874 = vmatprep.subr.bf16.mxu0 0
      %3875 = vmatpush1.bf16.msra.mxu0 %v3834
      %3876 = vmatprep.subr.bf16.mxu0 0
      %3877 = vmatpush1.bf16.msra.mxu0 %v3835
      %3878 = vmatprep.subr.bf16.mxu0 0
      %3879 = vmatpush1.bf16.msra.mxu0 %v3836
      %3880 = vmatprep.subr.bf16.mxu0 0
      %3881 = vmatpush1.bf16.msra.mxu0 %v3837
      %3882 = vmatprep.subr.bf16.mxu0 0
      %3883 = vmatpush1.bf16.msra.mxu0 %v3838
      %3884 = vmatprep.subr.bf16.mxu0 0
      %3885 = vmatpush1.bf16.msra.mxu0 %v3839
      %3886 = vmatprep.subr.bf16.mxu0 0
      %3887 = vmatpush1.bf16.msra.mxu0 0
      %3888 = vmatprep.subr.bf16.mxu0 0
      %3889 = vmatpush1.bf16.msra.mxu0 0
      %3890 = vmatprep.subr.bf16.mxu0 0
      %3891 = vmatpush1.bf16.msra.mxu0 0
      %3892 = vmatprep.subr.bf16.mxu0 0
      %3893 = vmatpush1.bf16.msra.mxu0 0
      %3894 = vmatprep.subr.bf16.mxu0 0
      %3895 = vmatpush1.bf16.msra.mxu0 0
      %3896 = vmatprep.subr.bf16.mxu0 0
      %3897 = vmatpush1.bf16.msra.mxu0 0
      %3898 = vmatprep.subr.bf16.mxu0 0
      %3899 = vmatpush1.bf16.msra.mxu0 0
      %3900 = vmatprep.mubr.bf16.mxu0 %v3863
      %3901 = vmatmul.mubr.bf16.gmra.mrb[0].mxu0 %v3856
      %v3902 = vpop.f32.mrb[0].mxu0
      %v3903 = vadd.f32 0.0, %v3902
      %v3904 = vpop.f32.mrb[0].mxu0
      %v3905 = vpop.f32.mrb[0].mxu0
      %v3906 = vadd.f32 0.0, %v3905
      %v3907 = vpop.f32.mrb[0].mxu0
      %3908 = vmatprep.mubr.bf16.mxu0 %v3866
      %3909 = vmatmul.mubr.bf16.gmra.mrb[0].mxu0 %v3858
      %v3910 = vpop.f32.mrb[0].mxu0
      %v3911 = vadd.f32 0.0, %v3910
      %v3912 = vpop.f32.mrb[0].mxu0
      %v3913 = vpop.f32.mrb[0].mxu0
      %v3914 = vadd.f32 0.0, %v3913
      %v3915 = vpop.f32.mrb[0].mxu0
      %3916 = vdwg.mxu0
      %v3917 = vld [vmem:[%s47] sm:$0xff]
      %v3918 = vld [vmem:[%s47 + $0x8] sm:$0xff]
      %s3919 = scalar_lea.vmem %s47, 16
      %v3920 = vld [vmem:[%s3919] sm:$0xff]
      %v3921 = vld [vmem:[%s3919 + $0x8] sm:$0xff]
      %v3923 = vsel %vm3125, %v3906, 0
      %3925 = vmatprep.subr.mxu0 0.0
      %3926 = vmatpush1.msra.mxu0 %v3920
      %3927 = vmatprep.subr.mxu0 0.0
      %3928 = vmatpush1.msra.mxu0 %v3921
      %3929 = vmatprep.subr.mxu0 0.0
      %3930 = vmatpush1.msra.mxu0 0.0
      %3931 = vmatprep.subr.mxu0 0.0
      %3932 = vmatpush1.msra.mxu0 0.0
      %3933 = vmatprep.subr.mxu0 0.0
      %3934 = vmatpush1.msra.mxu0 0.0
      %3935 = vmatprep.subr.mxu0 0.0
      %3936 = vmatpush1.msra.mxu0 0.0
      %3937 = vmatprep.subr.mxu0 0.0
      %3938 = vmatpush1.msra.mxu0 0.0
      %3939 = vmatprep.subr.mxu0 0.0
      %3940 = vmatpush1.msra.mxu0 0.0
      %3941 = vmatprep.subr.mxu0 0.0
      %3942 = vmatpush1.msra.mxu0 0.0
      %3943 = vmatprep.subr.mxu0 0.0
      %3944 = vmatpush1.msra.mxu0 0.0
      %3945 = vmatprep.subr.mxu0 0.0
      %3946 = vmatpush1.msra.mxu0 0.0
      %3947 = vmatprep.subr.mxu0 0.0
      %3948 = vmatpush1.msra.mxu0 0.0
      %3949 = vmatprep.subr.mxu0 0.0
      %3950 = vmatpush1.msra.mxu0 0.0
      %3951 = vmatprep.subr.mxu0 0.0
      %3952 = vmatpush1.msra.mxu0 0.0
      %3953 = vmatprep.subr.mxu0 0.0
      %3954 = vmatpush1.msra.mxu0 0.0
      %3955 = vmatprep.subr.mxu0 0.0
      %3956 = vmatpush1.msra.mxu0 0.0
      %3957 = vmatprep.subr.mxu0 0.0
      %3958 = vmatpush1.msra.mxu0 0.0
      %3959 = vmatprep.subr.mxu0 0.0
      %3960 = vmatpush1.msra.mxu0 0.0
      %3961 = vmatprep.subr.mxu0 0.0
      %3962 = vmatpush1.msra.mxu0 0.0
      %3963 = vmatprep.subr.mxu0 0.0
      %3964 = vmatpush1.msra.mxu0 0.0
      %3965 = vmatprep.subr.mxu0 0.0
      %3966 = vmatpush1.msra.mxu0 0.0
      %3967 = vmatprep.subr.mxu0 0.0
      %3968 = vmatpush1.msra.mxu0 0.0
      %3969 = vmatprep.subr.mxu0 0.0
      %3970 = vmatpush1.msra.mxu0 0.0
      %3971 = vmatprep.subr.mxu0 0.0
      %3972 = vmatpush1.msra.mxu0 0.0
      %3973 = vmatprep.subr.mxu0 0.0
      %3974 = vmatpush1.msra.mxu0 0.0
      %3975 = vmatprep.subr.mxu0 0.0
      %3976 = vmatpush1.msra.mxu0 0.0
      %3977 = vmatprep.subr.mxu0 0.0
      %3978 = vmatpush1.msra.mxu0 0.0
      %3979 = vmatprep.subr.mxu0 0.0
      %3980 = vmatpush1.msra.mxu0 0.0
      %3981 = vmatprep.subr.mxu0 0.0
      %3982 = vmatpush1.msra.mxu0 0.0
      %3983 = vmatprep.subr.mxu0 0.0
      %3984 = vmatpush1.msra.mxu0 0.0
      %3985 = vmatprep.subr.mxu0 0.0
      %3986 = vmatpush1.msra.mxu0 0.0
      %3987 = vmatprep.subr.mxu0 0.0
      %3988 = vmatpush1.msra.mxu0 0.0
      %3989 = vmatprep.mubr.f32.mxu0 0.0
      %3990 = vmatmul.mubr.f32.gmra.mrb[0].mxu0 %v3923
      %v3991 = vpop.f32.mrb[0].mxu0
      %v3992 = vadd.f32 0.0, %v3991
      %v3993 = vpop.f32.mrb[0].mxu0
      %3994 = vdwg.mxu0
      %v3996 = vsel %vm3125, %v3903, 0
      %3998 = vmatprep.subr.mxu0 0.0
      %3999 = vmatpush1.msra.mxu0 %v3917
      %4000 = vmatprep.subr.mxu0 0.0
      %4001 = vmatpush1.msra.mxu0 %v3918
      %4002 = vmatprep.subr.mxu0 0.0
      %4003 = vmatpush1.msra.mxu0 0.0
      %4004 = vmatprep.subr.mxu0 0.0
      %4005 = vmatpush1.msra.mxu0 0.0
      %4006 = vmatprep.subr.mxu0 0.0
      %4007 = vmatpush1.msra.mxu0 0.0
      %4008 = vmatprep.subr.mxu0 0.0
      %4009 = vmatpush1.msra.mxu0 0.0
      %4010 = vmatprep.subr.mxu0 0.0
      %4011 = vmatpush1.msra.mxu0 0.0
      %4012 = vmatprep.subr.mxu0 0.0
      %4013 = vmatpush1.msra.mxu0 0.0
      %4014 = vmatprep.subr.mxu0 0.0
      %4015 = vmatpush1.msra.mxu0 0.0
      %4016 = vmatprep.subr.mxu0 0.0
      %4017 = vmatpush1.msra.mxu0 0.0
      %4018 = vmatprep.subr.mxu0 0.0
      %4019 = vmatpush1.msra.mxu0 0.0
      %4020 = vmatprep.subr.mxu0 0.0
      %4021 = vmatpush1.msra.mxu0 0.0
      %4022 = vmatprep.subr.mxu0 0.0
      %4023 = vmatpush1.msra.mxu0 0.0
      %4024 = vmatprep.subr.mxu0 0.0
      %4025 = vmatpush1.msra.mxu0 0.0
      %4026 = vmatprep.subr.mxu0 0.0
      %4027 = vmatpush1.msra.mxu0 0.0
      %4028 = vmatprep.subr.mxu0 0.0
      %4029 = vmatpush1.msra.mxu0 0.0
      %4030 = vmatprep.subr.mxu0 0.0
      %4031 = vmatpush1.msra.mxu0 0.0
      %4032 = vmatprep.subr.mxu0 0.0
      %4033 = vmatpush1.msra.mxu0 0.0
      %4034 = vmatprep.subr.mxu0 0.0
      %4035 = vmatpush1.msra.mxu0 0.0
      %4036 = vmatprep.subr.mxu0 0.0
      %4037 = vmatpush1.msra.mxu0 0.0
      %4038 = vmatprep.subr.mxu0 0.0
      %4039 = vmatpush1.msra.mxu0 0.0
      %4040 = vmatprep.subr.mxu0 0.0
      %4041 = vmatpush1.msra.mxu0 0.0
      %4042 = vmatprep.subr.mxu0 0.0
      %4043 = vmatpush1.msra.mxu0 0.0
      %4044 = vmatprep.subr.mxu0 0.0
      %4045 = vmatpush1.msra.mxu0 0.0
      %4046 = vmatprep.subr.mxu0 0.0
      %4047 = vmatpush1.msra.mxu0 0.0
      %4048 = vmatprep.subr.mxu0 0.0
      %4049 = vmatpush1.msra.mxu0 0.0
      %4050 = vmatprep.subr.mxu0 0.0
      %4051 = vmatpush1.msra.mxu0 0.0
      %4052 = vmatprep.subr.mxu0 0.0
      %4053 = vmatpush1.msra.mxu0 0.0
      %4054 = vmatprep.subr.mxu0 0.0
      %4055 = vmatpush1.msra.mxu0 0.0
      %4056 = vmatprep.subr.mxu0 0.0
      %4057 = vmatpush1.msra.mxu0 0.0
      %4058 = vmatprep.subr.mxu0 0.0
      %4059 = vmatpush1.msra.mxu0 0.0
      %4060 = vmatprep.subr.mxu0 0.0
      %4061 = vmatpush1.msra.mxu0 0.0
      %4062 = vmatprep.mubr.f32.mxu0 0.0
      %4063 = vmatmul.mubr.f32.gmra.mrb[0].mxu0 %v3996
      %v4064 = vpop.f32.mrb[0].mxu0
      %v4065 = vadd.f32 %v3992, %v4064
      %v4066 = vpop.f32.mrb[0].mxu0
      %4067 = vdwg.mxu0
      %s4068 = scalar_lea.vmem %s47, 32
      %v4069 = vld [vmem:[%s4068] sm:$0xff]
      %v4070 = vld [vmem:[%s4068 + $0x8] sm:$0xff]
      %v4072 = vsel %vm3125, %v3911, 0
      %4074 = vmatprep.subr.mxu0 0.0
      %4075 = vmatpush1.msra.mxu0 %v4069
      %4076 = vmatprep.subr.mxu0 0.0
      %4077 = vmatpush1.msra.mxu0 %v4070
      %4078 = vmatprep.subr.mxu0 0.0
      %4079 = vmatpush1.msra.mxu0 0.0
      %4080 = vmatprep.subr.mxu0 0.0
      %4081 = vmatpush1.msra.mxu0 0.0
      %4082 = vmatprep.subr.mxu0 0.0
      %4083 = vmatpush1.msra.mxu0 0.0
      %4084 = vmatprep.subr.mxu0 0.0
      %4085 = vmatpush1.msra.mxu0 0.0
      %4086 = vmatprep.subr.mxu0 0.0
      %4087 = vmatpush1.msra.mxu0 0.0
      %4088 = vmatprep.subr.mxu0 0.0
      %4089 = vmatpush1.msra.mxu0 0.0
      %4090 = vmatprep.subr.mxu0 0.0
      %4091 = vmatpush1.msra.mxu0 0.0
      %4092 = vmatprep.subr.mxu0 0.0
      %4093 = vmatpush1.msra.mxu0 0.0
      %4094 = vmatprep.subr.mxu0 0.0
      %4095 = vmatpush1.msra.mxu0 0.0
      %4096 = vmatprep.subr.mxu0 0.0
      %4097 = vmatpush1.msra.mxu0 0.0
      %4098 = vmatprep.subr.mxu0 0.0
      %4099 = vmatpush1.msra.mxu0 0.0
      %4100 = vmatprep.subr.mxu0 0.0
      %4101 = vmatpush1.msra.mxu0 0.0
      %4102 = vmatprep.subr.mxu0 0.0
      %4103 = vmatpush1.msra.mxu0 0.0
      %4104 = vmatprep.subr.mxu0 0.0
      %4105 = vmatpush1.msra.mxu0 0.0
      %4106 = vmatprep.subr.mxu0 0.0
      %4107 = vmatpush1.msra.mxu0 0.0
      %4108 = vmatprep.subr.mxu0 0.0
      %4109 = vmatpush1.msra.mxu0 0.0
      %4110 = vmatprep.subr.mxu0 0.0
      %4111 = vmatpush1.msra.mxu0 0.0
      %4112 = vmatprep.subr.mxu0 0.0
      %4113 = vmatpush1.msra.mxu0 0.0
      %4114 = vmatprep.subr.mxu0 0.0
      %4115 = vmatpush1.msra.mxu0 0.0
      %4116 = vmatprep.subr.mxu0 0.0
      %4117 = vmatpush1.msra.mxu0 0.0
      %4118 = vmatprep.subr.mxu0 0.0
      %4119 = vmatpush1.msra.mxu0 0.0
      %4120 = vmatprep.subr.mxu0 0.0
      %4121 = vmatpush1.msra.mxu0 0.0
      %4122 = vmatprep.subr.mxu0 0.0
      %4123 = vmatpush1.msra.mxu0 0.0
      %4124 = vmatprep.subr.mxu0 0.0
      %4125 = vmatpush1.msra.mxu0 0.0
      %4126 = vmatprep.subr.mxu0 0.0
      %4127 = vmatpush1.msra.mxu0 0.0
      %4128 = vmatprep.subr.mxu0 0.0
      %4129 = vmatpush1.msra.mxu0 0.0
      %4130 = vmatprep.subr.mxu0 0.0
      %4131 = vmatpush1.msra.mxu0 0.0
      %4132 = vmatprep.subr.mxu0 0.0
      %4133 = vmatpush1.msra.mxu0 0.0
      %4134 = vmatprep.subr.mxu0 0.0
      %4135 = vmatpush1.msra.mxu0 0.0
      %4136 = vmatprep.subr.mxu0 0.0
      %4137 = vmatpush1.msra.mxu0 0.0
      %4138 = vmatprep.mubr.f32.mxu0 0.0
      %4139 = vmatmul.mubr.f32.gmra.mrb[0].mxu0 %v4072
      %v4140 = vpop.f32.mrb[0].mxu0
      %v4141 = vadd.f32 0.0, %v4140
      %v4142 = vpop.f32.mrb[0].mxu0
      %4143 = vdwg.mxu0
      %v4144 = vadd.f32 %v4065, %v4141
      %s4145 = scalar_lea.vmem %s47, 48
      %v4146 = vld [vmem:[%s4145] sm:$0xff]
      %v4147 = vld [vmem:[%s4145 + $0x8] sm:$0xff]
      %v4149 = vsel %vm3125, %v3914, 0
      %4151 = vmatprep.subr.mxu0 0.0
      %4152 = vmatpush1.msra.mxu0 %v4146
      %4153 = vmatprep.subr.mxu0 0.0
      %4154 = vmatpush1.msra.mxu0 %v4147
      %4155 = vmatprep.subr.mxu0 0.0
      %4156 = vmatpush1.msra.mxu0 0.0
      %4157 = vmatprep.subr.mxu0 0.0
      %4158 = vmatpush1.msra.mxu0 0.0
      %4159 = vmatprep.subr.mxu0 0.0
      %4160 = vmatpush1.msra.mxu0 0.0
      %4161 = vmatprep.subr.mxu0 0.0
      %4162 = vmatpush1.msra.mxu0 0.0
      %4163 = vmatprep.subr.mxu0 0.0
      %4164 = vmatpush1.msra.mxu0 0.0
      %4165 = vmatprep.subr.mxu0 0.0
      %4166 = vmatpush1.msra.mxu0 0.0
      %4167 = vmatprep.subr.mxu0 0.0
      %4168 = vmatpush1.msra.mxu0 0.0
      %4169 = vmatprep.subr.mxu0 0.0
      %4170 = vmatpush1.msra.mxu0 0.0
      %4171 = vmatprep.subr.mxu0 0.0
      %4172 = vmatpush1.msra.mxu0 0.0
      %4173 = vmatprep.subr.mxu0 0.0
      %4174 = vmatpush1.msra.mxu0 0.0
      %4175 = vmatprep.subr.mxu0 0.0
      %4176 = vmatpush1.msra.mxu0 0.0
      %4177 = vmatprep.subr.mxu0 0.0
      %4178 = vmatpush1.msra.mxu0 0.0
      %4179 = vmatprep.subr.mxu0 0.0
      %4180 = vmatpush1.msra.mxu0 0.0
      %4181 = vmatprep.subr.mxu0 0.0
      %4182 = vmatpush1.msra.mxu0 0.0
      %4183 = vmatprep.subr.mxu0 0.0
      %4184 = vmatpush1.msra.mxu0 0.0
      %4185 = vmatprep.subr.mxu0 0.0
      %4186 = vmatpush1.msra.mxu0 0.0
      %4187 = vmatprep.subr.mxu0 0.0
      %4188 = vmatpush1.msra.mxu0 0.0
      %4189 = vmatprep.subr.mxu0 0.0
      %4190 = vmatpush1.msra.mxu0 0.0
      %4191 = vmatprep.subr.mxu0 0.0
      %4192 = vmatpush1.msra.mxu0 0.0
      %4193 = vmatprep.subr.mxu0 0.0
      %4194 = vmatpush1.msra.mxu0 0.0
      %4195 = vmatprep.subr.mxu0 0.0
      %4196 = vmatpush1.msra.mxu0 0.0
      %4197 = vmatprep.subr.mxu0 0.0
      %4198 = vmatpush1.msra.mxu0 0.0
      %4199 = vmatprep.subr.mxu0 0.0
      %4200 = vmatpush1.msra.mxu0 0.0
      %4201 = vmatprep.subr.mxu0 0.0
      %4202 = vmatpush1.msra.mxu0 0.0
      %4203 = vmatprep.subr.mxu0 0.0
      %4204 = vmatpush1.msra.mxu0 0.0
      %4205 = vmatprep.subr.mxu0 0.0
      %4206 = vmatpush1.msra.mxu0 0.0
      %4207 = vmatprep.subr.mxu0 0.0
      %4208 = vmatpush1.msra.mxu0 0.0
      %4209 = vmatprep.subr.mxu0 0.0
      %4210 = vmatpush1.msra.mxu0 0.0
      %4211 = vmatprep.subr.mxu0 0.0
      %4212 = vmatpush1.msra.mxu0 0.0
      %4213 = vmatprep.subr.mxu0 0.0
      %4214 = vmatpush1.msra.mxu0 0.0
      %4215 = vmatprep.mubr.f32.mxu0 0.0
      %4216 = vmatmul.mubr.f32.gmra.mrb[0].mxu0 %v4149
      %v4217 = vpop.f32.mrb[0].mxu0
      %v4218 = vadd.f32 0.0, %v4217
      %v4219 = vpop.f32.mrb[0].mxu0
      %4220 = vdwg.mxu0
      %v4221 = vadd.f32 %v4144, %v4218
      %v4222 = vld [vmem:[%s49] sm:$0xff]
      %4224 = vset.pattern.permute.xlu0 0
      %4225 = vperm.xlu0 %4224, %v4222
      %v4226 = vpop.permute.xlu0 %4225
      %v4228 = vmul.f32 %v4221, %v4226
      %v4229 = vld [vmem:[%s51] sm:$0xff]
      %4231 = vset.pattern.permute.xlu0 0
      %4232 = vperm.xlu0 %4231, %v4229
      %v4233 = vpop.permute.xlu0 %4232
      %v4235 = vadd.f32 %v4228, %v4233
      %v4236 = vmax.f32 %v4235, 0.0
      %v4237 = vld [vmem:[%s53] sm:$0xff]
      %v4238 = vld [vmem:[%s53 + $0x8] sm:$0xff]
      %v4239 = vld [vmem:[%s53 + $0x10] sm:$0xff]
      %v4240 = vld [vmem:[%s53 + $0x18] sm:$0xff]
      %v4241 = vld [vmem:[%s53 + $0x20] sm:$0xff]
      %v4242 = vld [vmem:[%s53 + $0x28] sm:$0xff]
      %v4243 = vld [vmem:[%s53 + $0x30] sm:$0xff]
      %v4244 = vld [vmem:[%s53 + $0x38] sm:$0xff]
      %v4246 = vsel %vm2239, %v4236, 0
      %4248 = vmatprep.subr.mxu0 0.0
      %4249 = vmatpush1.msra.mxu0 %v4237
      %4250 = vmatprep.subr.mxu0 0.0
      %4251 = vmatpush1.msra.mxu0 %v4238
      %4252 = vmatprep.subr.mxu0 0.0
      %4253 = vmatpush1.msra.mxu0 %v4239
      %4254 = vmatprep.subr.mxu0 0.0
      %4255 = vmatpush1.msra.mxu0 %v4240
      %4256 = vmatprep.subr.mxu0 0.0
      %4257 = vmatpush1.msra.mxu0 %v4241
      %4258 = vmatprep.subr.mxu0 0.0
      %4259 = vmatpush1.msra.mxu0 %v4242
      %4260 = vmatprep.subr.mxu0 0.0
      %4261 = vmatpush1.msra.mxu0 %v4243
      %4262 = vmatprep.subr.mxu0 0.0
      %4263 = vmatpush1.msra.mxu0 %v4244
      %4264 = vmatprep.subr.mxu0 0.0
      %4265 = vmatpush1.msra.mxu0 0.0
      %4266 = vmatprep.subr.mxu0 0.0
      %4267 = vmatpush1.msra.mxu0 0.0
      %4268 = vmatprep.subr.mxu0 0.0
      %4269 = vmatpush1.msra.mxu0 0.0
      %4270 = vmatprep.subr.mxu0 0.0
      %4271 = vmatpush1.msra.mxu0 0.0
      %4272 = vmatprep.subr.mxu0 0.0
      %4273 = vmatpush1.msra.mxu0 0.0
      %4274 = vmatprep.subr.mxu0 0.0
      %4275 = vmatpush1.msra.mxu0 0.0
      %4276 = vmatprep.subr.mxu0 0.0
      %4277 = vmatpush1.msra.mxu0 0.0
      %4278 = vmatprep.subr.mxu0 0.0
      %4279 = vmatpush1.msra.mxu0 0.0
      %4280 = vmatprep.subr.mxu0 0.0
      %4281 = vmatpush1.msra.mxu0 0.0
      %4282 = vmatprep.subr.mxu0 0.0
      %4283 = vmatpush1.msra.mxu0 0.0
      %4284 = vmatprep.subr.mxu0 0.0
      %4285 = vmatpush1.msra.mxu0 0.0
      %4286 = vmatprep.subr.mxu0 0.0
      %4287 = vmatpush1.msra.mxu0 0.0
      %4288 = vmatprep.subr.mxu0 0.0
      %4289 = vmatpush1.msra.mxu0 0.0
      %4290 = vmatprep.subr.mxu0 0.0
      %4291 = vmatpush1.msra.mxu0 0.0
      %4292 = vmatprep.subr.mxu0 0.0
      %4293 = vmatpush1.msra.mxu0 0.0
      %4294 = vmatprep.subr.mxu0 0.0
      %4295 = vmatpush1.msra.mxu0 0.0
      %4296 = vmatprep.subr.mxu0 0.0
      %4297 = vmatpush1.msra.mxu0 0.0
      %4298 = vmatprep.subr.mxu0 0.0
      %4299 = vmatpush1.msra.mxu0 0.0
      %4300 = vmatprep.subr.mxu0 0.0
      %4301 = vmatpush1.msra.mxu0 0.0
      %4302 = vmatprep.subr.mxu0 0.0
      %4303 = vmatpush1.msra.mxu0 0.0
      %4304 = vmatprep.subr.mxu0 0.0
      %4305 = vmatpush1.msra.mxu0 0.0
      %4306 = vmatprep.subr.mxu0 0.0
      %4307 = vmatpush1.msra.mxu0 0.0
      %4308 = vmatprep.subr.mxu0 0.0
      %4309 = vmatpush1.msra.mxu0 0.0
      %4310 = vmatprep.subr.mxu0 0.0
      %4311 = vmatpush1.msra.mxu0 0.0
      %4312 = vmatprep.mubr.f32.mxu0 0.0
      %4313 = vmatmul.mubr.f32.gmra.mrb[0].mxu0 %v4246
      %v4314 = vpop.f32.mrb[0].mxu0
      %v4315 = vadd.f32 0.0, %v4314
      %v4316 = vpop.f32.mrb[0].mxu0
      %4317 = vdwg.mxu0
      %s4318 = scalar_lea.vmem %s53, 64
      %v4319 = vld [vmem:[%s4318] sm:$0xff]
      %v4320 = vld [vmem:[%s4318 + $0x8] sm:$0xff]
      %v4321 = vld [vmem:[%s4318 + $0x10] sm:$0xff]
      %v4322 = vld [vmem:[%s4318 + $0x18] sm:$0xff]
      %v4323 = vld [vmem:[%s4318 + $0x20] sm:$0xff]
      %v4324 = vld [vmem:[%s4318 + $0x28] sm:$0xff]
      %v4325 = vld [vmem:[%s4318 + $0x30] sm:$0xff]
      %v4326 = vld [vmem:[%s4318 + $0x38] sm:$0xff]
      %4327 = vmatprep.subr.mxu0 0.0
      %4328 = vmatpush1.msra.mxu0 %v4319
      %4329 = vmatprep.subr.mxu0 0.0
      %4330 = vmatpush1.msra.mxu0 %v4320
      %4331 = vmatprep.subr.mxu0 0.0
      %4332 = vmatpush1.msra.mxu0 %v4321
      %4333 = vmatprep.subr.mxu0 0.0
      %4334 = vmatpush1.msra.mxu0 %v4322
      %4335 = vmatprep.subr.mxu0 0.0
      %4336 = vmatpush1.msra.mxu0 %v4323
      %4337 = vmatprep.subr.mxu0 0.0
      %4338 = vmatpush1.msra.mxu0 %v4324
      %4339 = vmatprep.subr.mxu0 0.0
      %4340 = vmatpush1.msra.mxu0 %v4325
      %4341 = vmatprep.subr.mxu0 0.0
      %4342 = vmatpush1.msra.mxu0 %v4326
      %4343 = vmatprep.subr.mxu0 0.0
      %4344 = vmatpush1.msra.mxu0 0.0
      %4345 = vmatprep.subr.mxu0 0.0
      %4346 = vmatpush1.msra.mxu0 0.0
      %4347 = vmatprep.subr.mxu0 0.0
      %4348 = vmatpush1.msra.mxu0 0.0
      %4349 = vmatprep.subr.mxu0 0.0
      %4350 = vmatpush1.msra.mxu0 0.0
      %4351 = vmatprep.subr.mxu0 0.0
      %4352 = vmatpush1.msra.mxu0 0.0
      %4353 = vmatprep.subr.mxu0 0.0
      %4354 = vmatpush1.msra.mxu0 0.0
      %4355 = vmatprep.subr.mxu0 0.0
      %4356 = vmatpush1.msra.mxu0 0.0
      %4357 = vmatprep.subr.mxu0 0.0
      %4358 = vmatpush1.msra.mxu0 0.0
      %4359 = vmatprep.subr.mxu0 0.0
      %4360 = vmatpush1.msra.mxu0 0.0
      %4361 = vmatprep.subr.mxu0 0.0
      %4362 = vmatpush1.msra.mxu0 0.0
      %4363 = vmatprep.subr.mxu0 0.0
      %4364 = vmatpush1.msra.mxu0 0.0
      %4365 = vmatprep.subr.mxu0 0.0
      %4366 = vmatpush1.msra.mxu0 0.0
      %4367 = vmatprep.subr.mxu0 0.0
      %4368 = vmatpush1.msra.mxu0 0.0
      %4369 = vmatprep.subr.mxu0 0.0
      %4370 = vmatpush1.msra.mxu0 0.0
      %4371 = vmatprep.subr.mxu0 0.0
      %4372 = vmatpush1.msra.mxu0 0.0
      %4373 = vmatprep.subr.mxu0 0.0
      %4374 = vmatpush1.msra.mxu0 0.0
      %4375 = vmatprep.subr.mxu0 0.0
      %4376 = vmatpush1.msra.mxu0 0.0
      %4377 = vmatprep.subr.mxu0 0.0
      %4378 = vmatpush1.msra.mxu0 0.0
      %4379 = vmatprep.subr.mxu0 0.0
      %4380 = vmatpush1.msra.mxu0 0.0
      %4381 = vmatprep.subr.mxu0 0.0
      %4382 = vmatpush1.msra.mxu0 0.0
      %4383 = vmatprep.subr.mxu0 0.0
      %4384 = vmatpush1.msra.mxu0 0.0
      %4385 = vmatprep.subr.mxu0 0.0
      %4386 = vmatpush1.msra.mxu0 0.0
      %4387 = vmatprep.subr.mxu0 0.0
      %4388 = vmatpush1.msra.mxu0 0.0
      %4389 = vmatprep.subr.mxu0 0.0
      %4390 = vmatpush1.msra.mxu0 0.0
      %4391 = vmatprep.mubr.f32.mxu0 0.0
      %4392 = vmatmul.mubr.f32.gmra.mrb[0].mxu0 %v4246
      %v4393 = vpop.f32.mrb[0].mxu0
      %v4394 = vadd.f32 0.0, %v4393
      %v4395 = vpop.f32.mrb[0].mxu0
      %4396 = vdwg.mxu0
      %s4397 = scalar_lea.vmem %s53, 128
      %v4398 = vld [vmem:[%s4397] sm:$0xff]
      %v4399 = vld [vmem:[%s4397 + $0x8] sm:$0xff]
      %v4400 = vld [vmem:[%s4397 + $0x10] sm:$0xff]
      %v4401 = vld [vmem:[%s4397 + $0x18] sm:$0xff]
      %v4402 = vld [vmem:[%s4397 + $0x20] sm:$0xff]
      %v4403 = vld [vmem:[%s4397 + $0x28] sm:$0xff]
      %v4404 = vld [vmem:[%s4397 + $0x30] sm:$0xff]
      %v4405 = vld [vmem:[%s4397 + $0x38] sm:$0xff]
      %4406 = vmatprep.subr.mxu0 0.0
      %4407 = vmatpush1.msra.mxu0 %v4398
      %4408 = vmatprep.subr.mxu0 0.0
      %4409 = vmatpush1.msra.mxu0 %v4399
      %4410 = vmatprep.subr.mxu0 0.0
      %4411 = vmatpush1.msra.mxu0 %v4400
      %4412 = vmatprep.subr.mxu0 0.0
      %4413 = vmatpush1.msra.mxu0 %v4401
      %4414 = vmatprep.subr.mxu0 0.0
      %4415 = vmatpush1.msra.mxu0 %v4402
      %4416 = vmatprep.subr.mxu0 0.0
      %4417 = vmatpush1.msra.mxu0 %v4403
      %4418 = vmatprep.subr.mxu0 0.0
      %4419 = vmatpush1.msra.mxu0 %v4404
      %4420 = vmatprep.subr.mxu0 0.0
      %4421 = vmatpush1.msra.mxu0 %v4405
      %4422 = vmatprep.subr.mxu0 0.0
      %4423 = vmatpush1.msra.mxu0 0.0
      %4424 = vmatprep.subr.mxu0 0.0
      %4425 = vmatpush1.msra.mxu0 0.0
      %4426 = vmatprep.subr.mxu0 0.0
      %4427 = vmatpush1.msra.mxu0 0.0
      %4428 = vmatprep.subr.mxu0 0.0
      %4429 = vmatpush1.msra.mxu0 0.0
      %4430 = vmatprep.subr.mxu0 0.0
      %4431 = vmatpush1.msra.mxu0 0.0
      %4432 = vmatprep.subr.mxu0 0.0
      %4433 = vmatpush1.msra.mxu0 0.0
      %4434 = vmatprep.subr.mxu0 0.0
      %4435 = vmatpush1.msra.mxu0 0.0
      %4436 = vmatprep.subr.mxu0 0.0
      %4437 = vmatpush1.msra.mxu0 0.0
      %4438 = vmatprep.subr.mxu0 0.0
      %4439 = vmatpush1.msra.mxu0 0.0
      %4440 = vmatprep.subr.mxu0 0.0
      %4441 = vmatpush1.msra.mxu0 0.0
      %4442 = vmatprep.subr.mxu0 0.0
      %4443 = vmatpush1.msra.mxu0 0.0
      %4444 = vmatprep.subr.mxu0 0.0
      %4445 = vmatpush1.msra.mxu0 0.0
      %4446 = vmatprep.subr.mxu0 0.0
      %4447 = vmatpush1.msra.mxu0 0.0
      %4448 = vmatprep.subr.mxu0 0.0
      %4449 = vmatpush1.msra.mxu0 0.0
      %4450 = vmatprep.subr.mxu0 0.0
      %4451 = vmatpush1.msra.mxu0 0.0
      %4452 = vmatprep.subr.mxu0 0.0
      %4453 = vmatpush1.msra.mxu0 0.0
      %4454 = vmatprep.subr.mxu0 0.0
      %4455 = vmatpush1.msra.mxu0 0.0
      %4456 = vmatprep.subr.mxu0 0.0
      %4457 = vmatpush1.msra.mxu0 0.0
      %4458 = vmatprep.subr.mxu0 0.0
      %4459 = vmatpush1.msra.mxu0 0.0
      %4460 = vmatprep.subr.mxu0 0.0
      %4461 = vmatpush1.msra.mxu0 0.0
      %4462 = vmatprep.subr.mxu0 0.0
      %4463 = vmatpush1.msra.mxu0 0.0
      %4464 = vmatprep.subr.mxu0 0.0
      %4465 = vmatpush1.msra.mxu0 0.0
      %4466 = vmatprep.subr.mxu0 0.0
      %4467 = vmatpush1.msra.mxu0 0.0
      %4468 = vmatprep.subr.mxu0 0.0
      %4469 = vmatpush1.msra.mxu0 0.0
      %4470 = vmatprep.mubr.f32.mxu0 0.0
      %4471 = vmatmul.mubr.f32.gmra.mrb[0].mxu0 %v4246
      %v4472 = vpop.f32.mrb[0].mxu0
      %v4473 = vadd.f32 0.0, %v4472
      %v4474 = vpop.f32.mrb[0].mxu0
      %4475 = vdwg.mxu0
      %s4476 = scalar_lea.vmem %s53, 192
      %v4477 = vld [vmem:[%s4476] sm:$0xff]
      %v4478 = vld [vmem:[%s4476 + $0x8] sm:$0xff]
      %v4479 = vld [vmem:[%s4476 + $0x10] sm:$0xff]
      %v4480 = vld [vmem:[%s4476 + $0x18] sm:$0xff]
      %v4481 = vld [vmem:[%s4476 + $0x20] sm:$0xff]
      %v4482 = vld [vmem:[%s4476 + $0x28] sm:$0xff]
      %v4483 = vld [vmem:[%s4476 + $0x30] sm:$0xff]
      %v4484 = vld [vmem:[%s4476 + $0x38] sm:$0xff]
      %4485 = vmatprep.subr.mxu0 0.0
      %4486 = vmatpush1.msra.mxu0 %v4477
      %4487 = vmatprep.subr.mxu0 0.0
      %4488 = vmatpush1.msra.mxu0 %v4478
      %4489 = vmatprep.subr.mxu0 0.0
      %4490 = vmatpush1.msra.mxu0 %v4479
      %4491 = vmatprep.subr.mxu0 0.0
      %4492 = vmatpush1.msra.mxu0 %v4480
      %4493 = vmatprep.subr.mxu0 0.0
      %4494 = vmatpush1.msra.mxu0 %v4481
      %4495 = vmatprep.subr.mxu0 0.0
      %4496 = vmatpush1.msra.mxu0 %v4482
      %4497 = vmatprep.subr.mxu0 0.0
      %4498 = vmatpush1.msra.mxu0 %v4483
      %4499 = vmatprep.subr.mxu0 0.0
      %4500 = vmatpush1.msra.mxu0 %v4484
      %4501 = vmatprep.subr.mxu0 0.0
      %4502 = vmatpush1.msra.mxu0 0.0
      %4503 = vmatprep.subr.mxu0 0.0
      %4504 = vmatpush1.msra.mxu0 0.0
      %4505 = vmatprep.subr.mxu0 0.0
      %4506 = vmatpush1.msra.mxu0 0.0
      %4507 = vmatprep.subr.mxu0 0.0
      %4508 = vmatpush1.msra.mxu0 0.0
      %4509 = vmatprep.subr.mxu0 0.0
      %4510 = vmatpush1.msra.mxu0 0.0
      %4511 = vmatprep.subr.mxu0 0.0
      %4512 = vmatpush1.msra.mxu0 0.0
      %4513 = vmatprep.subr.mxu0 0.0
      %4514 = vmatpush1.msra.mxu0 0.0
      %4515 = vmatprep.subr.mxu0 0.0
      %4516 = vmatpush1.msra.mxu0 0.0
      %4517 = vmatprep.subr.mxu0 0.0
      %4518 = vmatpush1.msra.mxu0 0.0
      %4519 = vmatprep.subr.mxu0 0.0
      %4520 = vmatpush1.msra.mxu0 0.0
      %4521 = vmatprep.subr.mxu0 0.0
      %4522 = vmatpush1.msra.mxu0 0.0
      %4523 = vmatprep.subr.mxu0 0.0
      %4524 = vmatpush1.msra.mxu0 0.0
      %4525 = vmatprep.subr.mxu0 0.0
      %4526 = vmatpush1.msra.mxu0 0.0
      %4527 = vmatprep.subr.mxu0 0.0
      %4528 = vmatpush1.msra.mxu0 0.0
      %4529 = vmatprep.subr.mxu0 0.0
      %4530 = vmatpush1.msra.mxu0 0.0
      %4531 = vmatprep.subr.mxu0 0.0
      %4532 = vmatpush1.msra.mxu0 0.0
      %4533 = vmatprep.subr.mxu0 0.0
      %4534 = vmatpush1.msra.mxu0 0.0
      %4535 = vmatprep.subr.mxu0 0.0
      %4536 = vmatpush1.msra.mxu0 0.0
      %4537 = vmatprep.subr.mxu0 0.0
      %4538 = vmatpush1.msra.mxu0 0.0
      %4539 = vmatprep.subr.mxu0 0.0
      %4540 = vmatpush1.msra.mxu0 0.0
      %4541 = vmatprep.subr.mxu0 0.0
      %4542 = vmatpush1.msra.mxu0 0.0
      %4543 = vmatprep.subr.mxu0 0.0
      %4544 = vmatpush1.msra.mxu0 0.0
      %4545 = vmatprep.subr.mxu0 0.0
      %4546 = vmatpush1.msra.mxu0 0.0
      %4547 = vmatprep.subr.mxu0 0.0
      %4548 = vmatpush1.msra.mxu0 0.0
      %4549 = vmatprep.mubr.f32.mxu0 0.0
      %4550 = vmatmul.mubr.f32.gmra.mrb[0].mxu0 %v4246
      %v4551 = vpop.f32.mrb[0].mxu0
      %v4552 = vadd.f32 0.0, %v4551
      %v4553 = vpop.f32.mrb[0].mxu0
      %4554 = vdwg.mxu0
      %s4555 = scalar_lea.vmem %s53, 256
      %v4556 = vld [vmem:[%s4555] sm:$0xff]
      %v4557 = vld [vmem:[%s4555 + $0x8] sm:$0xff]
      %v4558 = vld [vmem:[%s4555 + $0x10] sm:$0xff]
      %v4559 = vld [vmem:[%s4555 + $0x18] sm:$0xff]
      %v4560 = vld [vmem:[%s4555 + $0x20] sm:$0xff]
      %v4561 = vld [vmem:[%s4555 + $0x28] sm:$0xff]
      %v4562 = vld [vmem:[%s4555 + $0x30] sm:$0xff]
      %v4563 = vld [vmem:[%s4555 + $0x38] sm:$0xff]
      %4564 = vmatprep.subr.mxu0 0.0
      %4565 = vmatpush1.msra.mxu0 %v4556
      %4566 = vmatprep.subr.mxu0 0.0
      %4567 = vmatpush1.msra.mxu0 %v4557
      %4568 = vmatprep.subr.mxu0 0.0
      %4569 = vmatpush1.msra.mxu0 %v4558
      %4570 = vmatprep.subr.mxu0 0.0
      %4571 = vmatpush1.msra.mxu0 %v4559
      %4572 = vmatprep.subr.mxu0 0.0
      %4573 = vmatpush1.msra.mxu0 %v4560
      %4574 = vmatprep.subr.mxu0 0.0
      %4575 = vmatpush1.msra.mxu0 %v4561
      %4576 = vmatprep.subr.mxu0 0.0
      %4577 = vmatpush1.msra.mxu0 %v4562
      %4578 = vmatprep.subr.mxu0 0.0
      %4579 = vmatpush1.msra.mxu0 %v4563
      %4580 = vmatprep.subr.mxu0 0.0
      %4581 = vmatpush1.msra.mxu0 0.0
      %4582 = vmatprep.subr.mxu0 0.0
      %4583 = vmatpush1.msra.mxu0 0.0
      %4584 = vmatprep.subr.mxu0 0.0
      %4585 = vmatpush1.msra.mxu0 0.0
      %4586 = vmatprep.subr.mxu0 0.0
      %4587 = vmatpush1.msra.mxu0 0.0
      %4588 = vmatprep.subr.mxu0 0.0
      %4589 = vmatpush1.msra.mxu0 0.0
      %4590 = vmatprep.subr.mxu0 0.0
      %4591 = vmatpush1.msra.mxu0 0.0
      %4592 = vmatprep.subr.mxu0 0.0
      %4593 = vmatpush1.msra.mxu0 0.0
      %4594 = vmatprep.subr.mxu0 0.0
      %4595 = vmatpush1.msra.mxu0 0.0
      %4596 = vmatprep.subr.mxu0 0.0
      %4597 = vmatpush1.msra.mxu0 0.0
      %4598 = vmatprep.subr.mxu0 0.0
      %4599 = vmatpush1.msra.mxu0 0.0
      %4600 = vmatprep.subr.mxu0 0.0
      %4601 = vmatpush1.msra.mxu0 0.0
      %4602 = vmatprep.subr.mxu0 0.0
      %4603 = vmatpush1.msra.mxu0 0.0
      %4604 = vmatprep.subr.mxu0 0.0
      %4605 = vmatpush1.msra.mxu0 0.0
      %4606 = vmatprep.subr.mxu0 0.0
      %4607 = vmatpush1.msra.mxu0 0.0
      %4608 = vmatprep.subr.mxu0 0.0
      %4609 = vmatpush1.msra.mxu0 0.0
      %4610 = vmatprep.subr.mxu0 0.0
      %4611 = vmatpush1.msra.mxu0 0.0
      %4612 = vmatprep.subr.mxu0 0.0
      %4613 = vmatpush1.msra.mxu0 0.0
      %4614 = vmatprep.subr.mxu0 0.0
      %4615 = vmatpush1.msra.mxu0 0.0
      %4616 = vmatprep.subr.mxu0 0.0
      %4617 = vmatpush1.msra.mxu0 0.0
      %4618 = vmatprep.subr.mxu0 0.0
      %4619 = vmatpush1.msra.mxu0 0.0
      %4620 = vmatprep.subr.mxu0 0.0
      %4621 = vmatpush1.msra.mxu0 0.0
      %4622 = vmatprep.subr.mxu0 0.0
      %4623 = vmatpush1.msra.mxu0 0.0
      %4624 = vmatprep.subr.mxu0 0.0
      %4625 = vmatpush1.msra.mxu0 0.0
      %4626 = vmatprep.subr.mxu0 0.0
      %4627 = vmatpush1.msra.mxu0 0.0
      %4628 = vmatprep.mubr.f32.mxu0 0.0
      %4629 = vmatmul.mubr.f32.gmra.mrb[0].mxu0 %v4246
      %v4630 = vpop.f32.mrb[0].mxu0
      %v4631 = vadd.f32 0.0, %v4630
      %v4632 = vpop.f32.mrb[0].mxu0
      %4633 = vdwg.mxu0
      %s4634 = scalar_lea.vmem %s53, 320
      %v4635 = vld [vmem:[%s4634] sm:$0xff]
      %v4636 = vld [vmem:[%s4634 + $0x8] sm:$0xff]
      %v4637 = vld [vmem:[%s4634 + $0x10] sm:$0xff]
      %v4638 = vld [vmem:[%s4634 + $0x18] sm:$0xff]
      %v4639 = vld [vmem:[%s4634 + $0x20] sm:$0xff]
      %v4640 = vld [vmem:[%s4634 + $0x28] sm:$0xff]
      %v4641 = vld [vmem:[%s4634 + $0x30] sm:$0xff]
      %v4642 = vld [vmem:[%s4634 + $0x38] sm:$0xff]
      %4643 = vmatprep.subr.mxu0 0.0
      %4644 = vmatpush1.msra.mxu0 %v4635
      %4645 = vmatprep.subr.mxu0 0.0
      %4646 = vmatpush1.msra.mxu0 %v4636
      %4647 = vmatprep.subr.mxu0 0.0
      %4648 = vmatpush1.msra.mxu0 %v4637
      %4649 = vmatprep.subr.mxu0 0.0
      %4650 = vmatpush1.msra.mxu0 %v4638
      %4651 = vmatprep.subr.mxu0 0.0
      %4652 = vmatpush1.msra.mxu0 %v4639
      %4653 = vmatprep.subr.mxu0 0.0
      %4654 = vmatpush1.msra.mxu0 %v4640
      %4655 = vmatprep.subr.mxu0 0.0
      %4656 = vmatpush1.msra.mxu0 %v4641
      %4657 = vmatprep.subr.mxu0 0.0
      %4658 = vmatpush1.msra.mxu0 %v4642
      %4659 = vmatprep.subr.mxu0 0.0
      %4660 = vmatpush1.msra.mxu0 0.0
      %4661 = vmatprep.subr.mxu0 0.0
      %4662 = vmatpush1.msra.mxu0 0.0
      %4663 = vmatprep.subr.mxu0 0.0
      %4664 = vmatpush1.msra.mxu0 0.0
      %4665 = vmatprep.subr.mxu0 0.0
      %4666 = vmatpush1.msra.mxu0 0.0
      %4667 = vmatprep.subr.mxu0 0.0
      %4668 = vmatpush1.msra.mxu0 0.0
      %4669 = vmatprep.subr.mxu0 0.0
      %4670 = vmatpush1.msra.mxu0 0.0
      %4671 = vmatprep.subr.mxu0 0.0
      %4672 = vmatpush1.msra.mxu0 0.0
      %4673 = vmatprep.subr.mxu0 0.0
      %4674 = vmatpush1.msra.mxu0 0.0
      %4675 = vmatprep.subr.mxu0 0.0
      %4676 = vmatpush1.msra.mxu0 0.0
      %4677 = vmatprep.subr.mxu0 0.0
      %4678 = vmatpush1.msra.mxu0 0.0
      %4679 = vmatprep.subr.mxu0 0.0
      %4680 = vmatpush1.msra.mxu0 0.0
      %4681 = vmatprep.subr.mxu0 0.0
      %4682 = vmatpush1.msra.mxu0 0.0
      %4683 = vmatprep.subr.mxu0 0.0
      %4684 = vmatpush1.msra.mxu0 0.0
      %4685 = vmatprep.subr.mxu0 0.0
      %4686 = vmatpush1.msra.mxu0 0.0
      %4687 = vmatprep.subr.mxu0 0.0
      %4688 = vmatpush1.msra.mxu0 0.0
      %4689 = vmatprep.subr.mxu0 0.0
      %4690 = vmatpush1.msra.mxu0 0.0
      %4691 = vmatprep.subr.mxu0 0.0
      %4692 = vmatpush1.msra.mxu0 0.0
      %4693 = vmatprep.subr.mxu0 0.0
      %4694 = vmatpush1.msra.mxu0 0.0
      %4695 = vmatprep.subr.mxu0 0.0
      %4696 = vmatpush1.msra.mxu0 0.0
      %4697 = vmatprep.subr.mxu0 0.0
      %4698 = vmatpush1.msra.mxu0 0.0
      %4699 = vmatprep.subr.mxu0 0.0
      %4700 = vmatpush1.msra.mxu0 0.0
      %4701 = vmatprep.subr.mxu0 0.0
      %4702 = vmatpush1.msra.mxu0 0.0
      %4703 = vmatprep.subr.mxu0 0.0
      %4704 = vmatpush1.msra.mxu0 0.0
      %4705 = vmatprep.subr.mxu0 0.0
      %4706 = vmatpush1.msra.mxu0 0.0
      %4707 = vmatprep.mubr.f32.mxu0 0.0
      %4708 = vmatmul.mubr.f32.gmra.mrb[0].mxu0 %v4246
      %v4709 = vpop.f32.mrb[0].mxu0
      %v4710 = vadd.f32 0.0, %v4709
      %v4711 = vpop.f32.mrb[0].mxu0
      %4712 = vdwg.mxu0
      %s4713 = scalar_lea.vmem %s53, 384
      %v4714 = vld [vmem:[%s4713] sm:$0xff]
      %v4715 = vld [vmem:[%s4713 + $0x8] sm:$0xff]
      %v4716 = vld [vmem:[%s4713 + $0x10] sm:$0xff]
      %v4717 = vld [vmem:[%s4713 + $0x18] sm:$0xff]
      %v4718 = vld [vmem:[%s4713 + $0x20] sm:$0xff]
      %v4719 = vld [vmem:[%s4713 + $0x28] sm:$0xff]
      %v4720 = vld [vmem:[%s4713 + $0x30] sm:$0xff]
      %v4721 = vld [vmem:[%s4713 + $0x38] sm:$0xff]
      %4722 = vmatprep.subr.mxu0 0.0
      %4723 = vmatpush1.msra.mxu0 %v4714
      %4724 = vmatprep.subr.mxu0 0.0
      %4725 = vmatpush1.msra.mxu0 %v4715
      %4726 = vmatprep.subr.mxu0 0.0
      %4727 = vmatpush1.msra.mxu0 %v4716
      %4728 = vmatprep.subr.mxu0 0.0
      %4729 = vmatpush1.msra.mxu0 %v4717
      %4730 = vmatprep.subr.mxu0 0.0
      %4731 = vmatpush1.msra.mxu0 %v4718
      %4732 = vmatprep.subr.mxu0 0.0
      %4733 = vmatpush1.msra.mxu0 %v4719
      %4734 = vmatprep.subr.mxu0 0.0
      %4735 = vmatpush1.msra.mxu0 %v4720
      %4736 = vmatprep.subr.mxu0 0.0
      %4737 = vmatpush1.msra.mxu0 %v4721
      %4738 = vmatprep.subr.mxu0 0.0
      %4739 = vmatpush1.msra.mxu0 0.0
      %4740 = vmatprep.subr.mxu0 0.0
      %4741 = vmatpush1.msra.mxu0 0.0
      %4742 = vmatprep.subr.mxu0 0.0
      %4743 = vmatpush1.msra.mxu0 0.0
      %4744 = vmatprep.subr.mxu0 0.0
      %4745 = vmatpush1.msra.mxu0 0.0
      %4746 = vmatprep.subr.mxu0 0.0
      %4747 = vmatpush1.msra.mxu0 0.0
      %4748 = vmatprep.subr.mxu0 0.0
      %4749 = vmatpush1.msra.mxu0 0.0
      %4750 = vmatprep.subr.mxu0 0.0
      %4751 = vmatpush1.msra.mxu0 0.0
      %4752 = vmatprep.subr.mxu0 0.0
      %4753 = vmatpush1.msra.mxu0 0.0
      %4754 = vmatprep.subr.mxu0 0.0
      %4755 = vmatpush1.msra.mxu0 0.0
      %4756 = vmatprep.subr.mxu0 0.0
      %4757 = vmatpush1.msra.mxu0 0.0
      %4758 = vmatprep.subr.mxu0 0.0
      %4759 = vmatpush1.msra.mxu0 0.0
      %4760 = vmatprep.subr.mxu0 0.0
      %4761 = vmatpush1.msra.mxu0 0.0
      %4762 = vmatprep.subr.mxu0 0.0
      %4763 = vmatpush1.msra.mxu0 0.0
      %4764 = vmatprep.subr.mxu0 0.0
      %4765 = vmatpush1.msra.mxu0 0.0
      %4766 = vmatprep.subr.mxu0 0.0
      %4767 = vmatpush1.msra.mxu0 0.0
      %4768 = vmatprep.subr.mxu0 0.0
      %4769 = vmatpush1.msra.mxu0 0.0
      %4770 = vmatprep.subr.mxu0 0.0
      %4771 = vmatpush1.msra.mxu0 0.0
      %4772 = vmatprep.subr.mxu0 0.0
      %4773 = vmatpush1.msra.mxu0 0.0
      %4774 = vmatprep.subr.mxu0 0.0
      %4775 = vmatpush1.msra.mxu0 0.0
      %4776 = vmatprep.subr.mxu0 0.0
      %4777 = vmatpush1.msra.mxu0 0.0
      %4778 = vmatprep.subr.mxu0 0.0
      %4779 = vmatpush1.msra.mxu0 0.0
      %4780 = vmatprep.subr.mxu0 0.0
      %4781 = vmatpush1.msra.mxu0 0.0
      %4782 = vmatprep.subr.mxu0 0.0
      %4783 = vmatpush1.msra.mxu0 0.0
      %4784 = vmatprep.subr.mxu0 0.0
      %4785 = vmatpush1.msra.mxu0 0.0
      %4786 = vmatprep.mubr.f32.mxu0 0.0
      %4787 = vmatmul.mubr.f32.gmra.mrb[0].mxu0 %v4246
      %v4788 = vpop.f32.mrb[0].mxu0
      %v4789 = vadd.f32 0.0, %v4788
      %v4790 = vpop.f32.mrb[0].mxu0
      %4791 = vdwg.mxu0
      %s4792 = scalar_lea.vmem %s53, 448
      %v4793 = vld [vmem:[%s4792] sm:$0xff]
      %v4794 = vld [vmem:[%s4792 + $0x8] sm:$0xff]
      %v4795 = vld [vmem:[%s4792 + $0x10] sm:$0xff]
      %v4796 = vld [vmem:[%s4792 + $0x18] sm:$0xff]
      %v4797 = vld [vmem:[%s4792 + $0x20] sm:$0xff]
      %v4798 = vld [vmem:[%s4792 + $0x28] sm:$0xff]
      %v4799 = vld [vmem:[%s4792 + $0x30] sm:$0xff]
      %v4800 = vld [vmem:[%s4792 + $0x38] sm:$0xff]
      %4801 = vmatprep.subr.mxu0 0.0
      %4802 = vmatpush1.msra.mxu0 %v4793
      %4803 = vmatprep.subr.mxu0 0.0
      %4804 = vmatpush1.msra.mxu0 %v4794
      %4805 = vmatprep.subr.mxu0 0.0
      %4806 = vmatpush1.msra.mxu0 %v4795
      %4807 = vmatprep.subr.mxu0 0.0
      %4808 = vmatpush1.msra.mxu0 %v4796
      %4809 = vmatprep.subr.mxu0 0.0
      %4810 = vmatpush1.msra.mxu0 %v4797
      %4811 = vmatprep.subr.mxu0 0.0
      %4812 = vmatpush1.msra.mxu0 %v4798
      %4813 = vmatprep.subr.mxu0 0.0
      %4814 = vmatpush1.msra.mxu0 %v4799
      %4815 = vmatprep.subr.mxu0 0.0
      %4816 = vmatpush1.msra.mxu0 %v4800
      %4817 = vmatprep.subr.mxu0 0.0
      %4818 = vmatpush1.msra.mxu0 0.0
      %4819 = vmatprep.subr.mxu0 0.0
      %4820 = vmatpush1.msra.mxu0 0.0
      %4821 = vmatprep.subr.mxu0 0.0
      %4822 = vmatpush1.msra.mxu0 0.0
      %4823 = vmatprep.subr.mxu0 0.0
      %4824 = vmatpush1.msra.mxu0 0.0
      %4825 = vmatprep.subr.mxu0 0.0
      %4826 = vmatpush1.msra.mxu0 0.0
      %4827 = vmatprep.subr.mxu0 0.0
      %4828 = vmatpush1.msra.mxu0 0.0
      %4829 = vmatprep.subr.mxu0 0.0
      %4830 = vmatpush1.msra.mxu0 0.0
      %4831 = vmatprep.subr.mxu0 0.0
      %4832 = vmatpush1.msra.mxu0 0.0
      %4833 = vmatprep.subr.mxu0 0.0
      %4834 = vmatpush1.msra.mxu0 0.0
      %4835 = vmatprep.subr.mxu0 0.0
      %4836 = vmatpush1.msra.mxu0 0.0
      %4837 = vmatprep.subr.mxu0 0.0
      %4838 = vmatpush1.msra.mxu0 0.0
      %4839 = vmatprep.subr.mxu0 0.0
      %4840 = vmatpush1.msra.mxu0 0.0
      %4841 = vmatprep.subr.mxu0 0.0
      %4842 = vmatpush1.msra.mxu0 0.0
      %4843 = vmatprep.subr.mxu0 0.0
      %4844 = vmatpush1.msra.mxu0 0.0
      %4845 = vmatprep.subr.mxu0 0.0
      %4846 = vmatpush1.msra.mxu0 0.0
      %4847 = vmatprep.subr.mxu0 0.0
      %4848 = vmatpush1.msra.mxu0 0.0
      %4849 = vmatprep.subr.mxu0 0.0
      %4850 = vmatpush1.msra.mxu0 0.0
      %4851 = vmatprep.subr.mxu0 0.0
      %4852 = vmatpush1.msra.mxu0 0.0
      %4853 = vmatprep.subr.mxu0 0.0
      %4854 = vmatpush1.msra.mxu0 0.0
      %4855 = vmatprep.subr.mxu0 0.0
      %4856 = vmatpush1.msra.mxu0 0.0
      %4857 = vmatprep.subr.mxu0 0.0
      %4858 = vmatpush1.msra.mxu0 0.0
      %4859 = vmatprep.subr.mxu0 0.0
      %4860 = vmatpush1.msra.mxu0 0.0
      %4861 = vmatprep.subr.mxu0 0.0
      %4862 = vmatpush1.msra.mxu0 0.0
      %4863 = vmatprep.subr.mxu0 0.0
      %4864 = vmatpush1.msra.mxu0 0.0
      %4865 = vmatprep.mubr.f32.mxu0 0.0
      %4866 = vmatmul.mubr.f32.gmra.mrb[0].mxu0 %v4246
      %v4867 = vpop.f32.mrb[0].mxu0
      %v4868 = vadd.f32 0.0, %v4867
      %v4869 = vpop.f32.mrb[0].mxu0
      %4870 = vdwg.mxu0
      %s4871 = scalar_lea.vmem %s53, 512
      %v4872 = vld [vmem:[%s4871] sm:$0xff]
      %v4873 = vld [vmem:[%s4871 + $0x8] sm:$0xff]
      %v4874 = vld [vmem:[%s4871 + $0x10] sm:$0xff]
      %v4875 = vld [vmem:[%s4871 + $0x18] sm:$0xff]
      %v4876 = vld [vmem:[%s4871 + $0x20] sm:$0xff]
      %v4877 = vld [vmem:[%s4871 + $0x28] sm:$0xff]
      %v4878 = vld [vmem:[%s4871 + $0x30] sm:$0xff]
      %v4879 = vld [vmem:[%s4871 + $0x38] sm:$0xff]
      %4880 = vmatprep.subr.mxu0 0.0
      %4881 = vmatpush1.msra.mxu0 %v4872
      %4882 = vmatprep.subr.mxu0 0.0
      %4883 = vmatpush1.msra.mxu0 %v4873
      %4884 = vmatprep.subr.mxu0 0.0
      %4885 = vmatpush1.msra.mxu0 %v4874
      %4886 = vmatprep.subr.mxu0 0.0
      %4887 = vmatpush1.msra.mxu0 %v4875
      %4888 = vmatprep.subr.mxu0 0.0
      %4889 = vmatpush1.msra.mxu0 %v4876
      %4890 = vmatprep.subr.mxu0 0.0
      %4891 = vmatpush1.msra.mxu0 %v4877
      %4892 = vmatprep.subr.mxu0 0.0
      %4893 = vmatpush1.msra.mxu0 %v4878
      %4894 = vmatprep.subr.mxu0 0.0
      %4895 = vmatpush1.msra.mxu0 %v4879
      %4896 = vmatprep.subr.mxu0 0.0
      %4897 = vmatpush1.msra.mxu0 0.0
      %4898 = vmatprep.subr.mxu0 0.0
      %4899 = vmatpush1.msra.mxu0 0.0
      %4900 = vmatprep.subr.mxu0 0.0
      %4901 = vmatpush1.msra.mxu0 0.0
      %4902 = vmatprep.subr.mxu0 0.0
      %4903 = vmatpush1.msra.mxu0 0.0
      %4904 = vmatprep.subr.mxu0 0.0
      %4905 = vmatpush1.msra.mxu0 0.0
      %4906 = vmatprep.subr.mxu0 0.0
      %4907 = vmatpush1.msra.mxu0 0.0
      %4908 = vmatprep.subr.mxu0 0.0
      %4909 = vmatpush1.msra.mxu0 0.0
      %4910 = vmatprep.subr.mxu0 0.0
      %4911 = vmatpush1.msra.mxu0 0.0
      %4912 = vmatprep.subr.mxu0 0.0
      %4913 = vmatpush1.msra.mxu0 0.0
      %4914 = vmatprep.subr.mxu0 0.0
      %4915 = vmatpush1.msra.mxu0 0.0
      %4916 = vmatprep.subr.mxu0 0.0
      %4917 = vmatpush1.msra.mxu0 0.0
      %4918 = vmatprep.subr.mxu0 0.0
      %4919 = vmatpush1.msra.mxu0 0.0
      %4920 = vmatprep.subr.mxu0 0.0
      %4921 = vmatpush1.msra.mxu0 0.0
      %4922 = vmatprep.subr.mxu0 0.0
      %4923 = vmatpush1.msra.mxu0 0.0
      %4924 = vmatprep.subr.mxu0 0.0
      %4925 = vmatpush1.msra.mxu0 0.0
      %4926 = vmatprep.subr.mxu0 0.0
      %4927 = vmatpush1.msra.mxu0 0.0
      %4928 = vmatprep.subr.mxu0 0.0
      %4929 = vmatpush1.msra.mxu0 0.0
      %4930 = vmatprep.subr.mxu0 0.0
      %4931 = vmatpush1.msra.mxu0 0.0
      %4932 = vmatprep.subr.mxu0 0.0
      %4933 = vmatpush1.msra.mxu0 0.0
      %4934 = vmatprep.subr.mxu0 0.0
      %4935 = vmatpush1.msra.mxu0 0.0
      %4936 = vmatprep.subr.mxu0 0.0
      %4937 = vmatpush1.msra.mxu0 0.0
      %4938 = vmatprep.subr.mxu0 0.0
      %4939 = vmatpush1.msra.mxu0 0.0
      %4940 = vmatprep.subr.mxu0 0.0
      %4941 = vmatpush1.msra.mxu0 0.0
      %4942 = vmatprep.subr.mxu0 0.0
      %4943 = vmatpush1.msra.mxu0 0.0
      %4944 = vmatprep.mubr.f32.mxu0 0.0
      %4945 = vmatmul.mubr.f32.gmra.mrb[0].mxu0 %v4246
      %v4946 = vpop.f32.mrb[0].mxu0
      %v4947 = vadd.f32 0.0, %v4946
      %v4948 = vpop.f32.mrb[0].mxu0
      %4949 = vdwg.mxu0
      %v4950 = vpack.c.bf16 %v4394, %v4315
      %v4951 = vpack.c.bf16 %v4552, %v4473
      %v4952 = vpack.c.bf16 %v4710, %v4631
      %v4953 = vpack.c.bf16 %v4868, %v4789
      %v4954 = vpack.c.bf16 %v4947, %v4947
      %v4955 = vld [vmem:[%s55] sm:$0xf]
      %v4956 = vld [vmem:[%s55 + $0x4] sm:$0xf]
      %v4957 = vld [vmem:[%s55 + $0x8] sm:$0xf]
      %v4958 = vld [vmem:[%s55 + $0xc] sm:$0xf]
      %v4959 = vld [vmem:[%s55 + $0x10] sm:$0xf]
      %v4960 = vld [vmem:[%s55 + $0x14] sm:$0xf]
      %v4961 = vld [vmem:[%s55 + $0x18] sm:$0xf]
      %v4962 = vld [vmem:[%s55 + $0x1c] sm:$0xf]
      %v4971 = vunpack.c.l.b16 %v4955
      %v4972 = vunpack.c.l.b16 %v4956
      %v4973 = vunpack.c.l.b16 %v4957
      %v4974 = vunpack.c.l.b16 %v4958
      %v4975 = vunpack.c.l.b16 %v4959
      %v4976 = vunpack.c.l.b16 %v4960
      %v4977 = vunpack.c.l.b16 %v4961
      %v4978 = vunpack.c.l.b16 %v4962
      %v4979 = vpack.c.b16 %v4972, %v4971
      %v4980 = vpack.c.b16 %v4974, %v4973
      %v4981 = vpack.c.b16 %v4976, %v4975
      %v4982 = vpack.c.b16 %v4978, %v4977
      %vm4983 = vcmask 588800
      %v4985 = vsel %vm4983, %v4979, 0
      %v4988 = vsel %vm4983, %v4980, 0
      %v4991 = vsel %vm4983, %v4981, 0
      %v4994 = vsel %vm4983, %v4982, 0
      %v4997 = vsel %vm2171, %v4954, 0
      %4999 = vmatprep.subr.bf16.mxu0 0
      %5000 = vmatpush1.bf16.msra.mxu0 %v4950
      %5001 = vmatprep.subr.bf16.mxu0 0
      %5002 = vmatpush1.bf16.msra.mxu0 %v4951
      %5003 = vmatprep.subr.bf16.mxu0 0
      %5004 = vmatpush1.bf16.msra.mxu0 %v4952
      %5005 = vmatprep.subr.bf16.mxu0 0
      %5006 = vmatpush1.bf16.msra.mxu0 %v4953
      %5007 = vmatprep.subr.bf16.mxu0 0
      %5008 = vmatpush1.bf16.msra.mxu0 %v4997
      %5009 = vmatprep.subr.bf16.mxu0 0
      %5010 = vmatpush1.bf16.msra.mxu0 0
      %5011 = vmatprep.subr.bf16.mxu0 0
      %5012 = vmatpush1.bf16.msra.mxu0 0
      %5013 = vmatprep.subr.bf16.mxu0 0
      %5014 = vmatpush1.bf16.msra.mxu0 0
      %5015 = vmatprep.subr.bf16.mxu0 0
      %5016 = vmatpush1.bf16.msra.mxu0 0
      %5017 = vmatprep.subr.bf16.mxu0 0
      %5018 = vmatpush1.bf16.msra.mxu0 0
      %5019 = vmatprep.subr.bf16.mxu0 0
      %5020 = vmatpush1.bf16.msra.mxu0 0
      %5021 = vmatprep.subr.bf16.mxu0 0
      %5022 = vmatpush1.bf16.msra.mxu0 0
      %5023 = vmatprep.subr.bf16.mxu0 0
      %5024 = vmatpush1.bf16.msra.mxu0 0
      %5025 = vmatprep.subr.bf16.mxu0 0
      %5026 = vmatpush1.bf16.msra.mxu0 0
      %5027 = vmatprep.subr.bf16.mxu0 0
      %5028 = vmatpush1.bf16.msra.mxu0 0
      %5029 = vmatprep.subr.bf16.mxu0 0
      %5030 = vmatpush1.bf16.msra.mxu0 0
      %5031 = vmatprep.mubr.bf16.mxu0 0
      %5032 = vmatmul.mubr.bf16.gmra.mrb[0].mxu0 %v4985
      %v5033 = vpop.f32.mrb[0].mxu0
      %v5034 = vadd.f32 0.0, %v5033
      %v5035 = vpop.f32.mrb[0].mxu0
      %v5036 = vpop.f32.mrb[0].mxu0
      %v5037 = vadd.f32 0.0, %v5036
      %v5038 = vpop.f32.mrb[0].mxu0
      %5039 = vmatprep.mubr.bf16.mxu0 0
      %5040 = vmatmul.mubr.bf16.gmra.mrb[0].mxu0 %v4988
      %v5041 = vpop.f32.mrb[0].mxu0
      %v5042 = vadd.f32 0.0, %v5041
      %v5043 = vpop.f32.mrb[0].mxu0
      %v5044 = vpop.f32.mrb[0].mxu0
      %v5045 = vadd.f32 0.0, %v5044
      %v5046 = vpop.f32.mrb[0].mxu0
      %5047 = vmatprep.mubr.bf16.mxu0 0
      %5048 = vmatmul.mubr.bf16.gmra.mrb[0].mxu0 %v4991
      %v5049 = vpop.f32.mrb[0].mxu0
      %v5050 = vadd.f32 0.0, %v5049
      %v5051 = vpop.f32.mrb[0].mxu0
      %v5052 = vpop.f32.mrb[0].mxu0
      %v5053 = vadd.f32 0.0, %v5052
      %v5054 = vpop.f32.mrb[0].mxu0
      %5055 = vmatprep.mubr.bf16.mxu0 0
      %5056 = vmatmul.mubr.bf16.gmra.mrb[0].mxu0 %v4994
      %v5057 = vpop.f32.mrb[0].mxu0
      %v5058 = vadd.f32 0.0, %v5057
      %v5059 = vpop.f32.mrb[0].mxu0
      %v5060 = vpop.f32.mrb[0].mxu0
      %v5061 = vadd.f32 0.0, %v5060
      %v5062 = vpop.f32.mrb[0].mxu0
      %5063 = vdwg.mxu0
      %v5064 = vld [vmem:[%s57] sm:$0xff]
      %v5065 = vld [vmem:[%s57 + $0x8] sm:$0xff]
      %v5066 = vld [vmem:[%s57 + $0x10] sm:$0xff]
      %v5067 = vld [vmem:[%s57 + $0x18] sm:$0xff]
      %v5068 = vld [vmem:[%s57 + $0x20] sm:$0xff]
      %v5069 = vld [vmem:[%s57 + $0x28] sm:$0xff]
      %v5070 = vld [vmem:[%s57 + $0x30] sm:$0xff]
      %v5071 = vld [vmem:[%s57 + $0x38] sm:$0xff]
      %v5072 = vld [vmem:[%s57 + $0x40] sm:$0xff]
      %v5073 = vld [vmem:[%s57 + $0x48] sm:$0xff]
      %v5074 = vld [vmem:[%s57 + $0x50] sm:$0xff]
      %v5075 = vld [vmem:[%s57 + $0x58] sm:$0xff]
      %v5076 = vld [vmem:[%s57 + $0x60] sm:$0xff]
      %v5077 = vld [vmem:[%s57 + $0x68] sm:$0xff]
      %v5078 = vld [vmem:[%s57 + $0x70] sm:$0xff]
      %v5079 = vld [vmem:[%s57 + $0x78] sm:$0xff]
      %s5080 = scalar_lea.vmem %s57, 128
      %v5081 = vld [vmem:[%s5080] sm:$0xff]
      %v5082 = vld [vmem:[%s5080 + $0x8] sm:$0xff]
      %v5083 = vld [vmem:[%s5080 + $0x10] sm:$0xff]
      %v5084 = vld [vmem:[%s5080 + $0x18] sm:$0xff]
      %v5085 = vld [vmem:[%s5080 + $0x20] sm:$0xff]
      %v5086 = vld [vmem:[%s5080 + $0x28] sm:$0xff]
      %v5087 = vld [vmem:[%s5080 + $0x30] sm:$0xff]
      %v5088 = vld [vmem:[%s5080 + $0x38] sm:$0xff]
      %v5089 = vld [vmem:[%s5080 + $0x40] sm:$0xff]
      %v5090 = vld [vmem:[%s5080 + $0x48] sm:$0xff]
      %v5091 = vld [vmem:[%s5080 + $0x50] sm:$0xff]
      %v5092 = vld [vmem:[%s5080 + $0x58] sm:$0xff]
      %v5093 = vld [vmem:[%s5080 + $0x60] sm:$0xff]
      %v5094 = vld [vmem:[%s5080 + $0x68] sm:$0xff]
      %v5095 = vld [vmem:[%s5080 + $0x70] sm:$0xff]
      %v5096 = vld [vmem:[%s5080 + $0x78] sm:$0xff]
      %v5098 = vsel %vm2239, %v5042, 0
      %v5101 = vsel %vm2239, %v5045, 0
      %5103 = vmatprep.subr.mxu0 %v5082
      %5104 = vmatpush1.msra.mxu0 %v5081
      %5105 = vmatprep.subr.mxu0 %v5084
      %5106 = vmatpush1.msra.mxu0 %v5083
      %5107 = vmatprep.subr.mxu0 %v5086
      %5108 = vmatpush1.msra.mxu0 %v5085
      %5109 = vmatprep.subr.mxu0 %v5088
      %5110 = vmatpush1.msra.mxu0 %v5087
      %5111 = vmatprep.subr.mxu0 %v5090
      %5112 = vmatpush1.msra.mxu0 %v5089
      %5113 = vmatprep.subr.mxu0 %v5092
      %5114 = vmatpush1.msra.mxu0 %v5091
      %5115 = vmatprep.subr.mxu0 %v5094
      %5116 = vmatpush1.msra.mxu0 %v5093
      %5117 = vmatprep.subr.mxu0 %v5096
      %5118 = vmatpush1.msra.mxu0 %v5095
      %5119 = vmatprep.subr.mxu0 0.0
      %5120 = vmatpush1.msra.mxu0 0.0
      %5121 = vmatprep.subr.mxu0 0.0
      %5122 = vmatpush1.msra.mxu0 0.0
      %5123 = vmatprep.subr.mxu0 0.0
      %5124 = vmatpush1.msra.mxu0 0.0
      %5125 = vmatprep.subr.mxu0 0.0
      %5126 = vmatpush1.msra.mxu0 0.0
      %5127 = vmatprep.subr.mxu0 0.0
      %5128 = vmatpush1.msra.mxu0 0.0
      %5129 = vmatprep.subr.mxu0 0.0
      %5130 = vmatpush1.msra.mxu0 0.0
      %5131 = vmatprep.subr.mxu0 0.0
      %5132 = vmatpush1.msra.mxu0 0.0
      %5133 = vmatprep.subr.mxu0 0.0
      %5134 = vmatpush1.msra.mxu0 0.0
      %5135 = vmatprep.subr.mxu0 0.0
      %5136 = vmatpush1.msra.mxu0 0.0
      %5137 = vmatprep.subr.mxu0 0.0
      %5138 = vmatpush1.msra.mxu0 0.0
      %5139 = vmatprep.subr.mxu0 0.0
      %5140 = vmatpush1.msra.mxu0 0.0
      %5141 = vmatprep.subr.mxu0 0.0
      %5142 = vmatpush1.msra.mxu0 0.0
      %5143 = vmatprep.subr.mxu0 0.0
      %5144 = vmatpush1.msra.mxu0 0.0
      %5145 = vmatprep.subr.mxu0 0.0
      %5146 = vmatpush1.msra.mxu0 0.0
      %5147 = vmatprep.subr.mxu0 0.0
      %5148 = vmatpush1.msra.mxu0 0.0
      %5149 = vmatprep.subr.mxu0 0.0
      %5150 = vmatpush1.msra.mxu0 0.0
      %5151 = vmatprep.subr.mxu0 0.0
      %5152 = vmatpush1.msra.mxu0 0.0
      %5153 = vmatprep.subr.mxu0 0.0
      %5154 = vmatpush1.msra.mxu0 0.0
      %5155 = vmatprep.subr.mxu0 0.0
      %5156 = vmatpush1.msra.mxu0 0.0
      %5157 = vmatprep.subr.mxu0 0.0
      %5158 = vmatpush1.msra.mxu0 0.0
      %5159 = vmatprep.subr.mxu0 0.0
      %5160 = vmatpush1.msra.mxu0 0.0
      %5161 = vmatprep.subr.mxu0 0.0
      %5162 = vmatpush1.msra.mxu0 0.0
      %5163 = vmatprep.subr.mxu0 0.0
      %5164 = vmatpush1.msra.mxu0 0.0
      %5165 = vmatprep.subr.mxu0 0.0
      %5166 = vmatpush1.msra.mxu0 0.0
      %5167 = vmatprep.mubr.f32.mxu0 0.0
      %5168 = vmatmul.mubr.f32.gmra.mrb[0].mxu0 %v5098
      %v5169 = vpop.f32.mrb[0].mxu0
      %v5170 = vadd.f32 0.0, %v5169
      %v5171 = vpop.f32.mrb[0].mxu0
      %v5172 = vadd.f32 0.0, %v5171
      %5173 = vmatprep.mubr.f32.mxu0 0.0
      %5174 = vmatmul.mubr.f32.gmra.mrb[0].mxu0 %v5101
      %v5175 = vpop.f32.mrb[0].mxu0
      %v5176 = vadd.f32 0.0, %v5175
      %v5177 = vpop.f32.mrb[0].mxu0
      %v5178 = vadd.f32 0.0, %v5177
      %5179 = vdwg.mxu0
      %v5181 = vsel %vm2239, %v5034, 0
      %v5184 = vsel %vm2239, %v5037, 0
      %5186 = vmatprep.subr.mxu0 %v5065
      %5187 = vmatpush1.msra.mxu0 %v5064
      %5188 = vmatprep.subr.mxu0 %v5067
      %5189 = vmatpush1.msra.mxu0 %v5066
      %5190 = vmatprep.subr.mxu0 %v5069
      %5191 = vmatpush1.msra.mxu0 %v5068
      %5192 = vmatprep.subr.mxu0 %v5071
      %5193 = vmatpush1.msra.mxu0 %v5070
      %5194 = vmatprep.subr.mxu0 %v5073
      %5195 = vmatpush1.msra.mxu0 %v5072
      %5196 = vmatprep.subr.mxu0 %v5075
      %5197 = vmatpush1.msra.mxu0 %v5074
      %5198 = vmatprep.subr.mxu0 %v5077
      %5199 = vmatpush1.msra.mxu0 %v5076
      %5200 = vmatprep.subr.mxu0 %v5079
      %5201 = vmatpush1.msra.mxu0 %v5078
      %5202 = vmatprep.subr.mxu0 0.0
      %5203 = vmatpush1.msra.mxu0 0.0
      %5204 = vmatprep.subr.mxu0 0.0
      %5205 = vmatpush1.msra.mxu0 0.0
      %5206 = vmatprep.subr.mxu0 0.0
      %5207 = vmatpush1.msra.mxu0 0.0
      %5208 = vmatprep.subr.mxu0 0.0
      %5209 = vmatpush1.msra.mxu0 0.0
      %5210 = vmatprep.subr.mxu0 0.0
      %5211 = vmatpush1.msra.mxu0 0.0
      %5212 = vmatprep.subr.mxu0 0.0
      %5213 = vmatpush1.msra.mxu0 0.0
      %5214 = vmatprep.subr.mxu0 0.0
      %5215 = vmatpush1.msra.mxu0 0.0
      %5216 = vmatprep.subr.mxu0 0.0
      %5217 = vmatpush1.msra.mxu0 0.0
      %5218 = vmatprep.subr.mxu0 0.0
      %5219 = vmatpush1.msra.mxu0 0.0
      %5220 = vmatprep.subr.mxu0 0.0
      %5221 = vmatpush1.msra.mxu0 0.0
      %5222 = vmatprep.subr.mxu0 0.0
      %5223 = vmatpush1.msra.mxu0 0.0
      %5224 = vmatprep.subr.mxu0 0.0
      %5225 = vmatpush1.msra.mxu0 0.0
      %5226 = vmatprep.subr.mxu0 0.0
      %5227 = vmatpush1.msra.mxu0 0.0
      %5228 = vmatprep.subr.mxu0 0.0
      %5229 = vmatpush1.msra.mxu0 0.0
      %5230 = vmatprep.subr.mxu0 0.0
      %5231 = vmatpush1.msra.mxu0 0.0
      %5232 = vmatprep.subr.mxu0 0.0
      %5233 = vmatpush1.msra.mxu0 0.0
      %5234 = vmatprep.subr.mxu0 0.0
      %5235 = vmatpush1.msra.mxu0 0.0
      %5236 = vmatprep.subr.mxu0 0.0
      %5237 = vmatpush1.msra.mxu0 0.0
      %5238 = vmatprep.subr.mxu0 0.0
      %5239 = vmatpush1.msra.mxu0 0.0
      %5240 = vmatprep.subr.mxu0 0.0
      %5241 = vmatpush1.msra.mxu0 0.0
      %5242 = vmatprep.subr.mxu0 0.0
      %5243 = vmatpush1.msra.mxu0 0.0
      %5244 = vmatprep.subr.mxu0 0.0
      %5245 = vmatpush1.msra.mxu0 0.0
      %5246 = vmatprep.subr.mxu0 0.0
      %5247 = vmatpush1.msra.mxu0 0.0
      %5248 = vmatprep.subr.mxu0 0.0
      %5249 = vmatpush1.msra.mxu0 0.0
      %5250 = vmatprep.mubr.f32.mxu0 0.0
      %5251 = vmatmul.mubr.f32.gmra.mrb[0].mxu0 %v5181
      %v5252 = vpop.f32.mrb[0].mxu0
      %v5253 = vadd.f32 %v5170, %v5252
      %v5254 = vpop.f32.mrb[0].mxu0
      %v5255 = vadd.f32 %v5172, %v5254
      %5256 = vmatprep.mubr.f32.mxu0 0.0
      %5257 = vmatmul.mubr.f32.gmra.mrb[0].mxu0 %v5184
      %v5258 = vpop.f32.mrb[0].mxu0
      %v5259 = vadd.f32 %v5176, %v5258
      %v5260 = vpop.f32.mrb[0].mxu0
      %v5261 = vadd.f32 %v5178, %v5260
      %5262 = vdwg.mxu0
      %s5263 = scalar_lea.vmem %s57, 256
      %v5264 = vld [vmem:[%s5263] sm:$0xff]
      %v5265 = vld [vmem:[%s5263 + $0x8] sm:$0xff]
      %v5266 = vld [vmem:[%s5263 + $0x10] sm:$0xff]
      %v5267 = vld [vmem:[%s5263 + $0x18] sm:$0xff]
      %v5268 = vld [vmem:[%s5263 + $0x20] sm:$0xff]
      %v5269 = vld [vmem:[%s5263 + $0x28] sm:$0xff]
      %v5270 = vld [vmem:[%s5263 + $0x30] sm:$0xff]
      %v5271 = vld [vmem:[%s5263 + $0x38] sm:$0xff]
      %v5272 = vld [vmem:[%s5263 + $0x40] sm:$0xff]
      %v5273 = vld [vmem:[%s5263 + $0x48] sm:$0xff]
      %v5274 = vld [vmem:[%s5263 + $0x50] sm:$0xff]
      %v5275 = vld [vmem:[%s5263 + $0x58] sm:$0xff]
      %v5276 = vld [vmem:[%s5263 + $0x60] sm:$0xff]
      %v5277 = vld [vmem:[%s5263 + $0x68] sm:$0xff]
      %v5278 = vld [vmem:[%s5263 + $0x70] sm:$0xff]
      %v5279 = vld [vmem:[%s5263 + $0x78] sm:$0xff]
      %v5281 = vsel %vm2239, %v5050, 0
      %v5284 = vsel %vm2239, %v5053, 0
      %5286 = vmatprep.subr.mxu0 %v5265
      %5287 = vmatpush1.msra.mxu0 %v5264
      %5288 = vmatprep.subr.mxu0 %v5267
      %5289 = vmatpush1.msra.mxu0 %v5266
      %5290 = vmatprep.subr.mxu0 %v5269
      %5291 = vmatpush1.msra.mxu0 %v5268
      %5292 = vmatprep.subr.mxu0 %v5271
      %5293 = vmatpush1.msra.mxu0 %v5270
      %5294 = vmatprep.subr.mxu0 %v5273
      %5295 = vmatpush1.msra.mxu0 %v5272
      %5296 = vmatprep.subr.mxu0 %v5275
      %5297 = vmatpush1.msra.mxu0 %v5274
      %5298 = vmatprep.subr.mxu0 %v5277
      %5299 = vmatpush1.msra.mxu0 %v5276
      %5300 = vmatprep.subr.mxu0 %v5279
      %5301 = vmatpush1.msra.mxu0 %v5278
      %5302 = vmatprep.subr.mxu0 0.0
      %5303 = vmatpush1.msra.mxu0 0.0
      %5304 = vmatprep.subr.mxu0 0.0
      %5305 = vmatpush1.msra.mxu0 0.0
      %5306 = vmatprep.subr.mxu0 0.0
      %5307 = vmatpush1.msra.mxu0 0.0
      %5308 = vmatprep.subr.mxu0 0.0
      %5309 = vmatpush1.msra.mxu0 0.0
      %5310 = vmatprep.subr.mxu0 0.0
      %5311 = vmatpush1.msra.mxu0 0.0
      %5312 = vmatprep.subr.mxu0 0.0
      %5313 = vmatpush1.msra.mxu0 0.0
      %5314 = vmatprep.subr.mxu0 0.0
      %5315 = vmatpush1.msra.mxu0 0.0
      %5316 = vmatprep.subr.mxu0 0.0
      %5317 = vmatpush1.msra.mxu0 0.0
      %5318 = vmatprep.subr.mxu0 0.0
      %5319 = vmatpush1.msra.mxu0 0.0
      %5320 = vmatprep.subr.mxu0 0.0
      %5321 = vmatpush1.msra.mxu0 0.0
      %5322 = vmatprep.subr.mxu0 0.0
      %5323 = vmatpush1.msra.mxu0 0.0
      %5324 = vmatprep.subr.mxu0 0.0
      %5325 = vmatpush1.msra.mxu0 0.0
      %5326 = vmatprep.subr.mxu0 0.0
      %5327 = vmatpush1.msra.mxu0 0.0
      %5328 = vmatprep.subr.mxu0 0.0
      %5329 = vmatpush1.msra.mxu0 0.0
      %5330 = vmatprep.subr.mxu0 0.0
      %5331 = vmatpush1.msra.mxu0 0.0
      %5332 = vmatprep.subr.mxu0 0.0
      %5333 = vmatpush1.msra.mxu0 0.0
      %5334 = vmatprep.subr.mxu0 0.0
      %5335 = vmatpush1.msra.mxu0 0.0
      %5336 = vmatprep.subr.mxu0 0.0
      %5337 = vmatpush1.msra.mxu0 0.0
      %5338 = vmatprep.subr.mxu0 0.0
      %5339 = vmatpush1.msra.mxu0 0.0
      %5340 = vmatprep.subr.mxu0 0.0
      %5341 = vmatpush1.msra.mxu0 0.0
      %5342 = vmatprep.subr.mxu0 0.0
      %5343 = vmatpush1.msra.mxu0 0.0
      %5344 = vmatprep.subr.mxu0 0.0
      %5345 = vmatpush1.msra.mxu0 0.0
      %5346 = vmatprep.subr.mxu0 0.0
      %5347 = vmatpush1.msra.mxu0 0.0
      %5348 = vmatprep.subr.mxu0 0.0
      %5349 = vmatpush1.msra.mxu0 0.0
      %5350 = vmatprep.mubr.f32.mxu0 0.0
      %5351 = vmatmul.mubr.f32.gmra.mrb[0].mxu0 %v5281
      %v5352 = vpop.f32.mrb[0].mxu0
      %v5353 = vadd.f32 0.0, %v5352
      %v5354 = vpop.f32.mrb[0].mxu0
      %v5355 = vadd.f32 0.0, %v5354
      %5356 = vmatprep.mubr.f32.mxu0 0.0
      %5357 = vmatmul.mubr.f32.gmra.mrb[0].mxu0 %v5284
      %v5358 = vpop.f32.mrb[0].mxu0
      %v5359 = vadd.f32 0.0, %v5358
      %v5360 = vpop.f32.mrb[0].mxu0
      %v5361 = vadd.f32 0.0, %v5360
      %5362 = vdwg.mxu0
      %v5363 = vadd.f32 %v5253, %v5353
      %v5364 = vadd.f32 %v5255, %v5355
      %v5365 = vadd.f32 %v5259, %v5359
      %v5366 = vadd.f32 %v5261, %v5361
      %s5367 = scalar_lea.vmem %s57, 384
      %v5368 = vld [vmem:[%s5367] sm:$0xff]
      %v5369 = vld [vmem:[%s5367 + $0x8] sm:$0xff]
      %v5370 = vld [vmem:[%s5367 + $0x10] sm:$0xff]
      %v5371 = vld [vmem:[%s5367 + $0x18] sm:$0xff]
      %v5372 = vld [vmem:[%s5367 + $0x20] sm:$0xff]
      %v5373 = vld [vmem:[%s5367 + $0x28] sm:$0xff]
      %v5374 = vld [vmem:[%s5367 + $0x30] sm:$0xff]
      %v5375 = vld [vmem:[%s5367 + $0x38] sm:$0xff]
      %v5376 = vld [vmem:[%s5367 + $0x40] sm:$0xff]
      %v5377 = vld [vmem:[%s5367 + $0x48] sm:$0xff]
      %v5378 = vld [vmem:[%s5367 + $0x50] sm:$0xff]
      %v5379 = vld [vmem:[%s5367 + $0x58] sm:$0xff]
      %v5380 = vld [vmem:[%s5367 + $0x60] sm:$0xff]
      %v5381 = vld [vmem:[%s5367 + $0x68] sm:$0xff]
      %v5382 = vld [vmem:[%s5367 + $0x70] sm:$0xff]
      %v5383 = vld [vmem:[%s5367 + $0x78] sm:$0xff]
      %v5385 = vsel %vm2239, %v5058, 0
      %v5388 = vsel %vm2239, %v5061, 0
      %5390 = vmatprep.subr.mxu0 %v5369
      %5391 = vmatpush1.msra.mxu0 %v5368
      %5392 = vmatprep.subr.mxu0 %v5371
      %5393 = vmatpush1.msra.mxu0 %v5370
      %5394 = vmatprep.subr.mxu0 %v5373
      %5395 = vmatpush1.msra.mxu0 %v5372
      %5396 = vmatprep.subr.mxu0 %v5375
      %5397 = vmatpush1.msra.mxu0 %v5374
      %5398 = vmatprep.subr.mxu0 %v5377
      %5399 = vmatpush1.msra.mxu0 %v5376
      %5400 = vmatprep.subr.mxu0 %v5379
      %5401 = vmatpush1.msra.mxu0 %v5378
      %5402 = vmatprep.subr.mxu0 %v5381
      %5403 = vmatpush1.msra.mxu0 %v5380
      %5404 = vmatprep.subr.mxu0 %v5383
      %5405 = vmatpush1.msra.mxu0 %v5382
      %5406 = vmatprep.subr.mxu0 0.0
      %5407 = vmatpush1.msra.mxu0 0.0
      %5408 = vmatprep.subr.mxu0 0.0
      %5409 = vmatpush1.msra.mxu0 0.0
      %5410 = vmatprep.subr.mxu0 0.0
      %5411 = vmatpush1.msra.mxu0 0.0
      %5412 = vmatprep.subr.mxu0 0.0
      %5413 = vmatpush1.msra.mxu0 0.0
      %5414 = vmatprep.subr.mxu0 0.0
      %5415 = vmatpush1.msra.mxu0 0.0
      %5416 = vmatprep.subr.mxu0 0.0
      %5417 = vmatpush1.msra.mxu0 0.0
      %5418 = vmatprep.subr.mxu0 0.0
      %5419 = vmatpush1.msra.mxu0 0.0
      %5420 = vmatprep.subr.mxu0 0.0
      %5421 = vmatpush1.msra.mxu0 0.0
      %5422 = vmatprep.subr.mxu0 0.0
      %5423 = vmatpush1.msra.mxu0 0.0
      %5424 = vmatprep.subr.mxu0 0.0
      %5425 = vmatpush1.msra.mxu0 0.0
      %5426 = vmatprep.subr.mxu0 0.0
      %5427 = vmatpush1.msra.mxu0 0.0
      %5428 = vmatprep.subr.mxu0 0.0
      %5429 = vmatpush1.msra.mxu0 0.0
      %5430 = vmatprep.subr.mxu0 0.0
      %5431 = vmatpush1.msra.mxu0 0.0
      %5432 = vmatprep.subr.mxu0 0.0
      %5433 = vmatpush1.msra.mxu0 0.0
      %5434 = vmatprep.subr.mxu0 0.0
      %5435 = vmatpush1.msra.mxu0 0.0
      %5436 = vmatprep.subr.mxu0 0.0
      %5437 = vmatpush1.msra.mxu0 0.0
      %5438 = vmatprep.subr.mxu0 0.0
      %5439 = vmatpush1.msra.mxu0 0.0
      %5440 = vmatprep.subr.mxu0 0.0
      %5441 = vmatpush1.msra.mxu0 0.0
      %5442 = vmatprep.subr.mxu0 0.0
      %5443 = vmatpush1.msra.mxu0 0.0
      %5444 = vmatprep.subr.mxu0 0.0
      %5445 = vmatpush1.msra.mxu0 0.0
      %5446 = vmatprep.subr.mxu0 0.0
      %5447 = vmatpush1.msra.mxu0 0.0
      %5448 = vmatprep.subr.mxu0 0.0
      %5449 = vmatpush1.msra.mxu0 0.0
      %5450 = vmatprep.subr.mxu0 0.0
      %5451 = vmatpush1.msra.mxu0 0.0
      %5452 = vmatprep.subr.mxu0 0.0
      %5453 = vmatpush1.msra.mxu0 0.0
      %5454 = vmatprep.mubr.f32.mxu0 0.0
      %5455 = vmatmul.mubr.f32.gmra.mrb[0].mxu0 %v5385
      %v5456 = vpop.f32.mrb[0].mxu0
      %v5457 = vadd.f32 0.0, %v5456
      %v5458 = vpop.f32.mrb[0].mxu0
      %v5459 = vadd.f32 0.0, %v5458
      %5460 = vmatprep.mubr.f32.mxu0 0.0
      %5461 = vmatmul.mubr.f32.gmra.mrb[0].mxu0 %v5388
      %v5462 = vpop.f32.mrb[0].mxu0
      %v5463 = vadd.f32 0.0, %v5462
      %v5464 = vpop.f32.mrb[0].mxu0
      %v5465 = vadd.f32 0.0, %v5464
      %5466 = vdwg.mxu0
      %v5467 = vadd.f32 %v5363, %v5457
      %v5468 = vadd.f32 %v5364, %v5459
      %v5469 = vadd.f32 %v5365, %v5463
      %v5470 = vadd.f32 %v5366, %v5465
      %v5471 = vld [vmem:[%s59] sm:$0xff]
      %v5472 = vld [vmem:[%s59 + $0x8] sm:$0xff]
      %5474 = vset.pattern.permute.xlu0 0
      %5475 = vperm.xlu0 %5474, %v5471
      %v5476 = vpop.permute.xlu0 %5475
      %5479 = vset.pattern.permute.xlu0 0
      %5480 = vperm.xlu0 %5479, %v5472
      %v5481 = vpop.permute.xlu0 %5480
      %v5483 = vmul.f32 %v5467, %v5476
      %v5484 = vmul.f32 %v5468, %v5476
      %v5485 = vmul.f32 %v5469, %v5481
      %v5486 = vmul.f32 %v5470, %v5481
      %v5487 = vld [vmem:[%s61] sm:$0xff]
      %v5488 = vld [vmem:[%s61 + $0x8] sm:$0xff]
      %5490 = vset.pattern.permute.xlu0 0
      %5491 = vperm.xlu0 %5490, %v5487
      %v5492 = vpop.permute.xlu0 %5491
      %5495 = vset.pattern.permute.xlu0 0
      %5496 = vperm.xlu0 %5495, %v5488
      %v5497 = vpop.permute.xlu0 %5496
      %v5499 = vadd.f32 %v5483, %v5492
      %v5500 = vadd.f32 %v5484, %v5492
      %v5501 = vadd.f32 %v5485, %v5497
      %v5502 = vadd.f32 %v5486, %v5497
      %v5503 = vmax.f32 %v5499, 0.0
      %v5504 = vmax.f32 %v5500, 0.0
      %v5505 = vmax.f32 %v5501, 0.0
      %v5506 = vmax.f32 %v5502, 0.0
      %5507 = vst [vmem:[%s958] sm:$0xff] %v5503
      %5508 = vst [vmem:[%s958 + $0x8] sm:$0xff] %v5504
      %5509 = vst [vmem:[%s958 + $0x10] sm:$0xff] %v5505
      %5510 = vst [vmem:[%s958 + $0x18] sm:$0xff] %v5506
      %p5511 = scmp.lt.s32.totalorder %s74, 1
      %s5512 = scalar_select %p5511, %s74, 1
      %s5513 = smul.addr %s5512, 4
      %s5514 = smul.addr %s5513, 8
      %s5515 = scalar_lea.vmem %s63, %s5514
      // Predicated region
      $region145: #{_lambda_.1} parent=143 // pred_check
        %p5516 = pneg %p748
      $region146: #{_lambda_.1} parent=143 // pred_check_branch
        %5518 = sbr.rel (%p5516) target = $region148
      $region147: #{_lambda_.1} parent=143 // pred_region
        _
      $region148: #{_lambda_.1} parent=143 // pred_fallthru
        _
    $region144: #{_lambda_.1} parent=5 // pred_fallthru
      _
    %p5519 = scmp.le.s32.totalorder 2, %s69
    // Predicated region
    $region149: #{_lambda_.1} parent=5 // pred_check
      %p5520 = pneg %p5519
    $region150: #{_lambda_.1} parent=5 // pred_check_branch
      %5522 = sbr.rel (%p5520) target = $region152
    $region151: #{_lambda_.1} parent=5 // pred_region
      %s5523 = ssub.s32 %s69, 2
      // Predicated region
      $region153: #{_lambda_.1} parent=151 // pred_check
        %p5524 = pneg %p754
      $region154: #{_lambda_.1} parent=151 // pred_check_branch
        %5526 = sbr.rel (%p5524) target = $region156
      $region155: #{_lambda_.1} parent=151 // pred_region
        %p5527 = scmp.lt.s32.totalorder %s75, 1
        %s5528 = scalar_select %p5527, %s75, 1
        %s5529 = smul.addr %s5528, 4
        %s5530 = smul.addr %s5529, 8
        %s5531 = scalar_lea.vmem %s63, %s5530
      $region156: #{_lambda_.1} parent=151 // pred_fallthru
        _
    $region152: #{_lambda_.1} parent=5 // pred_fallthru
      _
  $region6: #{_lambda_.1} parent=0 // loop_footer
    %s73 = sadd.s32 1, %s69
  $region7: #{_lambda_.1} parent=0 // loop_footer_branch
    %68 = sbr.rel target = $region3
  $region8: #{_lambda_.1} parent=0 // loop_exit
    _

</llo_original>
